<compile_context>
chip_gen: v5e
topology: v5e:2x2
jax: 0.10.0
libtpu: 0.0.40
codegen_flags: <defaults>
</compile_context>

<pallas_src>
import jax
import jax.numpy as jnp
from jax.experimental import pallas as pl
from jax.experimental.pallas import tpu as pltpu

# Model geometry (fixed by the module: fc1 expects 25920 = 20 * 36 * 36 inputs,
# which forces 32x32x3 CIFAR-shaped images).
H_IN = W_IN = 32
C_IN = 3
C_OUT = 20
KH = KW = 3
PAD = 3
H_OUT = H_IN + 2 * PAD - KH + 1          # 36
W_OUT = W_IN + 2 * PAD - KW + 1          # 36
P = H_OUT * W_OUT                         # 1296 valid conv output positions
P_PAD = 1408                              # 11 * 128: lane-aligned per-image stride
K = C_IN * KH * KW                        # 27 conv contraction size
K_EXT = K + 1                             # +1 "ones" row carrying the conv bias
KP = 32                                   # contraction padded to a sublane multiple
FC_IN = C_OUT * P                         # 25920
FC_OUT = 10
FCB = FC_OUT * C_OUT                      # 200: columns of the regrouped fc weight


def _fused_kernel(p_ref, wc_ref, wf_ref, mask_ref, sel_ref, bf_ref, o_ref):
    """One block of images: conv3x3(+bias) + ReLU + fc, all in VMEM.

    p_ref:    (B_BLK, KP, P_PAD)   bf16  im2col patches (+ ones row for the bias)
    wc_ref:   (C_OUT, KP)          bf16  conv weight, col 27 = conv bias
    wf_ref:   (P_PAD, FCB)         bf16  fc weight, [p, f*C_OUT + c] = W[f, c, p]
    mask_ref: (C_OUT, FCB)         f32   channel-diagonal mask: [c, f*C_OUT+c'] = (c==c')
    sel_ref:  (FCB, FC_OUT)        f32   group-sum selection: [f*C_OUT+c', f'] = (f==f')
    bf_ref:   (1, FC_OUT)          f32   fc bias
    o_ref:    (B_BLK, FC_OUT)      f32   logits
    """
    b_blk = p_ref.shape[0]
    wc = wc_ref[...]
    wf = wf_ref[...]
    mask = mask_ref[...]
    sel = sel_ref[...]
    bf = bf_ref[...]

    for b in range(b_blk):
        pat = p_ref[b]                                                 # (KP, P_PAD)
        # Conv + bias fused in one lane-dense MXU matmul (bias via the ones row).
        conv = jnp.dot(wc, pat, preferred_element_type=jnp.float32)   # (C_OUT, P_PAD)
        act = jnp.maximum(conv, 0.0).astype(jnp.bfloat16)             # ReLU, bf16
        # Full fc against the regrouped weight; the channel diagonal of the
        # (C_OUT, FC_OUT*C_OUT) result is exactly the per-channel fc contribution.
        res = jnp.dot(act, wf, preferred_element_type=jnp.float32)    # (C_OUT, FCB)
        part = jnp.sum(res * mask, axis=0, keepdims=True)             # (1, FCB)
        logit = jnp.dot(part, sel, preferred_element_type=jnp.float32) + bf
        o_ref[pl.ds(b, 1), :] = logit                                  # (1, FC_OUT)


def _im2col(x):
    """x: (N, C_IN, 32, 32) -> (N, K, P) bf16; row index = ci*9 + kh*3 + kw."""
    n = x.shape[0]
    xp = jnp.pad(x.astype(jnp.bfloat16),
                 ((0, 0), (0, 0), (PAD, PAD), (PAD, PAD)))
    cols = []
    for kh in range(KH):
        for kw in range(KW):
            cols.append(xp[:, :, kh:kh + H_OUT, kw:kw + W_OUT])
    pat = jnp.stack(cols, axis=2)            # (N, C_IN, 9, 36, 36)
    return pat.reshape(n, K, P)


def cifar_cnn_forward(x, w_conv, b_conv, w_fc, b_fc):
    """x: (N, 3, 32, 32) float32 -> logits (N, 10) float32."""
    n = x.shape[0]
    # Big blocks amortize per-step overhead; keep >=2 grid steps on real batches
    # so both v7x TensorCores get work under dimension_semantics=("parallel",).
    b_blk = 32 if n >= 64 else 8
    n_pad = ((n + b_blk - 1) // b_blk) * b_blk

    # Glue: im2col (bf16), plus a ones row (conv bias), K padded 28->32,
    # P padded 1296->1408 (zeros), batch padded to a multiple of b_blk.
    patches = _im2col(x)                                             # (n, 27, 1296)
    ones = jnp.ones((n, 1, P), jnp.bfloat16)
    patches = jnp.concatenate([patches, ones], axis=1)               # (n, 28, 1296)
    patches = jnp.pad(
        patches, ((0, n_pad - n), (0, KP - K_EXT), (0, P_PAD - P)))  # (n_pad, 32, 1408)

    # Conv weight with the bias as column 27, zero-padded to KP.
    wc = jnp.concatenate(
        [w_conv.reshape(C_OUT, K), b_conv.reshape(C_OUT, 1)], axis=1)
    wc = jnp.pad(wc, ((0, 0), (0, KP - K_EXT))).astype(jnp.bfloat16)  # (20, 32)

    # fc weight regrouped to [p, f*C_OUT + c]; zero in the padded p columns so the
    # (ReLU'd) padding positions cannot contribute to the logits.
    wf = w_fc.reshape(FC_OUT, C_OUT, P)
    wf = jnp.pad(wf, ((0, 0), (0, 0), (0, P_PAD - P)))
    wf_big = wf.transpose(2, 0, 1).reshape(P_PAD, FCB).astype(jnp.bfloat16)

    mask = jnp.tile(jnp.eye(C_OUT, dtype=jnp.float32), (1, FC_OUT))      # (20, 200)
    sel = jnp.repeat(jnp.eye(FC_OUT, dtype=jnp.float32), C_OUT, axis=0)  # (200, 10)
    bf = b_fc.reshape(1, FC_OUT).astype(jnp.float32)

    resident = dict(pipeline_mode=pl.Buffered(1))   # constant index -> single buffer
    out = pl.pallas_call(
        _fused_kernel,
        out_shape=jax.ShapeDtypeStruct((n_pad, FC_OUT), jnp.float32),
        grid=(n_pad // b_blk,),
        in_specs=[
            pl.BlockSpec((b_blk, KP, P_PAD), lambda i: (i, 0, 0)),       # patches
            pl.BlockSpec((C_OUT, KP), lambda i: (0, 0), **resident),     # conv w (+bias)
            pl.BlockSpec((P_PAD, FCB), lambda i: (0, 0), **resident),    # fc weight
            pl.BlockSpec((C_OUT, FCB), lambda i: (0, 0), **resident),    # diag mask
            pl.BlockSpec((FCB, FC_OUT), lambda i: (0, 0), **resident),   # group-sum sel
            pl.BlockSpec((1, FC_OUT), lambda i: (0, 0), **resident),     # fc bias
        ],
        out_specs=pl.BlockSpec((b_blk, FC_OUT), lambda i: (i, 0)),
        compiler_params=pltpu.CompilerParams(
            dimension_semantics=("parallel",)),
    )(patches, wc, wf_big, mask, sel, bf)

    return out[:n]


def _reference_forward(x, w_conv, b_conv, w_fc, b_fc):
    conv = jax.lax.conv_general_dilated(
        x, w_conv, window_strides=(1, 1), padding=((PAD, PAD), (PAD, PAD)),
        dimension_numbers=("NCHW", "OIHW", "NCHW"))
    conv = jnp.maximum(conv + b_conv[None, :, None, None], 0.0)
    flat = conv.reshape(x.shape[0], -1)
    return flat @ w_fc.T + b_fc


if __name__ == "__main__":
    key = jax.random.PRNGKey(0)
    kx, kw1, kb1, kw2, kb2 = jax.random.split(key, 5)

    batch = 2
    x = jax.random.normal(kx, (batch, C_IN, H_IN, W_IN), dtype=jnp.float32)

    # Deterministic synthetic parameters (shapes from the module __init__).
    w_conv = 0.05 * jax.random.normal(kw1, (C_OUT, C_IN, KH, KW), dtype=jnp.float32)
    b_conv = 0.05 * jax.random.normal(kb1, (C_OUT,), dtype=jnp.float32)
    w_fc = 0.01 * jax.random.normal(kw2, (FC_OUT, FC_IN), dtype=jnp.float32)
    b_fc = 0.01 * jax.random.normal(kb2, (FC_OUT,), dtype=jnp.float32)

    out = jax.jit(cifar_cnn_forward)(x, w_conv, b_conv, w_fc, b_fc)
    out = jax.block_until_ready(out)
    assert out.shape == (batch, FC_OUT) and out.dtype == jnp.float32

    ref = _reference_forward(x, w_conv, b_conv, w_fc, b_fc)
    # bf16 streamed operands / bf16 activation with f32 accumulation.
    assert jnp.allclose(out, ref, rtol=1e-2, atol=2e-2), (out, ref)

    print("KERNEL_OK")
</pallas_src>

<mosaic_0001>
module attributes {stable_mosaic.version = 11 : i64} {
  func.func @_fused_kernel(%arg0: i32, %arg1: memref<8x32x1408xbf16, #tpu.memory_space<vmem>>, %arg2: memref<20x32xbf16, #tpu.memory_space<vmem>>, %arg3: memref<1408x200xbf16, #tpu.memory_space<vmem>>, %arg4: memref<20x200xf32, #tpu.memory_space<vmem>>, %arg5: memref<200x10xf32, #tpu.memory_space<vmem>>, %arg6: memref<1x10xf32, #tpu.memory_space<vmem>>, %arg7: memref<8x10xf32, #tpu.memory_space<vmem>>) attributes {dimension_semantics = [#tpu.dimension_semantics<parallel>], iteration_bounds = array<i64: 1>, scalar_prefetch = 0 : i64, scratch_operands = 0 : i64, tpu.core_type = #tpu.core_type<tc>, window_params = [{transform_indices = @transform_0, window_bounds = array<i64: 8, 32, 1408>}, {pipeline_mode = #tpu.pipeline_mode<synchronous>, transform_indices = @transform_1, window_bounds = array<i64: 20, 32>}, {pipeline_mode = #tpu.pipeline_mode<synchronous>, transform_indices = @transform_2, window_bounds = array<i64: 1408, 200>}, {pipeline_mode = #tpu.pipeline_mode<synchronous>, transform_indices = @transform_3, window_bounds = array<i64: 20, 200>}, {pipeline_mode = #tpu.pipeline_mode<synchronous>, transform_indices = @transform_4, window_bounds = array<i64: 200, 10>}, {pipeline_mode = #tpu.pipeline_mode<synchronous>, transform_indices = @transform_5, window_bounds = array<i64: 1, 10>}, {transform_indices = @transform_6, window_bounds = array<i64: 8, 10>}]} {
    %c0 = arith.constant 0 : index
    %c0_0 = arith.constant 0 : index
    %0 = vector.load %arg2[%c0, %c0_0] : memref<20x32xbf16, #tpu.memory_space<vmem>>, vector<20x32xbf16>
    %c0_1 = arith.constant 0 : index
    %c0_2 = arith.constant 0 : index
    %1 = vector.load %arg3[%c0_1, %c0_2] : memref<1408x200xbf16, #tpu.memory_space<vmem>>, vector<1408x200xbf16>
    %c0_3 = arith.constant 0 : index
    %c0_4 = arith.constant 0 : index
    %2 = vector.load %arg4[%c0_3, %c0_4] : memref<20x200xf32, #tpu.memory_space<vmem>>, vector<20x200xf32>
    %c0_5 = arith.constant 0 : index
    %c0_6 = arith.constant 0 : index
    %3 = vector.load %arg5[%c0_5, %c0_6] : memref<200x10xf32, #tpu.memory_space<vmem>>, vector<200x10xf32>
    %c0_7 = arith.constant 0 : index
    %c0_8 = arith.constant 0 : index
    %4 = vector.load %arg6[%c0_7, %c0_8] : memref<1x10xf32, #tpu.memory_space<vmem>>, vector<1x10xf32>
    %c0_9 = arith.constant 0 : index
    %c0_10 = arith.constant 0 : index
    %c0_11 = arith.constant 0 : index
    %5 = vector.load %arg1[%c0_9, %c0_10, %c0_11] : memref<8x32x1408xbf16, #tpu.memory_space<vmem>>, vector<1x32x1408xbf16>
    %6 = vector.shape_cast %5 : vector<1x32x1408xbf16> to vector<32x1408xbf16>
    %cst = arith.constant dense<0.000000e+00> : vector<20x1408xf32>
    %7 = tpu.matmul %0, %6, %cst {dimension_numbers = #tpu.dot_dimension_numbers<[1], [0], [0], [1], [0, 0, 1, 1], [], []>} : vector<20x32xbf16>, vector<32x1408xbf16>, vector<20x1408xf32> -> vector<20x1408xf32>
    %cst_12 = arith.constant 0.000000e+00 : f32
    %8 = vector.broadcast %cst_12 : f32 to vector<20x1408xf32>
    %9 = arith.maximumf %7, %8 : vector<20x1408xf32>
    %10 = arith.truncf %9 : vector<20x1408xf32> to vector<20x1408xbf16>
    %cst_13 = arith.constant dense<0.000000e+00> : vector<20x200xf32>
    %11 = tpu.matmul %10, %1, %cst_13 {dimension_numbers = #tpu.dot_dimension_numbers<[1], [0], [0], [1], [0, 0, 1, 1], [], []>} : vector<20x1408xbf16>, vector<1408x200xbf16>, vector<20x200xf32> -> vector<20x200xf32>
    %12 = arith.mulf %11, %2 : vector<20x200xf32>
    %cst_14 = arith.constant dense<0.000000e+00> : vector<200xf32>
    %13 = vector.multi_reduction <add>, %12, %cst_14 [0] : vector<20x200xf32> to vector<200xf32>
    %14 = vector.shape_cast %13 : vector<200xf32> to vector<1x200xf32>
    %cst_15 = arith.constant dense<0.000000e+00> : vector<1x10xf32>
    %15 = tpu.matmul %14, %3, %cst_15 {dimension_numbers = #tpu.dot_dimension_numbers<[1], [0], [0], [1], [0, 0, 1, 1], [], []>} : vector<1x200xf32>, vector<200x10xf32>, vector<1x10xf32> -> vector<1x10xf32>
    %16 = arith.addf %15, %4 : vector<1x10xf32>
    %c0_16 = arith.constant 0 : index
    %c0_17 = arith.constant 0 : index
    %17 = vector.load %arg7[%c0_16, %c0_17] : memref<8x10xf32, #tpu.memory_space<vmem>>, vector<1x10xf32>
    tpu.vector_store %arg7[%c0_16, %c0_17], %16 {strides = array<i32>} : memref<8x10xf32, #tpu.memory_space<vmem>>, vector<1x10xf32>,
    %c1 = arith.constant 1 : index
    %c0_18 = arith.constant 0 : index
    %c0_19 = arith.constant 0 : index
    %18 = vector.load %arg1[%c1, %c0_18, %c0_19] : memref<8x32x1408xbf16, #tpu.memory_space<vmem>>, vector<1x32x1408xbf16>
    %19 = vector.shape_cast %18 : vector<1x32x1408xbf16> to vector<32x1408xbf16>
    %cst_20 = arith.constant dense<0.000000e+00> : vector<20x1408xf32>
    %20 = tpu.matmul %0, %19, %cst_20 {dimension_numbers = #tpu.dot_dimension_numbers<[1], [0], [0], [1], [0, 0, 1, 1], [], []>} : vector<20x32xbf16>, vector<32x1408xbf16>, vector<20x1408xf32> -> vector<20x1408xf32>
    %cst_21 = arith.constant 0.000000e+00 : f32
    %21 = vector.broadcast %cst_21 : f32 to vector<20x1408xf32>
    %22 = arith.maximumf %20, %21 : vector<20x1408xf32>
    %23 = arith.truncf %22 : vector<20x1408xf32> to vector<20x1408xbf16>
    %cst_22 = arith.constant dense<0.000000e+00> : vector<20x200xf32>
    %24 = tpu.matmul %23, %1, %cst_22 {dimension_numbers = #tpu.dot_dimension_numbers<[1], [0], [0], [1], [0, 0, 1, 1], [], []>} : vector<20x1408xbf16>, vector<1408x200xbf16>, vector<20x200xf32> -> vector<20x200xf32>
    %25 = arith.mulf %24, %2 : vector<20x200xf32>
    %cst_23 = arith.constant dense<0.000000e+00> : vector<200xf32>
    %26 = vector.multi_reduction <add>, %25, %cst_23 [0] : vector<20x200xf32> to vector<200xf32>
    %27 = vector.shape_cast %26 : vector<200xf32> to vector<1x200xf32>
    %cst_24 = arith.constant dense<0.000000e+00> : vector<1x10xf32>
    %28 = tpu.matmul %27, %3, %cst_24 {dimension_numbers = #tpu.dot_dimension_numbers<[1], [0], [0], [1], [0, 0, 1, 1], [], []>} : vector<1x200xf32>, vector<200x10xf32>, vector<1x10xf32> -> vector<1x10xf32>
    %29 = arith.addf %28, %4 : vector<1x10xf32>
    %c1_25 = arith.constant 1 : index
    %c0_26 = arith.constant 0 : index
    %30 = vector.load %arg7[%c1_25, %c0_26] : memref<8x10xf32, #tpu.memory_space<vmem>>, vector<1x10xf32>
    tpu.vector_store %arg7[%c1_25, %c0_26], %29 {strides = array<i32>} : memref<8x10xf32, #tpu.memory_space<vmem>>, vector<1x10xf32>,
    %c2 = arith.constant 2 : index
    %c0_27 = arith.constant 0 : index
    %c0_28 = arith.constant 0 : index
    %31 = vector.load %arg1[%c2, %c0_27, %c0_28] : memref<8x32x1408xbf16, #tpu.memory_space<vmem>>, vector<1x32x1408xbf16>
    %32 = vector.shape_cast %31 : vector<1x32x1408xbf16> to vector<32x1408xbf16>
    %cst_29 = arith.constant dense<0.000000e+00> : vector<20x1408xf32>
    %33 = tpu.matmul %0, %32, %cst_29 {dimension_numbers = #tpu.dot_dimension_numbers<[1], [0], [0], [1], [0, 0, 1, 1], [], []>} : vector<20x32xbf16>, vector<32x1408xbf16>, vector<20x1408xf32> -> vector<20x1408xf32>
    %cst_30 = arith.constant 0.000000e+00 : f32
    %34 = vector.broadcast %cst_30 : f32 to vector<20x1408xf32>
    %35 = arith.maximumf %33, %34 : vector<20x1408xf32>
    %36 = arith.truncf %35 : vector<20x1408xf32> to vector<20x1408xbf16>
    %cst_31 = arith.constant dense<0.000000e+00> : vector<20x200xf32>
    %37 = tpu.matmul %36, %1, %cst_31 {dimension_numbers = #tpu.dot_dimension_numbers<[1], [0], [0], [1], [0, 0, 1, 1], [], []>} : vector<20x1408xbf16>, vector<1408x200xbf16>, vector<20x200xf32> -> vector<20x200xf32>
    %38 = arith.mulf %37, %2 : vector<20x200xf32>
    %cst_32 = arith.constant dense<0.000000e+00> : vector<200xf32>
    %39 = vector.multi_reduction <add>, %38, %cst_32 [0] : vector<20x200xf32> to vector<200xf32>
    %40 = vector.shape_cast %39 : vector<200xf32> to vector<1x200xf32>
    %cst_33 = arith.constant dense<0.000000e+00> : vector<1x10xf32>
    %41 = tpu.matmul %40, %3, %cst_33 {dimension_numbers = #tpu.dot_dimension_numbers<[1], [0], [0], [1], [0, 0, 1, 1], [], []>} : vector<1x200xf32>, vector<200x10xf32>, vector<1x10xf32> -> vector<1x10xf32>
    %42 = arith.addf %41, %4 : vector<1x10xf32>
    %c2_34 = arith.constant 2 : index
    %c0_35 = arith.constant 0 : index
    %43 = vector.load %arg7[%c2_34, %c0_35] : memref<8x10xf32, #tpu.memory_space<vmem>>, vector<1x10xf32>
    tpu.vector_store %arg7[%c2_34, %c0_35], %42 {strides = array<i32>} : memref<8x10xf32, #tpu.memory_space<vmem>>, vector<1x10xf32>,
    %c3 = arith.constant 3 : index
    %c0_36 = arith.constant 0 : index
    %c0_37 = arith.constant 0 : index
    %44 = vector.load %arg1[%c3, %c0_36, %c0_37] : memref<8x32x1408xbf16, #tpu.memory_space<vmem>>, vector<1x32x1408xbf16>
    %45 = vector.shape_cast %44 : vector<1x32x1408xbf16> to vector<32x1408xbf16>
    %cst_38 = arith.constant dense<0.000000e+00> : vector<20x1408xf32>
    %46 = tpu.matmul %0, %45, %cst_38 {dimension_numbers = #tpu.dot_dimension_numbers<[1], [0], [0], [1], [0, 0, 1, 1], [], []>} : vector<20x32xbf16>, vector<32x1408xbf16>, vector<20x1408xf32> -> vector<20x1408xf32>
    %cst_39 = arith.constant 0.000000e+00 : f32
    %47 = vector.broadcast %cst_39 : f32 to vector<20x1408xf32>
    %48 = arith.maximumf %46, %47 : vector<20x1408xf32>
    %49 = arith.truncf %48 : vector<20x1408xf32> to vector<20x1408xbf16>
    %cst_40 = arith.constant dense<0.000000e+00> : vector<20x200xf32>
    %50 = tpu.matmul %49, %1, %cst_40 {dimension_numbers = #tpu.dot_dimension_numbers<[1], [0], [0], [1], [0, 0, 1, 1], [], []>} : vector<20x1408xbf16>, vector<1408x200xbf16>, vector<20x200xf32> -> vector<20x200xf32>
    %51 = arith.mulf %50, %2 : vector<20x200xf32>
    %cst_41 = arith.constant dense<0.000000e+00> : vector<200xf32>
    %52 = vector.multi_reduction <add>, %51, %cst_41 [0] : vector<20x200xf32> to vector<200xf32>
    %53 = vector.shape_cast %52 : vector<200xf32> to vector<1x200xf32>
    %cst_42 = arith.constant dense<0.000000e+00> : vector<1x10xf32>
    %54 = tpu.matmul %53, %3, %cst_42 {dimension_numbers = #tpu.dot_dimension_numbers<[1], [0], [0], [1], [0, 0, 1, 1], [], []>} : vector<1x200xf32>, vector<200x10xf32>, vector<1x10xf32> -> vector<1x10xf32>
    %55 = arith.addf %54, %4 : vector<1x10xf32>
    %c3_43 = arith.constant 3 : index
    %c0_44 = arith.constant 0 : index
    %56 = vector.load %arg7[%c3_43, %c0_44] : memref<8x10xf32, #tpu.memory_space<vmem>>, vector<1x10xf32>
    tpu.vector_store %arg7[%c3_43, %c0_44], %55 {strides = array<i32>} : memref<8x10xf32, #tpu.memory_space<vmem>>, vector<1x10xf32>,
    %c4 = arith.constant 4 : index
    %c0_45 = arith.constant 0 : index
    %c0_46 = arith.constant 0 : index
    %57 = vector.load %arg1[%c4, %c0_45, %c0_46] : memref<8x32x1408xbf16, #tpu.memory_space<vmem>>, vector<1x32x1408xbf16>
    %58 = vector.shape_cast %57 : vector<1x32x1408xbf16> to vector<32x1408xbf16>
    %cst_47 = arith.constant dense<0.000000e+00> : vector<20x1408xf32>
    %59 = tpu.matmul %0, %58, %cst_47 {dimension_numbers = #tpu.dot_dimension_numbers<[1], [0], [0], [1], [0, 0, 1, 1], [], []>} : vector<20x32xbf16>, vector<32x1408xbf16>, vector<20x1408xf32> -> vector<20x1408xf32>
    %cst_48 = arith.constant 0.000000e+00 : f32
    %60 = vector.broadcast %cst_48 : f32 to vector<20x1408xf32>
    %61 = arith.maximumf %59, %60 : vector<20x1408xf32>
    %62 = arith.truncf %61 : vector<20x1408xf32> to vector<20x1408xbf16>
    %cst_49 = arith.constant dense<0.000000e+00> : vector<20x200xf32>
    %63 = tpu.matmul %62, %1, %cst_49 {dimension_numbers = #tpu.dot_dimension_numbers<[1], [0], [0], [1], [0, 0, 1, 1], [], []>} : vector<20x1408xbf16>, vector<1408x200xbf16>, vector<20x200xf32> -> vector<20x200xf32>
    %64 = arith.mulf %63, %2 : vector<20x200xf32>
    %cst_50 = arith.constant dense<0.000000e+00> : vector<200xf32>
    %65 = vector.multi_reduction <add>, %64, %cst_50 [0] : vector<20x200xf32> to vector<200xf32>
    %66 = vector.shape_cast %65 : vector<200xf32> to vector<1x200xf32>
    %cst_51 = arith.constant dense<0.000000e+00> : vector<1x10xf32>
    %67 = tpu.matmul %66, %3, %cst_51 {dimension_numbers = #tpu.dot_dimension_numbers<[1], [0], [0], [1], [0, 0, 1, 1], [], []>} : vector<1x200xf32>, vector<200x10xf32>, vector<1x10xf32> -> vector<1x10xf32>
    %68 = arith.addf %67, %4 : vector<1x10xf32>
    %c4_52 = arith.constant 4 : index
    %c0_53 = arith.constant 0 : index
    %69 = vector.load %arg7[%c4_52, %c0_53] : memref<8x10xf32, #tpu.memory_space<vmem>>, vector<1x10xf32>
    tpu.vector_store %arg7[%c4_52, %c0_53], %68 {strides = array<i32>} : memref<8x10xf32, #tpu.memory_space<vmem>>, vector<1x10xf32>,
    %c5 = arith.constant 5 : index
    %c0_54 = arith.constant 0 : index
    %c0_55 = arith.constant 0 : index
    %70 = vector.load %arg1[%c5, %c0_54, %c0_55] : memref<8x32x1408xbf16, #tpu.memory_space<vmem>>, vector<1x32x1408xbf16>
    %71 = vector.shape_cast %70 : vector<1x32x1408xbf16> to vector<32x1408xbf16>
    %cst_56 = arith.constant dense<0.000000e+00> : vector<20x1408xf32>
    %72 = tpu.matmul %0, %71, %cst_56 {dimension_numbers = #tpu.dot_dimension_numbers<[1], [0], [0], [1], [0, 0, 1, 1], [], []>} : vector<20x32xbf16>, vector<32x1408xbf16>, vector<20x1408xf32> -> vector<20x1408xf32>
    %cst_57 = arith.constant 0.000000e+00 : f32
    %73 = vector.broadcast %cst_57 : f32 to vector<20x1408xf32>
    %74 = arith.maximumf %72, %73 : vector<20x1408xf32>
    %75 = arith.truncf %74 : vector<20x1408xf32> to vector<20x1408xbf16>
    %cst_58 = arith.constant dense<0.000000e+00> : vector<20x200xf32>
    %76 = tpu.matmul %75, %1, %cst_58 {dimension_numbers = #tpu.dot_dimension_numbers<[1], [0], [0], [1], [0, 0, 1, 1], [], []>} : vector<20x1408xbf16>, vector<1408x200xbf16>, vector<20x200xf32> -> vector<20x200xf32>
    %77 = arith.mulf %76, %2 : vector<20x200xf32>
    %cst_59 = arith.constant dense<0.000000e+00> : vector<200xf32>
    %78 = vector.multi_reduction <add>, %77, %cst_59 [0] : vector<20x200xf32> to vector<200xf32>
    %79 = vector.shape_cast %78 : vector<200xf32> to vector<1x200xf32>
    %cst_60 = arith.constant dense<0.000000e+00> : vector<1x10xf32>
    %80 = tpu.matmul %79, %3, %cst_60 {dimension_numbers = #tpu.dot_dimension_numbers<[1], [0], [0], [1], [0, 0, 1, 1], [], []>} : vector<1x200xf32>, vector<200x10xf32>, vector<1x10xf32> -> vector<1x10xf32>
    %81 = arith.addf %80, %4 : vector<1x10xf32>
    %c5_61 = arith.constant 5 : index
    %c0_62 = arith.constant 0 : index
    %82 = vector.load %arg7[%c5_61, %c0_62] : memref<8x10xf32, #tpu.memory_space<vmem>>, vector<1x10xf32>
    tpu.vector_store %arg7[%c5_61, %c0_62], %81 {strides = array<i32>} : memref<8x10xf32, #tpu.memory_space<vmem>>, vector<1x10xf32>,
    %c6 = arith.constant 6 : index
    %c0_63 = arith.constant 0 : index
    %c0_64 = arith.constant 0 : index
    %83 = vector.load %arg1[%c6, %c0_63, %c0_64] : memref<8x32x1408xbf16, #tpu.memory_space<vmem>>, vector<1x32x1408xbf16>
    %84 = vector.shape_cast %83 : vector<1x32x1408xbf16> to vector<32x1408xbf16>
    %cst_65 = arith.constant dense<0.000000e+00> : vector<20x1408xf32>
    %85 = tpu.matmul %0, %84, %cst_65 {dimension_numbers = #tpu.dot_dimension_numbers<[1], [0], [0], [1], [0, 0, 1, 1], [], []>} : vector<20x32xbf16>, vector<32x1408xbf16>, vector<20x1408xf32> -> vector<20x1408xf32>
    %cst_66 = arith.constant 0.000000e+00 : f32
    %86 = vector.broadcast %cst_66 : f32 to vector<20x1408xf32>
    %87 = arith.maximumf %85, %86 : vector<20x1408xf32>
    %88 = arith.truncf %87 : vector<20x1408xf32> to vector<20x1408xbf16>
    %cst_67 = arith.constant dense<0.000000e+00> : vector<20x200xf32>
    %89 = tpu.matmul %88, %1, %cst_67 {dimension_numbers = #tpu.dot_dimension_numbers<[1], [0], [0], [1], [0, 0, 1, 1], [], []>} : vector<20x1408xbf16>, vector<1408x200xbf16>, vector<20x200xf32> -> vector<20x200xf32>
    %90 = arith.mulf %89, %2 : vector<20x200xf32>
    %cst_68 = arith.constant dense<0.000000e+00> : vector<200xf32>
    %91 = vector.multi_reduction <add>, %90, %cst_68 [0] : vector<20x200xf32> to vector<200xf32>
    %92 = vector.shape_cast %91 : vector<200xf32> to vector<1x200xf32>
    %cst_69 = arith.constant dense<0.000000e+00> : vector<1x10xf32>
    %93 = tpu.matmul %92, %3, %cst_69 {dimension_numbers = #tpu.dot_dimension_numbers<[1], [0], [0], [1], [0, 0, 1, 1], [], []>} : vector<1x200xf32>, vector<200x10xf32>, vector<1x10xf32> -> vector<1x10xf32>
    %94 = arith.addf %93, %4 : vector<1x10xf32>
    %c6_70 = arith.constant 6 : index
    %c0_71 = arith.constant 0 : index
    %95 = vector.load %arg7[%c6_70, %c0_71] : memref<8x10xf32, #tpu.memory_space<vmem>>, vector<1x10xf32>
    tpu.vector_store %arg7[%c6_70, %c0_71], %94 {strides = array<i32>} : memref<8x10xf32, #tpu.memory_space<vmem>>, vector<1x10xf32>,
    %c7 = arith.constant 7 : index
    %c0_72 = arith.constant 0 : index
    %c0_73 = arith.constant 0 : index
    %96 = vector.load %arg1[%c7, %c0_72, %c0_73] : memref<8x32x1408xbf16, #tpu.memory_space<vmem>>, vector<1x32x1408xbf16>
    %97 = vector.shape_cast %96 : vector<1x32x1408xbf16> to vector<32x1408xbf16>
    %cst_74 = arith.constant dense<0.000000e+00> : vector<20x1408xf32>
    %98 = tpu.matmul %0, %97, %cst_74 {dimension_numbers = #tpu.dot_dimension_numbers<[1], [0], [0], [1], [0, 0, 1, 1], [], []>} : vector<20x32xbf16>, vector<32x1408xbf16>, vector<20x1408xf32> -> vector<20x1408xf32>
    %cst_75 = arith.constant 0.000000e+00 : f32
    %99 = vector.broadcast %cst_75 : f32 to vector<20x1408xf32>
    %100 = arith.maximumf %98, %99 : vector<20x1408xf32>
    %101 = arith.truncf %100 : vector<20x1408xf32> to vector<20x1408xbf16>
    %cst_76 = arith.constant dense<0.000000e+00> : vector<20x200xf32>
    %102 = tpu.matmul %101, %1, %cst_76 {dimension_numbers = #tpu.dot_dimension_numbers<[1], [0], [0], [1], [0, 0, 1, 1], [], []>} : vector<20x1408xbf16>, vector<1408x200xbf16>, vector<20x200xf32> -> vector<20x200xf32>
    %103 = arith.mulf %102, %2 : vector<20x200xf32>
    %cst_77 = arith.constant dense<0.000000e+00> : vector<200xf32>
    %104 = vector.multi_reduction <add>, %103, %cst_77 [0] : vector<20x200xf32> to vector<200xf32>
    %105 = vector.shape_cast %104 : vector<200xf32> to vector<1x200xf32>
    %cst_78 = arith.constant dense<0.000000e+00> : vector<1x10xf32>
    %106 = tpu.matmul %105, %3, %cst_78 {dimension_numbers = #tpu.dot_dimension_numbers<[1], [0], [0], [1], [0, 0, 1, 1], [], []>} : vector<1x200xf32>, vector<200x10xf32>, vector<1x10xf32> -> vector<1x10xf32>
    %107 = arith.addf %106, %4 : vector<1x10xf32>
    %c7_79 = arith.constant 7 : index
    %c0_80 = arith.constant 0 : index
    %108 = vector.load %arg7[%c7_79, %c0_80] : memref<8x10xf32, #tpu.memory_space<vmem>>, vector<1x10xf32>
    tpu.vector_store %arg7[%c7_79, %c0_80], %107 {strides = array<i32>} : memref<8x10xf32, #tpu.memory_space<vmem>>, vector<1x10xf32>,
    return
  }
  func.func @transform_0(%arg0: i32) -> (i32, i32, i32) {
    %c0_i32 = arith.constant 0 : i32
    %c0_i32_0 = arith.constant 0 : i32
    %c0_i32_1 = arith.constant 0 : i32
    return %arg0, %c0_i32, %c0_i32_0 : i32, i32, i32
  }
  func.func @transform_1(%arg0: i32) -> (i32, i32) {
    %c0_i32 = arith.constant 0 : i32
    %c0_i32_0 = arith.constant 0 : i32
    %c0_i32_1 = arith.constant 0 : i32
    return %c0_i32, %c0_i32_0 : i32, i32
  }
  func.func @transform_2(%arg0: i32) -> (i32, i32) {
    %c0_i32 = arith.constant 0 : i32
    %c0_i32_0 = arith.constant 0 : i32
    %c0_i32_1 = arith.constant 0 : i32
    return %c0_i32, %c0_i32_0 : i32, i32
  }
  func.func @transform_3(%arg0: i32) -> (i32, i32) {
    %c0_i32 = arith.constant 0 : i32
    %c0_i32_0 = arith.constant 0 : i32
    %c0_i32_1 = arith.constant 0 : i32
    return %c0_i32, %c0_i32_0 : i32, i32
  }
  func.func @transform_4(%arg0: i32) -> (i32, i32) {
    %c0_i32 = arith.constant 0 : i32
    %c0_i32_0 = arith.constant 0 : i32
    %c0_i32_1 = arith.constant 0 : i32
    return %c0_i32, %c0_i32_0 : i32, i32
  }
  func.func @transform_5(%arg0: i32) -> (i32, i32) {
    %c0_i32 = arith.constant 0 : i32
    %c0_i32_0 = arith.constant 0 : i32
    %c0_i32_1 = arith.constant 0 : i32
    return %c0_i32, %c0_i32_0 : i32, i32
  }
  func.func @transform_6(%arg0: i32) -> (i32, i32) {
    %c0_i32 = arith.constant 0 : i32
    %c0_i32_0 = arith.constant 0 : i32
    return %arg0, %c0_i32 : i32, i32
  }
}

</mosaic_0001>

<llo_original>
// kernel: tile.9
$region0: #{tile.9}
  %s0 = inlined_call_operand.vmem [shape: f32[20,10,20], index: 0, kind: input, shape index: {}]
  %s1 = inlined_call_operand.vmem [shape: f32[20,200], index: 1, kind: output, shape index: {}]
  %s2 = smov 3
  %v3 = vld [vmem:[%s0] ss:$16 sm:%s2]
  %s4 = smov 12
  %v5 = vld [vmem:[%s0] ss:$16 sm:%s4]
  %vm6 = vcmask 1043458
  %v7 = vsel %vm6, %v5, %v3
  %s8 = smov 48
  %v9 = vld [vmem:[%s0] ss:$16 sm:%s8]
  %vm10 = vcmask 1045508
  %v11 = vsel %vm10, %v9, %v7
  %s12 = smov 192
  %v13 = vld [vmem:[%s0] ss:$16 sm:%s12]
  %vm14 = vcmask 1047558
  %v15 = vsel %vm14, %v13, %v11
  %vm16 = vcmask 162816
  %17 = vst.msk [vmem:[%s1] sm:$0xff] %vm16, %v15
  %s18 = scalar_lea.vmem %s0, 128
  %s19 = smov 3
  %v20 = vld [vmem:[%s18] ss:$16 sm:%s19]
  %s21 = scalar_lea.vmem %s0, 128
  %s22 = smov 12
  %v23 = vld [vmem:[%s21] ss:$16 sm:%s22]
  %vm24 = vcmask 1043458
  %v25 = vsel %vm24, %v23, %v20
  %s26 = scalar_lea.vmem %s0, 128
  %s27 = smov 48
  %v28 = vld [vmem:[%s26] ss:$16 sm:%s27]
  %vm29 = vcmask 1045508
  %v30 = vsel %vm29, %v28, %v25
  %s31 = scalar_lea.vmem %s0, 128
  %s32 = smov 192
  %v33 = vld [vmem:[%s31] ss:$16 sm:%s32]
  %vm34 = vcmask 1047558
  %v35 = vsel %vm34, %v33, %v30
  %vm36 = vcmask 162816
  %s37 = scalar_lea.vmem %s1, 16
  %38 = vst.msk [vmem:[%s37] sm:$0xff] %vm36, %v35
  %s39 = scalar_lea.vmem %s0, 256
  %s40 = smov 3
  %v41 = vld [vmem:[%s39] ss:$16 sm:%s40]
  %s42 = scalar_lea.vmem %s0, 256
  %s43 = smov 12
  %v44 = vld [vmem:[%s42] ss:$16 sm:%s43]
  %vm45 = vcmask 1043458
  %v46 = vsel %vm45, %v44, %v41
  %vm47 = vcmask 162816
  %s48 = scalar_lea.vmem %s1, 32
  %49 = vst.msk [vmem:[%s48] sm:$0xf] %vm47, %v46
  %s50 = scalar_lea.vmem %s0, 6
  %s51 = smov 3
  %v52 = vld [vmem:[%s50] ss:$16 sm:%s51]
  %s53 = scalar_lea.vmem %s0, 6
  %s54 = smov 12
  %v55 = vld [vmem:[%s53] ss:$16 sm:%s54]
  %vm56 = vcmask 1043458
  %v57 = vsel %vm56, %v55, %v52
  %s58 = scalar_lea.vmem %s0, 6
  %s59 = smov 48
  %v60 = vld [vmem:[%s58] ss:$16 sm:%s59]
  %vm61 = vcmask 1045508
  %v62 = vsel %vm61, %v60, %v57
  %s63 = scalar_lea.vmem %s0, 6
  %s64 = smov 192
  %v65 = vld [vmem:[%s63] ss:$16 sm:%s64]
  %vm66 = vcmask 1047558
  %v67 = vsel %vm66, %v65, %v62
  %s68 = scalar_lea.vmem %s0, 6
  %s69 = smov 3
  %v70 = vld [vmem:[%s68] ss:$16 sm:%s69]
  %s71 = scalar_lea.vmem %s0, 6
  %s72 = smov 12
  %v73 = vld [vmem:[%s71] ss:$16 sm:%s72]
  %vm74 = vcmask 1043458
  %v75 = vsel %vm74, %v73, %v70
  %s76 = scalar_lea.vmem %s0, 6
  %s77 = smov 48
  %v78 = vld [vmem:[%s76] ss:$16 sm:%s77]
  %vm79 = vcmask 1045508
  %v80 = vsel %vm79, %v78, %v75
  %s81 = scalar_lea.vmem %s0, 6
  %s82 = smov 192
  %v83 = vld [vmem:[%s81] ss:$16 sm:%s82]
  %vm84 = vcmask 1047558
  %v85 = vsel %vm84, %v83, %v80
  %vm86 = vcmask 64512
  %v87 = vsel %vm86, %v85, %v67
  %88 = vrot.lane.b32.xlu0 %v87, 120
  %v89 = vpop.permute.xlu0 %88
  %vm90 = vcmask 97280
  %s91 = scalar_lea.vmem %s1, 8
  %92 = vst.msk [vmem:[%s91] sm:$0xff] %vm90, %v89
  %vm93 = vcmask 1048512
  %94 = vst.msk [vmem:[%s1] sm:$0xff] %vm93, %v89
  %s95 = scalar_lea.vmem %s0, 262
  %s96 = smov 3
  %v97 = vld [vmem:[%s95] ss:$16 sm:%s96]
  %s98 = scalar_lea.vmem %s0, 262
  %s99 = smov 12
  %v100 = vld [vmem:[%s98] ss:$16 sm:%s99]
  %vm101 = vcmask 1043458
  %v102 = vsel %vm101, %v100, %v97
  %s103 = scalar_lea.vmem %s0, 70
  %s104 = smov 48
  %v105 = vld [vmem:[%s103] ss:$16 sm:%s104]
  %vm106 = vcmask 1045508
  %v107 = vsel %vm106, %v105, %v102
  %s108 = scalar_lea.vmem %s0, 70
  %s109 = smov 192
  %v110 = vld [vmem:[%s108] ss:$16 sm:%s109]
  %vm111 = vcmask 1047558
  %v112 = vsel %vm111, %v110, %v107
  %s113 = scalar_lea.vmem %s0, 262
  %s114 = smov 3
  %v115 = vld [vmem:[%s113] ss:$16 sm:%s114]
  %s116 = scalar_lea.vmem %s0, 262
  %s117 = smov 12
  %v118 = vld [vmem:[%s116] ss:$16 sm:%s117]
  %vm119 = vcmask 1043458
  %v120 = vsel %vm119, %v118, %v115
  %s121 = scalar_lea.vmem %s0, 70
  %s122 = smov 48
  %v123 = vld [vmem:[%s121] ss:$16 sm:%s122]
  %vm124 = vcmask 1045508
  %v125 = vsel %vm124, %v123, %v120
  %s126 = scalar_lea.vmem %s0, 70
  %s127 = smov 192
  %v128 = vld [vmem:[%s126] ss:$16 sm:%s127]
  %vm129 = vcmask 1047558
  %v130 = vsel %vm129, %v128, %v125
  %vm131 = vcmask 64512
  %v132 = vsel %vm131, %v130, %v112
  %133 = vrot.lane.b32.xlu0 %v132, 120
  %v134 = vpop.permute.xlu0 %133
  %vm135 = vcmask 97280
  %s136 = scalar_lea.vmem %s1, 40
  %137 = vst.msk [vmem:[%s136] sm:$0xf] %vm135, %v134
  %s138 = scalar_lea.vmem %s1, 20
  %139 = vst.msk [vmem:[%s138] sm:$0xf0] %vm135, %v134
  %vm140 = vcmask 1048512
  %s141 = scalar_lea.vmem %s1, 32
  %142 = vst.msk [vmem:[%s141] sm:$0xf] %vm140, %v134
  %s143 = scalar_lea.vmem %s1, 12
  %144 = vst.msk [vmem:[%s143] sm:$0xf0] %vm140, %v134
  %s145 = scalar_lea.vmem %s0, 198
  %s146 = smov 3
  %v147 = vld [vmem:[%s145] ss:$16 sm:%s146]
  %s148 = scalar_lea.vmem %s0, 198
  %s149 = smov 12
  %v150 = vld [vmem:[%s148] ss:$16 sm:%s149]
  %vm151 = vcmask 1043458
  %v152 = vsel %vm151, %v150, %v147
  %s153 = scalar_lea.vmem %s0, 198
  %s154 = smov 3
  %v155 = vld [vmem:[%s153] ss:$16 sm:%s154]
  %s156 = scalar_lea.vmem %s0, 198
  %s157 = smov 12
  %v158 = vld [vmem:[%s156] ss:$16 sm:%s157]
  %vm159 = vcmask 1043458
  %v160 = vsel %vm159, %v158, %v155
  %vm161 = vcmask 64512
  %v162 = vsel %vm161, %v160, %v152
  %163 = vrot.lane.b32.xlu0 %v162, 120
  %v164 = vpop.permute.xlu0 %163
  %vm165 = vcmask 97280
  %s166 = scalar_lea.vmem %s1, 28
  %167 = vst.msk [vmem:[%s166] sm:$0xf] %vm165, %v164
  %vm168 = vcmask 1048512
  %s169 = scalar_lea.vmem %s1, 20
  %170 = vst.msk [vmem:[%s169] sm:$0xf] %vm168, %v164
  %s171 = scalar_lea.vmem %s0, 5
  %s172 = smov 3
  %v173 = vld [vmem:[%s171] ss:$16 sm:%s172]
  %s174 = scalar_lea.vmem %s0, 5
  %s175 = smov 12
  %v176 = vld [vmem:[%s174] ss:$16 sm:%s175]
  %vm177 = vcmask 1043458
  %v178 = vsel %vm177, %v176, %v173
  %s179 = scalar_lea.vmem %s0, 5
  %s180 = smov 48
  %v181 = vld [vmem:[%s179] ss:$16 sm:%s180]
  %vm182 = vcmask 1045508
  %v183 = vsel %vm182, %v181, %v178
  %s184 = scalar_lea.vmem %s0, 5
  %s185 = smov 192
  %v186 = vld [vmem:[%s184] ss:$16 sm:%s185]
  %vm187 = vcmask 1047558
  %v188 = vsel %vm187, %v186, %v183
  %189 = vrot.lane.b32.xlu0 %v188, 100
  %v190 = vpop.permute.xlu0 %189
  %vm191 = vcmask 982816
  %192 = vst.msk [vmem:[%s1] sm:$0xff] %vm191, %v190
  %s193 = scalar_lea.vmem %s0, 261
  %s194 = smov 3
  %v195 = vld [vmem:[%s193] ss:$16 sm:%s194]
  %s196 = scalar_lea.vmem %s0, 261
  %s197 = smov 12
  %v198 = vld [vmem:[%s196] ss:$16 sm:%s197]
  %vm199 = vcmask 1043458
  %v200 = vsel %vm199, %v198, %v195
  %s201 = scalar_lea.vmem %s0, 69
  %s202 = smov 48
  %v203 = vld [vmem:[%s201] ss:$16 sm:%s202]
  %vm204 = vcmask 1045508
  %v205 = vsel %vm204, %v203, %v200
  %s206 = scalar_lea.vmem %s0, 69
  %s207 = smov 192
  %v208 = vld [vmem:[%s206] ss:$16 sm:%s207]
  %vm209 = vcmask 1047558
  %v210 = vsel %vm209, %v208, %v205
  %211 = vrot.lane.b32.xlu0 %v210, 100
  %v212 = vpop.permute.xlu0 %211
  %vm213 = vcmask 982816
  %s214 = scalar_lea.vmem %s1, 32
  %215 = vst.msk [vmem:[%s214] sm:$0xf] %vm213, %v212
  %s216 = scalar_lea.vmem %s1, 12
  %217 = vst.msk [vmem:[%s216] sm:$0xf0] %vm213, %v212
  %s218 = scalar_lea.vmem %s0, 197
  %s219 = smov 3
  %v220 = vld [vmem:[%s218] ss:$16 sm:%s219]
  %s221 = scalar_lea.vmem %s0, 197
  %s222 = smov 12
  %v223 = vld [vmem:[%s221] ss:$16 sm:%s222]
  %vm224 = vcmask 1043458
  %v225 = vsel %vm224, %v223, %v220
  %226 = vrot.lane.b32.xlu0 %v225, 100
  %v227 = vpop.permute.xlu0 %226
  %vm228 = vcmask 982816
  %s229 = scalar_lea.vmem %s1, 20
  %230 = vst.msk [vmem:[%s229] sm:$0xf] %vm228, %v227
  %s231 = scalar_lea.vmem %s0, 4
  %s232 = smov 3
  %v233 = vld [vmem:[%s231] ss:$16 sm:%s232]
  %s234 = scalar_lea.vmem %s0, 4
  %s235 = smov 12
  %v236 = vld [vmem:[%s234] ss:$16 sm:%s235]
  %vm237 = vcmask 1043458
  %v238 = vsel %vm237, %v236, %v233
  %s239 = scalar_lea.vmem %s0, 4
  %s240 = smov 48
  %v241 = vld [vmem:[%s239] ss:$16 sm:%s240]
  %vm242 = vcmask 1045508
  %v243 = vsel %vm242, %v241, %v238
  %s244 = scalar_lea.vmem %s0, 4
  %s245 = smov 192
  %v246 = vld [vmem:[%s244] ss:$16 sm:%s245]
  %vm247 = vcmask 1047558
  %v248 = vsel %vm247, %v246, %v243
  %249 = vrot.lane.b32.xlu0 %v248, 80
  %v250 = vpop.permute.xlu0 %249
  %vm251 = vcmask 818816
  %252 = vst.msk [vmem:[%s1] sm:$0xff] %vm251, %v250
  %s253 = scalar_lea.vmem %s0, 260
  %s254 = smov 3
  %v255 = vld [vmem:[%s253] ss:$16 sm:%s254]
  %s256 = scalar_lea.vmem %s0, 260
  %s257 = smov 12
  %v258 = vld [vmem:[%s256] ss:$16 sm:%s257]
  %vm259 = vcmask 1043458
  %v260 = vsel %vm259, %v258, %v255
  %s261 = scalar_lea.vmem %s0, 68
  %s262 = smov 48
  %v263 = vld [vmem:[%s261] ss:$16 sm:%s262]
  %vm264 = vcmask 1045508
  %v265 = vsel %vm264, %v263, %v260
  %s266 = scalar_lea.vmem %s0, 68
  %s267 = smov 192
  %v268 = vld [vmem:[%s266] ss:$16 sm:%s267]
  %vm269 = vcmask 1047558
  %v270 = vsel %vm269, %v268, %v265
  %271 = vrot.lane.b32.xlu0 %v270, 80
  %v272 = vpop.permute.xlu0 %271
  %vm273 = vcmask 818816
  %s274 = scalar_lea.vmem %s1, 32
  %275 = vst.msk [vmem:[%s274] sm:$0xf] %vm273, %v272
  %s276 = scalar_lea.vmem %s1, 12
  %277 = vst.msk [vmem:[%s276] sm:$0xf0] %vm273, %v272
  %s278 = scalar_lea.vmem %s0, 196
  %s279 = smov 3
  %v280 = vld [vmem:[%s278] ss:$16 sm:%s279]
  %s281 = scalar_lea.vmem %s0, 196
  %s282 = smov 12
  %v283 = vld [vmem:[%s281] ss:$16 sm:%s282]
  %vm284 = vcmask 1043458
  %v285 = vsel %vm284, %v283, %v280
  %286 = vrot.lane.b32.xlu0 %v285, 80
  %v287 = vpop.permute.xlu0 %286
  %vm288 = vcmask 818816
  %s289 = scalar_lea.vmem %s1, 20
  %290 = vst.msk [vmem:[%s289] sm:$0xf] %vm288, %v287
  %s291 = scalar_lea.vmem %s0, 3
  %s292 = smov 3
  %v293 = vld [vmem:[%s291] ss:$16 sm:%s292]
  %s294 = scalar_lea.vmem %s0, 3
  %s295 = smov 12
  %v296 = vld [vmem:[%s294] ss:$16 sm:%s295]
  %vm297 = vcmask 1043458
  %v298 = vsel %vm297, %v296, %v293
  %s299 = scalar_lea.vmem %s0, 3
  %s300 = smov 48
  %v301 = vld [vmem:[%s299] ss:$16 sm:%s300]
  %vm302 = vcmask 1045508
  %v303 = vsel %vm302, %v301, %v298
  %s304 = scalar_lea.vmem %s0, 3
  %s305 = smov 192
  %v306 = vld [vmem:[%s304] ss:$16 sm:%s305]
  %vm307 = vcmask 1047558
  %v308 = vsel %vm307, %v306, %v303
  %309 = vrot.lane.b32.xlu0 %v308, 60
  %v310 = vpop.permute.xlu0 %309
  %vm311 = vcmask 654816
  %312 = vst.msk [vmem:[%s1] sm:$0xff] %vm311, %v310
  %s313 = scalar_lea.vmem %s0, 259
  %s314 = smov 3
  %v315 = vld [vmem:[%s313] ss:$16 sm:%s314]
  %s316 = scalar_lea.vmem %s0, 259
  %s317 = smov 12
  %v318 = vld [vmem:[%s316] ss:$16 sm:%s317]
  %vm319 = vcmask 1043458
  %v320 = vsel %vm319, %v318, %v315
  %s321 = scalar_lea.vmem %s0, 67
  %s322 = smov 48
  %v323 = vld [vmem:[%s321] ss:$16 sm:%s322]
  %vm324 = vcmask 1045508
  %v325 = vsel %vm324, %v323, %v320
  %s326 = scalar_lea.vmem %s0, 67
  %s327 = smov 192
  %v328 = vld [vmem:[%s326] ss:$16 sm:%s327]
  %vm329 = vcmask 1047558
  %v330 = vsel %vm329, %v328, %v325
  %331 = vrot.lane.b32.xlu0 %v330, 60
  %v332 = vpop.permute.xlu0 %331
  %vm333 = vcmask 654816
  %s334 = scalar_lea.vmem %s1, 32
  %335 = vst.msk [vmem:[%s334] sm:$0xf] %vm333, %v332
  %s336 = scalar_lea.vmem %s1, 12
  %337 = vst.msk [vmem:[%s336] sm:$0xf0] %vm333, %v332
  %s338 = scalar_lea.vmem %s0, 195
  %s339 = smov 3
  %v340 = vld [vmem:[%s338] ss:$16 sm:%s339]
  %s341 = scalar_lea.vmem %s0, 195
  %s342 = smov 12
  %v343 = vld [vmem:[%s341] ss:$16 sm:%s342]
  %vm344 = vcmask 1043458
  %v345 = vsel %vm344, %v343, %v340
  %346 = vrot.lane.b32.xlu0 %v345, 60
  %v347 = vpop.permute.xlu0 %346
  %vm348 = vcmask 654816
  %s349 = scalar_lea.vmem %s1, 20
  %350 = vst.msk [vmem:[%s349] sm:$0xf] %vm348, %v347
  %s351 = scalar_lea.vmem %s0, 9
  %s352 = smov 3
  %v353 = vld [vmem:[%s351] ss:$16 sm:%s352]
  %s354 = scalar_lea.vmem %s0, 9
  %s355 = smov 12
  %v356 = vld [vmem:[%s354] ss:$16 sm:%s355]
  %vm357 = vcmask 1043458
  %v358 = vsel %vm357, %v356, %v353
  %s359 = scalar_lea.vmem %s0, 9
  %s360 = smov 48
  %v361 = vld [vmem:[%s359] ss:$16 sm:%s360]
  %vm362 = vcmask 1045508
  %v363 = vsel %vm362, %v361, %v358
  %s364 = scalar_lea.vmem %s0, 9
  %s365 = smov 192
  %v366 = vld [vmem:[%s364] ss:$16 sm:%s365]
  %vm367 = vcmask 1047558
  %v368 = vsel %vm367, %v366, %v363
  %369 = vrot.lane.b32.xlu0 %v368, 52
  %v370 = vpop.permute.xlu0 %369
  %vm371 = vcmask 589216
  %s372 = scalar_lea.vmem %s1, 8
  %373 = vst.msk [vmem:[%s372] sm:$0xff] %vm371, %v370
  %s374 = scalar_lea.vmem %s0, 265
  %s375 = smov 3
  %v376 = vld [vmem:[%s374] ss:$16 sm:%s375]
  %s377 = scalar_lea.vmem %s0, 265
  %s378 = smov 12
  %v379 = vld [vmem:[%s377] ss:$16 sm:%s378]
  %vm380 = vcmask 1043458
  %v381 = vsel %vm380, %v379, %v376
  %s382 = scalar_lea.vmem %s0, 73
  %s383 = smov 48
  %v384 = vld [vmem:[%s382] ss:$16 sm:%s383]
  %vm385 = vcmask 1045508
  %v386 = vsel %vm385, %v384, %v381
  %s387 = scalar_lea.vmem %s0, 73
  %s388 = smov 192
  %v389 = vld [vmem:[%s387] ss:$16 sm:%s388]
  %vm390 = vcmask 1047558
  %v391 = vsel %vm390, %v389, %v386
  %392 = vrot.lane.b32.xlu0 %v391, 52
  %v393 = vpop.permute.xlu0 %392
  %vm394 = vcmask 589216
  %s395 = scalar_lea.vmem %s1, 40
  %396 = vst.msk [vmem:[%s395] sm:$0xf] %vm394, %v393
  %s397 = scalar_lea.vmem %s1, 20
  %398 = vst.msk [vmem:[%s397] sm:$0xf0] %vm394, %v393
  %s399 = scalar_lea.vmem %s0, 201
  %s400 = smov 3
  %v401 = vld [vmem:[%s399] ss:$16 sm:%s400]
  %s402 = scalar_lea.vmem %s0, 201
  %s403 = smov 12
  %v404 = vld [vmem:[%s402] ss:$16 sm:%s403]
  %vm405 = vcmask 1043458
  %v406 = vsel %vm405, %v404, %v401
  %407 = vrot.lane.b32.xlu0 %v406, 52
  %v408 = vpop.permute.xlu0 %407
  %vm409 = vcmask 589216
  %s410 = scalar_lea.vmem %s1, 28
  %411 = vst.msk [vmem:[%s410] sm:$0xf] %vm409, %v408
  %s412 = scalar_lea.vmem %s0, 2
  %s413 = smov 3
  %v414 = vld [vmem:[%s412] ss:$16 sm:%s413]
  %s415 = scalar_lea.vmem %s0, 2
  %s416 = smov 12
  %v417 = vld [vmem:[%s415] ss:$16 sm:%s416]
  %vm418 = vcmask 1043458
  %v419 = vsel %vm418, %v417, %v414
  %s420 = scalar_lea.vmem %s0, 2
  %s421 = smov 48
  %v422 = vld [vmem:[%s420] ss:$16 sm:%s421]
  %vm423 = vcmask 1045508
  %v424 = vsel %vm423, %v422, %v419
  %s425 = scalar_lea.vmem %s0, 2
  %s426 = smov 192
  %v427 = vld [vmem:[%s425] ss:$16 sm:%s426]
  %vm428 = vcmask 1047558
  %v429 = vsel %vm428, %v427, %v424
  %430 = vrot.lane.b32.xlu0 %v429, 40
  %v431 = vpop.permute.xlu0 %430
  %vm432 = vcmask 490816
  %433 = vst.msk [vmem:[%s1] sm:$0xff] %vm432, %v431
  %s434 = scalar_lea.vmem %s0, 258
  %s435 = smov 3
  %v436 = vld [vmem:[%s434] ss:$16 sm:%s435]
  %s437 = scalar_lea.vmem %s0, 258
  %s438 = smov 12
  %v439 = vld [vmem:[%s437] ss:$16 sm:%s438]
  %vm440 = vcmask 1043458
  %v441 = vsel %vm440, %v439, %v436
  %s442 = scalar_lea.vmem %s0, 66
  %s443 = smov 48
  %v444 = vld [vmem:[%s442] ss:$16 sm:%s443]
  %vm445 = vcmask 1045508
  %v446 = vsel %vm445, %v444, %v441
  %s447 = scalar_lea.vmem %s0, 66
  %s448 = smov 192
  %v449 = vld [vmem:[%s447] ss:$16 sm:%s448]
  %vm450 = vcmask 1047558
  %v451 = vsel %vm450, %v449, %v446
  %452 = vrot.lane.b32.xlu0 %v451, 40
  %v453 = vpop.permute.xlu0 %452
  %vm454 = vcmask 490816
  %s455 = scalar_lea.vmem %s1, 32
  %456 = vst.msk [vmem:[%s455] sm:$0xf] %vm454, %v453
  %s457 = scalar_lea.vmem %s1, 12
  %458 = vst.msk [vmem:[%s457] sm:$0xf0] %vm454, %v453
  %s459 = scalar_lea.vmem %s0, 194
  %s460 = smov 3
  %v461 = vld [vmem:[%s459] ss:$16 sm:%s460]
  %s462 = scalar_lea.vmem %s0, 194
  %s463 = smov 12
  %v464 = vld [vmem:[%s462] ss:$16 sm:%s463]
  %vm465 = vcmask 1043458
  %v466 = vsel %vm465, %v464, %v461
  %467 = vrot.lane.b32.xlu0 %v466, 40
  %v468 = vpop.permute.xlu0 %467
  %vm469 = vcmask 490816
  %s470 = scalar_lea.vmem %s1, 20
  %471 = vst.msk [vmem:[%s470] sm:$0xf] %vm469, %v468
  %s472 = scalar_lea.vmem %s0, 8
  %s473 = smov 3
  %v474 = vld [vmem:[%s472] ss:$16 sm:%s473]
  %s475 = scalar_lea.vmem %s0, 8
  %s476 = smov 12
  %v477 = vld [vmem:[%s475] ss:$16 sm:%s476]
  %vm478 = vcmask 1043458
  %v479 = vsel %vm478, %v477, %v474
  %s480 = scalar_lea.vmem %s0, 8
  %s481 = smov 48
  %v482 = vld [vmem:[%s480] ss:$16 sm:%s481]
  %vm483 = vcmask 1045508
  %v484 = vsel %vm483, %v482, %v479
  %s485 = scalar_lea.vmem %s0, 8
  %s486 = smov 192
  %v487 = vld [vmem:[%s485] ss:$16 sm:%s486]
  %vm488 = vcmask 1047558
  %v489 = vsel %vm488, %v487, %v484
  %490 = vrot.lane.b32.xlu0 %v489, 32
  %v491 = vpop.permute.xlu0 %490
  %vm492 = vcmask 425216
  %s493 = scalar_lea.vmem %s1, 8
  %494 = vst.msk [vmem:[%s493] sm:$0xff] %vm492, %v491
  %s495 = scalar_lea.vmem %s0, 264
  %s496 = smov 3
  %v497 = vld [vmem:[%s495] ss:$16 sm:%s496]
  %s498 = scalar_lea.vmem %s0, 264
  %s499 = smov 12
  %v500 = vld [vmem:[%s498] ss:$16 sm:%s499]
  %vm501 = vcmask 1043458
  %v502 = vsel %vm501, %v500, %v497
  %s503 = scalar_lea.vmem %s0, 72
  %s504 = smov 48
  %v505 = vld [vmem:[%s503] ss:$16 sm:%s504]
  %vm506 = vcmask 1045508
  %v507 = vsel %vm506, %v505, %v502
  %s508 = scalar_lea.vmem %s0, 72
  %s509 = smov 192
  %v510 = vld [vmem:[%s508] ss:$16 sm:%s509]
  %vm511 = vcmask 1047558
  %v512 = vsel %vm511, %v510, %v507
  %513 = vrot.lane.b32.xlu0 %v512, 32
  %v514 = vpop.permute.xlu0 %513
  %vm515 = vcmask 425216
  %s516 = scalar_lea.vmem %s1, 40
  %517 = vst.msk [vmem:[%s516] sm:$0xf] %vm515, %v514
  %s518 = scalar_lea.vmem %s1, 20
  %519 = vst.msk [vmem:[%s518] sm:$0xf0] %vm515, %v514
  %s520 = scalar_lea.vmem %s0, 200
  %s521 = smov 3
  %v522 = vld [vmem:[%s520] ss:$16 sm:%s521]
  %s523 = scalar_lea.vmem %s0, 200
  %s524 = smov 12
  %v525 = vld [vmem:[%s523] ss:$16 sm:%s524]
  %vm526 = vcmask 1043458
  %v527 = vsel %vm526, %v525, %v522
  %528 = vrot.lane.b32.xlu0 %v527, 32
  %v529 = vpop.permute.xlu0 %528
  %vm530 = vcmask 425216
  %s531 = scalar_lea.vmem %s1, 28
  %532 = vst.msk [vmem:[%s531] sm:$0xf] %vm530, %v529
  %s533 = scalar_lea.vmem %s0, 1
  %s534 = smov 3
  %v535 = vld [vmem:[%s533] ss:$16 sm:%s534]
  %s536 = scalar_lea.vmem %s0, 1
  %s537 = smov 12
  %v538 = vld [vmem:[%s536] ss:$16 sm:%s537]
  %vm539 = vcmask 1043458
  %v540 = vsel %vm539, %v538, %v535
  %s541 = scalar_lea.vmem %s0, 1
  %s542 = smov 48
  %v543 = vld [vmem:[%s541] ss:$16 sm:%s542]
  %vm544 = vcmask 1045508
  %v545 = vsel %vm544, %v543, %v540
  %s546 = scalar_lea.vmem %s0, 1
  %s547 = smov 192
  %v548 = vld [vmem:[%s546] ss:$16 sm:%s547]
  %vm549 = vcmask 1047558
  %v550 = vsel %vm549, %v548, %v545
  %551 = vrot.lane.b32.xlu0 %v550, 20
  %v552 = vpop.permute.xlu0 %551
  %vm553 = vcmask 326816
  %554 = vst.msk [vmem:[%s1] sm:$0xff] %vm553, %v552
  %s555 = scalar_lea.vmem %s0, 257
  %s556 = smov 3
  %v557 = vld [vmem:[%s555] ss:$16 sm:%s556]
  %s558 = scalar_lea.vmem %s0, 257
  %s559 = smov 12
  %v560 = vld [vmem:[%s558] ss:$16 sm:%s559]
  %vm561 = vcmask 1043458
  %v562 = vsel %vm561, %v560, %v557
  %s563 = scalar_lea.vmem %s0, 65
  %s564 = smov 48
  %v565 = vld [vmem:[%s563] ss:$16 sm:%s564]
  %vm566 = vcmask 1045508
  %v567 = vsel %vm566, %v565, %v562
  %s568 = scalar_lea.vmem %s0, 65
  %s569 = smov 192
  %v570 = vld [vmem:[%s568] ss:$16 sm:%s569]
  %vm571 = vcmask 1047558
  %v572 = vsel %vm571, %v570, %v567
  %573 = vrot.lane.b32.xlu0 %v572, 20
  %v574 = vpop.permute.xlu0 %573
  %vm575 = vcmask 326816
  %s576 = scalar_lea.vmem %s1, 32
  %577 = vst.msk [vmem:[%s576] sm:$0xf] %vm575, %v574
  %s578 = scalar_lea.vmem %s1, 12
  %579 = vst.msk [vmem:[%s578] sm:$0xf0] %vm575, %v574
  %s580 = scalar_lea.vmem %s0, 193
  %s581 = smov 3
  %v582 = vld [vmem:[%s580] ss:$16 sm:%s581]
  %s583 = scalar_lea.vmem %s0, 193
  %s584 = smov 12
  %v585 = vld [vmem:[%s583] ss:$16 sm:%s584]
  %vm586 = vcmask 1043458
  %v587 = vsel %vm586, %v585, %v582
  %588 = vrot.lane.b32.xlu0 %v587, 20
  %v589 = vpop.permute.xlu0 %588
  %vm590 = vcmask 326816
  %s591 = scalar_lea.vmem %s1, 20
  %592 = vst.msk [vmem:[%s591] sm:$0xf] %vm590, %v589
  %s593 = scalar_lea.vmem %s0, 7
  %s594 = smov 3
  %v595 = vld [vmem:[%s593] ss:$16 sm:%s594]
  %s596 = scalar_lea.vmem %s0, 7
  %s597 = smov 12
  %v598 = vld [vmem:[%s596] ss:$16 sm:%s597]
  %vm599 = vcmask 1043458
  %v600 = vsel %vm599, %v598, %v595
  %s601 = scalar_lea.vmem %s0, 7
  %s602 = smov 48
  %v603 = vld [vmem:[%s601] ss:$16 sm:%s602]
  %vm604 = vcmask 1045508
  %v605 = vsel %vm604, %v603, %v600
  %s606 = scalar_lea.vmem %s0, 7
  %s607 = smov 192
  %v608 = vld [vmem:[%s606] ss:$16 sm:%s607]
  %vm609 = vcmask 1047558
  %v610 = vsel %vm609, %v608, %v605
  %611 = vrot.lane.b32.xlu0 %v610, 12
  %v612 = vpop.permute.xlu0 %611
  %vm613 = vcmask 261216
  %s614 = scalar_lea.vmem %s1, 8
  %615 = vst.msk [vmem:[%s614] sm:$0xff] %vm613, %v612
  %s616 = scalar_lea.vmem %s0, 263
  %s617 = smov 3
  %v618 = vld [vmem:[%s616] ss:$16 sm:%s617]
  %s619 = scalar_lea.vmem %s0, 263
  %s620 = smov 12
  %v621 = vld [vmem:[%s619] ss:$16 sm:%s620]
  %vm622 = vcmask 1043458
  %v623 = vsel %vm622, %v621, %v618
  %s624 = scalar_lea.vmem %s0, 71
  %s625 = smov 48
  %v626 = vld [vmem:[%s624] ss:$16 sm:%s625]
  %vm627 = vcmask 1045508
  %v628 = vsel %vm627, %v626, %v623
  %s629 = scalar_lea.vmem %s0, 71
  %s630 = smov 192
  %v631 = vld [vmem:[%s629] ss:$16 sm:%s630]
  %vm632 = vcmask 1047558
  %v633 = vsel %vm632, %v631, %v628
  %634 = vrot.lane.b32.xlu0 %v633, 12
  %v635 = vpop.permute.xlu0 %634
  %vm636 = vcmask 261216
  %s637 = scalar_lea.vmem %s1, 40
  %638 = vst.msk [vmem:[%s637] sm:$0xf] %vm636, %v635
  %s639 = scalar_lea.vmem %s1, 20
  %640 = vst.msk [vmem:[%s639] sm:$0xf0] %vm636, %v635
  %s641 = scalar_lea.vmem %s0, 199
  %s642 = smov 3
  %v643 = vld [vmem:[%s641] ss:$16 sm:%s642]
  %s644 = scalar_lea.vmem %s0, 199
  %s645 = smov 12
  %v646 = vld [vmem:[%s644] ss:$16 sm:%s645]
  %vm647 = vcmask 1043458
  %v648 = vsel %vm647, %v646, %v643
  %649 = vrot.lane.b32.xlu0 %v648, 12
  %v650 = vpop.permute.xlu0 %649
  %vm651 = vcmask 261216
  %s652 = scalar_lea.vmem %s1, 28
  %653 = vst.msk [vmem:[%s652] sm:$0xf] %vm651, %v650

// kernel: cifar_cnn_forward.1
$region0: #{cifar_cnn_forward.1}
  #allocation0 [shape = 'u32[]', space=smem, size = 0x4, offset = 0x4, fixed_abs, tag = 'smem constant byte address 0x4 - core index']
  #allocation1 [shape = 'u32[72,128]{1,0:T(1,128)}', space=vmem, size = 0x9000, scoped, tag = 'internal scratch']
  %s0 = inlined_call_operand.vmem [shape: bf16[8,32,1408], index: 0, kind: input, shape index: {}]
  %s1 = inlined_call_operand.vmem [shape: bf16[20,32], index: 1, kind: input, shape index: {}]
  %s2 = inlined_call_operand.vmem [shape: bf16[1408,200], index: 2, kind: input, shape index: {}]
  %s3 = inlined_call_operand.vmem [shape: f32[20,200], index: 3, kind: input, shape index: {}]
  %s4 = inlined_call_operand.vmem [shape: f32[200,10], index: 4, kind: input, shape index: {}]
  %s5 = inlined_call_operand.vmem [shape: f32[1,10], index: 5, kind: input, shape index: {}]
  %s6 = inlined_call_operand.vmem [shape: f32[8,10], index: 6, kind: output, shape index: {}]
  %s7 = sld [smem:[#allocation0]]
  $region34: #{cifar_cnn_forward.1} parent=0
    _
  %s9 = ssub.s32 1, %s7
  %s10 = scalar_select 0, %s9, %s7
  // Predicated region
  $region2: #{cifar_cnn_forward.1} parent=0 // pred_check
    _
  $region3: #{cifar_cnn_forward.1} parent=0 // pred_check_branch
    %12 = sbr.rel (0) target = $region5
  $region4: #{cifar_cnn_forward.1} parent=0 // pred_region
    _
  $region5: #{cifar_cnn_forward.1} parent=0 // pred_fallthru
    _
  // Predicated region
  $region6: #{cifar_cnn_forward.1} parent=0 // pred_check
    _
  $region7: #{cifar_cnn_forward.1} parent=0 // pred_check_branch
    %14 = sbr.rel (0) target = $region9
  $region8: #{cifar_cnn_forward.1} parent=0 // pred_region
    _
  $region9: #{cifar_cnn_forward.1} parent=0 // pred_fallthru
    _
  // Predicated region
  $region10: #{cifar_cnn_forward.1} parent=0 // pred_check
    _
  $region11: #{cifar_cnn_forward.1} parent=0 // pred_check_branch
    %16 = sbr.rel (0) target = $region13
  $region12: #{cifar_cnn_forward.1} parent=0 // pred_region
    _
  $region13: #{cifar_cnn_forward.1} parent=0 // pred_fallthru
    _
  // Predicated region
  $region14: #{cifar_cnn_forward.1} parent=0 // pred_check
    _
  $region15: #{cifar_cnn_forward.1} parent=0 // pred_check_branch
    %18 = sbr.rel (0) target = $region17
  $region16: #{cifar_cnn_forward.1} parent=0 // pred_region
    _
  $region17: #{cifar_cnn_forward.1} parent=0 // pred_fallthru
    _
  // Predicated region
  $region18: #{cifar_cnn_forward.1} parent=0 // pred_check
    _
  $region19: #{cifar_cnn_forward.1} parent=0 // pred_check_branch
    %20 = sbr.rel (0) target = $region21
  $region20: #{cifar_cnn_forward.1} parent=0 // pred_region
    _
  $region21: #{cifar_cnn_forward.1} parent=0 // pred_fallthru
    _
  // Predicated region
  $region22: #{cifar_cnn_forward.1} parent=0 // pred_check
    _
  $region23: #{cifar_cnn_forward.1} parent=0 // pred_check_branch
    %22 = sbr.rel (0) target = $region25
  $region24: #{cifar_cnn_forward.1} parent=0 // pred_region
    _
  $region25: #{cifar_cnn_forward.1} parent=0 // pred_fallthru
    _
  %v24 = vld [vmem:[%s1] sm:$0xf]
  %v25 = vld [vmem:[%s1 + $0x4] sm:$0xf]
  %v26 = vld [vmem:[%s1 + $0x8] sm:$0x3]
  %v27 = vld [vmem:[%s2] sm:$0xff]
  %v28 = vld [vmem:[%s2 + $0x8] sm:$0xff]
  %v29 = vld [vmem:[%s2 + $0x10] sm:$0xff]
  %v30 = vld [vmem:[%s2 + $0x18] sm:$0xff]
  %v31 = vld [vmem:[%s2 + $0x20] sm:$0xff]
  %v32 = vld [vmem:[%s2 + $0x28] sm:$0xff]
  %v33 = vld [vmem:[%s2 + $0x30] sm:$0xff]
  %v34 = vld [vmem:[%s2 + $0x38] sm:$0xff]
  %v35 = vld [vmem:[%s2 + $0x40] sm:$0xff]
  %v36 = vld [vmem:[%s2 + $0x48] sm:$0xff]
  %v37 = vld [vmem:[%s2 + $0x50] sm:$0xff]
  %v38 = vld [vmem:[%s2 + $0x58] sm:$0xff]
  %v39 = vld [vmem:[%s2 + $0x60] sm:$0xff]
  %v40 = vld [vmem:[%s2 + $0x68] sm:$0xff]
  %v41 = vld [vmem:[%s2 + $0x70] sm:$0xff]
  %v42 = vld [vmem:[%s2 + $0x78] sm:$0xff]
  %v43 = vld [vmem:[%s2 + $0x80] sm:$0xff]
  %v44 = vld [vmem:[%s2 + $0x88] sm:$0xff]
  %v45 = vld [vmem:[%s2 + $0x90] sm:$0xff]
  %v46 = vld [vmem:[%s2 + $0x98] sm:$0xff]
  %v47 = vld [vmem:[%s2 + $0xa0] sm:$0xff]
  %v48 = vld [vmem:[%s2 + $0xa8] sm:$0xff]
  %v49 = vld [vmem:[%s2 + $0xb0] sm:$0xff]
  %v50 = vld [vmem:[%s2 + $0xb8] sm:$0xff]
  %v51 = vld [vmem:[%s2 + $0xc0] sm:$0xff]
  %v52 = vld [vmem:[%s2 + $0xc8] sm:$0xff]
  %v53 = vld [vmem:[%s2 + $0xd0] sm:$0xff]
  %v54 = vld [vmem:[%s2 + $0xd8] sm:$0xff]
  %v55 = vld [vmem:[%s2 + $0xe0] sm:$0xff]
  %v56 = vld [vmem:[%s2 + $0xe8] sm:$0xff]
  %v57 = vld [vmem:[%s2 + $0xf0] sm:$0xff]
  %v58 = vld [vmem:[%s2 + $0xf8] sm:$0xff]
  %v59 = vld [vmem:[%s2 + $0x100] sm:$0xff]
  %v60 = vld [vmem:[%s2 + $0x108] sm:$0xff]
  %v61 = vld [vmem:[%s2 + $0x110] sm:$0xff]
  %v62 = vld [vmem:[%s2 + $0x118] sm:$0xff]
  %v63 = vld [vmem:[%s2 + $0x120] sm:$0xff]
  %v64 = vld [vmem:[%s2 + $0x128] sm:$0xff]
  %v65 = vld [vmem:[%s2 + $0x130] sm:$0xff]
  %v66 = vld [vmem:[%s2 + $0x138] sm:$0xff]
  %v67 = vld [vmem:[%s2 + $0x140] sm:$0xff]
  %v68 = vld [vmem:[%s2 + $0x148] sm:$0xff]
  %v69 = vld [vmem:[%s2 + $0x150] sm:$0xff]
  %v70 = vld [vmem:[%s2 + $0x158] sm:$0xff]
  %v71 = vld [vmem:[%s2 + $0x160] sm:$0xff]
  %v72 = vld [vmem:[%s2 + $0x168] sm:$0xff]
  %v73 = vld [vmem:[%s2 + $0x170] sm:$0xff]
  %v74 = vld [vmem:[%s2 + $0x178] sm:$0xff]
  %v75 = vld [vmem:[%s2 + $0x180] sm:$0xff]
  %v76 = vld [vmem:[%s2 + $0x188] sm:$0xff]
  %v77 = vld [vmem:[%s2 + $0x190] sm:$0xff]
  %v78 = vld [vmem:[%s2 + $0x198] sm:$0xff]
  %v79 = vld [vmem:[%s2 + $0x1a0] sm:$0xff]
  %v80 = vld [vmem:[%s2 + $0x1a8] sm:$0xff]
  %v81 = vld [vmem:[%s2 + $0x1b0] sm:$0xff]
  %v82 = vld [vmem:[%s2 + $0x1b8] sm:$0xff]
  %v83 = vld [vmem:[%s2 + $0x1c0] sm:$0xff]
  %v84 = vld [vmem:[%s2 + $0x1c8] sm:$0xff]
  %v85 = vld [vmem:[%s2 + $0x1d0] sm:$0xff]
  %v86 = vld [vmem:[%s2 + $0x1d8] sm:$0xff]
  %v87 = vld [vmem:[%s2 + $0x1e0] sm:$0xff]
  %v88 = vld [vmem:[%s2 + $0x1e8] sm:$0xff]
  %v89 = vld [vmem:[%s2 + $0x1f0] sm:$0xff]
  %v90 = vld [vmem:[%s2 + $0x1f8] sm:$0xff]
  %v91 = vld [vmem:[%s2 + $0x200] sm:$0xff]
  %v92 = vld [vmem:[%s2 + $0x208] sm:$0xff]
  %v93 = vld [vmem:[%s2 + $0x210] sm:$0xff]
  %v94 = vld [vmem:[%s2 + $0x218] sm:$0xff]
  %v95 = vld [vmem:[%s2 + $0x220] sm:$0xff]
  %v96 = vld [vmem:[%s2 + $0x228] sm:$0xff]
  %v97 = vld [vmem:[%s2 + $0x230] sm:$0xff]
  %v98 = vld [vmem:[%s2 + $0x238] sm:$0xff]
  %v99 = vld [vmem:[%s2 + $0x240] sm:$0xff]
  %v100 = vld [vmem:[%s2 + $0x248] sm:$0xff]
  %v101 = vld [vmem:[%s2 + $0x250] sm:$0xff]
  %v102 = vld [vmem:[%s2 + $0x258] sm:$0xff]
  %v103 = vld [vmem:[%s2 + $0x260] sm:$0xff]
  %v104 = vld [vmem:[%s2 + $0x268] sm:$0xff]
  %v105 = vld [vmem:[%s2 + $0x270] sm:$0xff]
  %v106 = vld [vmem:[%s2 + $0x278] sm:$0xff]
  %v107 = vld [vmem:[%s2 + $0x280] sm:$0xff]
  %v108 = vld [vmem:[%s2 + $0x288] sm:$0xff]
  %v109 = vld [vmem:[%s2 + $0x290] sm:$0xff]
  %v110 = vld [vmem:[%s2 + $0x298] sm:$0xff]
  %v111 = vld [vmem:[%s2 + $0x2a0] sm:$0xff]
  %v112 = vld [vmem:[%s2 + $0x2a8] sm:$0xff]
  %v113 = vld [vmem:[%s2 + $0x2b0] sm:$0xff]
  %v114 = vld [vmem:[%s2 + $0x2b8] sm:$0xff]
  %v115 = vld [vmem:[%s2 + $0x2c0] sm:$0xff]
  %v116 = vld [vmem:[%s2 + $0x2c8] sm:$0xff]
  %v117 = vld [vmem:[%s2 + $0x2d0] sm:$0xff]
  %v118 = vld [vmem:[%s2 + $0x2d8] sm:$0xff]
  %v119 = vld [vmem:[%s2 + $0x2e0] sm:$0xff]
  %v120 = vld [vmem:[%s2 + $0x2e8] sm:$0xff]
  %v121 = vld [vmem:[%s2 + $0x2f0] sm:$0xff]
  %v122 = vld [vmem:[%s2 + $0x2f8] sm:$0xff]
  %v123 = vld [vmem:[%s2 + $0x300] sm:$0xff]
  %v124 = vld [vmem:[%s2 + $0x308] sm:$0xff]
  %v125 = vld [vmem:[%s2 + $0x310] sm:$0xff]
  %v126 = vld [vmem:[%s2 + $0x318] sm:$0xff]
  %v127 = vld [vmem:[%s2 + $0x320] sm:$0xff]
  %v128 = vld [vmem:[%s2 + $0x328] sm:$0xff]
  %v129 = vld [vmem:[%s2 + $0x330] sm:$0xff]
  %v130 = vld [vmem:[%s2 + $0x338] sm:$0xff]
  %v131 = vld [vmem:[%s2 + $0x340] sm:$0xff]
  %v132 = vld [vmem:[%s2 + $0x348] sm:$0xff]
  %v133 = vld [vmem:[%s2 + $0x350] sm:$0xff]
  %v134 = vld [vmem:[%s2 + $0x358] sm:$0xff]
  %v135 = vld [vmem:[%s2 + $0x360] sm:$0xff]
  %v136 = vld [vmem:[%s2 + $0x368] sm:$0xff]
  %v137 = vld [vmem:[%s2 + $0x370] sm:$0xff]
  %v138 = vld [vmem:[%s2 + $0x378] sm:$0xff]
  %v139 = vld [vmem:[%s2 + $0x380] sm:$0xff]
  %v140 = vld [vmem:[%s2 + $0x388] sm:$0xff]
  %v141 = vld [vmem:[%s2 + $0x390] sm:$0xff]
  %v142 = vld [vmem:[%s2 + $0x398] sm:$0xff]
  %v143 = vld [vmem:[%s2 + $0x3a0] sm:$0xff]
  %v144 = vld [vmem:[%s2 + $0x3a8] sm:$0xff]
  %v145 = vld [vmem:[%s2 + $0x3b0] sm:$0xff]
  %v146 = vld [vmem:[%s2 + $0x3b8] sm:$0xff]
  %v147 = vld [vmem:[%s2 + $0x3c0] sm:$0xff]
  %v148 = vld [vmem:[%s2 + $0x3c8] sm:$0xff]
  %v149 = vld [vmem:[%s2 + $0x3d0] sm:$0xff]
  %v150 = vld [vmem:[%s2 + $0x3d8] sm:$0xff]
  %v151 = vld [vmem:[%s2 + $0x3e0] sm:$0xff]
  %v152 = vld [vmem:[%s2 + $0x3e8] sm:$0xff]
  %v153 = vld [vmem:[%s2 + $0x3f0] sm:$0xff]
  %v154 = vld [vmem:[%s2 + $0x3f8] sm:$0xff]
  %v155 = vld [vmem:[%s2 + $0x400] sm:$0xff]
  %v156 = vld [vmem:[%s2 + $0x408] sm:$0xff]
  %v157 = vld [vmem:[%s2 + $0x410] sm:$0xff]
  %v158 = vld [vmem:[%s2 + $0x418] sm:$0xff]
  %v159 = vld [vmem:[%s2 + $0x420] sm:$0xff]
  %v160 = vld [vmem:[%s2 + $0x428] sm:$0xff]
  %v161 = vld [vmem:[%s2 + $0x430] sm:$0xff]
  %v162 = vld [vmem:[%s2 + $0x438] sm:$0xff]
  %v163 = vld [vmem:[%s2 + $0x440] sm:$0xff]
  %v164 = vld [vmem:[%s2 + $0x448] sm:$0xff]
  %v165 = vld [vmem:[%s2 + $0x450] sm:$0xff]
  %v166 = vld [vmem:[%s2 + $0x458] sm:$0xff]
  %v167 = vld [vmem:[%s2 + $0x460] sm:$0xff]
  %v168 = vld [vmem:[%s2 + $0x468] sm:$0xff]
  %v169 = vld [vmem:[%s2 + $0x470] sm:$0xff]
  %v170 = vld [vmem:[%s2 + $0x478] sm:$0xff]
  %v171 = vld [vmem:[%s2 + $0x480] sm:$0xff]
  %v172 = vld [vmem:[%s2 + $0x488] sm:$0xff]
  %v173 = vld [vmem:[%s2 + $0x490] sm:$0xff]
  %v174 = vld [vmem:[%s2 + $0x498] sm:$0xff]
  %v175 = vld [vmem:[%s2 + $0x4a0] sm:$0xff]
  %v176 = vld [vmem:[%s2 + $0x4a8] sm:$0xff]
  %v177 = vld [vmem:[%s2 + $0x4b0] sm:$0xff]
  %v178 = vld [vmem:[%s2 + $0x4b8] sm:$0xff]
  %v179 = vld [vmem:[%s2 + $0x4c0] sm:$0xff]
  %v180 = vld [vmem:[%s2 + $0x4c8] sm:$0xff]
  %v181 = vld [vmem:[%s2 + $0x4d0] sm:$0xff]
  %v182 = vld [vmem:[%s2 + $0x4d8] sm:$0xff]
  %v183 = vld [vmem:[%s2 + $0x4e0] sm:$0xff]
  %v184 = vld [vmem:[%s2 + $0x4e8] sm:$0xff]
  %v185 = vld [vmem:[%s2 + $0x4f0] sm:$0xff]
  %v186 = vld [vmem:[%s2 + $0x4f8] sm:$0xff]
  %v187 = vld [vmem:[%s2 + $0x500] sm:$0xff]
  %v188 = vld [vmem:[%s2 + $0x508] sm:$0xff]
  %v189 = vld [vmem:[%s2 + $0x510] sm:$0xff]
  %v190 = vld [vmem:[%s2 + $0x518] sm:$0xff]
  %v191 = vld [vmem:[%s2 + $0x520] sm:$0xff]
  %v192 = vld [vmem:[%s2 + $0x528] sm:$0xff]
  %v193 = vld [vmem:[%s2 + $0x530] sm:$0xff]
  %v194 = vld [vmem:[%s2 + $0x538] sm:$0xff]
  %v195 = vld [vmem:[%s2 + $0x540] sm:$0xff]
  %v196 = vld [vmem:[%s2 + $0x548] sm:$0xff]
  %v197 = vld [vmem:[%s2 + $0x550] sm:$0xff]
  %v198 = vld [vmem:[%s2 + $0x558] sm:$0xff]
  %v199 = vld [vmem:[%s2 + $0x560] sm:$0xff]
  %v200 = vld [vmem:[%s2 + $0x568] sm:$0xff]
  %v201 = vld [vmem:[%s2 + $0x570] sm:$0xff]
  %v202 = vld [vmem:[%s2 + $0x578] sm:$0xff]
  %v203 = vld [vmem:[%s3] sm:$0xff]
  %v204 = vld [vmem:[%s3 + $0x8] sm:$0xff]
  %v205 = vld [vmem:[%s3 + $0x10] sm:$0xff]
  %v206 = vld [vmem:[%s3 + $0x18] sm:$0xff]
  %v207 = vld [vmem:[%s3 + $0x20] sm:$0xf]
  %v208 = vld [vmem:[%s3 + $0x28] sm:$0xf]
  %v209 = vld [vmem:[%s4] sm:$0xff]
  %v210 = vld [vmem:[%s4 + $0x8] sm:$0xff]
  %v211 = vld [vmem:[%s4 + $0x10] sm:$0xff]
  %v212 = vld [vmem:[%s4 + $0x18] sm:$0xff]
  %v213 = vld [vmem:[%s4 + $0x20] sm:$0xff]
  %v214 = vld [vmem:[%s4 + $0x28] sm:$0xff]
  %v215 = vld [vmem:[%s4 + $0x30] sm:$0xff]
  %v216 = vld [vmem:[%s4 + $0x38] sm:$0xff]
  %v217 = vld [vmem:[%s4 + $0x40] sm:$0xff]
  %v218 = vld [vmem:[%s4 + $0x48] sm:$0xff]
  %v219 = vld [vmem:[%s4 + $0x50] sm:$0xff]
  %v220 = vld [vmem:[%s4 + $0x58] sm:$0xff]
  %v221 = vld [vmem:[%s4 + $0x60] sm:$0xff]
  %v222 = vld [vmem:[%s4 + $0x68] sm:$0xff]
  %v223 = vld [vmem:[%s4 + $0x70] sm:$0xff]
  %v224 = vld [vmem:[%s4 + $0x78] sm:$0xff]
  %v225 = vld [vmem:[%s4 + $0x80] sm:$0xff]
  %v226 = vld [vmem:[%s4 + $0x88] sm:$0xff]
  %v227 = vld [vmem:[%s4 + $0x90] sm:$0xff]
  %v228 = vld [vmem:[%s4 + $0x98] sm:$0xff]
  %v229 = vld [vmem:[%s4 + $0xa0] sm:$0xff]
  %v230 = vld [vmem:[%s4 + $0xa8] sm:$0xff]
  %v231 = vld [vmem:[%s4 + $0xb0] sm:$0xff]
  %v232 = vld [vmem:[%s4 + $0xb8] sm:$0xff]
  %v233 = vld [vmem:[%s4 + $0xc0] sm:$0xff]
  %v234 = vld [vmem:[%s5] sm:$0x1]
  %v235 = vld [vmem:[%s0] sm:$0xff]
  %v236 = vld [vmem:[%s0 + $0x8] sm:$0xff]
  %v237 = vld [vmem:[%s0 + $0x10] sm:$0xff]
  %v238 = vld [vmem:[%s0 + $0x18] sm:$0xff]
  %v239 = vld [vmem:[%s0 + $0x20] sm:$0xff]
  %v240 = vld [vmem:[%s0 + $0x28] sm:$0xf]
  %v241 = vld [vmem:[%s0 + $0x2c] sm:$0xff]
  %v242 = vld [vmem:[%s0 + $0x34] sm:$0xff]
  %v243 = vld [vmem:[%s0 + $0x3c] sm:$0xff]
  %v244 = vld [vmem:[%s0 + $0x44] sm:$0xff]
  %v245 = vld [vmem:[%s0 + $0x4c] sm:$0xff]
  %v246 = vld [vmem:[%s0 + $0x54] sm:$0xf]
  %v247 = vld [vmem:[%s0 + $0x58] sm:$0xff]
  %v248 = vld [vmem:[%s0 + $0x60] sm:$0xff]
  %v249 = vld [vmem:[%s0 + $0x68] sm:$0xff]
  %v250 = vld [vmem:[%s0 + $0x70] sm:$0xff]
  %v251 = vld [vmem:[%s0 + $0x78] sm:$0xff]
  %v252 = vld [vmem:[%s0 + $0x80] sm:$0xf]
  %v253 = vld [vmem:[%s0 + $0x84] sm:$0xff]
  %v254 = vld [vmem:[%s0 + $0x8c] sm:$0xff]
  %v255 = vld [vmem:[%s0 + $0x94] sm:$0xff]
  %v256 = vld [vmem:[%s0 + $0x9c] sm:$0xff]
  %v257 = vld [vmem:[%s0 + $0xa4] sm:$0xff]
  %v258 = vld [vmem:[%s0 + $0xac] sm:$0xf]
  %v262 = vunpack.c.l.b16 %v24
  %v263 = vunpack.c.l.b16 %v25
  %v264 = vunpack.c.l.b16 %v26
  %v265 = vpack.c.b16 %v263, %v262
  %v266 = vpack.c.b16 %v264, %v264
  %v291 = vunpack.c.l.b16 %v235
  %v292 = vunpack.c.h.b16 %v235
  %v293 = vunpack.c.l.b16 %v236
  %v294 = vunpack.c.h.b16 %v236
  %v295 = vunpack.c.l.b16 %v237
  %v296 = vunpack.c.h.b16 %v237
  %v297 = vunpack.c.l.b16 %v238
  %v298 = vunpack.c.h.b16 %v238
  %v299 = vunpack.c.l.b16 %v239
  %v300 = vunpack.c.h.b16 %v239
  %v301 = vunpack.c.l.b16 %v240
  %v302 = vunpack.c.l.b16 %v241
  %v303 = vunpack.c.h.b16 %v241
  %v304 = vunpack.c.l.b16 %v242
  %v305 = vunpack.c.h.b16 %v242
  %v306 = vunpack.c.l.b16 %v243
  %v307 = vunpack.c.h.b16 %v243
  %v308 = vunpack.c.l.b16 %v244
  %v309 = vunpack.c.h.b16 %v244
  %v310 = vunpack.c.l.b16 %v245
  %v311 = vunpack.c.h.b16 %v245
  %v312 = vunpack.c.l.b16 %v246
  %v313 = vunpack.c.l.b16 %v247
  %v314 = vunpack.c.h.b16 %v247
  %v315 = vunpack.c.l.b16 %v248
  %v316 = vunpack.c.h.b16 %v248
  %v317 = vunpack.c.l.b16 %v249
  %v318 = vunpack.c.h.b16 %v249
  %v319 = vunpack.c.l.b16 %v250
  %v320 = vunpack.c.h.b16 %v250
  %v321 = vunpack.c.l.b16 %v251
  %v322 = vunpack.c.h.b16 %v251
  %v323 = vunpack.c.l.b16 %v252
  %v324 = vunpack.c.l.b16 %v253
  %v325 = vunpack.c.h.b16 %v253
  %v326 = vunpack.c.l.b16 %v254
  %v327 = vunpack.c.h.b16 %v254
  %v328 = vunpack.c.l.b16 %v255
  %v329 = vunpack.c.h.b16 %v255
  %v330 = vunpack.c.l.b16 %v256
  %v331 = vunpack.c.h.b16 %v256
  %v332 = vunpack.c.l.b16 %v257
  %v333 = vunpack.c.h.b16 %v257
  %v334 = vunpack.c.l.b16 %v258
  %v335 = vpack.c.b16 %v302, %v291
  %v336 = vpack.c.b16 %v303, %v292
  %v337 = vpack.c.b16 %v304, %v293
  %v338 = vpack.c.b16 %v305, %v294
  %v339 = vpack.c.b16 %v306, %v295
  %v340 = vpack.c.b16 %v307, %v296
  %v341 = vpack.c.b16 %v308, %v297
  %v342 = vpack.c.b16 %v309, %v298
  %v343 = vpack.c.b16 %v310, %v299
  %v344 = vpack.c.b16 %v311, %v300
  %v345 = vpack.c.b16 %v312, %v301
  %v346 = vpack.c.b16 %v324, %v313
  %v347 = vpack.c.b16 %v325, %v314
  %v348 = vpack.c.b16 %v326, %v315
  %v349 = vpack.c.b16 %v327, %v316
  %v350 = vpack.c.b16 %v328, %v317
  %v351 = vpack.c.b16 %v329, %v318
  %v352 = vpack.c.b16 %v330, %v319
  %v353 = vpack.c.b16 %v331, %v320
  %v354 = vpack.c.b16 %v332, %v321
  %v355 = vpack.c.b16 %v333, %v322
  %v356 = vpack.c.b16 %v334, %v323
  %vm379 = vcmask 261120
  %v381 = vsel %vm379, %v265, 0
  %v384 = vsel %vm379, %v266, 0
  %386 = vmatpush.bf16.msra.mxu0 0
  %387 = vmatpush.bf16.msra.mxu0 0
  %388 = vmatpush.bf16.msra.mxu0 0
  %389 = vmatpush.bf16.msra.mxu0 0
  %390 = vmatpush.bf16.msra.mxu0 0
  %391 = vmatpush.bf16.msra.mxu0 0
  %392 = vmatpush.bf16.msra.mxu0 %v346
  %393 = vmatpush.bf16.msra.mxu0 %v335
  %394 = vmatmul.bf16.gmra.mxu0 %v381
  %v395 = vpop.f32.mrf.mxu0
  %v396 = vadd.f32 0.0, %v395
  %v397 = vpop.f32.mrf.mxu0
  %v398 = vadd.f32 0.0, %v397
  %399 = vmatmul.bf16.gmra.mxu0 %v384
  %v400 = vpop.f32.mrf.mxu0
  %v401 = vadd.f32 0.0, %v400
  %v402 = vpop.f32.mrf.mxu0
  %403 = vdwg.mxu0
  %404 = vmatpush.bf16.msra.mxu0 0
  %405 = vmatpush.bf16.msra.mxu0 0
  %406 = vmatpush.bf16.msra.mxu0 0
  %407 = vmatpush.bf16.msra.mxu0 0
  %408 = vmatpush.bf16.msra.mxu0 0
  %409 = vmatpush.bf16.msra.mxu0 0
  %410 = vmatpush.bf16.msra.mxu0 %v347
  %411 = vmatpush.bf16.msra.mxu0 %v336
  %412 = vmatmul.bf16.gmra.mxu0 %v381
  %v413 = vpop.f32.mrf.mxu0
  %v414 = vadd.f32 0.0, %v413
  %v415 = vpop.f32.mrf.mxu0
  %v416 = vadd.f32 0.0, %v415
  %417 = vmatmul.bf16.gmra.mxu0 %v384
  %v418 = vpop.f32.mrf.mxu0
  %v419 = vadd.f32 0.0, %v418
  %v420 = vpop.f32.mrf.mxu0
  %421 = vdwg.mxu0
  %422 = vmatpush.bf16.msra.mxu0 0
  %423 = vmatpush.bf16.msra.mxu0 0
  %424 = vmatpush.bf16.msra.mxu0 0
  %425 = vmatpush.bf16.msra.mxu0 0
  %426 = vmatpush.bf16.msra.mxu0 0
  %427 = vmatpush.bf16.msra.mxu0 0
  %428 = vmatpush.bf16.msra.mxu0 %v348
  %429 = vmatpush.bf16.msra.mxu0 %v337
  %430 = vmatmul.bf16.gmra.mxu0 %v381
  %v431 = vpop.f32.mrf.mxu0
  %v432 = vadd.f32 0.0, %v431
  %v433 = vpop.f32.mrf.mxu0
  %v434 = vadd.f32 0.0, %v433
  %435 = vmatmul.bf16.gmra.mxu0 %v384
  %v436 = vpop.f32.mrf.mxu0
  %v437 = vadd.f32 0.0, %v436
  %v438 = vpop.f32.mrf.mxu0
  %439 = vdwg.mxu0
  %440 = vmatpush.bf16.msra.mxu0 0
  %441 = vmatpush.bf16.msra.mxu0 0
  %442 = vmatpush.bf16.msra.mxu0 0
  %443 = vmatpush.bf16.msra.mxu0 0
  %444 = vmatpush.bf16.msra.mxu0 0
  %445 = vmatpush.bf16.msra.mxu0 0
  %446 = vmatpush.bf16.msra.mxu0 %v349
  %447 = vmatpush.bf16.msra.mxu0 %v338
  %448 = vmatmul.bf16.gmra.mxu0 %v381
  %v449 = vpop.f32.mrf.mxu0
  %v450 = vadd.f32 0.0, %v449
  %v451 = vpop.f32.mrf.mxu0
  %v452 = vadd.f32 0.0, %v451
  %453 = vmatmul.bf16.gmra.mxu0 %v384
  %v454 = vpop.f32.mrf.mxu0
  %v455 = vadd.f32 0.0, %v454
  %v456 = vpop.f32.mrf.mxu0
  %457 = vdwg.mxu0
  %458 = vmatpush.bf16.msra.mxu0 0
  %459 = vmatpush.bf16.msra.mxu0 0
  %460 = vmatpush.bf16.msra.mxu0 0
  %461 = vmatpush.bf16.msra.mxu0 0
  %462 = vmatpush.bf16.msra.mxu0 0
  %463 = vmatpush.bf16.msra.mxu0 0
  %464 = vmatpush.bf16.msra.mxu0 %v350
  %465 = vmatpush.bf16.msra.mxu0 %v339
  %466 = vmatmul.bf16.gmra.mxu0 %v381
  %v467 = vpop.f32.mrf.mxu0
  %v468 = vadd.f32 0.0, %v467
  %v469 = vpop.f32.mrf.mxu0
  %v470 = vadd.f32 0.0, %v469
  %471 = vmatmul.bf16.gmra.mxu0 %v384
  %v472 = vpop.f32.mrf.mxu0
  %v473 = vadd.f32 0.0, %v472
  %v474 = vpop.f32.mrf.mxu0
  %475 = vdwg.mxu0
  %476 = vmatpush.bf16.msra.mxu0 0
  %477 = vmatpush.bf16.msra.mxu0 0
  %478 = vmatpush.bf16.msra.mxu0 0
  %479 = vmatpush.bf16.msra.mxu0 0
  %480 = vmatpush.bf16.msra.mxu0 0
  %481 = vmatpush.bf16.msra.mxu0 0
  %482 = vmatpush.bf16.msra.mxu0 %v351
  %483 = vmatpush.bf16.msra.mxu0 %v340
  %484 = vmatmul.bf16.gmra.mxu0 %v381
  %v485 = vpop.f32.mrf.mxu0
  %v486 = vadd.f32 0.0, %v485
  %v487 = vpop.f32.mrf.mxu0
  %v488 = vadd.f32 0.0, %v487
  %489 = vmatmul.bf16.gmra.mxu0 %v384
  %v490 = vpop.f32.mrf.mxu0
  %v491 = vadd.f32 0.0, %v490
  %v492 = vpop.f32.mrf.mxu0
  %493 = vdwg.mxu0
  %494 = vmatpush.bf16.msra.mxu0 0
  %495 = vmatpush.bf16.msra.mxu0 0
  %496 = vmatpush.bf16.msra.mxu0 0
  %497 = vmatpush.bf16.msra.mxu0 0
  %498 = vmatpush.bf16.msra.mxu0 0
  %499 = vmatpush.bf16.msra.mxu0 0
  %500 = vmatpush.bf16.msra.mxu0 %v352
  %501 = vmatpush.bf16.msra.mxu0 %v341
  %502 = vmatmul.bf16.gmra.mxu0 %v381
  %v503 = vpop.f32.mrf.mxu0
  %v504 = vadd.f32 0.0, %v503
  %v505 = vpop.f32.mrf.mxu0
  %v506 = vadd.f32 0.0, %v505
  %507 = vmatmul.bf16.gmra.mxu0 %v384
  %v508 = vpop.f32.mrf.mxu0
  %v509 = vadd.f32 0.0, %v508
  %v510 = vpop.f32.mrf.mxu0
  %511 = vdwg.mxu0
  %512 = vmatpush.bf16.msra.mxu0 0
  %513 = vmatpush.bf16.msra.mxu0 0
  %514 = vmatpush.bf16.msra.mxu0 0
  %515 = vmatpush.bf16.msra.mxu0 0
  %516 = vmatpush.bf16.msra.mxu0 0
  %517 = vmatpush.bf16.msra.mxu0 0
  %518 = vmatpush.bf16.msra.mxu0 %v353
  %519 = vmatpush.bf16.msra.mxu0 %v342
  %520 = vmatmul.bf16.gmra.mxu0 %v381
  %v521 = vpop.f32.mrf.mxu0
  %v522 = vadd.f32 0.0, %v521
  %v523 = vpop.f32.mrf.mxu0
  %v524 = vadd.f32 0.0, %v523
  %525 = vmatmul.bf16.gmra.mxu0 %v384
  %v526 = vpop.f32.mrf.mxu0
  %v527 = vadd.f32 0.0, %v526
  %v528 = vpop.f32.mrf.mxu0
  %529 = vdwg.mxu0
  %530 = vmatpush.bf16.msra.mxu0 0
  %531 = vmatpush.bf16.msra.mxu0 0
  %532 = vmatpush.bf16.msra.mxu0 0
  %533 = vmatpush.bf16.msra.mxu0 0
  %534 = vmatpush.bf16.msra.mxu0 0
  %535 = vmatpush.bf16.msra.mxu0 0
  %536 = vmatpush.bf16.msra.mxu0 %v354
  %537 = vmatpush.bf16.msra.mxu0 %v343
  %538 = vmatmul.bf16.gmra.mxu0 %v381
  %v539 = vpop.f32.mrf.mxu0
  %v540 = vadd.f32 0.0, %v539
  %v541 = vpop.f32.mrf.mxu0
  %v542 = vadd.f32 0.0, %v541
  %543 = vmatmul.bf16.gmra.mxu0 %v384
  %v544 = vpop.f32.mrf.mxu0
  %v545 = vadd.f32 0.0, %v544
  %v546 = vpop.f32.mrf.mxu0
  %547 = vdwg.mxu0
  %548 = vmatpush.bf16.msra.mxu0 0
  %549 = vmatpush.bf16.msra.mxu0 0
  %550 = vmatpush.bf16.msra.mxu0 0
  %551 = vmatpush.bf16.msra.mxu0 0
  %552 = vmatpush.bf16.msra.mxu0 0
  %553 = vmatpush.bf16.msra.mxu0 0
  %554 = vmatpush.bf16.msra.mxu0 %v355
  %555 = vmatpush.bf16.msra.mxu0 %v344
  %556 = vmatmul.bf16.gmra.mxu0 %v381
  %v557 = vpop.f32.mrf.mxu0
  %v558 = vadd.f32 0.0, %v557
  %v559 = vpop.f32.mrf.mxu0
  %v560 = vadd.f32 0.0, %v559
  %561 = vmatmul.bf16.gmra.mxu0 %v384
  %v562 = vpop.f32.mrf.mxu0
  %v563 = vadd.f32 0.0, %v562
  %v564 = vpop.f32.mrf.mxu0
  %565 = vdwg.mxu0
  %566 = vmatpush.bf16.msra.mxu0 0
  %567 = vmatpush.bf16.msra.mxu0 0
  %568 = vmatpush.bf16.msra.mxu0 0
  %569 = vmatpush.bf16.msra.mxu0 0
  %570 = vmatpush.bf16.msra.mxu0 0
  %571 = vmatpush.bf16.msra.mxu0 0
  %572 = vmatpush.bf16.msra.mxu0 %v356
  %573 = vmatpush.bf16.msra.mxu0 %v345
  %574 = vmatmul.bf16.gmra.mxu0 %v381
  %v575 = vpop.f32.mrf.mxu0
  %v576 = vadd.f32 0.0, %v575
  %v577 = vpop.f32.mrf.mxu0
  %v578 = vadd.f32 0.0, %v577
  %579 = vmatmul.bf16.gmra.mxu0 %v384
  %v580 = vpop.f32.mrf.mxu0
  %v581 = vadd.f32 0.0, %v580
  %v582 = vpop.f32.mrf.mxu0
  %583 = vdwg.mxu0
  %v584 = vmax.f32 %v396, 0.0
  %v585 = vmax.f32 %v414, 0.0
  %v586 = vmax.f32 %v432, 0.0
  %v587 = vmax.f32 %v450, 0.0
  %v588 = vmax.f32 %v468, 0.0
  %v589 = vmax.f32 %v486, 0.0
  %v590 = vmax.f32 %v504, 0.0
  %v591 = vmax.f32 %v522, 0.0
  %v592 = vmax.f32 %v540, 0.0
  %v593 = vmax.f32 %v558, 0.0
  %v594 = vmax.f32 %v576, 0.0
  %v595 = vmax.f32 %v398, 0.0
  %v596 = vmax.f32 %v416, 0.0
  %v597 = vmax.f32 %v434, 0.0
  %v598 = vmax.f32 %v452, 0.0
  %v599 = vmax.f32 %v470, 0.0
  %v600 = vmax.f32 %v488, 0.0
  %v601 = vmax.f32 %v506, 0.0
  %v602 = vmax.f32 %v524, 0.0
  %v603 = vmax.f32 %v542, 0.0
  %v604 = vmax.f32 %v560, 0.0
  %v605 = vmax.f32 %v578, 0.0
  %v606 = vmax.f32 %v401, 0.0
  %v607 = vmax.f32 %v419, 0.0
  %v608 = vmax.f32 %v437, 0.0
  %v609 = vmax.f32 %v455, 0.0
  %v610 = vmax.f32 %v473, 0.0
  %v611 = vmax.f32 %v491, 0.0
  %v612 = vmax.f32 %v509, 0.0
  %v613 = vmax.f32 %v527, 0.0
  %v614 = vmax.f32 %v545, 0.0
  %v615 = vmax.f32 %v563, 0.0
  %v616 = vmax.f32 %v581, 0.0
  %v617 = vpack.c.bf16 %v595, %v584
  %v618 = vpack.c.bf16 %v596, %v585
  %v619 = vpack.c.bf16 %v597, %v586
  %v620 = vpack.c.bf16 %v598, %v587
  %v621 = vpack.c.bf16 %v599, %v588
  %v622 = vpack.c.bf16 %v600, %v589
  %v623 = vpack.c.bf16 %v601, %v590
  %v624 = vpack.c.bf16 %v602, %v591
  %v625 = vpack.c.bf16 %v603, %v592
  %v626 = vpack.c.bf16 %v604, %v593
  %v627 = vpack.c.bf16 %v605, %v594
  %v628 = vpack.c.bf16 %v606, %v606
  %v629 = vpack.c.bf16 %v607, %v607
  %v630 = vpack.c.bf16 %v608, %v608
  %v631 = vpack.c.bf16 %v609, %v609
  %v632 = vpack.c.bf16 %v610, %v610
  %v633 = vpack.c.bf16 %v611, %v611
  %v634 = vpack.c.bf16 %v612, %v612
  %v635 = vpack.c.bf16 %v613, %v613
  %v636 = vpack.c.bf16 %v614, %v614
  %v637 = vpack.c.bf16 %v615, %v615
  %v638 = vpack.c.bf16 %v616, %v616
  %v815 = vunpack.c.l.b16 %v27
  %v816 = vunpack.c.h.b16 %v27
  %v817 = vunpack.c.l.b16 %v28
  %v818 = vunpack.c.h.b16 %v28
  %v819 = vunpack.c.l.b16 %v29
  %v820 = vunpack.c.h.b16 %v29
  %v821 = vunpack.c.l.b16 %v30
  %v822 = vunpack.c.h.b16 %v30
  %v823 = vunpack.c.l.b16 %v31
  %v824 = vunpack.c.h.b16 %v31
  %v825 = vunpack.c.l.b16 %v32
  %v826 = vunpack.c.h.b16 %v32
  %v827 = vunpack.c.l.b16 %v33
  %v828 = vunpack.c.h.b16 %v33
  %v829 = vunpack.c.l.b16 %v34
  %v830 = vunpack.c.h.b16 %v34
  %v831 = vunpack.c.l.b16 %v35
  %v832 = vunpack.c.h.b16 %v35
  %v833 = vunpack.c.l.b16 %v36
  %v834 = vunpack.c.h.b16 %v36
  %v835 = vunpack.c.l.b16 %v37
  %v836 = vunpack.c.h.b16 %v37
  %v837 = vunpack.c.l.b16 %v38
  %v838 = vunpack.c.h.b16 %v38
  %v839 = vunpack.c.l.b16 %v39
  %v840 = vunpack.c.h.b16 %v39
  %v841 = vunpack.c.l.b16 %v40
  %v842 = vunpack.c.h.b16 %v40
  %v843 = vunpack.c.l.b16 %v41
  %v844 = vunpack.c.h.b16 %v41
  %v845 = vunpack.c.l.b16 %v42
  %v846 = vunpack.c.h.b16 %v42
  %v847 = vunpack.c.l.b16 %v43
  %v848 = vunpack.c.h.b16 %v43
  %v849 = vunpack.c.l.b16 %v44
  %v850 = vunpack.c.h.b16 %v44
  %v851 = vunpack.c.l.b16 %v45
  %v852 = vunpack.c.h.b16 %v45
  %v853 = vunpack.c.l.b16 %v46
  %v854 = vunpack.c.h.b16 %v46
  %v855 = vunpack.c.l.b16 %v47
  %v856 = vunpack.c.h.b16 %v47
  %v857 = vunpack.c.l.b16 %v48
  %v858 = vunpack.c.h.b16 %v48
  %v859 = vunpack.c.l.b16 %v49
  %v860 = vunpack.c.h.b16 %v49
  %v861 = vunpack.c.l.b16 %v50
  %v862 = vunpack.c.h.b16 %v50
  %v863 = vunpack.c.l.b16 %v51
  %v864 = vunpack.c.h.b16 %v51
  %v865 = vunpack.c.l.b16 %v52
  %v866 = vunpack.c.h.b16 %v52
  %v867 = vunpack.c.l.b16 %v53
  %v868 = vunpack.c.h.b16 %v53
  %v869 = vunpack.c.l.b16 %v54
  %v870 = vunpack.c.h.b16 %v54
  %v871 = vunpack.c.l.b16 %v55
  %v872 = vunpack.c.h.b16 %v55
  %v873 = vunpack.c.l.b16 %v56
  %v874 = vunpack.c.h.b16 %v56
  %v875 = vunpack.c.l.b16 %v57
  %v876 = vunpack.c.h.b16 %v57
  %v877 = vunpack.c.l.b16 %v58
  %v878 = vunpack.c.h.b16 %v58
  %v879 = vunpack.c.l.b16 %v59
  %v880 = vunpack.c.h.b16 %v59
  %v881 = vunpack.c.l.b16 %v60
  %v882 = vunpack.c.h.b16 %v60
  %v883 = vunpack.c.l.b16 %v61
  %v884 = vunpack.c.h.b16 %v61
  %v885 = vunpack.c.l.b16 %v62
  %v886 = vunpack.c.h.b16 %v62
  %v887 = vunpack.c.l.b16 %v63
  %v888 = vunpack.c.h.b16 %v63
  %v889 = vunpack.c.l.b16 %v64
  %v890 = vunpack.c.h.b16 %v64
  %v891 = vunpack.c.l.b16 %v65
  %v892 = vunpack.c.h.b16 %v65
  %v893 = vunpack.c.l.b16 %v66
  %v894 = vunpack.c.h.b16 %v66
  %v895 = vunpack.c.l.b16 %v67
  %v896 = vunpack.c.h.b16 %v67
  %v897 = vunpack.c.l.b16 %v68
  %v898 = vunpack.c.h.b16 %v68
  %v899 = vunpack.c.l.b16 %v69
  %v900 = vunpack.c.h.b16 %v69
  %v901 = vunpack.c.l.b16 %v70
  %v902 = vunpack.c.h.b16 %v70
  %v903 = vunpack.c.l.b16 %v71
  %v904 = vunpack.c.h.b16 %v71
  %v905 = vunpack.c.l.b16 %v72
  %v906 = vunpack.c.h.b16 %v72
  %v907 = vunpack.c.l.b16 %v73
  %v908 = vunpack.c.h.b16 %v73
  %v909 = vunpack.c.l.b16 %v74
  %v910 = vunpack.c.h.b16 %v74
  %v911 = vunpack.c.l.b16 %v75
  %v912 = vunpack.c.h.b16 %v75
  %v913 = vunpack.c.l.b16 %v76
  %v914 = vunpack.c.h.b16 %v76
  %v915 = vunpack.c.l.b16 %v77
  %v916 = vunpack.c.h.b16 %v77
  %v917 = vunpack.c.l.b16 %v78
  %v918 = vunpack.c.h.b16 %v78
  %v919 = vunpack.c.l.b16 %v79
  %v920 = vunpack.c.h.b16 %v79
  %v921 = vunpack.c.l.b16 %v80
  %v922 = vunpack.c.h.b16 %v80
  %v923 = vunpack.c.l.b16 %v81
  %v924 = vunpack.c.h.b16 %v81
  %v925 = vunpack.c.l.b16 %v82
  %v926 = vunpack.c.h.b16 %v82
  %v927 = vunpack.c.l.b16 %v83
  %v928 = vunpack.c.h.b16 %v83
  %v929 = vunpack.c.l.b16 %v84
  %v930 = vunpack.c.h.b16 %v84
  %v931 = vunpack.c.l.b16 %v85
  %v932 = vunpack.c.h.b16 %v85
  %v933 = vunpack.c.l.b16 %v86
  %v934 = vunpack.c.h.b16 %v86
  %v935 = vunpack.c.l.b16 %v87
  %v936 = vunpack.c.h.b16 %v87
  %v937 = vunpack.c.l.b16 %v88
  %v938 = vunpack.c.h.b16 %v88
  %v939 = vunpack.c.l.b16 %v89
  %v940 = vunpack.c.h.b16 %v89
  %v941 = vunpack.c.l.b16 %v90
  %v942 = vunpack.c.h.b16 %v90
  %v943 = vunpack.c.l.b16 %v91
  %v944 = vunpack.c.h.b16 %v91
  %v945 = vunpack.c.l.b16 %v92
  %v946 = vunpack.c.h.b16 %v92
  %v947 = vunpack.c.l.b16 %v93
  %v948 = vunpack.c.h.b16 %v93
  %v949 = vunpack.c.l.b16 %v94
  %v950 = vunpack.c.h.b16 %v94
  %v951 = vunpack.c.l.b16 %v95
  %v952 = vunpack.c.h.b16 %v95
  %v953 = vunpack.c.l.b16 %v96
  %v954 = vunpack.c.h.b16 %v96
  %v955 = vunpack.c.l.b16 %v97
  %v956 = vunpack.c.h.b16 %v97
  %v957 = vunpack.c.l.b16 %v98
  %v958 = vunpack.c.h.b16 %v98
  %v959 = vunpack.c.l.b16 %v99
  %v960 = vunpack.c.h.b16 %v99
  %v961 = vunpack.c.l.b16 %v100
  %v962 = vunpack.c.h.b16 %v100
  %v963 = vunpack.c.l.b16 %v101
  %v964 = vunpack.c.h.b16 %v101
  %v965 = vunpack.c.l.b16 %v102
  %v966 = vunpack.c.h.b16 %v102
  %v967 = vunpack.c.l.b16 %v103
  %v968 = vunpack.c.h.b16 %v103
  %v969 = vunpack.c.l.b16 %v104
  %v970 = vunpack.c.h.b16 %v104
  %v971 = vunpack.c.l.b16 %v105
  %v972 = vunpack.c.h.b16 %v105
  %v973 = vunpack.c.l.b16 %v106
  %v974 = vunpack.c.h.b16 %v106
  %v975 = vunpack.c.l.b16 %v107
  %v976 = vunpack.c.h.b16 %v107
  %v977 = vunpack.c.l.b16 %v108
  %v978 = vunpack.c.h.b16 %v108
  %v979 = vunpack.c.l.b16 %v109
  %v980 = vunpack.c.h.b16 %v109
  %v981 = vunpack.c.l.b16 %v110
  %v982 = vunpack.c.h.b16 %v110
  %v983 = vunpack.c.l.b16 %v111
  %v984 = vunpack.c.h.b16 %v111
  %v985 = vunpack.c.l.b16 %v112
  %v986 = vunpack.c.h.b16 %v112
  %v987 = vunpack.c.l.b16 %v113
  %v988 = vunpack.c.h.b16 %v113
  %v989 = vunpack.c.l.b16 %v114
  %v990 = vunpack.c.h.b16 %v114
  %v991 = vunpack.c.l.b16 %v115
  %v992 = vunpack.c.h.b16 %v115
  %v993 = vunpack.c.l.b16 %v116
  %v994 = vunpack.c.h.b16 %v116
  %v995 = vunpack.c.l.b16 %v117
  %v996 = vunpack.c.h.b16 %v117
  %v997 = vunpack.c.l.b16 %v118
  %v998 = vunpack.c.h.b16 %v118
  %v999 = vunpack.c.l.b16 %v119
  %v1000 = vunpack.c.h.b16 %v119
  %v1001 = vunpack.c.l.b16 %v120
  %v1002 = vunpack.c.h.b16 %v120
  %v1003 = vunpack.c.l.b16 %v121
  %v1004 = vunpack.c.h.b16 %v121
  %v1005 = vunpack.c.l.b16 %v122
  %v1006 = vunpack.c.h.b16 %v122
  %v1007 = vunpack.c.l.b16 %v123
  %v1008 = vunpack.c.h.b16 %v123
  %v1009 = vunpack.c.l.b16 %v124
  %v1010 = vunpack.c.h.b16 %v124
  %v1011 = vunpack.c.l.b16 %v125
  %v1012 = vunpack.c.h.b16 %v125
  %v1013 = vunpack.c.l.b16 %v126
  %v1014 = vunpack.c.h.b16 %v126
  %v1015 = vunpack.c.l.b16 %v127
  %v1016 = vunpack.c.h.b16 %v127
  %v1017 = vunpack.c.l.b16 %v128
  %v1018 = vunpack.c.h.b16 %v128
  %v1019 = vunpack.c.l.b16 %v129
  %v1020 = vunpack.c.h.b16 %v129
  %v1021 = vunpack.c.l.b16 %v130
  %v1022 = vunpack.c.h.b16 %v130
  %v1023 = vunpack.c.l.b16 %v131
  %v1024 = vunpack.c.h.b16 %v131
  %v1025 = vunpack.c.l.b16 %v132
  %v1026 = vunpack.c.h.b16 %v132
  %v1027 = vunpack.c.l.b16 %v133
  %v1028 = vunpack.c.h.b16 %v133
  %v1029 = vunpack.c.l.b16 %v134
  %v1030 = vunpack.c.h.b16 %v134
  %v1031 = vunpack.c.l.b16 %v135
  %v1032 = vunpack.c.h.b16 %v135
  %v1033 = vunpack.c.l.b16 %v136
  %v1034 = vunpack.c.h.b16 %v136
  %v1035 = vunpack.c.l.b16 %v137
  %v1036 = vunpack.c.h.b16 %v137
  %v1037 = vunpack.c.l.b16 %v138
  %v1038 = vunpack.c.h.b16 %v138
  %v1039 = vunpack.c.l.b16 %v139
  %v1040 = vunpack.c.h.b16 %v139
  %v1041 = vunpack.c.l.b16 %v140
  %v1042 = vunpack.c.h.b16 %v140
  %v1043 = vunpack.c.l.b16 %v141
  %v1044 = vunpack.c.h.b16 %v141
  %v1045 = vunpack.c.l.b16 %v142
  %v1046 = vunpack.c.h.b16 %v142
  %v1047 = vunpack.c.l.b16 %v143
  %v1048 = vunpack.c.h.b16 %v143
  %v1049 = vunpack.c.l.b16 %v144
  %v1050 = vunpack.c.h.b16 %v144
  %v1051 = vunpack.c.l.b16 %v145
  %v1052 = vunpack.c.h.b16 %v145
  %v1053 = vunpack.c.l.b16 %v146
  %v1054 = vunpack.c.h.b16 %v146
  %v1055 = vunpack.c.l.b16 %v147
  %v1056 = vunpack.c.h.b16 %v147
  %v1057 = vunpack.c.l.b16 %v148
  %v1058 = vunpack.c.h.b16 %v148
  %v1059 = vunpack.c.l.b16 %v149
  %v1060 = vunpack.c.h.b16 %v149
  %v1061 = vunpack.c.l.b16 %v150
  %v1062 = vunpack.c.h.b16 %v150
  %v1063 = vunpack.c.l.b16 %v151
  %v1064 = vunpack.c.h.b16 %v151
  %v1065 = vunpack.c.l.b16 %v152
  %v1066 = vunpack.c.h.b16 %v152
  %v1067 = vunpack.c.l.b16 %v153
  %v1068 = vunpack.c.h.b16 %v153
  %v1069 = vunpack.c.l.b16 %v154
  %v1070 = vunpack.c.h.b16 %v154
  %v1071 = vunpack.c.l.b16 %v155
  %v1072 = vunpack.c.h.b16 %v155
  %v1073 = vunpack.c.l.b16 %v156
  %v1074 = vunpack.c.h.b16 %v156
  %v1075 = vunpack.c.l.b16 %v157
  %v1076 = vunpack.c.h.b16 %v157
  %v1077 = vunpack.c.l.b16 %v158
  %v1078 = vunpack.c.h.b16 %v158
  %v1079 = vunpack.c.l.b16 %v159
  %v1080 = vunpack.c.h.b16 %v159
  %v1081 = vunpack.c.l.b16 %v160
  %v1082 = vunpack.c.h.b16 %v160
  %v1083 = vunpack.c.l.b16 %v161
  %v1084 = vunpack.c.h.b16 %v161
  %v1085 = vunpack.c.l.b16 %v162
  %v1086 = vunpack.c.h.b16 %v162
  %v1087 = vunpack.c.l.b16 %v163
  %v1088 = vunpack.c.h.b16 %v163
  %v1089 = vunpack.c.l.b16 %v164
  %v1090 = vunpack.c.h.b16 %v164
  %v1091 = vunpack.c.l.b16 %v165
  %v1092 = vunpack.c.h.b16 %v165
  %v1093 = vunpack.c.l.b16 %v166
  %v1094 = vunpack.c.h.b16 %v166
  %v1095 = vunpack.c.l.b16 %v167
  %v1096 = vunpack.c.h.b16 %v167
  %v1097 = vunpack.c.l.b16 %v168
  %v1098 = vunpack.c.h.b16 %v168
  %v1099 = vunpack.c.l.b16 %v169
  %v1100 = vunpack.c.h.b16 %v169
  %v1101 = vunpack.c.l.b16 %v170
  %v1102 = vunpack.c.h.b16 %v170
  %v1103 = vunpack.c.l.b16 %v171
  %v1104 = vunpack.c.h.b16 %v171
  %v1105 = vunpack.c.l.b16 %v172
  %v1106 = vunpack.c.h.b16 %v172
  %v1107 = vunpack.c.l.b16 %v173
  %v1108 = vunpack.c.h.b16 %v173
  %v1109 = vunpack.c.l.b16 %v174
  %v1110 = vunpack.c.h.b16 %v174
  %v1111 = vunpack.c.l.b16 %v175
  %v1112 = vunpack.c.h.b16 %v175
  %v1113 = vunpack.c.l.b16 %v176
  %v1114 = vunpack.c.h.b16 %v176
  %v1115 = vunpack.c.l.b16 %v177
  %v1116 = vunpack.c.h.b16 %v177
  %v1117 = vunpack.c.l.b16 %v178
  %v1118 = vunpack.c.h.b16 %v178
  %v1119 = vunpack.c.l.b16 %v179
  %v1120 = vunpack.c.h.b16 %v179
  %v1121 = vunpack.c.l.b16 %v180
  %v1122 = vunpack.c.h.b16 %v180
  %v1123 = vunpack.c.l.b16 %v181
  %v1124 = vunpack.c.h.b16 %v181
  %v1125 = vunpack.c.l.b16 %v182
  %v1126 = vunpack.c.h.b16 %v182
  %v1127 = vunpack.c.l.b16 %v183
  %v1128 = vunpack.c.h.b16 %v183
  %v1129 = vunpack.c.l.b16 %v184
  %v1130 = vunpack.c.h.b16 %v184
  %v1131 = vunpack.c.l.b16 %v185
  %v1132 = vunpack.c.h.b16 %v185
  %v1133 = vunpack.c.l.b16 %v186
  %v1134 = vunpack.c.h.b16 %v186
  %v1135 = vunpack.c.l.b16 %v187
  %v1136 = vunpack.c.h.b16 %v187
  %v1137 = vunpack.c.l.b16 %v188
  %v1138 = vunpack.c.h.b16 %v188
  %v1139 = vunpack.c.l.b16 %v189
  %v1140 = vunpack.c.h.b16 %v189
  %v1141 = vunpack.c.l.b16 %v190
  %v1142 = vunpack.c.h.b16 %v190
  %v1143 = vunpack.c.l.b16 %v191
  %v1144 = vunpack.c.h.b16 %v191
  %v1145 = vunpack.c.l.b16 %v192
  %v1146 = vunpack.c.h.b16 %v192
  %v1147 = vunpack.c.l.b16 %v193
  %v1148 = vunpack.c.h.b16 %v193
  %v1149 = vunpack.c.l.b16 %v194
  %v1150 = vunpack.c.h.b16 %v194
  %v1151 = vunpack.c.l.b16 %v195
  %v1152 = vunpack.c.h.b16 %v195
  %v1153 = vunpack.c.l.b16 %v196
  %v1154 = vunpack.c.h.b16 %v196
  %v1155 = vunpack.c.l.b16 %v197
  %v1156 = vunpack.c.h.b16 %v197
  %v1157 = vunpack.c.l.b16 %v198
  %v1158 = vunpack.c.h.b16 %v198
  %v1159 = vunpack.c.l.b16 %v199
  %v1160 = vunpack.c.h.b16 %v199
  %v1161 = vunpack.c.l.b16 %v200
  %v1162 = vunpack.c.h.b16 %v200
  %v1163 = vunpack.c.l.b16 %v201
  %v1164 = vunpack.c.h.b16 %v201
  %v1165 = vunpack.c.l.b16 %v202
  %v1166 = vunpack.c.h.b16 %v202
  %v1167 = vpack.c.b16 %v817, %v815
  %v1168 = vpack.c.b16 %v818, %v816
  %v1169 = vpack.c.b16 %v821, %v819
  %v1170 = vpack.c.b16 %v822, %v820
  %v1171 = vpack.c.b16 %v825, %v823
  %v1172 = vpack.c.b16 %v826, %v824
  %v1173 = vpack.c.b16 %v829, %v827
  %v1174 = vpack.c.b16 %v830, %v828
  %v1175 = vpack.c.b16 %v833, %v831
  %v1176 = vpack.c.b16 %v834, %v832
  %v1177 = vpack.c.b16 %v837, %v835
  %v1178 = vpack.c.b16 %v838, %v836
  %v1179 = vpack.c.b16 %v841, %v839
  %v1180 = vpack.c.b16 %v842, %v840
  %v1181 = vpack.c.b16 %v845, %v843
  %v1182 = vpack.c.b16 %v846, %v844
  %v1183 = vpack.c.b16 %v849, %v847
  %v1184 = vpack.c.b16 %v850, %v848
  %v1185 = vpack.c.b16 %v853, %v851
  %v1186 = vpack.c.b16 %v854, %v852
  %v1187 = vpack.c.b16 %v857, %v855
  %v1188 = vpack.c.b16 %v858, %v856
  %v1189 = vpack.c.b16 %v861, %v859
  %v1190 = vpack.c.b16 %v862, %v860
  %v1191 = vpack.c.b16 %v865, %v863
  %v1192 = vpack.c.b16 %v866, %v864
  %v1193 = vpack.c.b16 %v869, %v867
  %v1194 = vpack.c.b16 %v870, %v868
  %v1195 = vpack.c.b16 %v873, %v871
  %v1196 = vpack.c.b16 %v874, %v872
  %v1197 = vpack.c.b16 %v877, %v875
  %v1198 = vpack.c.b16 %v878, %v876
  %v1199 = vpack.c.b16 %v881, %v879
  %v1200 = vpack.c.b16 %v882, %v880
  %v1201 = vpack.c.b16 %v885, %v883
  %v1202 = vpack.c.b16 %v886, %v884
  %v1203 = vpack.c.b16 %v889, %v887
  %v1204 = vpack.c.b16 %v890, %v888
  %v1205 = vpack.c.b16 %v893, %v891
  %v1206 = vpack.c.b16 %v894, %v892
  %v1207 = vpack.c.b16 %v897, %v895
  %v1208 = vpack.c.b16 %v898, %v896
  %v1209 = vpack.c.b16 %v901, %v899
  %v1210 = vpack.c.b16 %v902, %v900
  %v1211 = vpack.c.b16 %v905, %v903
  %v1212 = vpack.c.b16 %v906, %v904
  %v1213 = vpack.c.b16 %v909, %v907
  %v1214 = vpack.c.b16 %v910, %v908
  %v1215 = vpack.c.b16 %v913, %v911
  %v1216 = vpack.c.b16 %v914, %v912
  %v1217 = vpack.c.b16 %v917, %v915
  %v1218 = vpack.c.b16 %v918, %v916
  %v1219 = vpack.c.b16 %v921, %v919
  %v1220 = vpack.c.b16 %v922, %v920
  %v1221 = vpack.c.b16 %v925, %v923
  %v1222 = vpack.c.b16 %v926, %v924
  %v1223 = vpack.c.b16 %v929, %v927
  %v1224 = vpack.c.b16 %v930, %v928
  %v1225 = vpack.c.b16 %v933, %v931
  %v1226 = vpack.c.b16 %v934, %v932
  %v1227 = vpack.c.b16 %v937, %v935
  %v1228 = vpack.c.b16 %v938, %v936
  %v1229 = vpack.c.b16 %v941, %v939
  %v1230 = vpack.c.b16 %v942, %v940
  %v1231 = vpack.c.b16 %v945, %v943
  %v1232 = vpack.c.b16 %v946, %v944
  %v1233 = vpack.c.b16 %v949, %v947
  %v1234 = vpack.c.b16 %v950, %v948
  %v1235 = vpack.c.b16 %v953, %v951
  %v1236 = vpack.c.b16 %v954, %v952
  %v1237 = vpack.c.b16 %v957, %v955
  %v1238 = vpack.c.b16 %v958, %v956
  %v1239 = vpack.c.b16 %v961, %v959
  %v1240 = vpack.c.b16 %v962, %v960
  %v1241 = vpack.c.b16 %v965, %v963
  %v1242 = vpack.c.b16 %v966, %v964
  %v1243 = vpack.c.b16 %v969, %v967
  %v1244 = vpack.c.b16 %v970, %v968
  %v1245 = vpack.c.b16 %v973, %v971
  %v1246 = vpack.c.b16 %v974, %v972
  %v1247 = vpack.c.b16 %v977, %v975
  %v1248 = vpack.c.b16 %v978, %v976
  %v1249 = vpack.c.b16 %v981, %v979
  %v1250 = vpack.c.b16 %v982, %v980
  %v1251 = vpack.c.b16 %v985, %v983
  %v1252 = vpack.c.b16 %v986, %v984
  %v1253 = vpack.c.b16 %v989, %v987
  %v1254 = vpack.c.b16 %v990, %v988
  %v1255 = vpack.c.b16 %v993, %v991
  %v1256 = vpack.c.b16 %v994, %v992
  %v1257 = vpack.c.b16 %v997, %v995
  %v1258 = vpack.c.b16 %v998, %v996
  %v1259 = vpack.c.b16 %v1001, %v999
  %v1260 = vpack.c.b16 %v1002, %v1000
  %v1261 = vpack.c.b16 %v1005, %v1003
  %v1262 = vpack.c.b16 %v1006, %v1004
  %v1263 = vpack.c.b16 %v1009, %v1007
  %v1264 = vpack.c.b16 %v1010, %v1008
  %v1265 = vpack.c.b16 %v1013, %v1011
  %v1266 = vpack.c.b16 %v1014, %v1012
  %v1267 = vpack.c.b16 %v1017, %v1015
  %v1268 = vpack.c.b16 %v1018, %v1016
  %v1269 = vpack.c.b16 %v1021, %v1019
  %v1270 = vpack.c.b16 %v1022, %v1020
  %v1271 = vpack.c.b16 %v1025, %v1023
  %v1272 = vpack.c.b16 %v1026, %v1024
  %v1273 = vpack.c.b16 %v1029, %v1027
  %v1274 = vpack.c.b16 %v1030, %v1028
  %v1275 = vpack.c.b16 %v1033, %v1031
  %v1276 = vpack.c.b16 %v1034, %v1032
  %v1277 = vpack.c.b16 %v1037, %v1035
  %v1278 = vpack.c.b16 %v1038, %v1036
  %v1279 = vpack.c.b16 %v1041, %v1039
  %v1280 = vpack.c.b16 %v1042, %v1040
  %v1281 = vpack.c.b16 %v1045, %v1043
  %v1282 = vpack.c.b16 %v1046, %v1044
  %v1283 = vpack.c.b16 %v1049, %v1047
  %v1284 = vpack.c.b16 %v1050, %v1048
  %v1285 = vpack.c.b16 %v1053, %v1051
  %v1286 = vpack.c.b16 %v1054, %v1052
  %v1287 = vpack.c.b16 %v1057, %v1055
  %v1288 = vpack.c.b16 %v1058, %v1056
  %v1289 = vpack.c.b16 %v1061, %v1059
  %v1290 = vpack.c.b16 %v1062, %v1060
  %v1291 = vpack.c.b16 %v1065, %v1063
  %v1292 = vpack.c.b16 %v1066, %v1064
  %v1293 = vpack.c.b16 %v1069, %v1067
  %v1294 = vpack.c.b16 %v1070, %v1068
  %v1295 = vpack.c.b16 %v1073, %v1071
  %v1296 = vpack.c.b16 %v1074, %v1072
  %v1297 = vpack.c.b16 %v1077, %v1075
  %v1298 = vpack.c.b16 %v1078, %v1076
  %v1299 = vpack.c.b16 %v1081, %v1079
  %v1300 = vpack.c.b16 %v1082, %v1080
  %v1301 = vpack.c.b16 %v1085, %v1083
  %v1302 = vpack.c.b16 %v1086, %v1084
  %v1303 = vpack.c.b16 %v1089, %v1087
  %v1304 = vpack.c.b16 %v1090, %v1088
  %v1305 = vpack.c.b16 %v1093, %v1091
  %v1306 = vpack.c.b16 %v1094, %v1092
  %v1307 = vpack.c.b16 %v1097, %v1095
  %v1308 = vpack.c.b16 %v1098, %v1096
  %v1309 = vpack.c.b16 %v1101, %v1099
  %v1310 = vpack.c.b16 %v1102, %v1100
  %v1311 = vpack.c.b16 %v1105, %v1103
  %v1312 = vpack.c.b16 %v1106, %v1104
  %v1313 = vpack.c.b16 %v1109, %v1107
  %v1314 = vpack.c.b16 %v1110, %v1108
  %v1315 = vpack.c.b16 %v1113, %v1111
  %v1316 = vpack.c.b16 %v1114, %v1112
  %v1317 = vpack.c.b16 %v1117, %v1115
  %v1318 = vpack.c.b16 %v1118, %v1116
  %v1319 = vpack.c.b16 %v1121, %v1119
  %v1320 = vpack.c.b16 %v1122, %v1120
  %v1321 = vpack.c.b16 %v1125, %v1123
  %v1322 = vpack.c.b16 %v1126, %v1124
  %v1323 = vpack.c.b16 %v1129, %v1127
  %v1324 = vpack.c.b16 %v1130, %v1128
  %v1325 = vpack.c.b16 %v1133, %v1131
  %v1326 = vpack.c.b16 %v1134, %v1132
  %v1327 = vpack.c.b16 %v1137, %v1135
  %v1328 = vpack.c.b16 %v1138, %v1136
  %v1329 = vpack.c.b16 %v1141, %v1139
  %v1330 = vpack.c.b16 %v1142, %v1140
  %v1331 = vpack.c.b16 %v1145, %v1143
  %v1332 = vpack.c.b16 %v1146, %v1144
  %v1333 = vpack.c.b16 %v1149, %v1147
  %v1334 = vpack.c.b16 %v1150, %v1148
  %v1335 = vpack.c.b16 %v1153, %v1151
  %v1336 = vpack.c.b16 %v1154, %v1152
  %v1337 = vpack.c.b16 %v1157, %v1155
  %v1338 = vpack.c.b16 %v1158, %v1156
  %v1339 = vpack.c.b16 %v1161, %v1159
  %v1340 = vpack.c.b16 %v1162, %v1160
  %v1341 = vpack.c.b16 %v1165, %v1163
  %v1342 = vpack.c.b16 %v1166, %v1164
  %1519 = vmatpush.bf16.msra.mxu0 %v1181
  %1520 = vmatpush.bf16.msra.mxu0 %v1179
  %1521 = vmatpush.bf16.msra.mxu0 %v1177
  %1522 = vmatpush.bf16.msra.mxu0 %v1175
  %1523 = vmatpush.bf16.msra.mxu0 %v1173
  %1524 = vmatpush.bf16.msra.mxu0 %v1171
  %1525 = vmatpush.bf16.msra.mxu0 %v1169
  %1526 = vmatpush.bf16.msra.mxu0 %v1167
  %1527 = vmatmul.bf16.gmra.mxu0 %v617
  %v1528 = vpop.f32.mrf.mxu0
  %v1529 = vadd.f32 0.0, %v1528
  %v1530 = vpop.f32.mrf.mxu0
  %v1531 = vadd.f32 0.0, %v1530
  %1532 = vmatmul.bf16.gmra.mxu0 %v628
  %v1533 = vpop.f32.mrf.mxu0
  %v1534 = vadd.f32 0.0, %v1533
  %v1535 = vpop.f32.mrf.mxu0
  %1536 = vdwg.mxu0
  %1537 = vmatpush.bf16.msra.mxu0 %v1197
  %1538 = vmatpush.bf16.msra.mxu0 %v1195
  %1539 = vmatpush.bf16.msra.mxu0 %v1193
  %1540 = vmatpush.bf16.msra.mxu0 %v1191
  %1541 = vmatpush.bf16.msra.mxu0 %v1189
  %1542 = vmatpush.bf16.msra.mxu0 %v1187
  %1543 = vmatpush.bf16.msra.mxu0 %v1185
  %1544 = vmatpush.bf16.msra.mxu0 %v1183
  %1545 = vmatmul.bf16.gmra.mxu0 %v618
  %v1546 = vpop.f32.mrf.mxu0
  %v1547 = vadd.f32 %v1529, %v1546
  %v1548 = vpop.f32.mrf.mxu0
  %v1549 = vadd.f32 %v1531, %v1548
  %1550 = vmatmul.bf16.gmra.mxu0 %v629
  %v1551 = vpop.f32.mrf.mxu0
  %v1552 = vadd.f32 %v1534, %v1551
  %v1553 = vpop.f32.mrf.mxu0
  %1554 = vdwg.mxu0
  %1555 = vmatpush.bf16.msra.mxu0 %v1213
  %1556 = vmatpush.bf16.msra.mxu0 %v1211
  %1557 = vmatpush.bf16.msra.mxu0 %v1209
  %1558 = vmatpush.bf16.msra.mxu0 %v1207
  %1559 = vmatpush.bf16.msra.mxu0 %v1205
  %1560 = vmatpush.bf16.msra.mxu0 %v1203
  %1561 = vmatpush.bf16.msra.mxu0 %v1201
  %1562 = vmatpush.bf16.msra.mxu0 %v1199
  %1563 = vmatmul.bf16.gmra.mxu0 %v619
  %v1564 = vpop.f32.mrf.mxu0
  %v1565 = vadd.f32 %v1547, %v1564
  %v1566 = vpop.f32.mrf.mxu0
  %v1567 = vadd.f32 %v1549, %v1566
  %1568 = vmatmul.bf16.gmra.mxu0 %v630
  %v1569 = vpop.f32.mrf.mxu0
  %v1570 = vadd.f32 %v1552, %v1569
  %v1571 = vpop.f32.mrf.mxu0
  %1572 = vdwg.mxu0
  %1573 = vmatpush.bf16.msra.mxu0 %v1229
  %1574 = vmatpush.bf16.msra.mxu0 %v1227
  %1575 = vmatpush.bf16.msra.mxu0 %v1225
  %1576 = vmatpush.bf16.msra.mxu0 %v1223
  %1577 = vmatpush.bf16.msra.mxu0 %v1221
  %1578 = vmatpush.bf16.msra.mxu0 %v1219
  %1579 = vmatpush.bf16.msra.mxu0 %v1217
  %1580 = vmatpush.bf16.msra.mxu0 %v1215
  %1581 = vmatmul.bf16.gmra.mxu0 %v620
  %v1582 = vpop.f32.mrf.mxu0
  %v1583 = vadd.f32 %v1565, %v1582
  %v1584 = vpop.f32.mrf.mxu0
  %v1585 = vadd.f32 %v1567, %v1584
  %1586 = vmatmul.bf16.gmra.mxu0 %v631
  %v1587 = vpop.f32.mrf.mxu0
  %v1588 = vadd.f32 %v1570, %v1587
  %v1589 = vpop.f32.mrf.mxu0
  %1590 = vdwg.mxu0
  %1591 = vmatpush.bf16.msra.mxu0 %v1245
  %1592 = vmatpush.bf16.msra.mxu0 %v1243
  %1593 = vmatpush.bf16.msra.mxu0 %v1241
  %1594 = vmatpush.bf16.msra.mxu0 %v1239
  %1595 = vmatpush.bf16.msra.mxu0 %v1237
  %1596 = vmatpush.bf16.msra.mxu0 %v1235
  %1597 = vmatpush.bf16.msra.mxu0 %v1233
  %1598 = vmatpush.bf16.msra.mxu0 %v1231
  %1599 = vmatmul.bf16.gmra.mxu0 %v621
  %v1600 = vpop.f32.mrf.mxu0
  %v1601 = vadd.f32 %v1583, %v1600
  %v1602 = vpop.f32.mrf.mxu0
  %v1603 = vadd.f32 %v1585, %v1602
  %1604 = vmatmul.bf16.gmra.mxu0 %v632
  %v1605 = vpop.f32.mrf.mxu0
  %v1606 = vadd.f32 %v1588, %v1605
  %v1607 = vpop.f32.mrf.mxu0
  %1608 = vdwg.mxu0
  %1609 = vmatpush.bf16.msra.mxu0 %v1261
  %1610 = vmatpush.bf16.msra.mxu0 %v1259
  %1611 = vmatpush.bf16.msra.mxu0 %v1257
  %1612 = vmatpush.bf16.msra.mxu0 %v1255
  %1613 = vmatpush.bf16.msra.mxu0 %v1253
  %1614 = vmatpush.bf16.msra.mxu0 %v1251
  %1615 = vmatpush.bf16.msra.mxu0 %v1249
  %1616 = vmatpush.bf16.msra.mxu0 %v1247
  %1617 = vmatmul.bf16.gmra.mxu0 %v622
  %v1618 = vpop.f32.mrf.mxu0
  %v1619 = vadd.f32 %v1601, %v1618
  %v1620 = vpop.f32.mrf.mxu0
  %v1621 = vadd.f32 %v1603, %v1620
  %1622 = vmatmul.bf16.gmra.mxu0 %v633
  %v1623 = vpop.f32.mrf.mxu0
  %v1624 = vadd.f32 %v1606, %v1623
  %v1625 = vpop.f32.mrf.mxu0
  %1626 = vdwg.mxu0
  %1627 = vmatpush.bf16.msra.mxu0 %v1277
  %1628 = vmatpush.bf16.msra.mxu0 %v1275
  %1629 = vmatpush.bf16.msra.mxu0 %v1273
  %1630 = vmatpush.bf16.msra.mxu0 %v1271
  %1631 = vmatpush.bf16.msra.mxu0 %v1269
  %1632 = vmatpush.bf16.msra.mxu0 %v1267
  %1633 = vmatpush.bf16.msra.mxu0 %v1265
  %1634 = vmatpush.bf16.msra.mxu0 %v1263
  %1635 = vmatmul.bf16.gmra.mxu0 %v623
  %v1636 = vpop.f32.mrf.mxu0
  %v1637 = vadd.f32 %v1619, %v1636
  %v1638 = vpop.f32.mrf.mxu0
  %v1639 = vadd.f32 %v1621, %v1638
  %1640 = vmatmul.bf16.gmra.mxu0 %v634
  %v1641 = vpop.f32.mrf.mxu0
  %v1642 = vadd.f32 %v1624, %v1641
  %v1643 = vpop.f32.mrf.mxu0
  %1644 = vdwg.mxu0
  %1645 = vmatpush.bf16.msra.mxu0 %v1293
  %1646 = vmatpush.bf16.msra.mxu0 %v1291
  %1647 = vmatpush.bf16.msra.mxu0 %v1289
  %1648 = vmatpush.bf16.msra.mxu0 %v1287
  %1649 = vmatpush.bf16.msra.mxu0 %v1285
  %1650 = vmatpush.bf16.msra.mxu0 %v1283
  %1651 = vmatpush.bf16.msra.mxu0 %v1281
  %1652 = vmatpush.bf16.msra.mxu0 %v1279
  %1653 = vmatmul.bf16.gmra.mxu0 %v624
  %v1654 = vpop.f32.mrf.mxu0
  %v1655 = vadd.f32 %v1637, %v1654
  %v1656 = vpop.f32.mrf.mxu0
  %v1657 = vadd.f32 %v1639, %v1656
  %1658 = vmatmul.bf16.gmra.mxu0 %v635
  %v1659 = vpop.f32.mrf.mxu0
  %v1660 = vadd.f32 %v1642, %v1659
  %v1661 = vpop.f32.mrf.mxu0
  %1662 = vdwg.mxu0
  %1663 = vmatpush.bf16.msra.mxu0 %v1309
  %1664 = vmatpush.bf16.msra.mxu0 %v1307
  %1665 = vmatpush.bf16.msra.mxu0 %v1305
  %1666 = vmatpush.bf16.msra.mxu0 %v1303
  %1667 = vmatpush.bf16.msra.mxu0 %v1301
  %1668 = vmatpush.bf16.msra.mxu0 %v1299
  %1669 = vmatpush.bf16.msra.mxu0 %v1297
  %1670 = vmatpush.bf16.msra.mxu0 %v1295
  %1671 = vmatmul.bf16.gmra.mxu0 %v625
  %v1672 = vpop.f32.mrf.mxu0
  %v1673 = vadd.f32 %v1655, %v1672
  %v1674 = vpop.f32.mrf.mxu0
  %v1675 = vadd.f32 %v1657, %v1674
  %1676 = vmatmul.bf16.gmra.mxu0 %v636
  %v1677 = vpop.f32.mrf.mxu0
  %v1678 = vadd.f32 %v1660, %v1677
  %v1679 = vpop.f32.mrf.mxu0
  %1680 = vdwg.mxu0
  %1681 = vmatpush.bf16.msra.mxu0 %v1325
  %1682 = vmatpush.bf16.msra.mxu0 %v1323
  %1683 = vmatpush.bf16.msra.mxu0 %v1321
  %1684 = vmatpush.bf16.msra.mxu0 %v1319
  %1685 = vmatpush.bf16.msra.mxu0 %v1317
  %1686 = vmatpush.bf16.msra.mxu0 %v1315
  %1687 = vmatpush.bf16.msra.mxu0 %v1313
  %1688 = vmatpush.bf16.msra.mxu0 %v1311
  %1689 = vmatmul.bf16.gmra.mxu0 %v626
  %v1690 = vpop.f32.mrf.mxu0
  %v1691 = vadd.f32 %v1673, %v1690
  %v1692 = vpop.f32.mrf.mxu0
  %v1693 = vadd.f32 %v1675, %v1692
  %1694 = vmatmul.bf16.gmra.mxu0 %v637
  %v1695 = vpop.f32.mrf.mxu0
  %v1696 = vadd.f32 %v1678, %v1695
  %v1697 = vpop.f32.mrf.mxu0
  %1698 = vdwg.mxu0
  %1699 = vmatpush.bf16.msra.mxu0 %v1341
  %1700 = vmatpush.bf16.msra.mxu0 %v1339
  %1701 = vmatpush.bf16.msra.mxu0 %v1337
  %1702 = vmatpush.bf16.msra.mxu0 %v1335
  %1703 = vmatpush.bf16.msra.mxu0 %v1333
  %1704 = vmatpush.bf16.msra.mxu0 %v1331
  %1705 = vmatpush.bf16.msra.mxu0 %v1329
  %1706 = vmatpush.bf16.msra.mxu0 %v1327
  %1707 = vmatmul.bf16.gmra.mxu0 %v627
  %v1708 = vpop.f32.mrf.mxu0
  %v1709 = vadd.f32 %v1691, %v1708
  %v1710 = vpop.f32.mrf.mxu0
  %v1711 = vadd.f32 %v1693, %v1710
  %1712 = vmatmul.bf16.gmra.mxu0 %v638
  %v1713 = vpop.f32.mrf.mxu0
  %v1714 = vadd.f32 %v1696, %v1713
  %v1715 = vpop.f32.mrf.mxu0
  %1716 = vdwg.mxu0
  %1717 = vmatpush.bf16.msra.mxu0 %v1182
  %1718 = vmatpush.bf16.msra.mxu0 %v1180
  %1719 = vmatpush.bf16.msra.mxu0 %v1178
  %1720 = vmatpush.bf16.msra.mxu0 %v1176
  %1721 = vmatpush.bf16.msra.mxu0 %v1174
  %1722 = vmatpush.bf16.msra.mxu0 %v1172
  %1723 = vmatpush.bf16.msra.mxu0 %v1170
  %1724 = vmatpush.bf16.msra.mxu0 %v1168
  %1725 = vmatmul.bf16.gmra.mxu0 %v617
  %v1726 = vpop.f32.mrf.mxu0
  %v1727 = vadd.f32 0.0, %v1726
  %v1728 = vpop.f32.mrf.mxu0
  %v1729 = vadd.f32 0.0, %v1728
  %1730 = vmatmul.bf16.gmra.mxu0 %v628
  %v1731 = vpop.f32.mrf.mxu0
  %v1732 = vadd.f32 0.0, %v1731
  %v1733 = vpop.f32.mrf.mxu0
  %1734 = vdwg.mxu0
  %1735 = vmatpush.bf16.msra.mxu0 %v1198
  %1736 = vmatpush.bf16.msra.mxu0 %v1196
  %1737 = vmatpush.bf16.msra.mxu0 %v1194
  %1738 = vmatpush.bf16.msra.mxu0 %v1192
  %1739 = vmatpush.bf16.msra.mxu0 %v1190
  %1740 = vmatpush.bf16.msra.mxu0 %v1188
  %1741 = vmatpush.bf16.msra.mxu0 %v1186
  %1742 = vmatpush.bf16.msra.mxu0 %v1184
  %1743 = vmatmul.bf16.gmra.mxu0 %v618
  %v1744 = vpop.f32.mrf.mxu0
  %v1745 = vadd.f32 %v1727, %v1744
  %v1746 = vpop.f32.mrf.mxu0
  %v1747 = vadd.f32 %v1729, %v1746
  %1748 = vmatmul.bf16.gmra.mxu0 %v629
  %v1749 = vpop.f32.mrf.mxu0
  %v1750 = vadd.f32 %v1732, %v1749
  %v1751 = vpop.f32.mrf.mxu0
  %1752 = vdwg.mxu0
  %1753 = vmatpush.bf16.msra.mxu0 %v1214
  %1754 = vmatpush.bf16.msra.mxu0 %v1212
  %1755 = vmatpush.bf16.msra.mxu0 %v1210
  %1756 = vmatpush.bf16.msra.mxu0 %v1208
  %1757 = vmatpush.bf16.msra.mxu0 %v1206
  %1758 = vmatpush.bf16.msra.mxu0 %v1204
  %1759 = vmatpush.bf16.msra.mxu0 %v1202
  %1760 = vmatpush.bf16.msra.mxu0 %v1200
  %1761 = vmatmul.bf16.gmra.mxu0 %v619
  %v1762 = vpop.f32.mrf.mxu0
  %v1763 = vadd.f32 %v1745, %v1762
  %v1764 = vpop.f32.mrf.mxu0
  %v1765 = vadd.f32 %v1747, %v1764
  %1766 = vmatmul.bf16.gmra.mxu0 %v630
  %v1767 = vpop.f32.mrf.mxu0
  %v1768 = vadd.f32 %v1750, %v1767
  %v1769 = vpop.f32.mrf.mxu0
  %1770 = vdwg.mxu0
  %1771 = vmatpush.bf16.msra.mxu0 %v1230
  %1772 = vmatpush.bf16.msra.mxu0 %v1228
  %1773 = vmatpush.bf16.msra.mxu0 %v1226
  %1774 = vmatpush.bf16.msra.mxu0 %v1224
  %1775 = vmatpush.bf16.msra.mxu0 %v1222
  %1776 = vmatpush.bf16.msra.mxu0 %v1220
  %1777 = vmatpush.bf16.msra.mxu0 %v1218
  %1778 = vmatpush.bf16.msra.mxu0 %v1216
  %1779 = vmatmul.bf16.gmra.mxu0 %v620
  %v1780 = vpop.f32.mrf.mxu0
  %v1781 = vadd.f32 %v1763, %v1780
  %v1782 = vpop.f32.mrf.mxu0
  %v1783 = vadd.f32 %v1765, %v1782
  %1784 = vmatmul.bf16.gmra.mxu0 %v631
  %v1785 = vpop.f32.mrf.mxu0
  %v1786 = vadd.f32 %v1768, %v1785
  %v1787 = vpop.f32.mrf.mxu0
  %1788 = vdwg.mxu0
  %1789 = vmatpush.bf16.msra.mxu0 %v1246
  %1790 = vmatpush.bf16.msra.mxu0 %v1244
  %1791 = vmatpush.bf16.msra.mxu0 %v1242
  %1792 = vmatpush.bf16.msra.mxu0 %v1240
  %1793 = vmatpush.bf16.msra.mxu0 %v1238
  %1794 = vmatpush.bf16.msra.mxu0 %v1236
  %1795 = vmatpush.bf16.msra.mxu0 %v1234
  %1796 = vmatpush.bf16.msra.mxu0 %v1232
  %1797 = vmatmul.bf16.gmra.mxu0 %v621
  %v1798 = vpop.f32.mrf.mxu0
  %v1799 = vadd.f32 %v1781, %v1798
  %v1800 = vpop.f32.mrf.mxu0
  %v1801 = vadd.f32 %v1783, %v1800
  %1802 = vmatmul.bf16.gmra.mxu0 %v632
  %v1803 = vpop.f32.mrf.mxu0
  %v1804 = vadd.f32 %v1786, %v1803
  %v1805 = vpop.f32.mrf.mxu0
  %1806 = vdwg.mxu0
  %1807 = vmatpush.bf16.msra.mxu0 %v1262
  %1808 = vmatpush.bf16.msra.mxu0 %v1260
  %1809 = vmatpush.bf16.msra.mxu0 %v1258
  %1810 = vmatpush.bf16.msra.mxu0 %v1256
  %1811 = vmatpush.bf16.msra.mxu0 %v1254
  %1812 = vmatpush.bf16.msra.mxu0 %v1252
  %1813 = vmatpush.bf16.msra.mxu0 %v1250
  %1814 = vmatpush.bf16.msra.mxu0 %v1248
  %1815 = vmatmul.bf16.gmra.mxu0 %v622
  %v1816 = vpop.f32.mrf.mxu0
  %v1817 = vadd.f32 %v1799, %v1816
  %v1818 = vpop.f32.mrf.mxu0
  %v1819 = vadd.f32 %v1801, %v1818
  %1820 = vmatmul.bf16.gmra.mxu0 %v633
  %v1821 = vpop.f32.mrf.mxu0
  %v1822 = vadd.f32 %v1804, %v1821
  %v1823 = vpop.f32.mrf.mxu0
  %1824 = vdwg.mxu0
  %1825 = vmatpush.bf16.msra.mxu0 %v1278
  %1826 = vmatpush.bf16.msra.mxu0 %v1276
  %1827 = vmatpush.bf16.msra.mxu0 %v1274
  %1828 = vmatpush.bf16.msra.mxu0 %v1272
  %1829 = vmatpush.bf16.msra.mxu0 %v1270
  %1830 = vmatpush.bf16.msra.mxu0 %v1268
  %1831 = vmatpush.bf16.msra.mxu0 %v1266
  %1832 = vmatpush.bf16.msra.mxu0 %v1264
  %1833 = vmatmul.bf16.gmra.mxu0 %v623
  %v1834 = vpop.f32.mrf.mxu0
  %v1835 = vadd.f32 %v1817, %v1834
  %v1836 = vpop.f32.mrf.mxu0
  %v1837 = vadd.f32 %v1819, %v1836
  %1838 = vmatmul.bf16.gmra.mxu0 %v634
  %v1839 = vpop.f32.mrf.mxu0
  %v1840 = vadd.f32 %v1822, %v1839
  %v1841 = vpop.f32.mrf.mxu0
  %1842 = vdwg.mxu0
  %1843 = vmatpush.bf16.msra.mxu0 %v1294
  %1844 = vmatpush.bf16.msra.mxu0 %v1292
  %1845 = vmatpush.bf16.msra.mxu0 %v1290
  %1846 = vmatpush.bf16.msra.mxu0 %v1288
  %1847 = vmatpush.bf16.msra.mxu0 %v1286
  %1848 = vmatpush.bf16.msra.mxu0 %v1284
  %1849 = vmatpush.bf16.msra.mxu0 %v1282
  %1850 = vmatpush.bf16.msra.mxu0 %v1280
  %1851 = vmatmul.bf16.gmra.mxu0 %v624
  %v1852 = vpop.f32.mrf.mxu0
  %v1853 = vadd.f32 %v1835, %v1852
  %v1854 = vpop.f32.mrf.mxu0
  %v1855 = vadd.f32 %v1837, %v1854
  %1856 = vmatmul.bf16.gmra.mxu0 %v635
  %v1857 = vpop.f32.mrf.mxu0
  %v1858 = vadd.f32 %v1840, %v1857
  %v1859 = vpop.f32.mrf.mxu0
  %1860 = vdwg.mxu0
  %1861 = vmatpush.bf16.msra.mxu0 %v1310
  %1862 = vmatpush.bf16.msra.mxu0 %v1308
  %1863 = vmatpush.bf16.msra.mxu0 %v1306
  %1864 = vmatpush.bf16.msra.mxu0 %v1304
  %1865 = vmatpush.bf16.msra.mxu0 %v1302
  %1866 = vmatpush.bf16.msra.mxu0 %v1300
  %1867 = vmatpush.bf16.msra.mxu0 %v1298
  %1868 = vmatpush.bf16.msra.mxu0 %v1296
  %1869 = vmatmul.bf16.gmra.mxu0 %v625
  %v1870 = vpop.f32.mrf.mxu0
  %v1871 = vadd.f32 %v1853, %v1870
  %v1872 = vpop.f32.mrf.mxu0
  %v1873 = vadd.f32 %v1855, %v1872
  %1874 = vmatmul.bf16.gmra.mxu0 %v636
  %v1875 = vpop.f32.mrf.mxu0
  %v1876 = vadd.f32 %v1858, %v1875
  %v1877 = vpop.f32.mrf.mxu0
  %1878 = vdwg.mxu0
  %1879 = vmatpush.bf16.msra.mxu0 %v1326
  %1880 = vmatpush.bf16.msra.mxu0 %v1324
  %1881 = vmatpush.bf16.msra.mxu0 %v1322
  %1882 = vmatpush.bf16.msra.mxu0 %v1320
  %1883 = vmatpush.bf16.msra.mxu0 %v1318
  %1884 = vmatpush.bf16.msra.mxu0 %v1316
  %1885 = vmatpush.bf16.msra.mxu0 %v1314
  %1886 = vmatpush.bf16.msra.mxu0 %v1312
  %1887 = vmatmul.bf16.gmra.mxu0 %v626
  %v1888 = vpop.f32.mrf.mxu0
  %v1889 = vadd.f32 %v1871, %v1888
  %v1890 = vpop.f32.mrf.mxu0
  %v1891 = vadd.f32 %v1873, %v1890
  %1892 = vmatmul.bf16.gmra.mxu0 %v637
  %v1893 = vpop.f32.mrf.mxu0
  %v1894 = vadd.f32 %v1876, %v1893
  %v1895 = vpop.f32.mrf.mxu0
  %1896 = vdwg.mxu0
  %1897 = vmatpush.bf16.msra.mxu0 %v1342
  %1898 = vmatpush.bf16.msra.mxu0 %v1340
  %1899 = vmatpush.bf16.msra.mxu0 %v1338
  %1900 = vmatpush.bf16.msra.mxu0 %v1336
  %1901 = vmatpush.bf16.msra.mxu0 %v1334
  %1902 = vmatpush.bf16.msra.mxu0 %v1332
  %1903 = vmatpush.bf16.msra.mxu0 %v1330
  %1904 = vmatpush.bf16.msra.mxu0 %v1328
  %1905 = vmatmul.bf16.gmra.mxu0 %v627
  %v1906 = vpop.f32.mrf.mxu0
  %v1907 = vadd.f32 %v1889, %v1906
  %v1908 = vpop.f32.mrf.mxu0
  %v1909 = vadd.f32 %v1891, %v1908
  %1910 = vmatmul.bf16.gmra.mxu0 %v638
  %v1911 = vpop.f32.mrf.mxu0
  %v1912 = vadd.f32 %v1894, %v1911
  %v1913 = vpop.f32.mrf.mxu0
  %1914 = vdwg.mxu0
  %v1915 = vmul.f32 %v1709, %v203
  %v1916 = vmul.f32 %v1907, %v204
  %v1917 = vmul.f32 %v1711, %v205
  %v1918 = vmul.f32 %v1909, %v206
  %v1919 = vmul.f32 %v1714, %v207
  %v1920 = vmul.f32 %v1912, %v208
  %v1921 = vadd.f32 %v1915, %v1917
  %vm1922 = vcmask 1043456
  %v1923 = vsel %vm1922, %v1919, 0.0
  %v1924 = vadd.f32 %v1921, %v1923
  %v1925 = vrot.slane %v1924, 4
  %v1926 = vadd.f32 %v1924, %v1925
  %v1927 = vrot.slane %v1926, 2
  %v1928 = vadd.f32 %v1926, %v1927
  %v1929 = vrot.slane %v1928, 1
  %v1930 = vadd.f32 %v1928, %v1929
  %vm1931 = vcmask 588800
  %v1932 = vsel %vm1931, %v1916, 0.0
  %v1933 = vsel %vm1931, %v1918, 0.0
  %v1934 = vadd.f32 %v1932, %v1933
  %vm1935 = vcmask 584704
  %v1936 = vsel %vm1935, %v1920, 0.0
  %v1937 = vadd.f32 %v1934, %v1936
  %v1938 = vrot.slane %v1937, 4
  %v1939 = vadd.f32 %v1937, %v1938
  %v1940 = vrot.slane %v1939, 2
  %v1941 = vadd.f32 %v1939, %v1940
  %v1942 = vrot.slane %v1941, 1
  %v1943 = vadd.f32 %v1941, %v1942
  %v1945 = vsel %vm1931, %v1943, 0
  %1947 = vmatpush.msra.mxu0 %v224
  %1948 = vmatpush.msra.mxu0 %v223
  %1949 = vmatpush.msra.mxu0 %v222
  %1950 = vmatpush.msra.mxu0 %v221
  %1951 = vmatpush.msra.mxu0 %v220
  %1952 = vmatpush.msra.mxu0 %v219
  %1953 = vmatpush.msra.mxu0 %v218
  %1954 = vmatpush.msra.mxu0 %v217
  %1955 = vmatpush.msra.mxu0 %v216
  %1956 = vmatpush.msra.mxu0 %v215
  %1957 = vmatpush.msra.mxu0 %v214
  %1958 = vmatpush.msra.mxu0 %v213
  %1959 = vmatpush.msra.mxu0 %v212
  %1960 = vmatpush.msra.mxu0 %v211
  %1961 = vmatpush.msra.mxu0 %v210
  %1962 = vmatpush.msra.mxu0 %v209
  %1963 = vmatmul.f32.gmra.mxu0 %v1930
  %v1964 = vpop.f32.mrf.mxu0
  %v1965 = vadd.f32 %v234, %v1964
  %1966 = vdwg.mxu0
  %1967 = vmatpush.msra.mxu0 0.0
  %1968 = vmatpush.msra.mxu0 0.0
  %1969 = vmatpush.msra.mxu0 0.0
  %1970 = vmatpush.msra.mxu0 0.0
  %1971 = vmatpush.msra.mxu0 0.0
  %1972 = vmatpush.msra.mxu0 0.0
  %1973 = vmatpush.msra.mxu0 0.0
  %1974 = vmatpush.msra.mxu0 %v233
  %1975 = vmatpush.msra.mxu0 %v232
  %1976 = vmatpush.msra.mxu0 %v231
  %1977 = vmatpush.msra.mxu0 %v230
  %1978 = vmatpush.msra.mxu0 %v229
  %1979 = vmatpush.msra.mxu0 %v228
  %1980 = vmatpush.msra.mxu0 %v227
  %1981 = vmatpush.msra.mxu0 %v226
  %1982 = vmatpush.msra.mxu0 %v225
  %1983 = vmatmul.f32.gmra.mxu0 %v1945
  %v1984 = vpop.f32.mrf.mxu0
  %v1985 = vadd.f32 %v1965, %v1984
  %1986 = vdwg.mxu0
  %vm1987 = vcmask 73728
  %1988 = vst.msk [vmem:[%s6] sm:$0x1] %vm1987, %v1985
  %s1989 = scalar_lea.vmem %s0, 176
  %v1990 = vld [vmem:[%s1989] sm:$0xff]
  %v1991 = vld [vmem:[%s1989 + $0x8] sm:$0xff]
  %v1992 = vld [vmem:[%s1989 + $0x10] sm:$0xff]
  %v1993 = vld [vmem:[%s1989 + $0x18] sm:$0xff]
  %v1994 = vld [vmem:[%s1989 + $0x20] sm:$0xff]
  %v1995 = vld [vmem:[%s1989 + $0x28] sm:$0xf]
  %v1996 = vld [vmem:[%s1989 + $0x2c] sm:$0xff]
  %v1997 = vld [vmem:[%s1989 + $0x34] sm:$0xff]
  %v1998 = vld [vmem:[%s1989 + $0x3c] sm:$0xff]
  %v1999 = vld [vmem:[%s1989 + $0x44] sm:$0xff]
  %v2000 = vld [vmem:[%s1989 + $0x4c] sm:$0xff]
  %v2001 = vld [vmem:[%s1989 + $0x54] sm:$0xf]
  %v2002 = vld [vmem:[%s1989 + $0x58] sm:$0xff]
  %v2003 = vld [vmem:[%s1989 + $0x60] sm:$0xff]
  %v2004 = vld [vmem:[%s1989 + $0x68] sm:$0xff]
  %v2005 = vld [vmem:[%s1989 + $0x70] sm:$0xff]
  %v2006 = vld [vmem:[%s1989 + $0x78] sm:$0xff]
  %v2007 = vld [vmem:[%s1989 + $0x80] sm:$0xf]
  %v2008 = vld [vmem:[%s1989 + $0x84] sm:$0xff]
  %v2009 = vld [vmem:[%s1989 + $0x8c] sm:$0xff]
  %v2010 = vld [vmem:[%s1989 + $0x94] sm:$0xff]
  %v2011 = vld [vmem:[%s1989 + $0x9c] sm:$0xff]
  %v2012 = vld [vmem:[%s1989 + $0xa4] sm:$0xff]
  %v2013 = vld [vmem:[%s1989 + $0xac] sm:$0xf]
  %v2038 = vunpack.c.l.b16 %v1990
  %v2039 = vunpack.c.h.b16 %v1990
  %v2040 = vunpack.c.l.b16 %v1991
  %v2041 = vunpack.c.h.b16 %v1991
  %v2042 = vunpack.c.l.b16 %v1992
  %v2043 = vunpack.c.h.b16 %v1992
  %v2044 = vunpack.c.l.b16 %v1993
  %v2045 = vunpack.c.h.b16 %v1993
  %v2046 = vunpack.c.l.b16 %v1994
  %v2047 = vunpack.c.h.b16 %v1994
  %v2048 = vunpack.c.l.b16 %v1995
  %v2049 = vunpack.c.l.b16 %v1996
  %v2050 = vunpack.c.h.b16 %v1996
  %v2051 = vunpack.c.l.b16 %v1997
  %v2052 = vunpack.c.h.b16 %v1997
  %v2053 = vunpack.c.l.b16 %v1998
  %v2054 = vunpack.c.h.b16 %v1998
  %v2055 = vunpack.c.l.b16 %v1999
  %v2056 = vunpack.c.h.b16 %v1999
  %v2057 = vunpack.c.l.b16 %v2000
  %v2058 = vunpack.c.h.b16 %v2000
  %v2059 = vunpack.c.l.b16 %v2001
  %v2060 = vunpack.c.l.b16 %v2002
  %v2061 = vunpack.c.h.b16 %v2002
  %v2062 = vunpack.c.l.b16 %v2003
  %v2063 = vunpack.c.h.b16 %v2003
  %v2064 = vunpack.c.l.b16 %v2004
  %v2065 = vunpack.c.h.b16 %v2004
  %v2066 = vunpack.c.l.b16 %v2005
  %v2067 = vunpack.c.h.b16 %v2005
  %v2068 = vunpack.c.l.b16 %v2006
  %v2069 = vunpack.c.h.b16 %v2006
  %v2070 = vunpack.c.l.b16 %v2007
  %v2071 = vunpack.c.l.b16 %v2008
  %v2072 = vunpack.c.h.b16 %v2008
  %v2073 = vunpack.c.l.b16 %v2009
  %v2074 = vunpack.c.h.b16 %v2009
  %v2075 = vunpack.c.l.b16 %v2010
  %v2076 = vunpack.c.h.b16 %v2010
  %v2077 = vunpack.c.l.b16 %v2011
  %v2078 = vunpack.c.h.b16 %v2011
  %v2079 = vunpack.c.l.b16 %v2012
  %v2080 = vunpack.c.h.b16 %v2012
  %v2081 = vunpack.c.l.b16 %v2013
  %v2082 = vpack.c.b16 %v2049, %v2038
  %v2083 = vpack.c.b16 %v2050, %v2039
  %v2084 = vpack.c.b16 %v2051, %v2040
  %v2085 = vpack.c.b16 %v2052, %v2041
  %v2086 = vpack.c.b16 %v2053, %v2042
  %v2087 = vpack.c.b16 %v2054, %v2043
  %v2088 = vpack.c.b16 %v2055, %v2044
  %v2089 = vpack.c.b16 %v2056, %v2045
  %v2090 = vpack.c.b16 %v2057, %v2046
  %v2091 = vpack.c.b16 %v2058, %v2047
  %v2092 = vpack.c.b16 %v2059, %v2048
  %v2093 = vpack.c.b16 %v2071, %v2060
  %v2094 = vpack.c.b16 %v2072, %v2061
  %v2095 = vpack.c.b16 %v2073, %v2062
  %v2096 = vpack.c.b16 %v2074, %v2063
  %v2097 = vpack.c.b16 %v2075, %v2064
  %v2098 = vpack.c.b16 %v2076, %v2065
  %v2099 = vpack.c.b16 %v2077, %v2066
  %v2100 = vpack.c.b16 %v2078, %v2067
  %v2101 = vpack.c.b16 %v2079, %v2068
  %v2102 = vpack.c.b16 %v2080, %v2069
  %v2103 = vpack.c.b16 %v2081, %v2070
  %2126 = vmatpush.bf16.msra.mxu0 0
  %2127 = vmatpush.bf16.msra.mxu0 0
  %2128 = vmatpush.bf16.msra.mxu0 0
  %2129 = vmatpush.bf16.msra.mxu0 0
  %2130 = vmatpush.bf16.msra.mxu0 0
  %2131 = vmatpush.bf16.msra.mxu0 0
  %2132 = vmatpush.bf16.msra.mxu0 %v2093
  %2133 = vmatpush.bf16.msra.mxu0 %v2082
  %2134 = vmatmul.bf16.gmra.mxu0 %v381
  %v2135 = vpop.f32.mrf.mxu0
  %v2136 = vadd.f32 0.0, %v2135
  %v2137 = vpop.f32.mrf.mxu0
  %v2138 = vadd.f32 0.0, %v2137
  %2139 = vmatmul.bf16.gmra.mxu0 %v384
  %v2140 = vpop.f32.mrf.mxu0
  %v2141 = vadd.f32 0.0, %v2140
  %v2142 = vpop.f32.mrf.mxu0
  %2143 = vdwg.mxu0
  %2144 = vmatpush.bf16.msra.mxu0 0
  %2145 = vmatpush.bf16.msra.mxu0 0
  %2146 = vmatpush.bf16.msra.mxu0 0
  %2147 = vmatpush.bf16.msra.mxu0 0
  %2148 = vmatpush.bf16.msra.mxu0 0
  %2149 = vmatpush.bf16.msra.mxu0 0
  %2150 = vmatpush.bf16.msra.mxu0 %v2094
  %2151 = vmatpush.bf16.msra.mxu0 %v2083
  %2152 = vmatmul.bf16.gmra.mxu0 %v381
  %v2153 = vpop.f32.mrf.mxu0
  %v2154 = vadd.f32 0.0, %v2153
  %v2155 = vpop.f32.mrf.mxu0
  %v2156 = vadd.f32 0.0, %v2155
  %2157 = vmatmul.bf16.gmra.mxu0 %v384
  %v2158 = vpop.f32.mrf.mxu0
  %v2159 = vadd.f32 0.0, %v2158
  %v2160 = vpop.f32.mrf.mxu0
  %2161 = vdwg.mxu0
  %2162 = vmatpush.bf16.msra.mxu0 0
  %2163 = vmatpush.bf16.msra.mxu0 0
  %2164 = vmatpush.bf16.msra.mxu0 0
  %2165 = vmatpush.bf16.msra.mxu0 0
  %2166 = vmatpush.bf16.msra.mxu0 0
  %2167 = vmatpush.bf16.msra.mxu0 0
  %2168 = vmatpush.bf16.msra.mxu0 %v2095
  %2169 = vmatpush.bf16.msra.mxu0 %v2084
  %2170 = vmatmul.bf16.gmra.mxu0 %v381
  %v2171 = vpop.f32.mrf.mxu0
  %v2172 = vadd.f32 0.0, %v2171
  %v2173 = vpop.f32.mrf.mxu0
  %v2174 = vadd.f32 0.0, %v2173
  %2175 = vmatmul.bf16.gmra.mxu0 %v384
  %v2176 = vpop.f32.mrf.mxu0
  %v2177 = vadd.f32 0.0, %v2176
  %v2178 = vpop.f32.mrf.mxu0
  %2179 = vdwg.mxu0
  %2180 = vmatpush.bf16.msra.mxu0 0
  %2181 = vmatpush.bf16.msra.mxu0 0
  %2182 = vmatpush.bf16.msra.mxu0 0
  %2183 = vmatpush.bf16.msra.mxu0 0
  %2184 = vmatpush.bf16.msra.mxu0 0
  %2185 = vmatpush.bf16.msra.mxu0 0
  %2186 = vmatpush.bf16.msra.mxu0 %v2096
  %2187 = vmatpush.bf16.msra.mxu0 %v2085
  %2188 = vmatmul.bf16.gmra.mxu0 %v381
  %v2189 = vpop.f32.mrf.mxu0
  %v2190 = vadd.f32 0.0, %v2189
  %v2191 = vpop.f32.mrf.mxu0
  %v2192 = vadd.f32 0.0, %v2191
  %2193 = vmatmul.bf16.gmra.mxu0 %v384
  %v2194 = vpop.f32.mrf.mxu0
  %v2195 = vadd.f32 0.0, %v2194
  %v2196 = vpop.f32.mrf.mxu0
  %2197 = vdwg.mxu0
  %2198 = vmatpush.bf16.msra.mxu0 0
  %2199 = vmatpush.bf16.msra.mxu0 0
  %2200 = vmatpush.bf16.msra.mxu0 0
  %2201 = vmatpush.bf16.msra.mxu0 0
  %2202 = vmatpush.bf16.msra.mxu0 0
  %2203 = vmatpush.bf16.msra.mxu0 0
  %2204 = vmatpush.bf16.msra.mxu0 %v2097
  %2205 = vmatpush.bf16.msra.mxu0 %v2086
  %2206 = vmatmul.bf16.gmra.mxu0 %v381
  %v2207 = vpop.f32.mrf.mxu0
  %v2208 = vadd.f32 0.0, %v2207
  %v2209 = vpop.f32.mrf.mxu0
  %v2210 = vadd.f32 0.0, %v2209
  %2211 = vmatmul.bf16.gmra.mxu0 %v384
  %v2212 = vpop.f32.mrf.mxu0
  %v2213 = vadd.f32 0.0, %v2212
  %v2214 = vpop.f32.mrf.mxu0
  %2215 = vdwg.mxu0
  %2216 = vmatpush.bf16.msra.mxu0 0
  %2217 = vmatpush.bf16.msra.mxu0 0
  %2218 = vmatpush.bf16.msra.mxu0 0
  %2219 = vmatpush.bf16.msra.mxu0 0
  %2220 = vmatpush.bf16.msra.mxu0 0
  %2221 = vmatpush.bf16.msra.mxu0 0
  %2222 = vmatpush.bf16.msra.mxu0 %v2098
  %2223 = vmatpush.bf16.msra.mxu0 %v2087
  %2224 = vmatmul.bf16.gmra.mxu0 %v381
  %v2225 = vpop.f32.mrf.mxu0
  %v2226 = vadd.f32 0.0, %v2225
  %v2227 = vpop.f32.mrf.mxu0
  %v2228 = vadd.f32 0.0, %v2227
  %2229 = vmatmul.bf16.gmra.mxu0 %v384
  %v2230 = vpop.f32.mrf.mxu0
  %v2231 = vadd.f32 0.0, %v2230
  %v2232 = vpop.f32.mrf.mxu0
  %2233 = vdwg.mxu0
  %2234 = vmatpush.bf16.msra.mxu0 0
  %2235 = vmatpush.bf16.msra.mxu0 0
  %2236 = vmatpush.bf16.msra.mxu0 0
  %2237 = vmatpush.bf16.msra.mxu0 0
  %2238 = vmatpush.bf16.msra.mxu0 0
  %2239 = vmatpush.bf16.msra.mxu0 0
  %2240 = vmatpush.bf16.msra.mxu0 %v2099
  %2241 = vmatpush.bf16.msra.mxu0 %v2088
  %2242 = vmatmul.bf16.gmra.mxu0 %v381
  %v2243 = vpop.f32.mrf.mxu0
  %v2244 = vadd.f32 0.0, %v2243
  %v2245 = vpop.f32.mrf.mxu0
  %v2246 = vadd.f32 0.0, %v2245
  %2247 = vmatmul.bf16.gmra.mxu0 %v384
  %v2248 = vpop.f32.mrf.mxu0
  %v2249 = vadd.f32 0.0, %v2248
  %v2250 = vpop.f32.mrf.mxu0
  %2251 = vdwg.mxu0
  %2252 = vmatpush.bf16.msra.mxu0 0
  %2253 = vmatpush.bf16.msra.mxu0 0
  %2254 = vmatpush.bf16.msra.mxu0 0
  %2255 = vmatpush.bf16.msra.mxu0 0
  %2256 = vmatpush.bf16.msra.mxu0 0
  %2257 = vmatpush.bf16.msra.mxu0 0
  %2258 = vmatpush.bf16.msra.mxu0 %v2100
  %2259 = vmatpush.bf16.msra.mxu0 %v2089
  %2260 = vmatmul.bf16.gmra.mxu0 %v381
  %v2261 = vpop.f32.mrf.mxu0
  %v2262 = vadd.f32 0.0, %v2261
  %v2263 = vpop.f32.mrf.mxu0
  %v2264 = vadd.f32 0.0, %v2263
  %2265 = vmatmul.bf16.gmra.mxu0 %v384
  %v2266 = vpop.f32.mrf.mxu0
  %v2267 = vadd.f32 0.0, %v2266
  %v2268 = vpop.f32.mrf.mxu0
  %2269 = vdwg.mxu0
  %2270 = vmatpush.bf16.msra.mxu0 0
  %2271 = vmatpush.bf16.msra.mxu0 0
  %2272 = vmatpush.bf16.msra.mxu0 0
  %2273 = vmatpush.bf16.msra.mxu0 0
  %2274 = vmatpush.bf16.msra.mxu0 0
  %2275 = vmatpush.bf16.msra.mxu0 0
  %2276 = vmatpush.bf16.msra.mxu0 %v2101
  %2277 = vmatpush.bf16.msra.mxu0 %v2090
  %2278 = vmatmul.bf16.gmra.mxu0 %v381
  %v2279 = vpop.f32.mrf.mxu0
  %v2280 = vadd.f32 0.0, %v2279
  %v2281 = vpop.f32.mrf.mxu0
  %v2282 = vadd.f32 0.0, %v2281
  %2283 = vmatmul.bf16.gmra.mxu0 %v384
  %v2284 = vpop.f32.mrf.mxu0
  %v2285 = vadd.f32 0.0, %v2284
  %v2286 = vpop.f32.mrf.mxu0
  %2287 = vdwg.mxu0
  %2288 = vmatpush.bf16.msra.mxu0 0
  %2289 = vmatpush.bf16.msra.mxu0 0
  %2290 = vmatpush.bf16.msra.mxu0 0
  %2291 = vmatpush.bf16.msra.mxu0 0
  %2292 = vmatpush.bf16.msra.mxu0 0
  %2293 = vmatpush.bf16.msra.mxu0 0
  %2294 = vmatpush.bf16.msra.mxu0 %v2102
  %2295 = vmatpush.bf16.msra.mxu0 %v2091
  %2296 = vmatmul.bf16.gmra.mxu0 %v381
  %v2297 = vpop.f32.mrf.mxu0
  %v2298 = vadd.f32 0.0, %v2297
  %v2299 = vpop.f32.mrf.mxu0
  %v2300 = vadd.f32 0.0, %v2299
  %2301 = vmatmul.bf16.gmra.mxu0 %v384
  %v2302 = vpop.f32.mrf.mxu0
  %v2303 = vadd.f32 0.0, %v2302
  %v2304 = vpop.f32.mrf.mxu0
  %2305 = vdwg.mxu0
  %2306 = vmatpush.bf16.msra.mxu0 0
  %2307 = vmatpush.bf16.msra.mxu0 0
  %2308 = vmatpush.bf16.msra.mxu0 0
  %2309 = vmatpush.bf16.msra.mxu0 0
  %2310 = vmatpush.bf16.msra.mxu0 0
  %2311 = vmatpush.bf16.msra.mxu0 0
  %2312 = vmatpush.bf16.msra.mxu0 %v2103
  %2313 = vmatpush.bf16.msra.mxu0 %v2092
  %2314 = vmatmul.bf16.gmra.mxu0 %v381
  %v2315 = vpop.f32.mrf.mxu0
  %v2316 = vadd.f32 0.0, %v2315
  %v2317 = vpop.f32.mrf.mxu0
  %v2318 = vadd.f32 0.0, %v2317
  %2319 = vmatmul.bf16.gmra.mxu0 %v384
  %v2320 = vpop.f32.mrf.mxu0
  %v2321 = vadd.f32 0.0, %v2320
  %v2322 = vpop.f32.mrf.mxu0
  %2323 = vdwg.mxu0
  %v2324 = vmax.f32 %v2136, 0.0
  %v2325 = vmax.f32 %v2154, 0.0
  %v2326 = vmax.f32 %v2172, 0.0
  %v2327 = vmax.f32 %v2190, 0.0
  %v2328 = vmax.f32 %v2208, 0.0
  %v2329 = vmax.f32 %v2226, 0.0
  %v2330 = vmax.f32 %v2244, 0.0
  %v2331 = vmax.f32 %v2262, 0.0
  %v2332 = vmax.f32 %v2280, 0.0
  %v2333 = vmax.f32 %v2298, 0.0
  %v2334 = vmax.f32 %v2316, 0.0
  %v2335 = vmax.f32 %v2138, 0.0
  %v2336 = vmax.f32 %v2156, 0.0
  %v2337 = vmax.f32 %v2174, 0.0
  %v2338 = vmax.f32 %v2192, 0.0
  %v2339 = vmax.f32 %v2210, 0.0
  %v2340 = vmax.f32 %v2228, 0.0
  %v2341 = vmax.f32 %v2246, 0.0
  %v2342 = vmax.f32 %v2264, 0.0
  %v2343 = vmax.f32 %v2282, 0.0
  %v2344 = vmax.f32 %v2300, 0.0
  %v2345 = vmax.f32 %v2318, 0.0
  %v2346 = vmax.f32 %v2141, 0.0
  %v2347 = vmax.f32 %v2159, 0.0
  %v2348 = vmax.f32 %v2177, 0.0
  %v2349 = vmax.f32 %v2195, 0.0
  %v2350 = vmax.f32 %v2213, 0.0
  %v2351 = vmax.f32 %v2231, 0.0
  %v2352 = vmax.f32 %v2249, 0.0
  %v2353 = vmax.f32 %v2267, 0.0
  %v2354 = vmax.f32 %v2285, 0.0
  %v2355 = vmax.f32 %v2303, 0.0
  %v2356 = vmax.f32 %v2321, 0.0
  %v2357 = vpack.c.bf16 %v2335, %v2324
  %v2358 = vpack.c.bf16 %v2336, %v2325
  %v2359 = vpack.c.bf16 %v2337, %v2326
  %v2360 = vpack.c.bf16 %v2338, %v2327
  %v2361 = vpack.c.bf16 %v2339, %v2328
  %v2362 = vpack.c.bf16 %v2340, %v2329
  %v2363 = vpack.c.bf16 %v2341, %v2330
  %v2364 = vpack.c.bf16 %v2342, %v2331
  %v2365 = vpack.c.bf16 %v2343, %v2332
  %v2366 = vpack.c.bf16 %v2344, %v2333
  %v2367 = vpack.c.bf16 %v2345, %v2334
  %v2368 = vpack.c.bf16 %v2346, %v2346
  %v2369 = vpack.c.bf16 %v2347, %v2347
  %v2370 = vpack.c.bf16 %v2348, %v2348
  %v2371 = vpack.c.bf16 %v2349, %v2349
  %v2372 = vpack.c.bf16 %v2350, %v2350
  %v2373 = vpack.c.bf16 %v2351, %v2351
  %v2374 = vpack.c.bf16 %v2352, %v2352
  %v2375 = vpack.c.bf16 %v2353, %v2353
  %v2376 = vpack.c.bf16 %v2354, %v2354
  %v2377 = vpack.c.bf16 %v2355, %v2355
  %v2378 = vpack.c.bf16 %v2356, %v2356
  %2379 = vmatpush.bf16.msra.mxu0 %v1181
  %2380 = vmatpush.bf16.msra.mxu0 %v1179
  %2381 = vmatpush.bf16.msra.mxu0 %v1177
  %2382 = vmatpush.bf16.msra.mxu0 %v1175
  %2383 = vmatpush.bf16.msra.mxu0 %v1173
  %2384 = vmatpush.bf16.msra.mxu0 %v1171
  %2385 = vmatpush.bf16.msra.mxu0 %v1169
  %2386 = vmatpush.bf16.msra.mxu0 %v1167
  %2387 = vmatmul.bf16.gmra.mxu0 %v2357
  %v2388 = vpop.f32.mrf.mxu0
  %v2389 = vadd.f32 0.0, %v2388
  %v2390 = vpop.f32.mrf.mxu0
  %v2391 = vadd.f32 0.0, %v2390
  %2392 = vmatmul.bf16.gmra.mxu0 %v2368
  %v2393 = vpop.f32.mrf.mxu0
  %v2394 = vadd.f32 0.0, %v2393
  %v2395 = vpop.f32.mrf.mxu0
  %2396 = vdwg.mxu0
  %2397 = vmatpush.bf16.msra.mxu0 %v1197
  %2398 = vmatpush.bf16.msra.mxu0 %v1195
  %2399 = vmatpush.bf16.msra.mxu0 %v1193
  %2400 = vmatpush.bf16.msra.mxu0 %v1191
  %2401 = vmatpush.bf16.msra.mxu0 %v1189
  %2402 = vmatpush.bf16.msra.mxu0 %v1187
  %2403 = vmatpush.bf16.msra.mxu0 %v1185
  %2404 = vmatpush.bf16.msra.mxu0 %v1183
  %2405 = vmatmul.bf16.gmra.mxu0 %v2358
  %v2406 = vpop.f32.mrf.mxu0
  %v2407 = vadd.f32 %v2389, %v2406
  %v2408 = vpop.f32.mrf.mxu0
  %v2409 = vadd.f32 %v2391, %v2408
  %2410 = vmatmul.bf16.gmra.mxu0 %v2369
  %v2411 = vpop.f32.mrf.mxu0
  %v2412 = vadd.f32 %v2394, %v2411
  %v2413 = vpop.f32.mrf.mxu0
  %2414 = vdwg.mxu0
  %2415 = vmatpush.bf16.msra.mxu0 %v1213
  %2416 = vmatpush.bf16.msra.mxu0 %v1211
  %2417 = vmatpush.bf16.msra.mxu0 %v1209
  %2418 = vmatpush.bf16.msra.mxu0 %v1207
  %2419 = vmatpush.bf16.msra.mxu0 %v1205
  %2420 = vmatpush.bf16.msra.mxu0 %v1203
  %2421 = vmatpush.bf16.msra.mxu0 %v1201
  %2422 = vmatpush.bf16.msra.mxu0 %v1199
  %2423 = vmatmul.bf16.gmra.mxu0 %v2359
  %v2424 = vpop.f32.mrf.mxu0
  %v2425 = vadd.f32 %v2407, %v2424
  %v2426 = vpop.f32.mrf.mxu0
  %v2427 = vadd.f32 %v2409, %v2426
  %2428 = vmatmul.bf16.gmra.mxu0 %v2370
  %v2429 = vpop.f32.mrf.mxu0
  %v2430 = vadd.f32 %v2412, %v2429
  %v2431 = vpop.f32.mrf.mxu0
  %2432 = vdwg.mxu0
  %2433 = vmatpush.bf16.msra.mxu0 %v1229
  %2434 = vmatpush.bf16.msra.mxu0 %v1227
  %2435 = vmatpush.bf16.msra.mxu0 %v1225
  %2436 = vmatpush.bf16.msra.mxu0 %v1223
  %2437 = vmatpush.bf16.msra.mxu0 %v1221
  %2438 = vmatpush.bf16.msra.mxu0 %v1219
  %2439 = vmatpush.bf16.msra.mxu0 %v1217
  %2440 = vmatpush.bf16.msra.mxu0 %v1215
  %2441 = vmatmul.bf16.gmra.mxu0 %v2360
  %v2442 = vpop.f32.mrf.mxu0
  %v2443 = vadd.f32 %v2425, %v2442
  %v2444 = vpop.f32.mrf.mxu0
  %v2445 = vadd.f32 %v2427, %v2444
  %2446 = vmatmul.bf16.gmra.mxu0 %v2371
  %v2447 = vpop.f32.mrf.mxu0
  %v2448 = vadd.f32 %v2430, %v2447
  %v2449 = vpop.f32.mrf.mxu0
  %2450 = vdwg.mxu0
  %2451 = vmatpush.bf16.msra.mxu0 %v1245
  %2452 = vmatpush.bf16.msra.mxu0 %v1243
  %2453 = vmatpush.bf16.msra.mxu0 %v1241
  %2454 = vmatpush.bf16.msra.mxu0 %v1239
  %2455 = vmatpush.bf16.msra.mxu0 %v1237
  %2456 = vmatpush.bf16.msra.mxu0 %v1235
  %2457 = vmatpush.bf16.msra.mxu0 %v1233
  %2458 = vmatpush.bf16.msra.mxu0 %v1231
  %2459 = vmatmul.bf16.gmra.mxu0 %v2361
  %v2460 = vpop.f32.mrf.mxu0
  %v2461 = vadd.f32 %v2443, %v2460
  %v2462 = vpop.f32.mrf.mxu0
  %v2463 = vadd.f32 %v2445, %v2462
  %2464 = vmatmul.bf16.gmra.mxu0 %v2372
  %v2465 = vpop.f32.mrf.mxu0
  %v2466 = vadd.f32 %v2448, %v2465
  %v2467 = vpop.f32.mrf.mxu0
  %2468 = vdwg.mxu0
  %2469 = vmatpush.bf16.msra.mxu0 %v1261
  %2470 = vmatpush.bf16.msra.mxu0 %v1259
  %2471 = vmatpush.bf16.msra.mxu0 %v1257
  %2472 = vmatpush.bf16.msra.mxu0 %v1255
  %2473 = vmatpush.bf16.msra.mxu0 %v1253
  %2474 = vmatpush.bf16.msra.mxu0 %v1251
  %2475 = vmatpush.bf16.msra.mxu0 %v1249
  %2476 = vmatpush.bf16.msra.mxu0 %v1247
  %2477 = vmatmul.bf16.gmra.mxu0 %v2362
  %v2478 = vpop.f32.mrf.mxu0
  %v2479 = vadd.f32 %v2461, %v2478
  %v2480 = vpop.f32.mrf.mxu0
  %v2481 = vadd.f32 %v2463, %v2480
  %2482 = vmatmul.bf16.gmra.mxu0 %v2373
  %v2483 = vpop.f32.mrf.mxu0
  %v2484 = vadd.f32 %v2466, %v2483
  %v2485 = vpop.f32.mrf.mxu0
  %2486 = vdwg.mxu0
  %2487 = vmatpush.bf16.msra.mxu0 %v1277
  %2488 = vmatpush.bf16.msra.mxu0 %v1275
  %2489 = vmatpush.bf16.msra.mxu0 %v1273
  %2490 = vmatpush.bf16.msra.mxu0 %v1271
  %2491 = vmatpush.bf16.msra.mxu0 %v1269
  %2492 = vmatpush.bf16.msra.mxu0 %v1267
  %2493 = vmatpush.bf16.msra.mxu0 %v1265
  %2494 = vmatpush.bf16.msra.mxu0 %v1263
  %2495 = vmatmul.bf16.gmra.mxu0 %v2363
  %v2496 = vpop.f32.mrf.mxu0
  %v2497 = vadd.f32 %v2479, %v2496
  %v2498 = vpop.f32.mrf.mxu0
  %v2499 = vadd.f32 %v2481, %v2498
  %2500 = vmatmul.bf16.gmra.mxu0 %v2374
  %v2501 = vpop.f32.mrf.mxu0
  %v2502 = vadd.f32 %v2484, %v2501
  %v2503 = vpop.f32.mrf.mxu0
  %2504 = vdwg.mxu0
  %2505 = vmatpush.bf16.msra.mxu0 %v1293
  %2506 = vmatpush.bf16.msra.mxu0 %v1291
  %2507 = vmatpush.bf16.msra.mxu0 %v1289
  %2508 = vmatpush.bf16.msra.mxu0 %v1287
  %2509 = vmatpush.bf16.msra.mxu0 %v1285
  %2510 = vmatpush.bf16.msra.mxu0 %v1283
  %2511 = vmatpush.bf16.msra.mxu0 %v1281
  %2512 = vmatpush.bf16.msra.mxu0 %v1279
  %2513 = vmatmul.bf16.gmra.mxu0 %v2364
  %v2514 = vpop.f32.mrf.mxu0
  %v2515 = vadd.f32 %v2497, %v2514
  %v2516 = vpop.f32.mrf.mxu0
  %v2517 = vadd.f32 %v2499, %v2516
  %2518 = vmatmul.bf16.gmra.mxu0 %v2375
  %v2519 = vpop.f32.mrf.mxu0
  %v2520 = vadd.f32 %v2502, %v2519
  %v2521 = vpop.f32.mrf.mxu0
  %2522 = vdwg.mxu0
  %2523 = vmatpush.bf16.msra.mxu0 %v1309
  %2524 = vmatpush.bf16.msra.mxu0 %v1307
  %2525 = vmatpush.bf16.msra.mxu0 %v1305
  %2526 = vmatpush.bf16.msra.mxu0 %v1303
  %2527 = vmatpush.bf16.msra.mxu0 %v1301
  %2528 = vmatpush.bf16.msra.mxu0 %v1299
  %2529 = vmatpush.bf16.msra.mxu0 %v1297
  %2530 = vmatpush.bf16.msra.mxu0 %v1295
  %2531 = vmatmul.bf16.gmra.mxu0 %v2365
  %v2532 = vpop.f32.mrf.mxu0
  %v2533 = vadd.f32 %v2515, %v2532
  %v2534 = vpop.f32.mrf.mxu0
  %v2535 = vadd.f32 %v2517, %v2534
  %2536 = vmatmul.bf16.gmra.mxu0 %v2376
  %v2537 = vpop.f32.mrf.mxu0
  %v2538 = vadd.f32 %v2520, %v2537
  %v2539 = vpop.f32.mrf.mxu0
  %2540 = vdwg.mxu0
  %2541 = vmatpush.bf16.msra.mxu0 %v1325
  %2542 = vmatpush.bf16.msra.mxu0 %v1323
  %2543 = vmatpush.bf16.msra.mxu0 %v1321
  %2544 = vmatpush.bf16.msra.mxu0 %v1319
  %2545 = vmatpush.bf16.msra.mxu0 %v1317
  %2546 = vmatpush.bf16.msra.mxu0 %v1315
  %2547 = vmatpush.bf16.msra.mxu0 %v1313
  %2548 = vmatpush.bf16.msra.mxu0 %v1311
  %2549 = vmatmul.bf16.gmra.mxu0 %v2366
  %v2550 = vpop.f32.mrf.mxu0
  %v2551 = vadd.f32 %v2533, %v2550
  %v2552 = vpop.f32.mrf.mxu0
  %v2553 = vadd.f32 %v2535, %v2552
  %2554 = vmatmul.bf16.gmra.mxu0 %v2377
  %v2555 = vpop.f32.mrf.mxu0
  %v2556 = vadd.f32 %v2538, %v2555
  %v2557 = vpop.f32.mrf.mxu0
  %2558 = vdwg.mxu0
  %2559 = vmatpush.bf16.msra.mxu0 %v1341
  %2560 = vmatpush.bf16.msra.mxu0 %v1339
  %2561 = vmatpush.bf16.msra.mxu0 %v1337
  %2562 = vmatpush.bf16.msra.mxu0 %v1335
  %2563 = vmatpush.bf16.msra.mxu0 %v1333
  %2564 = vmatpush.bf16.msra.mxu0 %v1331
  %2565 = vmatpush.bf16.msra.mxu0 %v1329
  %2566 = vmatpush.bf16.msra.mxu0 %v1327
  %2567 = vmatmul.bf16.gmra.mxu0 %v2367
  %v2568 = vpop.f32.mrf.mxu0
  %v2569 = vadd.f32 %v2551, %v2568
  %v2570 = vpop.f32.mrf.mxu0
  %v2571 = vadd.f32 %v2553, %v2570
  %2572 = vmatmul.bf16.gmra.mxu0 %v2378
  %v2573 = vpop.f32.mrf.mxu0
  %v2574 = vadd.f32 %v2556, %v2573
  %v2575 = vpop.f32.mrf.mxu0
  %2576 = vdwg.mxu0
  %2577 = vmatpush.bf16.msra.mxu0 %v1182
  %2578 = vmatpush.bf16.msra.mxu0 %v1180
  %2579 = vmatpush.bf16.msra.mxu0 %v1178
  %2580 = vmatpush.bf16.msra.mxu0 %v1176
  %2581 = vmatpush.bf16.msra.mxu0 %v1174
  %2582 = vmatpush.bf16.msra.mxu0 %v1172
  %2583 = vmatpush.bf16.msra.mxu0 %v1170
  %2584 = vmatpush.bf16.msra.mxu0 %v1168
  %2585 = vmatmul.bf16.gmra.mxu0 %v2357
  %v2586 = vpop.f32.mrf.mxu0
  %v2587 = vadd.f32 0.0, %v2586
  %v2588 = vpop.f32.mrf.mxu0
  %v2589 = vadd.f32 0.0, %v2588
  %2590 = vmatmul.bf16.gmra.mxu0 %v2368
  %v2591 = vpop.f32.mrf.mxu0
  %v2592 = vadd.f32 0.0, %v2591
  %v2593 = vpop.f32.mrf.mxu0
  %2594 = vdwg.mxu0
  %2595 = vmatpush.bf16.msra.mxu0 %v1198
  %2596 = vmatpush.bf16.msra.mxu0 %v1196
  %2597 = vmatpush.bf16.msra.mxu0 %v1194
  %2598 = vmatpush.bf16.msra.mxu0 %v1192
  %2599 = vmatpush.bf16.msra.mxu0 %v1190
  %2600 = vmatpush.bf16.msra.mxu0 %v1188
  %2601 = vmatpush.bf16.msra.mxu0 %v1186
  %2602 = vmatpush.bf16.msra.mxu0 %v1184
  %2603 = vmatmul.bf16.gmra.mxu0 %v2358
  %v2604 = vpop.f32.mrf.mxu0
  %v2605 = vadd.f32 %v2587, %v2604
  %v2606 = vpop.f32.mrf.mxu0
  %v2607 = vadd.f32 %v2589, %v2606
  %2608 = vmatmul.bf16.gmra.mxu0 %v2369
  %v2609 = vpop.f32.mrf.mxu0
  %v2610 = vadd.f32 %v2592, %v2609
  %v2611 = vpop.f32.mrf.mxu0
  %2612 = vdwg.mxu0
  %2613 = vmatpush.bf16.msra.mxu0 %v1214
  %2614 = vmatpush.bf16.msra.mxu0 %v1212
  %2615 = vmatpush.bf16.msra.mxu0 %v1210
  %2616 = vmatpush.bf16.msra.mxu0 %v1208
  %2617 = vmatpush.bf16.msra.mxu0 %v1206
  %2618 = vmatpush.bf16.msra.mxu0 %v1204
  %2619 = vmatpush.bf16.msra.mxu0 %v1202
  %2620 = vmatpush.bf16.msra.mxu0 %v1200
  %2621 = vmatmul.bf16.gmra.mxu0 %v2359
  %v2622 = vpop.f32.mrf.mxu0
  %v2623 = vadd.f32 %v2605, %v2622
  %v2624 = vpop.f32.mrf.mxu0
  %v2625 = vadd.f32 %v2607, %v2624
  %2626 = vmatmul.bf16.gmra.mxu0 %v2370
  %v2627 = vpop.f32.mrf.mxu0
  %v2628 = vadd.f32 %v2610, %v2627
  %v2629 = vpop.f32.mrf.mxu0
  %2630 = vdwg.mxu0
  %2631 = vmatpush.bf16.msra.mxu0 %v1230
  %2632 = vmatpush.bf16.msra.mxu0 %v1228
  %2633 = vmatpush.bf16.msra.mxu0 %v1226
  %2634 = vmatpush.bf16.msra.mxu0 %v1224
  %2635 = vmatpush.bf16.msra.mxu0 %v1222
  %2636 = vmatpush.bf16.msra.mxu0 %v1220
  %2637 = vmatpush.bf16.msra.mxu0 %v1218
  %2638 = vmatpush.bf16.msra.mxu0 %v1216
  %2639 = vmatmul.bf16.gmra.mxu0 %v2360
  %v2640 = vpop.f32.mrf.mxu0
  %v2641 = vadd.f32 %v2623, %v2640
  %v2642 = vpop.f32.mrf.mxu0
  %v2643 = vadd.f32 %v2625, %v2642
  %2644 = vmatmul.bf16.gmra.mxu0 %v2371
  %v2645 = vpop.f32.mrf.mxu0
  %v2646 = vadd.f32 %v2628, %v2645
  %v2647 = vpop.f32.mrf.mxu0
  %2648 = vdwg.mxu0
  %2649 = vmatpush.bf16.msra.mxu0 %v1246
  %2650 = vmatpush.bf16.msra.mxu0 %v1244
  %2651 = vmatpush.bf16.msra.mxu0 %v1242
  %2652 = vmatpush.bf16.msra.mxu0 %v1240
  %2653 = vmatpush.bf16.msra.mxu0 %v1238
  %2654 = vmatpush.bf16.msra.mxu0 %v1236
  %2655 = vmatpush.bf16.msra.mxu0 %v1234
  %2656 = vmatpush.bf16.msra.mxu0 %v1232
  %2657 = vmatmul.bf16.gmra.mxu0 %v2361
  %v2658 = vpop.f32.mrf.mxu0
  %v2659 = vadd.f32 %v2641, %v2658
  %v2660 = vpop.f32.mrf.mxu0
  %v2661 = vadd.f32 %v2643, %v2660
  %2662 = vmatmul.bf16.gmra.mxu0 %v2372
  %v2663 = vpop.f32.mrf.mxu0
  %v2664 = vadd.f32 %v2646, %v2663
  %v2665 = vpop.f32.mrf.mxu0
  %2666 = vdwg.mxu0
  %2667 = vmatpush.bf16.msra.mxu0 %v1262
  %2668 = vmatpush.bf16.msra.mxu0 %v1260
  %2669 = vmatpush.bf16.msra.mxu0 %v1258
  %2670 = vmatpush.bf16.msra.mxu0 %v1256
  %2671 = vmatpush.bf16.msra.mxu0 %v1254
  %2672 = vmatpush.bf16.msra.mxu0 %v1252
  %2673 = vmatpush.bf16.msra.mxu0 %v1250
  %2674 = vmatpush.bf16.msra.mxu0 %v1248
  %2675 = vmatmul.bf16.gmra.mxu0 %v2362
  %v2676 = vpop.f32.mrf.mxu0
  %v2677 = vadd.f32 %v2659, %v2676
  %v2678 = vpop.f32.mrf.mxu0
  %v2679 = vadd.f32 %v2661, %v2678
  %2680 = vmatmul.bf16.gmra.mxu0 %v2373
  %v2681 = vpop.f32.mrf.mxu0
  %v2682 = vadd.f32 %v2664, %v2681
  %v2683 = vpop.f32.mrf.mxu0
  %2684 = vdwg.mxu0
  %2685 = vmatpush.bf16.msra.mxu0 %v1278
  %2686 = vmatpush.bf16.msra.mxu0 %v1276
  %2687 = vmatpush.bf16.msra.mxu0 %v1274
  %2688 = vmatpush.bf16.msra.mxu0 %v1272
  %2689 = vmatpush.bf16.msra.mxu0 %v1270
  %2690 = vmatpush.bf16.msra.mxu0 %v1268
  %2691 = vmatpush.bf16.msra.mxu0 %v1266
  %2692 = vmatpush.bf16.msra.mxu0 %v1264
  %2693 = vmatmul.bf16.gmra.mxu0 %v2363
  %v2694 = vpop.f32.mrf.mxu0
  %v2695 = vadd.f32 %v2677, %v2694
  %v2696 = vpop.f32.mrf.mxu0
  %v2697 = vadd.f32 %v2679, %v2696
  %2698 = vmatmul.bf16.gmra.mxu0 %v2374
  %v2699 = vpop.f32.mrf.mxu0
  %v2700 = vadd.f32 %v2682, %v2699
  %v2701 = vpop.f32.mrf.mxu0
  %2702 = vdwg.mxu0
  %2703 = vmatpush.bf16.msra.mxu0 %v1294
  %2704 = vmatpush.bf16.msra.mxu0 %v1292
  %2705 = vmatpush.bf16.msra.mxu0 %v1290
  %2706 = vmatpush.bf16.msra.mxu0 %v1288
  %2707 = vmatpush.bf16.msra.mxu0 %v1286
  %2708 = vmatpush.bf16.msra.mxu0 %v1284
  %2709 = vmatpush.bf16.msra.mxu0 %v1282
  %2710 = vmatpush.bf16.msra.mxu0 %v1280
  %2711 = vmatmul.bf16.gmra.mxu0 %v2364
  %v2712 = vpop.f32.mrf.mxu0
  %v2713 = vadd.f32 %v2695, %v2712
  %v2714 = vpop.f32.mrf.mxu0
  %v2715 = vadd.f32 %v2697, %v2714
  %2716 = vmatmul.bf16.gmra.mxu0 %v2375
  %v2717 = vpop.f32.mrf.mxu0
  %v2718 = vadd.f32 %v2700, %v2717
  %v2719 = vpop.f32.mrf.mxu0
  %2720 = vdwg.mxu0
  %2721 = vmatpush.bf16.msra.mxu0 %v1310
  %2722 = vmatpush.bf16.msra.mxu0 %v1308
  %2723 = vmatpush.bf16.msra.mxu0 %v1306
  %2724 = vmatpush.bf16.msra.mxu0 %v1304
  %2725 = vmatpush.bf16.msra.mxu0 %v1302
  %2726 = vmatpush.bf16.msra.mxu0 %v1300
  %2727 = vmatpush.bf16.msra.mxu0 %v1298
  %2728 = vmatpush.bf16.msra.mxu0 %v1296
  %2729 = vmatmul.bf16.gmra.mxu0 %v2365
  %v2730 = vpop.f32.mrf.mxu0
  %v2731 = vadd.f32 %v2713, %v2730
  %v2732 = vpop.f32.mrf.mxu0
  %v2733 = vadd.f32 %v2715, %v2732
  %2734 = vmatmul.bf16.gmra.mxu0 %v2376
  %v2735 = vpop.f32.mrf.mxu0
  %v2736 = vadd.f32 %v2718, %v2735
  %v2737 = vpop.f32.mrf.mxu0
  %2738 = vdwg.mxu0
  %2739 = vmatpush.bf16.msra.mxu0 %v1326
  %2740 = vmatpush.bf16.msra.mxu0 %v1324
  %2741 = vmatpush.bf16.msra.mxu0 %v1322
  %2742 = vmatpush.bf16.msra.mxu0 %v1320
  %2743 = vmatpush.bf16.msra.mxu0 %v1318
  %2744 = vmatpush.bf16.msra.mxu0 %v1316
  %2745 = vmatpush.bf16.msra.mxu0 %v1314
  %2746 = vmatpush.bf16.msra.mxu0 %v1312
  %2747 = vmatmul.bf16.gmra.mxu0 %v2366
  %v2748 = vpop.f32.mrf.mxu0
  %v2749 = vadd.f32 %v2731, %v2748
  %v2750 = vpop.f32.mrf.mxu0
  %v2751 = vadd.f32 %v2733, %v2750
  %2752 = vmatmul.bf16.gmra.mxu0 %v2377
  %v2753 = vpop.f32.mrf.mxu0
  %v2754 = vadd.f32 %v2736, %v2753
  %v2755 = vpop.f32.mrf.mxu0
  %2756 = vdwg.mxu0
  %2757 = vmatpush.bf16.msra.mxu0 %v1342
  %2758 = vmatpush.bf16.msra.mxu0 %v1340
  %2759 = vmatpush.bf16.msra.mxu0 %v1338
  %2760 = vmatpush.bf16.msra.mxu0 %v1336
  %2761 = vmatpush.bf16.msra.mxu0 %v1334
  %2762 = vmatpush.bf16.msra.mxu0 %v1332
  %2763 = vmatpush.bf16.msra.mxu0 %v1330
  %2764 = vmatpush.bf16.msra.mxu0 %v1328
  %2765 = vmatmul.bf16.gmra.mxu0 %v2367
  %v2766 = vpop.f32.mrf.mxu0
  %v2767 = vadd.f32 %v2749, %v2766
  %v2768 = vpop.f32.mrf.mxu0
  %v2769 = vadd.f32 %v2751, %v2768
  %2770 = vmatmul.bf16.gmra.mxu0 %v2378
  %v2771 = vpop.f32.mrf.mxu0
  %v2772 = vadd.f32 %v2754, %v2771
  %v2773 = vpop.f32.mrf.mxu0
  %2774 = vdwg.mxu0
  %v2775 = vmul.f32 %v2569, %v203
  %v2776 = vmul.f32 %v2767, %v204
  %v2777 = vmul.f32 %v2571, %v205
  %v2778 = vmul.f32 %v2769, %v206
  %v2779 = vmul.f32 %v2574, %v207
  %v2780 = vmul.f32 %v2772, %v208
  %v2781 = vadd.f32 %v2775, %v2777
  %v2782 = vsel %vm1922, %v2779, 0.0
  %v2783 = vadd.f32 %v2781, %v2782
  %v2784 = vrot.slane %v2783, 4
  %v2785 = vadd.f32 %v2783, %v2784
  %v2786 = vrot.slane %v2785, 2
  %v2787 = vadd.f32 %v2785, %v2786
  %v2788 = vrot.slane %v2787, 1
  %v2789 = vadd.f32 %v2787, %v2788
  %v2790 = vsel %vm1931, %v2776, 0.0
  %v2791 = vsel %vm1931, %v2778, 0.0
  %v2792 = vadd.f32 %v2790, %v2791
  %v2793 = vsel %vm1935, %v2780, 0.0
  %v2794 = vadd.f32 %v2792, %v2793
  %v2795 = vrot.slane %v2794, 4
  %v2796 = vadd.f32 %v2794, %v2795
  %v2797 = vrot.slane %v2796, 2
  %v2798 = vadd.f32 %v2796, %v2797
  %v2799 = vrot.slane %v2798, 1
  %v2800 = vadd.f32 %v2798, %v2799
  %v2802 = vsel %vm1931, %v2800, 0
  %2804 = vmatpush.msra.mxu0 %v224
  %2805 = vmatpush.msra.mxu0 %v223
  %2806 = vmatpush.msra.mxu0 %v222
  %2807 = vmatpush.msra.mxu0 %v221
  %2808 = vmatpush.msra.mxu0 %v220
  %2809 = vmatpush.msra.mxu0 %v219
  %2810 = vmatpush.msra.mxu0 %v218
  %2811 = vmatpush.msra.mxu0 %v217
  %2812 = vmatpush.msra.mxu0 %v216
  %2813 = vmatpush.msra.mxu0 %v215
  %2814 = vmatpush.msra.mxu0 %v214
  %2815 = vmatpush.msra.mxu0 %v213
  %2816 = vmatpush.msra.mxu0 %v212
  %2817 = vmatpush.msra.mxu0 %v211
  %2818 = vmatpush.msra.mxu0 %v210
  %2819 = vmatpush.msra.mxu0 %v209
  %2820 = vmatmul.f32.gmra.mxu0 %v2789
  %v2821 = vpop.f32.mrf.mxu0
  %v2822 = vadd.f32 %v234, %v2821
  %2823 = vdwg.mxu0
  %2824 = vmatpush.msra.mxu0 0.0
  %2825 = vmatpush.msra.mxu0 0.0
  %2826 = vmatpush.msra.mxu0 0.0
  %2827 = vmatpush.msra.mxu0 0.0
  %2828 = vmatpush.msra.mxu0 0.0
  %2829 = vmatpush.msra.mxu0 0.0
  %2830 = vmatpush.msra.mxu0 0.0
  %2831 = vmatpush.msra.mxu0 %v233
  %2832 = vmatpush.msra.mxu0 %v232
  %2833 = vmatpush.msra.mxu0 %v231
  %2834 = vmatpush.msra.mxu0 %v230
  %2835 = vmatpush.msra.mxu0 %v229
  %2836 = vmatpush.msra.mxu0 %v228
  %2837 = vmatpush.msra.mxu0 %v227
  %2838 = vmatpush.msra.mxu0 %v226
  %2839 = vmatpush.msra.mxu0 %v225
  %2840 = vmatmul.f32.gmra.mxu0 %v2802
  %v2841 = vpop.f32.mrf.mxu0
  %v2842 = vadd.f32 %v2822, %v2841
  %2843 = vdwg.mxu0
  %2844 = vst.msk [vmem:[%s6 + $0x1] sm:$0x1] %vm1987, %v2842
  %s2845 = scalar_lea.vmem %s0, 352
  %v2846 = vld [vmem:[%s2845] sm:$0xff]
  %v2847 = vld [vmem:[%s2845 + $0x8] sm:$0xff]
  %v2848 = vld [vmem:[%s2845 + $0x10] sm:$0xff]
  %v2849 = vld [vmem:[%s2845 + $0x18] sm:$0xff]
  %v2850 = vld [vmem:[%s2845 + $0x20] sm:$0xff]
  %v2851 = vld [vmem:[%s2845 + $0x28] sm:$0xf]
  %v2852 = vld [vmem:[%s2845 + $0x2c] sm:$0xff]
  %v2853 = vld [vmem:[%s2845 + $0x34] sm:$0xff]
  %v2854 = vld [vmem:[%s2845 + $0x3c] sm:$0xff]
  %v2855 = vld [vmem:[%s2845 + $0x44] sm:$0xff]
  %v2856 = vld [vmem:[%s2845 + $0x4c] sm:$0xff]
  %v2857 = vld [vmem:[%s2845 + $0x54] sm:$0xf]
  %v2858 = vld [vmem:[%s2845 + $0x58] sm:$0xff]
  %v2859 = vld [vmem:[%s2845 + $0x60] sm:$0xff]
  %v2860 = vld [vmem:[%s2845 + $0x68] sm:$0xff]
  %v2861 = vld [vmem:[%s2845 + $0x70] sm:$0xff]
  %v2862 = vld [vmem:[%s2845 + $0x78] sm:$0xff]
  %v2863 = vld [vmem:[%s2845 + $0x80] sm:$0xf]
  %v2864 = vld [vmem:[%s2845 + $0x84] sm:$0xff]
  %v2865 = vld [vmem:[%s2845 + $0x8c] sm:$0xff]
  %v2866 = vld [vmem:[%s2845 + $0x94] sm:$0xff]
  %v2867 = vld [vmem:[%s2845 + $0x9c] sm:$0xff]
  %v2868 = vld [vmem:[%s2845 + $0xa4] sm:$0xff]
  %v2869 = vld [vmem:[%s2845 + $0xac] sm:$0xf]
  %v2894 = vunpack.c.l.b16 %v2846
  %v2895 = vunpack.c.h.b16 %v2846
  %v2896 = vunpack.c.l.b16 %v2847
  %v2897 = vunpack.c.h.b16 %v2847
  %v2898 = vunpack.c.l.b16 %v2848
  %v2899 = vunpack.c.h.b16 %v2848
  %v2900 = vunpack.c.l.b16 %v2849
  %v2901 = vunpack.c.h.b16 %v2849
  %v2902 = vunpack.c.l.b16 %v2850
  %v2903 = vunpack.c.h.b16 %v2850
  %v2904 = vunpack.c.l.b16 %v2851
  %v2905 = vunpack.c.l.b16 %v2852
  %v2906 = vunpack.c.h.b16 %v2852
  %v2907 = vunpack.c.l.b16 %v2853
  %v2908 = vunpack.c.h.b16 %v2853
  %v2909 = vunpack.c.l.b16 %v2854
  %v2910 = vunpack.c.h.b16 %v2854
  %v2911 = vunpack.c.l.b16 %v2855
  %v2912 = vunpack.c.h.b16 %v2855
  %v2913 = vunpack.c.l.b16 %v2856
  %v2914 = vunpack.c.h.b16 %v2856
  %v2915 = vunpack.c.l.b16 %v2857
  %v2916 = vunpack.c.l.b16 %v2858
  %v2917 = vunpack.c.h.b16 %v2858
  %v2918 = vunpack.c.l.b16 %v2859
  %v2919 = vunpack.c.h.b16 %v2859
  %v2920 = vunpack.c.l.b16 %v2860
  %v2921 = vunpack.c.h.b16 %v2860
  %v2922 = vunpack.c.l.b16 %v2861
  %v2923 = vunpack.c.h.b16 %v2861
  %v2924 = vunpack.c.l.b16 %v2862
  %v2925 = vunpack.c.h.b16 %v2862
  %v2926 = vunpack.c.l.b16 %v2863
  %v2927 = vunpack.c.l.b16 %v2864
  %v2928 = vunpack.c.h.b16 %v2864
  %v2929 = vunpack.c.l.b16 %v2865
  %v2930 = vunpack.c.h.b16 %v2865
  %v2931 = vunpack.c.l.b16 %v2866
  %v2932 = vunpack.c.h.b16 %v2866
  %v2933 = vunpack.c.l.b16 %v2867
  %v2934 = vunpack.c.h.b16 %v2867
  %v2935 = vunpack.c.l.b16 %v2868
  %v2936 = vunpack.c.h.b16 %v2868
  %v2937 = vunpack.c.l.b16 %v2869
  %v2938 = vpack.c.b16 %v2905, %v2894
  %v2939 = vpack.c.b16 %v2906, %v2895
  %v2940 = vpack.c.b16 %v2907, %v2896
  %v2941 = vpack.c.b16 %v2908, %v2897
  %v2942 = vpack.c.b16 %v2909, %v2898
  %v2943 = vpack.c.b16 %v2910, %v2899
  %v2944 = vpack.c.b16 %v2911, %v2900
  %v2945 = vpack.c.b16 %v2912, %v2901
  %v2946 = vpack.c.b16 %v2913, %v2902
  %v2947 = vpack.c.b16 %v2914, %v2903
  %v2948 = vpack.c.b16 %v2915, %v2904
  %v2949 = vpack.c.b16 %v2927, %v2916
  %v2950 = vpack.c.b16 %v2928, %v2917
  %v2951 = vpack.c.b16 %v2929, %v2918
  %v2952 = vpack.c.b16 %v2930, %v2919
  %v2953 = vpack.c.b16 %v2931, %v2920
  %v2954 = vpack.c.b16 %v2932, %v2921
  %v2955 = vpack.c.b16 %v2933, %v2922
  %v2956 = vpack.c.b16 %v2934, %v2923
  %v2957 = vpack.c.b16 %v2935, %v2924
  %v2958 = vpack.c.b16 %v2936, %v2925
  %v2959 = vpack.c.b16 %v2937, %v2926
  %2982 = vmatpush.bf16.msra.mxu0 0
  %2983 = vmatpush.bf16.msra.mxu0 0
  %2984 = vmatpush.bf16.msra.mxu0 0
  %2985 = vmatpush.bf16.msra.mxu0 0
  %2986 = vmatpush.bf16.msra.mxu0 0
  %2987 = vmatpush.bf16.msra.mxu0 0
  %2988 = vmatpush.bf16.msra.mxu0 %v2949
  %2989 = vmatpush.bf16.msra.mxu0 %v2938
  %2990 = vmatmul.bf16.gmra.mxu0 %v381
  %v2991 = vpop.f32.mrf.mxu0
  %v2992 = vadd.f32 0.0, %v2991
  %v2993 = vpop.f32.mrf.mxu0
  %v2994 = vadd.f32 0.0, %v2993
  %2995 = vmatmul.bf16.gmra.mxu0 %v384
  %v2996 = vpop.f32.mrf.mxu0
  %v2997 = vadd.f32 0.0, %v2996
  %v2998 = vpop.f32.mrf.mxu0
  %2999 = vdwg.mxu0
  %3000 = vmatpush.bf16.msra.mxu0 0
  %3001 = vmatpush.bf16.msra.mxu0 0
  %3002 = vmatpush.bf16.msra.mxu0 0
  %3003 = vmatpush.bf16.msra.mxu0 0
  %3004 = vmatpush.bf16.msra.mxu0 0
  %3005 = vmatpush.bf16.msra.mxu0 0
  %3006 = vmatpush.bf16.msra.mxu0 %v2950
  %3007 = vmatpush.bf16.msra.mxu0 %v2939
  %3008 = vmatmul.bf16.gmra.mxu0 %v381
  %v3009 = vpop.f32.mrf.mxu0
  %v3010 = vadd.f32 0.0, %v3009
  %v3011 = vpop.f32.mrf.mxu0
  %v3012 = vadd.f32 0.0, %v3011
  %3013 = vmatmul.bf16.gmra.mxu0 %v384
  %v3014 = vpop.f32.mrf.mxu0
  %v3015 = vadd.f32 0.0, %v3014
  %v3016 = vpop.f32.mrf.mxu0
  %3017 = vdwg.mxu0
  %3018 = vmatpush.bf16.msra.mxu0 0
  %3019 = vmatpush.bf16.msra.mxu0 0
  %3020 = vmatpush.bf16.msra.mxu0 0
  %3021 = vmatpush.bf16.msra.mxu0 0
  %3022 = vmatpush.bf16.msra.mxu0 0
  %3023 = vmatpush.bf16.msra.mxu0 0
  %3024 = vmatpush.bf16.msra.mxu0 %v2951
  %3025 = vmatpush.bf16.msra.mxu0 %v2940
  %3026 = vmatmul.bf16.gmra.mxu0 %v381
  %v3027 = vpop.f32.mrf.mxu0
  %v3028 = vadd.f32 0.0, %v3027
  %v3029 = vpop.f32.mrf.mxu0
  %v3030 = vadd.f32 0.0, %v3029
  %3031 = vmatmul.bf16.gmra.mxu0 %v384
  %v3032 = vpop.f32.mrf.mxu0
  %v3033 = vadd.f32 0.0, %v3032
  %v3034 = vpop.f32.mrf.mxu0
  %3035 = vdwg.mxu0
  %3036 = vmatpush.bf16.msra.mxu0 0
  %3037 = vmatpush.bf16.msra.mxu0 0
  %3038 = vmatpush.bf16.msra.mxu0 0
  %3039 = vmatpush.bf16.msra.mxu0 0
  %3040 = vmatpush.bf16.msra.mxu0 0
  %3041 = vmatpush.bf16.msra.mxu0 0
  %3042 = vmatpush.bf16.msra.mxu0 %v2952
  %3043 = vmatpush.bf16.msra.mxu0 %v2941
  %3044 = vmatmul.bf16.gmra.mxu0 %v381
  %v3045 = vpop.f32.mrf.mxu0
  %v3046 = vadd.f32 0.0, %v3045
  %v3047 = vpop.f32.mrf.mxu0
  %v3048 = vadd.f32 0.0, %v3047
  %3049 = vmatmul.bf16.gmra.mxu0 %v384
  %v3050 = vpop.f32.mrf.mxu0
  %v3051 = vadd.f32 0.0, %v3050
  %v3052 = vpop.f32.mrf.mxu0
  %3053 = vdwg.mxu0
  %3054 = vmatpush.bf16.msra.mxu0 0
  %3055 = vmatpush.bf16.msra.mxu0 0
  %3056 = vmatpush.bf16.msra.mxu0 0
  %3057 = vmatpush.bf16.msra.mxu0 0
  %3058 = vmatpush.bf16.msra.mxu0 0
  %3059 = vmatpush.bf16.msra.mxu0 0
  %3060 = vmatpush.bf16.msra.mxu0 %v2953
  %3061 = vmatpush.bf16.msra.mxu0 %v2942
  %3062 = vmatmul.bf16.gmra.mxu0 %v381
  %v3063 = vpop.f32.mrf.mxu0
  %v3064 = vadd.f32 0.0, %v3063
  %v3065 = vpop.f32.mrf.mxu0
  %v3066 = vadd.f32 0.0, %v3065
  %3067 = vmatmul.bf16.gmra.mxu0 %v384
  %v3068 = vpop.f32.mrf.mxu0
  %v3069 = vadd.f32 0.0, %v3068
  %v3070 = vpop.f32.mrf.mxu0
  %3071 = vdwg.mxu0
  %3072 = vmatpush.bf16.msra.mxu0 0
  %3073 = vmatpush.bf16.msra.mxu0 0
  %3074 = vmatpush.bf16.msra.mxu0 0
  %3075 = vmatpush.bf16.msra.mxu0 0
  %3076 = vmatpush.bf16.msra.mxu0 0
  %3077 = vmatpush.bf16.msra.mxu0 0
  %3078 = vmatpush.bf16.msra.mxu0 %v2954
  %3079 = vmatpush.bf16.msra.mxu0 %v2943
  %3080 = vmatmul.bf16.gmra.mxu0 %v381
  %v3081 = vpop.f32.mrf.mxu0
  %v3082 = vadd.f32 0.0, %v3081
  %v3083 = vpop.f32.mrf.mxu0
  %v3084 = vadd.f32 0.0, %v3083
  %3085 = vmatmul.bf16.gmra.mxu0 %v384
  %v3086 = vpop.f32.mrf.mxu0
  %v3087 = vadd.f32 0.0, %v3086
  %v3088 = vpop.f32.mrf.mxu0
  %3089 = vdwg.mxu0
  %3090 = vmatpush.bf16.msra.mxu0 0
  %3091 = vmatpush.bf16.msra.mxu0 0
  %3092 = vmatpush.bf16.msra.mxu0 0
  %3093 = vmatpush.bf16.msra.mxu0 0
  %3094 = vmatpush.bf16.msra.mxu0 0
  %3095 = vmatpush.bf16.msra.mxu0 0
  %3096 = vmatpush.bf16.msra.mxu0 %v2955
  %3097 = vmatpush.bf16.msra.mxu0 %v2944
  %3098 = vmatmul.bf16.gmra.mxu0 %v381
  %v3099 = vpop.f32.mrf.mxu0
  %v3100 = vadd.f32 0.0, %v3099
  %v3101 = vpop.f32.mrf.mxu0
  %v3102 = vadd.f32 0.0, %v3101
  %3103 = vmatmul.bf16.gmra.mxu0 %v384
  %v3104 = vpop.f32.mrf.mxu0
  %v3105 = vadd.f32 0.0, %v3104
  %v3106 = vpop.f32.mrf.mxu0
  %3107 = vdwg.mxu0
  %3108 = vmatpush.bf16.msra.mxu0 0
  %3109 = vmatpush.bf16.msra.mxu0 0
  %3110 = vmatpush.bf16.msra.mxu0 0
  %3111 = vmatpush.bf16.msra.mxu0 0
  %3112 = vmatpush.bf16.msra.mxu0 0
  %3113 = vmatpush.bf16.msra.mxu0 0
  %3114 = vmatpush.bf16.msra.mxu0 %v2956
  %3115 = vmatpush.bf16.msra.mxu0 %v2945
  %3116 = vmatmul.bf16.gmra.mxu0 %v381
  %v3117 = vpop.f32.mrf.mxu0
  %v3118 = vadd.f32 0.0, %v3117
  %v3119 = vpop.f32.mrf.mxu0
  %v3120 = vadd.f32 0.0, %v3119
  %3121 = vmatmul.bf16.gmra.mxu0 %v384
  %v3122 = vpop.f32.mrf.mxu0
  %v3123 = vadd.f32 0.0, %v3122
  %v3124 = vpop.f32.mrf.mxu0
  %3125 = vdwg.mxu0
  %3126 = vmatpush.bf16.msra.mxu0 0
  %3127 = vmatpush.bf16.msra.mxu0 0
  %3128 = vmatpush.bf16.msra.mxu0 0
  %3129 = vmatpush.bf16.msra.mxu0 0
  %3130 = vmatpush.bf16.msra.mxu0 0
  %3131 = vmatpush.bf16.msra.mxu0 0
  %3132 = vmatpush.bf16.msra.mxu0 %v2957
  %3133 = vmatpush.bf16.msra.mxu0 %v2946
  %3134 = vmatmul.bf16.gmra.mxu0 %v381
  %v3135 = vpop.f32.mrf.mxu0
  %v3136 = vadd.f32 0.0, %v3135
  %v3137 = vpop.f32.mrf.mxu0
  %v3138 = vadd.f32 0.0, %v3137
  %3139 = vmatmul.bf16.gmra.mxu0 %v384
  %v3140 = vpop.f32.mrf.mxu0
  %v3141 = vadd.f32 0.0, %v3140
  %v3142 = vpop.f32.mrf.mxu0
  %3143 = vdwg.mxu0
  %3144 = vmatpush.bf16.msra.mxu0 0
  %3145 = vmatpush.bf16.msra.mxu0 0
  %3146 = vmatpush.bf16.msra.mxu0 0
  %3147 = vmatpush.bf16.msra.mxu0 0
  %3148 = vmatpush.bf16.msra.mxu0 0
  %3149 = vmatpush.bf16.msra.mxu0 0
  %3150 = vmatpush.bf16.msra.mxu0 %v2958
  %3151 = vmatpush.bf16.msra.mxu0 %v2947
  %3152 = vmatmul.bf16.gmra.mxu0 %v381
  %v3153 = vpop.f32.mrf.mxu0
  %v3154 = vadd.f32 0.0, %v3153
  %v3155 = vpop.f32.mrf.mxu0
  %v3156 = vadd.f32 0.0, %v3155
  %3157 = vmatmul.bf16.gmra.mxu0 %v384
  %v3158 = vpop.f32.mrf.mxu0
  %v3159 = vadd.f32 0.0, %v3158
  %v3160 = vpop.f32.mrf.mxu0
  %3161 = vdwg.mxu0
  %3162 = vmatpush.bf16.msra.mxu0 0
  %3163 = vmatpush.bf16.msra.mxu0 0
  %3164 = vmatpush.bf16.msra.mxu0 0
  %3165 = vmatpush.bf16.msra.mxu0 0
  %3166 = vmatpush.bf16.msra.mxu0 0
  %3167 = vmatpush.bf16.msra.mxu0 0
  %3168 = vmatpush.bf16.msra.mxu0 %v2959
  %3169 = vmatpush.bf16.msra.mxu0 %v2948
  %3170 = vmatmul.bf16.gmra.mxu0 %v381
  %v3171 = vpop.f32.mrf.mxu0
  %v3172 = vadd.f32 0.0, %v3171
  %v3173 = vpop.f32.mrf.mxu0
  %v3174 = vadd.f32 0.0, %v3173
  %3175 = vmatmul.bf16.gmra.mxu0 %v384
  %v3176 = vpop.f32.mrf.mxu0
  %v3177 = vadd.f32 0.0, %v3176
  %v3178 = vpop.f32.mrf.mxu0
  %3179 = vdwg.mxu0
  %v3180 = vmax.f32 %v2992, 0.0
  %v3181 = vmax.f32 %v3010, 0.0
  %v3182 = vmax.f32 %v3028, 0.0
  %v3183 = vmax.f32 %v3046, 0.0
  %v3184 = vmax.f32 %v3064, 0.0
  %v3185 = vmax.f32 %v3082, 0.0
  %v3186 = vmax.f32 %v3100, 0.0
  %v3187 = vmax.f32 %v3118, 0.0
  %v3188 = vmax.f32 %v3136, 0.0
  %v3189 = vmax.f32 %v3154, 0.0
  %v3190 = vmax.f32 %v3172, 0.0
  %v3191 = vmax.f32 %v2994, 0.0
  %v3192 = vmax.f32 %v3012, 0.0
  %v3193 = vmax.f32 %v3030, 0.0
  %v3194 = vmax.f32 %v3048, 0.0
  %v3195 = vmax.f32 %v3066, 0.0
  %v3196 = vmax.f32 %v3084, 0.0
  %v3197 = vmax.f32 %v3102, 0.0
  %v3198 = vmax.f32 %v3120, 0.0
  %v3199 = vmax.f32 %v3138, 0.0
  %v3200 = vmax.f32 %v3156, 0.0
  %v3201 = vmax.f32 %v3174, 0.0
  %v3202 = vmax.f32 %v2997, 0.0
  %v3203 = vmax.f32 %v3015, 0.0
  %v3204 = vmax.f32 %v3033, 0.0
  %v3205 = vmax.f32 %v3051, 0.0
  %v3206 = vmax.f32 %v3069, 0.0
  %v3207 = vmax.f32 %v3087, 0.0
  %v3208 = vmax.f32 %v3105, 0.0
  %v3209 = vmax.f32 %v3123, 0.0
  %v3210 = vmax.f32 %v3141, 0.0
  %v3211 = vmax.f32 %v3159, 0.0
  %v3212 = vmax.f32 %v3177, 0.0
  %v3213 = vpack.c.bf16 %v3191, %v3180
  %v3214 = vpack.c.bf16 %v3192, %v3181
  %v3215 = vpack.c.bf16 %v3193, %v3182
  %v3216 = vpack.c.bf16 %v3194, %v3183
  %v3217 = vpack.c.bf16 %v3195, %v3184
  %v3218 = vpack.c.bf16 %v3196, %v3185
  %v3219 = vpack.c.bf16 %v3197, %v3186
  %v3220 = vpack.c.bf16 %v3198, %v3187
  %v3221 = vpack.c.bf16 %v3199, %v3188
  %v3222 = vpack.c.bf16 %v3200, %v3189
  %v3223 = vpack.c.bf16 %v3201, %v3190
  %v3224 = vpack.c.bf16 %v3202, %v3202
  %v3225 = vpack.c.bf16 %v3203, %v3203
  %v3226 = vpack.c.bf16 %v3204, %v3204
  %v3227 = vpack.c.bf16 %v3205, %v3205
  %v3228 = vpack.c.bf16 %v3206, %v3206
  %v3229 = vpack.c.bf16 %v3207, %v3207
  %v3230 = vpack.c.bf16 %v3208, %v3208
  %v3231 = vpack.c.bf16 %v3209, %v3209
  %v3232 = vpack.c.bf16 %v3210, %v3210
  %v3233 = vpack.c.bf16 %v3211, %v3211
  %v3234 = vpack.c.bf16 %v3212, %v3212
  %3235 = vmatpush.bf16.msra.mxu0 %v1181
  %3236 = vmatpush.bf16.msra.mxu0 %v1179
  %3237 = vmatpush.bf16.msra.mxu0 %v1177
  %3238 = vmatpush.bf16.msra.mxu0 %v1175
  %3239 = vmatpush.bf16.msra.mxu0 %v1173
  %3240 = vmatpush.bf16.msra.mxu0 %v1171
  %3241 = vmatpush.bf16.msra.mxu0 %v1169
  %3242 = vmatpush.bf16.msra.mxu0 %v1167
  %3243 = vmatmul.bf16.gmra.mxu0 %v3213
  %v3244 = vpop.f32.mrf.mxu0
  %v3245 = vadd.f32 0.0, %v3244
  %v3246 = vpop.f32.mrf.mxu0
  %v3247 = vadd.f32 0.0, %v3246
  %3248 = vmatmul.bf16.gmra.mxu0 %v3224
  %v3249 = vpop.f32.mrf.mxu0
  %v3250 = vadd.f32 0.0, %v3249
  %v3251 = vpop.f32.mrf.mxu0
  %3252 = vdwg.mxu0
  %3253 = vmatpush.bf16.msra.mxu0 %v1197
  %3254 = vmatpush.bf16.msra.mxu0 %v1195
  %3255 = vmatpush.bf16.msra.mxu0 %v1193
  %3256 = vmatpush.bf16.msra.mxu0 %v1191
  %3257 = vmatpush.bf16.msra.mxu0 %v1189
  %3258 = vmatpush.bf16.msra.mxu0 %v1187
  %3259 = vmatpush.bf16.msra.mxu0 %v1185
  %3260 = vmatpush.bf16.msra.mxu0 %v1183
  %3261 = vmatmul.bf16.gmra.mxu0 %v3214
  %v3262 = vpop.f32.mrf.mxu0
  %v3263 = vadd.f32 %v3245, %v3262
  %v3264 = vpop.f32.mrf.mxu0
  %v3265 = vadd.f32 %v3247, %v3264
  %3266 = vmatmul.bf16.gmra.mxu0 %v3225
  %v3267 = vpop.f32.mrf.mxu0
  %v3268 = vadd.f32 %v3250, %v3267
  %v3269 = vpop.f32.mrf.mxu0
  %3270 = vdwg.mxu0
  %3271 = vmatpush.bf16.msra.mxu0 %v1213
  %3272 = vmatpush.bf16.msra.mxu0 %v1211
  %3273 = vmatpush.bf16.msra.mxu0 %v1209
  %3274 = vmatpush.bf16.msra.mxu0 %v1207
  %3275 = vmatpush.bf16.msra.mxu0 %v1205
  %3276 = vmatpush.bf16.msra.mxu0 %v1203
  %3277 = vmatpush.bf16.msra.mxu0 %v1201
  %3278 = vmatpush.bf16.msra.mxu0 %v1199
  %3279 = vmatmul.bf16.gmra.mxu0 %v3215
  %v3280 = vpop.f32.mrf.mxu0
  %v3281 = vadd.f32 %v3263, %v3280
  %v3282 = vpop.f32.mrf.mxu0
  %v3283 = vadd.f32 %v3265, %v3282
  %3284 = vmatmul.bf16.gmra.mxu0 %v3226
  %v3285 = vpop.f32.mrf.mxu0
  %v3286 = vadd.f32 %v3268, %v3285
  %v3287 = vpop.f32.mrf.mxu0
  %3288 = vdwg.mxu0
  %3289 = vmatpush.bf16.msra.mxu0 %v1229
  %3290 = vmatpush.bf16.msra.mxu0 %v1227
  %3291 = vmatpush.bf16.msra.mxu0 %v1225
  %3292 = vmatpush.bf16.msra.mxu0 %v1223
  %3293 = vmatpush.bf16.msra.mxu0 %v1221
  %3294 = vmatpush.bf16.msra.mxu0 %v1219
  %3295 = vmatpush.bf16.msra.mxu0 %v1217
  %3296 = vmatpush.bf16.msra.mxu0 %v1215
  %3297 = vmatmul.bf16.gmra.mxu0 %v3216
  %v3298 = vpop.f32.mrf.mxu0
  %v3299 = vadd.f32 %v3281, %v3298
  %v3300 = vpop.f32.mrf.mxu0
  %v3301 = vadd.f32 %v3283, %v3300
  %3302 = vmatmul.bf16.gmra.mxu0 %v3227
  %v3303 = vpop.f32.mrf.mxu0
  %v3304 = vadd.f32 %v3286, %v3303
  %v3305 = vpop.f32.mrf.mxu0
  %3306 = vdwg.mxu0
  %3307 = vmatpush.bf16.msra.mxu0 %v1245
  %3308 = vmatpush.bf16.msra.mxu0 %v1243
  %3309 = vmatpush.bf16.msra.mxu0 %v1241
  %3310 = vmatpush.bf16.msra.mxu0 %v1239
  %3311 = vmatpush.bf16.msra.mxu0 %v1237
  %3312 = vmatpush.bf16.msra.mxu0 %v1235
  %3313 = vmatpush.bf16.msra.mxu0 %v1233
  %3314 = vmatpush.bf16.msra.mxu0 %v1231
  %3315 = vmatmul.bf16.gmra.mxu0 %v3217
  %v3316 = vpop.f32.mrf.mxu0
  %v3317 = vadd.f32 %v3299, %v3316
  %v3318 = vpop.f32.mrf.mxu0
  %v3319 = vadd.f32 %v3301, %v3318
  %3320 = vmatmul.bf16.gmra.mxu0 %v3228
  %v3321 = vpop.f32.mrf.mxu0
  %v3322 = vadd.f32 %v3304, %v3321
  %v3323 = vpop.f32.mrf.mxu0
  %3324 = vdwg.mxu0
  %3325 = vmatpush.bf16.msra.mxu0 %v1261
  %3326 = vmatpush.bf16.msra.mxu0 %v1259
  %3327 = vmatpush.bf16.msra.mxu0 %v1257
  %3328 = vmatpush.bf16.msra.mxu0 %v1255
  %3329 = vmatpush.bf16.msra.mxu0 %v1253
  %3330 = vmatpush.bf16.msra.mxu0 %v1251
  %3331 = vmatpush.bf16.msra.mxu0 %v1249
  %3332 = vmatpush.bf16.msra.mxu0 %v1247
  %3333 = vmatmul.bf16.gmra.mxu0 %v3218
  %v3334 = vpop.f32.mrf.mxu0
  %v3335 = vadd.f32 %v3317, %v3334
  %v3336 = vpop.f32.mrf.mxu0
  %v3337 = vadd.f32 %v3319, %v3336
  %3338 = vmatmul.bf16.gmra.mxu0 %v3229
  %v3339 = vpop.f32.mrf.mxu0
  %v3340 = vadd.f32 %v3322, %v3339
  %v3341 = vpop.f32.mrf.mxu0
  %3342 = vdwg.mxu0
  %3343 = vmatpush.bf16.msra.mxu0 %v1277
  %3344 = vmatpush.bf16.msra.mxu0 %v1275
  %3345 = vmatpush.bf16.msra.mxu0 %v1273
  %3346 = vmatpush.bf16.msra.mxu0 %v1271
  %3347 = vmatpush.bf16.msra.mxu0 %v1269
  %3348 = vmatpush.bf16.msra.mxu0 %v1267
  %3349 = vmatpush.bf16.msra.mxu0 %v1265
  %3350 = vmatpush.bf16.msra.mxu0 %v1263
  %3351 = vmatmul.bf16.gmra.mxu0 %v3219
  %v3352 = vpop.f32.mrf.mxu0
  %v3353 = vadd.f32 %v3335, %v3352
  %v3354 = vpop.f32.mrf.mxu0
  %v3355 = vadd.f32 %v3337, %v3354
  %3356 = vmatmul.bf16.gmra.mxu0 %v3230
  %v3357 = vpop.f32.mrf.mxu0
  %v3358 = vadd.f32 %v3340, %v3357
  %v3359 = vpop.f32.mrf.mxu0
  %3360 = vdwg.mxu0
  %3361 = vmatpush.bf16.msra.mxu0 %v1293
  %3362 = vmatpush.bf16.msra.mxu0 %v1291
  %3363 = vmatpush.bf16.msra.mxu0 %v1289
  %3364 = vmatpush.bf16.msra.mxu0 %v1287
  %3365 = vmatpush.bf16.msra.mxu0 %v1285
  %3366 = vmatpush.bf16.msra.mxu0 %v1283
  %3367 = vmatpush.bf16.msra.mxu0 %v1281
  %3368 = vmatpush.bf16.msra.mxu0 %v1279
  %3369 = vmatmul.bf16.gmra.mxu0 %v3220
  %v3370 = vpop.f32.mrf.mxu0
  %v3371 = vadd.f32 %v3353, %v3370
  %v3372 = vpop.f32.mrf.mxu0
  %v3373 = vadd.f32 %v3355, %v3372
  %3374 = vmatmul.bf16.gmra.mxu0 %v3231
  %v3375 = vpop.f32.mrf.mxu0
  %v3376 = vadd.f32 %v3358, %v3375
  %v3377 = vpop.f32.mrf.mxu0
  %3378 = vdwg.mxu0
  %3379 = vmatpush.bf16.msra.mxu0 %v1309
  %3380 = vmatpush.bf16.msra.mxu0 %v1307
  %3381 = vmatpush.bf16.msra.mxu0 %v1305
  %3382 = vmatpush.bf16.msra.mxu0 %v1303
  %3383 = vmatpush.bf16.msra.mxu0 %v1301
  %3384 = vmatpush.bf16.msra.mxu0 %v1299
  %3385 = vmatpush.bf16.msra.mxu0 %v1297
  %3386 = vmatpush.bf16.msra.mxu0 %v1295
  %3387 = vmatmul.bf16.gmra.mxu0 %v3221
  %v3388 = vpop.f32.mrf.mxu0
  %v3389 = vadd.f32 %v3371, %v3388
  %v3390 = vpop.f32.mrf.mxu0
  %v3391 = vadd.f32 %v3373, %v3390
  %3392 = vmatmul.bf16.gmra.mxu0 %v3232
  %v3393 = vpop.f32.mrf.mxu0
  %v3394 = vadd.f32 %v3376, %v3393
  %v3395 = vpop.f32.mrf.mxu0
  %3396 = vdwg.mxu0
  %3397 = vmatpush.bf16.msra.mxu0 %v1325
  %3398 = vmatpush.bf16.msra.mxu0 %v1323
  %3399 = vmatpush.bf16.msra.mxu0 %v1321
  %3400 = vmatpush.bf16.msra.mxu0 %v1319
  %3401 = vmatpush.bf16.msra.mxu0 %v1317
  %3402 = vmatpush.bf16.msra.mxu0 %v1315
  %3403 = vmatpush.bf16.msra.mxu0 %v1313
  %3404 = vmatpush.bf16.msra.mxu0 %v1311
  %3405 = vmatmul.bf16.gmra.mxu0 %v3222
  %v3406 = vpop.f32.mrf.mxu0
  %v3407 = vadd.f32 %v3389, %v3406
  %v3408 = vpop.f32.mrf.mxu0
  %v3409 = vadd.f32 %v3391, %v3408
  %3410 = vmatmul.bf16.gmra.mxu0 %v3233
  %v3411 = vpop.f32.mrf.mxu0
  %v3412 = vadd.f32 %v3394, %v3411
  %v3413 = vpop.f32.mrf.mxu0
  %3414 = vdwg.mxu0
  %3415 = vmatpush.bf16.msra.mxu0 %v1341
  %3416 = vmatpush.bf16.msra.mxu0 %v1339
  %3417 = vmatpush.bf16.msra.mxu0 %v1337
  %3418 = vmatpush.bf16.msra.mxu0 %v1335
  %3419 = vmatpush.bf16.msra.mxu0 %v1333
  %3420 = vmatpush.bf16.msra.mxu0 %v1331
  %3421 = vmatpush.bf16.msra.mxu0 %v1329
  %3422 = vmatpush.bf16.msra.mxu0 %v1327
  %3423 = vmatmul.bf16.gmra.mxu0 %v3223
  %v3424 = vpop.f32.mrf.mxu0
  %v3425 = vadd.f32 %v3407, %v3424
  %v3426 = vpop.f32.mrf.mxu0
  %v3427 = vadd.f32 %v3409, %v3426
  %3428 = vmatmul.bf16.gmra.mxu0 %v3234
  %v3429 = vpop.f32.mrf.mxu0
  %v3430 = vadd.f32 %v3412, %v3429
  %v3431 = vpop.f32.mrf.mxu0
  %3432 = vdwg.mxu0
  %3433 = vmatpush.bf16.msra.mxu0 %v1182
  %3434 = vmatpush.bf16.msra.mxu0 %v1180
  %3435 = vmatpush.bf16.msra.mxu0 %v1178
  %3436 = vmatpush.bf16.msra.mxu0 %v1176
  %3437 = vmatpush.bf16.msra.mxu0 %v1174
  %3438 = vmatpush.bf16.msra.mxu0 %v1172
  %3439 = vmatpush.bf16.msra.mxu0 %v1170
  %3440 = vmatpush.bf16.msra.mxu0 %v1168
  %3441 = vmatmul.bf16.gmra.mxu0 %v3213
  %v3442 = vpop.f32.mrf.mxu0
  %v3443 = vadd.f32 0.0, %v3442
  %v3444 = vpop.f32.mrf.mxu0
  %v3445 = vadd.f32 0.0, %v3444
  %3446 = vmatmul.bf16.gmra.mxu0 %v3224
  %v3447 = vpop.f32.mrf.mxu0
  %v3448 = vadd.f32 0.0, %v3447
  %v3449 = vpop.f32.mrf.mxu0
  %3450 = vdwg.mxu0
  %3451 = vmatpush.bf16.msra.mxu0 %v1198
  %3452 = vmatpush.bf16.msra.mxu0 %v1196
  %3453 = vmatpush.bf16.msra.mxu0 %v1194
  %3454 = vmatpush.bf16.msra.mxu0 %v1192
  %3455 = vmatpush.bf16.msra.mxu0 %v1190
  %3456 = vmatpush.bf16.msra.mxu0 %v1188
  %3457 = vmatpush.bf16.msra.mxu0 %v1186
  %3458 = vmatpush.bf16.msra.mxu0 %v1184
  %3459 = vmatmul.bf16.gmra.mxu0 %v3214
  %v3460 = vpop.f32.mrf.mxu0
  %v3461 = vadd.f32 %v3443, %v3460
  %v3462 = vpop.f32.mrf.mxu0
  %v3463 = vadd.f32 %v3445, %v3462
  %3464 = vmatmul.bf16.gmra.mxu0 %v3225
  %v3465 = vpop.f32.mrf.mxu0
  %v3466 = vadd.f32 %v3448, %v3465
  %v3467 = vpop.f32.mrf.mxu0
  %3468 = vdwg.mxu0
  %3469 = vmatpush.bf16.msra.mxu0 %v1214
  %3470 = vmatpush.bf16.msra.mxu0 %v1212
  %3471 = vmatpush.bf16.msra.mxu0 %v1210
  %3472 = vmatpush.bf16.msra.mxu0 %v1208
  %3473 = vmatpush.bf16.msra.mxu0 %v1206
  %3474 = vmatpush.bf16.msra.mxu0 %v1204
  %3475 = vmatpush.bf16.msra.mxu0 %v1202
  %3476 = vmatpush.bf16.msra.mxu0 %v1200
  %3477 = vmatmul.bf16.gmra.mxu0 %v3215
  %v3478 = vpop.f32.mrf.mxu0
  %v3479 = vadd.f32 %v3461, %v3478
  %v3480 = vpop.f32.mrf.mxu0
  %v3481 = vadd.f32 %v3463, %v3480
  %3482 = vmatmul.bf16.gmra.mxu0 %v3226
  %v3483 = vpop.f32.mrf.mxu0
  %v3484 = vadd.f32 %v3466, %v3483
  %v3485 = vpop.f32.mrf.mxu0
  %3486 = vdwg.mxu0
  %3487 = vmatpush.bf16.msra.mxu0 %v1230
  %3488 = vmatpush.bf16.msra.mxu0 %v1228
  %3489 = vmatpush.bf16.msra.mxu0 %v1226
  %3490 = vmatpush.bf16.msra.mxu0 %v1224
  %3491 = vmatpush.bf16.msra.mxu0 %v1222
  %3492 = vmatpush.bf16.msra.mxu0 %v1220
  %3493 = vmatpush.bf16.msra.mxu0 %v1218
  %3494 = vmatpush.bf16.msra.mxu0 %v1216
  %3495 = vmatmul.bf16.gmra.mxu0 %v3216
  %v3496 = vpop.f32.mrf.mxu0
  %v3497 = vadd.f32 %v3479, %v3496
  %v3498 = vpop.f32.mrf.mxu0
  %v3499 = vadd.f32 %v3481, %v3498
  %3500 = vmatmul.bf16.gmra.mxu0 %v3227
  %v3501 = vpop.f32.mrf.mxu0
  %v3502 = vadd.f32 %v3484, %v3501
  %v3503 = vpop.f32.mrf.mxu0
  %3504 = vdwg.mxu0
  %3505 = vmatpush.bf16.msra.mxu0 %v1246
  %3506 = vmatpush.bf16.msra.mxu0 %v1244
  %3507 = vmatpush.bf16.msra.mxu0 %v1242
  %3508 = vmatpush.bf16.msra.mxu0 %v1240
  %3509 = vmatpush.bf16.msra.mxu0 %v1238
  %3510 = vmatpush.bf16.msra.mxu0 %v1236
  %3511 = vmatpush.bf16.msra.mxu0 %v1234
  %3512 = vmatpush.bf16.msra.mxu0 %v1232
  %3513 = vmatmul.bf16.gmra.mxu0 %v3217
  %v3514 = vpop.f32.mrf.mxu0
  %v3515 = vadd.f32 %v3497, %v3514
  %v3516 = vpop.f32.mrf.mxu0
  %v3517 = vadd.f32 %v3499, %v3516
  %3518 = vmatmul.bf16.gmra.mxu0 %v3228
  %v3519 = vpop.f32.mrf.mxu0
  %v3520 = vadd.f32 %v3502, %v3519
  %v3521 = vpop.f32.mrf.mxu0
  %3522 = vdwg.mxu0
  %3523 = vmatpush.bf16.msra.mxu0 %v1262
  %3524 = vmatpush.bf16.msra.mxu0 %v1260
  %3525 = vmatpush.bf16.msra.mxu0 %v1258
  %3526 = vmatpush.bf16.msra.mxu0 %v1256
  %3527 = vmatpush.bf16.msra.mxu0 %v1254
  %3528 = vmatpush.bf16.msra.mxu0 %v1252
  %3529 = vmatpush.bf16.msra.mxu0 %v1250
  %3530 = vmatpush.bf16.msra.mxu0 %v1248
  %3531 = vmatmul.bf16.gmra.mxu0 %v3218
  %v3532 = vpop.f32.mrf.mxu0
  %v3533 = vadd.f32 %v3515, %v3532
  %v3534 = vpop.f32.mrf.mxu0
  %v3535 = vadd.f32 %v3517, %v3534
  %3536 = vmatmul.bf16.gmra.mxu0 %v3229
  %v3537 = vpop.f32.mrf.mxu0
  %v3538 = vadd.f32 %v3520, %v3537
  %v3539 = vpop.f32.mrf.mxu0
  %3540 = vdwg.mxu0
  %3541 = vmatpush.bf16.msra.mxu0 %v1278
  %3542 = vmatpush.bf16.msra.mxu0 %v1276
  %3543 = vmatpush.bf16.msra.mxu0 %v1274
  %3544 = vmatpush.bf16.msra.mxu0 %v1272
  %3545 = vmatpush.bf16.msra.mxu0 %v1270
  %3546 = vmatpush.bf16.msra.mxu0 %v1268
  %3547 = vmatpush.bf16.msra.mxu0 %v1266
  %3548 = vmatpush.bf16.msra.mxu0 %v1264
  %3549 = vmatmul.bf16.gmra.mxu0 %v3219
  %v3550 = vpop.f32.mrf.mxu0
  %v3551 = vadd.f32 %v3533, %v3550
  %v3552 = vpop.f32.mrf.mxu0
  %v3553 = vadd.f32 %v3535, %v3552
  %3554 = vmatmul.bf16.gmra.mxu0 %v3230
  %v3555 = vpop.f32.mrf.mxu0
  %v3556 = vadd.f32 %v3538, %v3555
  %v3557 = vpop.f32.mrf.mxu0
  %3558 = vdwg.mxu0
  %3559 = vmatpush.bf16.msra.mxu0 %v1294
  %3560 = vmatpush.bf16.msra.mxu0 %v1292
  %3561 = vmatpush.bf16.msra.mxu0 %v1290
  %3562 = vmatpush.bf16.msra.mxu0 %v1288
  %3563 = vmatpush.bf16.msra.mxu0 %v1286
  %3564 = vmatpush.bf16.msra.mxu0 %v1284
  %3565 = vmatpush.bf16.msra.mxu0 %v1282
  %3566 = vmatpush.bf16.msra.mxu0 %v1280
  %3567 = vmatmul.bf16.gmra.mxu0 %v3220
  %v3568 = vpop.f32.mrf.mxu0
  %v3569 = vadd.f32 %v3551, %v3568
  %v3570 = vpop.f32.mrf.mxu0
  %v3571 = vadd.f32 %v3553, %v3570
  %3572 = vmatmul.bf16.gmra.mxu0 %v3231
  %v3573 = vpop.f32.mrf.mxu0
  %v3574 = vadd.f32 %v3556, %v3573
  %v3575 = vpop.f32.mrf.mxu0
  %3576 = vdwg.mxu0
  %3577 = vmatpush.bf16.msra.mxu0 %v1310
  %3578 = vmatpush.bf16.msra.mxu0 %v1308
  %3579 = vmatpush.bf16.msra.mxu0 %v1306
  %3580 = vmatpush.bf16.msra.mxu0 %v1304
  %3581 = vmatpush.bf16.msra.mxu0 %v1302
  %3582 = vmatpush.bf16.msra.mxu0 %v1300
  %3583 = vmatpush.bf16.msra.mxu0 %v1298
  %3584 = vmatpush.bf16.msra.mxu0 %v1296
  %3585 = vmatmul.bf16.gmra.mxu0 %v3221
  %v3586 = vpop.f32.mrf.mxu0
  %v3587 = vadd.f32 %v3569, %v3586
  %v3588 = vpop.f32.mrf.mxu0
  %v3589 = vadd.f32 %v3571, %v3588
  %3590 = vmatmul.bf16.gmra.mxu0 %v3232
  %v3591 = vpop.f32.mrf.mxu0
  %v3592 = vadd.f32 %v3574, %v3591
  %v3593 = vpop.f32.mrf.mxu0
  %3594 = vdwg.mxu0
  %3595 = vmatpush.bf16.msra.mxu0 %v1326
  %3596 = vmatpush.bf16.msra.mxu0 %v1324
  %3597 = vmatpush.bf16.msra.mxu0 %v1322
  %3598 = vmatpush.bf16.msra.mxu0 %v1320
  %3599 = vmatpush.bf16.msra.mxu0 %v1318
  %3600 = vmatpush.bf16.msra.mxu0 %v1316
  %3601 = vmatpush.bf16.msra.mxu0 %v1314
  %3602 = vmatpush.bf16.msra.mxu0 %v1312
  %3603 = vmatmul.bf16.gmra.mxu0 %v3222
  %v3604 = vpop.f32.mrf.mxu0
  %v3605 = vadd.f32 %v3587, %v3604
  %v3606 = vpop.f32.mrf.mxu0
  %v3607 = vadd.f32 %v3589, %v3606
  %3608 = vmatmul.bf16.gmra.mxu0 %v3233
  %v3609 = vpop.f32.mrf.mxu0
  %v3610 = vadd.f32 %v3592, %v3609
  %v3611 = vpop.f32.mrf.mxu0
  %3612 = vdwg.mxu0
  %3613 = vmatpush.bf16.msra.mxu0 %v1342
  %3614 = vmatpush.bf16.msra.mxu0 %v1340
  %3615 = vmatpush.bf16.msra.mxu0 %v1338
  %3616 = vmatpush.bf16.msra.mxu0 %v1336
  %3617 = vmatpush.bf16.msra.mxu0 %v1334
  %3618 = vmatpush.bf16.msra.mxu0 %v1332
  %3619 = vmatpush.bf16.msra.mxu0 %v1330
  %3620 = vmatpush.bf16.msra.mxu0 %v1328
  %3621 = vmatmul.bf16.gmra.mxu0 %v3223
  %v3622 = vpop.f32.mrf.mxu0
  %v3623 = vadd.f32 %v3605, %v3622
  %v3624 = vpop.f32.mrf.mxu0
  %v3625 = vadd.f32 %v3607, %v3624
  %3626 = vmatmul.bf16.gmra.mxu0 %v3234
  %v3627 = vpop.f32.mrf.mxu0
  %v3628 = vadd.f32 %v3610, %v3627
  %v3629 = vpop.f32.mrf.mxu0
  %3630 = vdwg.mxu0
  %v3631 = vmul.f32 %v3425, %v203
  %v3632 = vmul.f32 %v3623, %v204
  %v3633 = vmul.f32 %v3427, %v205
  %v3634 = vmul.f32 %v3625, %v206
  %v3635 = vmul.f32 %v3430, %v207
  %v3636 = vmul.f32 %v3628, %v208
  %v3637 = vadd.f32 %v3631, %v3633
  %v3638 = vsel %vm1922, %v3635, 0.0
  %v3639 = vadd.f32 %v3637, %v3638
  %v3640 = vrot.slane %v3639, 4
  %v3641 = vadd.f32 %v3639, %v3640
  %v3642 = vrot.slane %v3641, 2
  %v3643 = vadd.f32 %v3641, %v3642
  %v3644 = vrot.slane %v3643, 1
  %v3645 = vadd.f32 %v3643, %v3644
  %v3646 = vsel %vm1931, %v3632, 0.0
  %v3647 = vsel %vm1931, %v3634, 0.0
  %v3648 = vadd.f32 %v3646, %v3647
  %v3649 = vsel %vm1935, %v3636, 0.0
  %v3650 = vadd.f32 %v3648, %v3649
  %v3651 = vrot.slane %v3650, 4
  %v3652 = vadd.f32 %v3650, %v3651
  %v3653 = vrot.slane %v3652, 2
  %v3654 = vadd.f32 %v3652, %v3653
  %v3655 = vrot.slane %v3654, 1
  %v3656 = vadd.f32 %v3654, %v3655
  %v3658 = vsel %vm1931, %v3656, 0
  %3660 = vmatpush.msra.mxu0 %v224
  %3661 = vmatpush.msra.mxu0 %v223
  %3662 = vmatpush.msra.mxu0 %v222
  %3663 = vmatpush.msra.mxu0 %v221
  %3664 = vmatpush.msra.mxu0 %v220
  %3665 = vmatpush.msra.mxu0 %v219
  %3666 = vmatpush.msra.mxu0 %v218
  %3667 = vmatpush.msra.mxu0 %v217
  %3668 = vmatpush.msra.mxu0 %v216
  %3669 = vmatpush.msra.mxu0 %v215
  %3670 = vmatpush.msra.mxu0 %v214
  %3671 = vmatpush.msra.mxu0 %v213
  %3672 = vmatpush.msra.mxu0 %v212
  %3673 = vmatpush.msra.mxu0 %v211
  %3674 = vmatpush.msra.mxu0 %v210
  %3675 = vmatpush.msra.mxu0 %v209
  %3676 = vmatmul.f32.gmra.mxu0 %v3645
  %v3677 = vpop.f32.mrf.mxu0
  %v3678 = vadd.f32 %v234, %v3677
  %3679 = vdwg.mxu0
  %3680 = vmatpush.msra.mxu0 0.0
  %3681 = vmatpush.msra.mxu0 0.0
  %3682 = vmatpush.msra.mxu0 0.0
  %3683 = vmatpush.msra.mxu0 0.0
  %3684 = vmatpush.msra.mxu0 0.0
  %3685 = vmatpush.msra.mxu0 0.0
  %3686 = vmatpush.msra.mxu0 0.0
  %3687 = vmatpush.msra.mxu0 %v233
  %3688 = vmatpush.msra.mxu0 %v232
  %3689 = vmatpush.msra.mxu0 %v231
  %3690 = vmatpush.msra.mxu0 %v230
  %3691 = vmatpush.msra.mxu0 %v229
  %3692 = vmatpush.msra.mxu0 %v228
  %3693 = vmatpush.msra.mxu0 %v227
  %3694 = vmatpush.msra.mxu0 %v226
  %3695 = vmatpush.msra.mxu0 %v225
  %3696 = vmatmul.f32.gmra.mxu0 %v3658
  %v3697 = vpop.f32.mrf.mxu0
  %v3698 = vadd.f32 %v3678, %v3697
  %3699 = vdwg.mxu0
  %3700 = vst.msk [vmem:[%s6 + $0x2] sm:$0x1] %vm1987, %v3698
  %s3701 = scalar_lea.vmem %s0, 528
  %v3702 = vld [vmem:[%s3701] sm:$0xff]
  %v3703 = vld [vmem:[%s3701 + $0x8] sm:$0xff]
  %v3704 = vld [vmem:[%s3701 + $0x10] sm:$0xff]
  %v3705 = vld [vmem:[%s3701 + $0x18] sm:$0xff]
  %v3706 = vld [vmem:[%s3701 + $0x20] sm:$0xff]
  %v3707 = vld [vmem:[%s3701 + $0x28] sm:$0xf]
  %v3708 = vld [vmem:[%s3701 + $0x2c] sm:$0xff]
  %v3709 = vld [vmem:[%s3701 + $0x34] sm:$0xff]
  %v3710 = vld [vmem:[%s3701 + $0x3c] sm:$0xff]
  %v3711 = vld [vmem:[%s3701 + $0x44] sm:$0xff]
  %v3712 = vld [vmem:[%s3701 + $0x4c] sm:$0xff]
  %v3713 = vld [vmem:[%s3701 + $0x54] sm:$0xf]
  %v3714 = vld [vmem:[%s3701 + $0x58] sm:$0xff]
  %v3715 = vld [vmem:[%s3701 + $0x60] sm:$0xff]
  %v3716 = vld [vmem:[%s3701 + $0x68] sm:$0xff]
  %v3717 = vld [vmem:[%s3701 + $0x70] sm:$0xff]
  %v3718 = vld [vmem:[%s3701 + $0x78] sm:$0xff]
  %v3719 = vld [vmem:[%s3701 + $0x80] sm:$0xf]
  %v3720 = vld [vmem:[%s3701 + $0x84] sm:$0xff]
  %v3721 = vld [vmem:[%s3701 + $0x8c] sm:$0xff]
  %v3722 = vld [vmem:[%s3701 + $0x94] sm:$0xff]
  %v3723 = vld [vmem:[%s3701 + $0x9c] sm:$0xff]
  %v3724 = vld [vmem:[%s3701 + $0xa4] sm:$0xff]
  %v3725 = vld [vmem:[%s3701 + $0xac] sm:$0xf]
  %v3750 = vunpack.c.l.b16 %v3702
  %v3751 = vunpack.c.h.b16 %v3702
  %v3752 = vunpack.c.l.b16 %v3703
  %v3753 = vunpack.c.h.b16 %v3703
  %v3754 = vunpack.c.l.b16 %v3704
  %v3755 = vunpack.c.h.b16 %v3704
  %v3756 = vunpack.c.l.b16 %v3705
  %v3757 = vunpack.c.h.b16 %v3705
  %v3758 = vunpack.c.l.b16 %v3706
  %v3759 = vunpack.c.h.b16 %v3706
  %v3760 = vunpack.c.l.b16 %v3707
  %v3761 = vunpack.c.l.b16 %v3708
  %v3762 = vunpack.c.h.b16 %v3708
  %v3763 = vunpack.c.l.b16 %v3709
  %v3764 = vunpack.c.h.b16 %v3709
  %v3765 = vunpack.c.l.b16 %v3710
  %v3766 = vunpack.c.h.b16 %v3710
  %v3767 = vunpack.c.l.b16 %v3711
  %v3768 = vunpack.c.h.b16 %v3711
  %v3769 = vunpack.c.l.b16 %v3712
  %v3770 = vunpack.c.h.b16 %v3712
  %v3771 = vunpack.c.l.b16 %v3713
  %v3772 = vunpack.c.l.b16 %v3714
  %v3773 = vunpack.c.h.b16 %v3714
  %v3774 = vunpack.c.l.b16 %v3715
  %v3775 = vunpack.c.h.b16 %v3715
  %v3776 = vunpack.c.l.b16 %v3716
  %v3777 = vunpack.c.h.b16 %v3716
  %v3778 = vunpack.c.l.b16 %v3717
  %v3779 = vunpack.c.h.b16 %v3717
  %v3780 = vunpack.c.l.b16 %v3718
  %v3781 = vunpack.c.h.b16 %v3718
  %v3782 = vunpack.c.l.b16 %v3719
  %v3783 = vunpack.c.l.b16 %v3720
  %v3784 = vunpack.c.h.b16 %v3720
  %v3785 = vunpack.c.l.b16 %v3721
  %v3786 = vunpack.c.h.b16 %v3721
  %v3787 = vunpack.c.l.b16 %v3722
  %v3788 = vunpack.c.h.b16 %v3722
  %v3789 = vunpack.c.l.b16 %v3723
  %v3790 = vunpack.c.h.b16 %v3723
  %v3791 = vunpack.c.l.b16 %v3724
  %v3792 = vunpack.c.h.b16 %v3724
  %v3793 = vunpack.c.l.b16 %v3725
  %v3794 = vpack.c.b16 %v3761, %v3750
  %v3795 = vpack.c.b16 %v3762, %v3751
  %v3796 = vpack.c.b16 %v3763, %v3752
  %v3797 = vpack.c.b16 %v3764, %v3753
  %v3798 = vpack.c.b16 %v3765, %v3754
  %v3799 = vpack.c.b16 %v3766, %v3755
  %v3800 = vpack.c.b16 %v3767, %v3756
  %v3801 = vpack.c.b16 %v3768, %v3757
  %v3802 = vpack.c.b16 %v3769, %v3758
  %v3803 = vpack.c.b16 %v3770, %v3759
  %v3804 = vpack.c.b16 %v3771, %v3760
  %v3805 = vpack.c.b16 %v3783, %v3772
  %v3806 = vpack.c.b16 %v3784, %v3773
  %v3807 = vpack.c.b16 %v3785, %v3774
  %v3808 = vpack.c.b16 %v3786, %v3775
  %v3809 = vpack.c.b16 %v3787, %v3776
  %v3810 = vpack.c.b16 %v3788, %v3777
  %v3811 = vpack.c.b16 %v3789, %v3778
  %v3812 = vpack.c.b16 %v3790, %v3779
  %v3813 = vpack.c.b16 %v3791, %v3780
  %v3814 = vpack.c.b16 %v3792, %v3781
  %v3815 = vpack.c.b16 %v3793, %v3782
  %3838 = vmatpush.bf16.msra.mxu0 0
  %3839 = vmatpush.bf16.msra.mxu0 0
  %3840 = vmatpush.bf16.msra.mxu0 0
  %3841 = vmatpush.bf16.msra.mxu0 0
  %3842 = vmatpush.bf16.msra.mxu0 0
  %3843 = vmatpush.bf16.msra.mxu0 0
  %3844 = vmatpush.bf16.msra.mxu0 %v3805
  %3845 = vmatpush.bf16.msra.mxu0 %v3794
  %3846 = vmatmul.bf16.gmra.mxu0 %v381
  %v3847 = vpop.f32.mrf.mxu0
  %v3848 = vadd.f32 0.0, %v3847
  %v3849 = vpop.f32.mrf.mxu0
  %v3850 = vadd.f32 0.0, %v3849
  %3851 = vmatmul.bf16.gmra.mxu0 %v384
  %v3852 = vpop.f32.mrf.mxu0
  %v3853 = vadd.f32 0.0, %v3852
  %v3854 = vpop.f32.mrf.mxu0
  %3855 = vdwg.mxu0
  %3856 = vmatpush.bf16.msra.mxu0 0
  %3857 = vmatpush.bf16.msra.mxu0 0
  %3858 = vmatpush.bf16.msra.mxu0 0
  %3859 = vmatpush.bf16.msra.mxu0 0
  %3860 = vmatpush.bf16.msra.mxu0 0
  %3861 = vmatpush.bf16.msra.mxu0 0
  %3862 = vmatpush.bf16.msra.mxu0 %v3806
  %3863 = vmatpush.bf16.msra.mxu0 %v3795
  %3864 = vmatmul.bf16.gmra.mxu0 %v381
  %v3865 = vpop.f32.mrf.mxu0
  %v3866 = vadd.f32 0.0, %v3865
  %v3867 = vpop.f32.mrf.mxu0
  %v3868 = vadd.f32 0.0, %v3867
  %3869 = vmatmul.bf16.gmra.mxu0 %v384
  %v3870 = vpop.f32.mrf.mxu0
  %v3871 = vadd.f32 0.0, %v3870
  %v3872 = vpop.f32.mrf.mxu0
  %3873 = vdwg.mxu0
  %3874 = vmatpush.bf16.msra.mxu0 0
  %3875 = vmatpush.bf16.msra.mxu0 0
  %3876 = vmatpush.bf16.msra.mxu0 0
  %3877 = vmatpush.bf16.msra.mxu0 0
  %3878 = vmatpush.bf16.msra.mxu0 0
  %3879 = vmatpush.bf16.msra.mxu0 0
  %3880 = vmatpush.bf16.msra.mxu0 %v3807
  %3881 = vmatpush.bf16.msra.mxu0 %v3796
  %3882 = vmatmul.bf16.gmra.mxu0 %v381
  %v3883 = vpop.f32.mrf.mxu0
  %v3884 = vadd.f32 0.0, %v3883
  %v3885 = vpop.f32.mrf.mxu0
  %v3886 = vadd.f32 0.0, %v3885
  %3887 = vmatmul.bf16.gmra.mxu0 %v384
  %v3888 = vpop.f32.mrf.mxu0
  %v3889 = vadd.f32 0.0, %v3888
  %v3890 = vpop.f32.mrf.mxu0
  %3891 = vdwg.mxu0
  %3892 = vmatpush.bf16.msra.mxu0 0
  %3893 = vmatpush.bf16.msra.mxu0 0
  %3894 = vmatpush.bf16.msra.mxu0 0
  %3895 = vmatpush.bf16.msra.mxu0 0
  %3896 = vmatpush.bf16.msra.mxu0 0
  %3897 = vmatpush.bf16.msra.mxu0 0
  %3898 = vmatpush.bf16.msra.mxu0 %v3808
  %3899 = vmatpush.bf16.msra.mxu0 %v3797
  %3900 = vmatmul.bf16.gmra.mxu0 %v381
  %v3901 = vpop.f32.mrf.mxu0
  %v3902 = vadd.f32 0.0, %v3901
  %v3903 = vpop.f32.mrf.mxu0
  %v3904 = vadd.f32 0.0, %v3903
  %3905 = vmatmul.bf16.gmra.mxu0 %v384
  %v3906 = vpop.f32.mrf.mxu0
  %v3907 = vadd.f32 0.0, %v3906
  %v3908 = vpop.f32.mrf.mxu0
  %3909 = vdwg.mxu0
  %3910 = vmatpush.bf16.msra.mxu0 0
  %3911 = vmatpush.bf16.msra.mxu0 0
  %3912 = vmatpush.bf16.msra.mxu0 0
  %3913 = vmatpush.bf16.msra.mxu0 0
  %3914 = vmatpush.bf16.msra.mxu0 0
  %3915 = vmatpush.bf16.msra.mxu0 0
  %3916 = vmatpush.bf16.msra.mxu0 %v3809
  %3917 = vmatpush.bf16.msra.mxu0 %v3798
  %3918 = vmatmul.bf16.gmra.mxu0 %v381
  %v3919 = vpop.f32.mrf.mxu0
  %v3920 = vadd.f32 0.0, %v3919
  %v3921 = vpop.f32.mrf.mxu0
  %v3922 = vadd.f32 0.0, %v3921
  %3923 = vmatmul.bf16.gmra.mxu0 %v384
  %v3924 = vpop.f32.mrf.mxu0
  %v3925 = vadd.f32 0.0, %v3924
  %v3926 = vpop.f32.mrf.mxu0
  %3927 = vdwg.mxu0
  %3928 = vmatpush.bf16.msra.mxu0 0
  %3929 = vmatpush.bf16.msra.mxu0 0
  %3930 = vmatpush.bf16.msra.mxu0 0
  %3931 = vmatpush.bf16.msra.mxu0 0
  %3932 = vmatpush.bf16.msra.mxu0 0
  %3933 = vmatpush.bf16.msra.mxu0 0
  %3934 = vmatpush.bf16.msra.mxu0 %v3810
  %3935 = vmatpush.bf16.msra.mxu0 %v3799
  %3936 = vmatmul.bf16.gmra.mxu0 %v381
  %v3937 = vpop.f32.mrf.mxu0
  %v3938 = vadd.f32 0.0, %v3937
  %v3939 = vpop.f32.mrf.mxu0
  %v3940 = vadd.f32 0.0, %v3939
  %3941 = vmatmul.bf16.gmra.mxu0 %v384
  %v3942 = vpop.f32.mrf.mxu0
  %v3943 = vadd.f32 0.0, %v3942
  %v3944 = vpop.f32.mrf.mxu0
  %3945 = vdwg.mxu0
  %3946 = vmatpush.bf16.msra.mxu0 0
  %3947 = vmatpush.bf16.msra.mxu0 0
  %3948 = vmatpush.bf16.msra.mxu0 0
  %3949 = vmatpush.bf16.msra.mxu0 0
  %3950 = vmatpush.bf16.msra.mxu0 0
  %3951 = vmatpush.bf16.msra.mxu0 0
  %3952 = vmatpush.bf16.msra.mxu0 %v3811
  %3953 = vmatpush.bf16.msra.mxu0 %v3800
  %3954 = vmatmul.bf16.gmra.mxu0 %v381
  %v3955 = vpop.f32.mrf.mxu0
  %v3956 = vadd.f32 0.0, %v3955
  %v3957 = vpop.f32.mrf.mxu0
  %v3958 = vadd.f32 0.0, %v3957
  %3959 = vmatmul.bf16.gmra.mxu0 %v384
  %v3960 = vpop.f32.mrf.mxu0
  %v3961 = vadd.f32 0.0, %v3960
  %v3962 = vpop.f32.mrf.mxu0
  %3963 = vdwg.mxu0
  %3964 = vmatpush.bf16.msra.mxu0 0
  %3965 = vmatpush.bf16.msra.mxu0 0
  %3966 = vmatpush.bf16.msra.mxu0 0
  %3967 = vmatpush.bf16.msra.mxu0 0
  %3968 = vmatpush.bf16.msra.mxu0 0
  %3969 = vmatpush.bf16.msra.mxu0 0
  %3970 = vmatpush.bf16.msra.mxu0 %v3812
  %3971 = vmatpush.bf16.msra.mxu0 %v3801
  %3972 = vmatmul.bf16.gmra.mxu0 %v381
  %v3973 = vpop.f32.mrf.mxu0
  %v3974 = vadd.f32 0.0, %v3973
  %v3975 = vpop.f32.mrf.mxu0
  %v3976 = vadd.f32 0.0, %v3975
  %3977 = vmatmul.bf16.gmra.mxu0 %v384
  %v3978 = vpop.f32.mrf.mxu0
  %v3979 = vadd.f32 0.0, %v3978
  %v3980 = vpop.f32.mrf.mxu0
  %3981 = vdwg.mxu0
  %3982 = vmatpush.bf16.msra.mxu0 0
  %3983 = vmatpush.bf16.msra.mxu0 0
  %3984 = vmatpush.bf16.msra.mxu0 0
  %3985 = vmatpush.bf16.msra.mxu0 0
  %3986 = vmatpush.bf16.msra.mxu0 0
  %3987 = vmatpush.bf16.msra.mxu0 0
  %3988 = vmatpush.bf16.msra.mxu0 %v3813
  %3989 = vmatpush.bf16.msra.mxu0 %v3802
  %3990 = vmatmul.bf16.gmra.mxu0 %v381
  %v3991 = vpop.f32.mrf.mxu0
  %v3992 = vadd.f32 0.0, %v3991
  %v3993 = vpop.f32.mrf.mxu0
  %v3994 = vadd.f32 0.0, %v3993
  %3995 = vmatmul.bf16.gmra.mxu0 %v384
  %v3996 = vpop.f32.mrf.mxu0
  %v3997 = vadd.f32 0.0, %v3996
  %v3998 = vpop.f32.mrf.mxu0
  %3999 = vdwg.mxu0
  %4000 = vmatpush.bf16.msra.mxu0 0
  %4001 = vmatpush.bf16.msra.mxu0 0
  %4002 = vmatpush.bf16.msra.mxu0 0
  %4003 = vmatpush.bf16.msra.mxu0 0
  %4004 = vmatpush.bf16.msra.mxu0 0
  %4005 = vmatpush.bf16.msra.mxu0 0
  %4006 = vmatpush.bf16.msra.mxu0 %v3814
  %4007 = vmatpush.bf16.msra.mxu0 %v3803
  %4008 = vmatmul.bf16.gmra.mxu0 %v381
  %v4009 = vpop.f32.mrf.mxu0
  %v4010 = vadd.f32 0.0, %v4009
  %v4011 = vpop.f32.mrf.mxu0
  %v4012 = vadd.f32 0.0, %v4011
  %4013 = vmatmul.bf16.gmra.mxu0 %v384
  %v4014 = vpop.f32.mrf.mxu0
  %v4015 = vadd.f32 0.0, %v4014
  %v4016 = vpop.f32.mrf.mxu0
  %4017 = vdwg.mxu0
  %4018 = vmatpush.bf16.msra.mxu0 0
  %4019 = vmatpush.bf16.msra.mxu0 0
  %4020 = vmatpush.bf16.msra.mxu0 0
  %4021 = vmatpush.bf16.msra.mxu0 0
  %4022 = vmatpush.bf16.msra.mxu0 0
  %4023 = vmatpush.bf16.msra.mxu0 0
  %4024 = vmatpush.bf16.msra.mxu0 %v3815
  %4025 = vmatpush.bf16.msra.mxu0 %v3804
  %4026 = vmatmul.bf16.gmra.mxu0 %v381
  %v4027 = vpop.f32.mrf.mxu0
  %v4028 = vadd.f32 0.0, %v4027
  %v4029 = vpop.f32.mrf.mxu0
  %v4030 = vadd.f32 0.0, %v4029
  %4031 = vmatmul.bf16.gmra.mxu0 %v384
  %v4032 = vpop.f32.mrf.mxu0
  %v4033 = vadd.f32 0.0, %v4032
  %v4034 = vpop.f32.mrf.mxu0
  %4035 = vdwg.mxu0
  %v4036 = vmax.f32 %v3848, 0.0
  %v4037 = vmax.f32 %v3866, 0.0
  %v4038 = vmax.f32 %v3884, 0.0
  %v4039 = vmax.f32 %v3902, 0.0
  %v4040 = vmax.f32 %v3920, 0.0
  %v4041 = vmax.f32 %v3938, 0.0
  %v4042 = vmax.f32 %v3956, 0.0
  %v4043 = vmax.f32 %v3974, 0.0
  %v4044 = vmax.f32 %v3992, 0.0
  %v4045 = vmax.f32 %v4010, 0.0
  %v4046 = vmax.f32 %v4028, 0.0
  %v4047 = vmax.f32 %v3850, 0.0
  %v4048 = vmax.f32 %v3868, 0.0
  %v4049 = vmax.f32 %v3886, 0.0
  %v4050 = vmax.f32 %v3904, 0.0
  %v4051 = vmax.f32 %v3922, 0.0
  %v4052 = vmax.f32 %v3940, 0.0
  %v4053 = vmax.f32 %v3958, 0.0
  %v4054 = vmax.f32 %v3976, 0.0
  %v4055 = vmax.f32 %v3994, 0.0
  %v4056 = vmax.f32 %v4012, 0.0
  %v4057 = vmax.f32 %v4030, 0.0
  %v4058 = vmax.f32 %v3853, 0.0
  %v4059 = vmax.f32 %v3871, 0.0
  %v4060 = vmax.f32 %v3889, 0.0
  %v4061 = vmax.f32 %v3907, 0.0
  %v4062 = vmax.f32 %v3925, 0.0
  %v4063 = vmax.f32 %v3943, 0.0
  %v4064 = vmax.f32 %v3961, 0.0
  %v4065 = vmax.f32 %v3979, 0.0
  %v4066 = vmax.f32 %v3997, 0.0
  %v4067 = vmax.f32 %v4015, 0.0
  %v4068 = vmax.f32 %v4033, 0.0
  %v4069 = vpack.c.bf16 %v4047, %v4036
  %v4070 = vpack.c.bf16 %v4048, %v4037
  %v4071 = vpack.c.bf16 %v4049, %v4038
  %v4072 = vpack.c.bf16 %v4050, %v4039
  %v4073 = vpack.c.bf16 %v4051, %v4040
  %v4074 = vpack.c.bf16 %v4052, %v4041
  %v4075 = vpack.c.bf16 %v4053, %v4042
  %v4076 = vpack.c.bf16 %v4054, %v4043
  %v4077 = vpack.c.bf16 %v4055, %v4044
  %v4078 = vpack.c.bf16 %v4056, %v4045
  %v4079 = vpack.c.bf16 %v4057, %v4046
  %v4080 = vpack.c.bf16 %v4058, %v4058
  %v4081 = vpack.c.bf16 %v4059, %v4059
  %v4082 = vpack.c.bf16 %v4060, %v4060
  %v4083 = vpack.c.bf16 %v4061, %v4061
  %v4084 = vpack.c.bf16 %v4062, %v4062
  %v4085 = vpack.c.bf16 %v4063, %v4063
  %v4086 = vpack.c.bf16 %v4064, %v4064
  %v4087 = vpack.c.bf16 %v4065, %v4065
  %v4088 = vpack.c.bf16 %v4066, %v4066
  %v4089 = vpack.c.bf16 %v4067, %v4067
  %v4090 = vpack.c.bf16 %v4068, %v4068
  %4091 = vmatpush.bf16.msra.mxu0 %v1181
  %4092 = vmatpush.bf16.msra.mxu0 %v1179
  %4093 = vmatpush.bf16.msra.mxu0 %v1177
  %4094 = vmatpush.bf16.msra.mxu0 %v1175
  %4095 = vmatpush.bf16.msra.mxu0 %v1173
  %4096 = vmatpush.bf16.msra.mxu0 %v1171
  %4097 = vmatpush.bf16.msra.mxu0 %v1169
  %4098 = vmatpush.bf16.msra.mxu0 %v1167
  %4099 = vmatmul.bf16.gmra.mxu0 %v4069
  %v4100 = vpop.f32.mrf.mxu0
  %v4101 = vadd.f32 0.0, %v4100
  %v4102 = vpop.f32.mrf.mxu0
  %v4103 = vadd.f32 0.0, %v4102
  %4104 = vmatmul.bf16.gmra.mxu0 %v4080
  %v4105 = vpop.f32.mrf.mxu0
  %v4106 = vadd.f32 0.0, %v4105
  %v4107 = vpop.f32.mrf.mxu0
  %4108 = vdwg.mxu0
  %4109 = vmatpush.bf16.msra.mxu0 %v1197
  %4110 = vmatpush.bf16.msra.mxu0 %v1195
  %4111 = vmatpush.bf16.msra.mxu0 %v1193
  %4112 = vmatpush.bf16.msra.mxu0 %v1191
  %4113 = vmatpush.bf16.msra.mxu0 %v1189
  %4114 = vmatpush.bf16.msra.mxu0 %v1187
  %4115 = vmatpush.bf16.msra.mxu0 %v1185
  %4116 = vmatpush.bf16.msra.mxu0 %v1183
  %4117 = vmatmul.bf16.gmra.mxu0 %v4070
  %v4118 = vpop.f32.mrf.mxu0
  %v4119 = vadd.f32 %v4101, %v4118
  %v4120 = vpop.f32.mrf.mxu0
  %v4121 = vadd.f32 %v4103, %v4120
  %4122 = vmatmul.bf16.gmra.mxu0 %v4081
  %v4123 = vpop.f32.mrf.mxu0
  %v4124 = vadd.f32 %v4106, %v4123
  %v4125 = vpop.f32.mrf.mxu0
  %4126 = vdwg.mxu0
  %4127 = vmatpush.bf16.msra.mxu0 %v1213
  %4128 = vmatpush.bf16.msra.mxu0 %v1211
  %4129 = vmatpush.bf16.msra.mxu0 %v1209
  %4130 = vmatpush.bf16.msra.mxu0 %v1207
  %4131 = vmatpush.bf16.msra.mxu0 %v1205
  %4132 = vmatpush.bf16.msra.mxu0 %v1203
  %4133 = vmatpush.bf16.msra.mxu0 %v1201
  %4134 = vmatpush.bf16.msra.mxu0 %v1199
  %4135 = vmatmul.bf16.gmra.mxu0 %v4071
  %v4136 = vpop.f32.mrf.mxu0
  %v4137 = vadd.f32 %v4119, %v4136
  %v4138 = vpop.f32.mrf.mxu0
  %v4139 = vadd.f32 %v4121, %v4138
  %4140 = vmatmul.bf16.gmra.mxu0 %v4082
  %v4141 = vpop.f32.mrf.mxu0
  %v4142 = vadd.f32 %v4124, %v4141
  %v4143 = vpop.f32.mrf.mxu0
  %4144 = vdwg.mxu0
  %4145 = vmatpush.bf16.msra.mxu0 %v1229
  %4146 = vmatpush.bf16.msra.mxu0 %v1227
  %4147 = vmatpush.bf16.msra.mxu0 %v1225
  %4148 = vmatpush.bf16.msra.mxu0 %v1223
  %4149 = vmatpush.bf16.msra.mxu0 %v1221
  %4150 = vmatpush.bf16.msra.mxu0 %v1219
  %4151 = vmatpush.bf16.msra.mxu0 %v1217
  %4152 = vmatpush.bf16.msra.mxu0 %v1215
  %4153 = vmatmul.bf16.gmra.mxu0 %v4072
  %v4154 = vpop.f32.mrf.mxu0
  %v4155 = vadd.f32 %v4137, %v4154
  %v4156 = vpop.f32.mrf.mxu0
  %v4157 = vadd.f32 %v4139, %v4156
  %4158 = vmatmul.bf16.gmra.mxu0 %v4083
  %v4159 = vpop.f32.mrf.mxu0
  %v4160 = vadd.f32 %v4142, %v4159
  %v4161 = vpop.f32.mrf.mxu0
  %4162 = vdwg.mxu0
  %4163 = vmatpush.bf16.msra.mxu0 %v1245
  %4164 = vmatpush.bf16.msra.mxu0 %v1243
  %4165 = vmatpush.bf16.msra.mxu0 %v1241
  %4166 = vmatpush.bf16.msra.mxu0 %v1239
  %4167 = vmatpush.bf16.msra.mxu0 %v1237
  %4168 = vmatpush.bf16.msra.mxu0 %v1235
  %4169 = vmatpush.bf16.msra.mxu0 %v1233
  %4170 = vmatpush.bf16.msra.mxu0 %v1231
  %4171 = vmatmul.bf16.gmra.mxu0 %v4073
  %v4172 = vpop.f32.mrf.mxu0
  %v4173 = vadd.f32 %v4155, %v4172
  %v4174 = vpop.f32.mrf.mxu0
  %v4175 = vadd.f32 %v4157, %v4174
  %4176 = vmatmul.bf16.gmra.mxu0 %v4084
  %v4177 = vpop.f32.mrf.mxu0
  %v4178 = vadd.f32 %v4160, %v4177
  %v4179 = vpop.f32.mrf.mxu0
  %4180 = vdwg.mxu0
  %4181 = vmatpush.bf16.msra.mxu0 %v1261
  %4182 = vmatpush.bf16.msra.mxu0 %v1259
  %4183 = vmatpush.bf16.msra.mxu0 %v1257
  %4184 = vmatpush.bf16.msra.mxu0 %v1255
  %4185 = vmatpush.bf16.msra.mxu0 %v1253
  %4186 = vmatpush.bf16.msra.mxu0 %v1251
  %4187 = vmatpush.bf16.msra.mxu0 %v1249
  %4188 = vmatpush.bf16.msra.mxu0 %v1247
  %4189 = vmatmul.bf16.gmra.mxu0 %v4074
  %v4190 = vpop.f32.mrf.mxu0
  %v4191 = vadd.f32 %v4173, %v4190
  %v4192 = vpop.f32.mrf.mxu0
  %v4193 = vadd.f32 %v4175, %v4192
  %4194 = vmatmul.bf16.gmra.mxu0 %v4085
  %v4195 = vpop.f32.mrf.mxu0
  %v4196 = vadd.f32 %v4178, %v4195
  %v4197 = vpop.f32.mrf.mxu0
  %4198 = vdwg.mxu0
  %4199 = vmatpush.bf16.msra.mxu0 %v1277
  %4200 = vmatpush.bf16.msra.mxu0 %v1275
  %4201 = vmatpush.bf16.msra.mxu0 %v1273
  %4202 = vmatpush.bf16.msra.mxu0 %v1271
  %4203 = vmatpush.bf16.msra.mxu0 %v1269
  %4204 = vmatpush.bf16.msra.mxu0 %v1267
  %4205 = vmatpush.bf16.msra.mxu0 %v1265
  %4206 = vmatpush.bf16.msra.mxu0 %v1263
  %4207 = vmatmul.bf16.gmra.mxu0 %v4075
  %v4208 = vpop.f32.mrf.mxu0
  %v4209 = vadd.f32 %v4191, %v4208
  %v4210 = vpop.f32.mrf.mxu0
  %v4211 = vadd.f32 %v4193, %v4210
  %4212 = vmatmul.bf16.gmra.mxu0 %v4086
  %v4213 = vpop.f32.mrf.mxu0
  %v4214 = vadd.f32 %v4196, %v4213
  %v4215 = vpop.f32.mrf.mxu0
  %4216 = vdwg.mxu0
  %4217 = vmatpush.bf16.msra.mxu0 %v1293
  %4218 = vmatpush.bf16.msra.mxu0 %v1291
  %4219 = vmatpush.bf16.msra.mxu0 %v1289
  %4220 = vmatpush.bf16.msra.mxu0 %v1287
  %4221 = vmatpush.bf16.msra.mxu0 %v1285
  %4222 = vmatpush.bf16.msra.mxu0 %v1283
  %4223 = vmatpush.bf16.msra.mxu0 %v1281
  %4224 = vmatpush.bf16.msra.mxu0 %v1279
  %4225 = vmatmul.bf16.gmra.mxu0 %v4076
  %v4226 = vpop.f32.mrf.mxu0
  %v4227 = vadd.f32 %v4209, %v4226
  %v4228 = vpop.f32.mrf.mxu0
  %v4229 = vadd.f32 %v4211, %v4228
  %4230 = vmatmul.bf16.gmra.mxu0 %v4087
  %v4231 = vpop.f32.mrf.mxu0
  %v4232 = vadd.f32 %v4214, %v4231
  %v4233 = vpop.f32.mrf.mxu0
  %4234 = vdwg.mxu0
  %4235 = vmatpush.bf16.msra.mxu0 %v1309
  %4236 = vmatpush.bf16.msra.mxu0 %v1307
  %4237 = vmatpush.bf16.msra.mxu0 %v1305
  %4238 = vmatpush.bf16.msra.mxu0 %v1303
  %4239 = vmatpush.bf16.msra.mxu0 %v1301
  %4240 = vmatpush.bf16.msra.mxu0 %v1299
  %4241 = vmatpush.bf16.msra.mxu0 %v1297
  %4242 = vmatpush.bf16.msra.mxu0 %v1295
  %4243 = vmatmul.bf16.gmra.mxu0 %v4077
  %v4244 = vpop.f32.mrf.mxu0
  %v4245 = vadd.f32 %v4227, %v4244
  %v4246 = vpop.f32.mrf.mxu0
  %v4247 = vadd.f32 %v4229, %v4246
  %4248 = vmatmul.bf16.gmra.mxu0 %v4088
  %v4249 = vpop.f32.mrf.mxu0
  %v4250 = vadd.f32 %v4232, %v4249
  %v4251 = vpop.f32.mrf.mxu0
  %4252 = vdwg.mxu0
  %4253 = vmatpush.bf16.msra.mxu0 %v1325
  %4254 = vmatpush.bf16.msra.mxu0 %v1323
  %4255 = vmatpush.bf16.msra.mxu0 %v1321
  %4256 = vmatpush.bf16.msra.mxu0 %v1319
  %4257 = vmatpush.bf16.msra.mxu0 %v1317
  %4258 = vmatpush.bf16.msra.mxu0 %v1315
  %4259 = vmatpush.bf16.msra.mxu0 %v1313
  %4260 = vmatpush.bf16.msra.mxu0 %v1311
  %4261 = vmatmul.bf16.gmra.mxu0 %v4078
  %v4262 = vpop.f32.mrf.mxu0
  %v4263 = vadd.f32 %v4245, %v4262
  %v4264 = vpop.f32.mrf.mxu0
  %v4265 = vadd.f32 %v4247, %v4264
  %4266 = vmatmul.bf16.gmra.mxu0 %v4089
  %v4267 = vpop.f32.mrf.mxu0
  %v4268 = vadd.f32 %v4250, %v4267
  %v4269 = vpop.f32.mrf.mxu0
  %4270 = vdwg.mxu0
  %4271 = vmatpush.bf16.msra.mxu0 %v1341
  %4272 = vmatpush.bf16.msra.mxu0 %v1339
  %4273 = vmatpush.bf16.msra.mxu0 %v1337
  %4274 = vmatpush.bf16.msra.mxu0 %v1335
  %4275 = vmatpush.bf16.msra.mxu0 %v1333
  %4276 = vmatpush.bf16.msra.mxu0 %v1331
  %4277 = vmatpush.bf16.msra.mxu0 %v1329
  %4278 = vmatpush.bf16.msra.mxu0 %v1327
  %4279 = vmatmul.bf16.gmra.mxu0 %v4079
  %v4280 = vpop.f32.mrf.mxu0
  %v4281 = vadd.f32 %v4263, %v4280
  %v4282 = vpop.f32.mrf.mxu0
  %v4283 = vadd.f32 %v4265, %v4282
  %4284 = vmatmul.bf16.gmra.mxu0 %v4090
  %v4285 = vpop.f32.mrf.mxu0
  %v4286 = vadd.f32 %v4268, %v4285
  %v4287 = vpop.f32.mrf.mxu0
  %4288 = vdwg.mxu0
  %4289 = vmatpush.bf16.msra.mxu0 %v1182
  %4290 = vmatpush.bf16.msra.mxu0 %v1180
  %4291 = vmatpush.bf16.msra.mxu0 %v1178
  %4292 = vmatpush.bf16.msra.mxu0 %v1176
  %4293 = vmatpush.bf16.msra.mxu0 %v1174
  %4294 = vmatpush.bf16.msra.mxu0 %v1172
  %4295 = vmatpush.bf16.msra.mxu0 %v1170
  %4296 = vmatpush.bf16.msra.mxu0 %v1168
  %4297 = vmatmul.bf16.gmra.mxu0 %v4069
  %v4298 = vpop.f32.mrf.mxu0
  %v4299 = vadd.f32 0.0, %v4298
  %v4300 = vpop.f32.mrf.mxu0
  %v4301 = vadd.f32 0.0, %v4300
  %4302 = vmatmul.bf16.gmra.mxu0 %v4080
  %v4303 = vpop.f32.mrf.mxu0
  %v4304 = vadd.f32 0.0, %v4303
  %v4305 = vpop.f32.mrf.mxu0
  %4306 = vdwg.mxu0
  %4307 = vmatpush.bf16.msra.mxu0 %v1198
  %4308 = vmatpush.bf16.msra.mxu0 %v1196
  %4309 = vmatpush.bf16.msra.mxu0 %v1194
  %4310 = vmatpush.bf16.msra.mxu0 %v1192
  %4311 = vmatpush.bf16.msra.mxu0 %v1190
  %4312 = vmatpush.bf16.msra.mxu0 %v1188
  %4313 = vmatpush.bf16.msra.mxu0 %v1186
  %4314 = vmatpush.bf16.msra.mxu0 %v1184
  %4315 = vmatmul.bf16.gmra.mxu0 %v4070
  %v4316 = vpop.f32.mrf.mxu0
  %v4317 = vadd.f32 %v4299, %v4316
  %v4318 = vpop.f32.mrf.mxu0
  %v4319 = vadd.f32 %v4301, %v4318
  %4320 = vmatmul.bf16.gmra.mxu0 %v4081
  %v4321 = vpop.f32.mrf.mxu0
  %v4322 = vadd.f32 %v4304, %v4321
  %v4323 = vpop.f32.mrf.mxu0
  %4324 = vdwg.mxu0
  %4325 = vmatpush.bf16.msra.mxu0 %v1214
  %4326 = vmatpush.bf16.msra.mxu0 %v1212
  %4327 = vmatpush.bf16.msra.mxu0 %v1210
  %4328 = vmatpush.bf16.msra.mxu0 %v1208
  %4329 = vmatpush.bf16.msra.mxu0 %v1206
  %4330 = vmatpush.bf16.msra.mxu0 %v1204
  %4331 = vmatpush.bf16.msra.mxu0 %v1202
  %4332 = vmatpush.bf16.msra.mxu0 %v1200
  %4333 = vmatmul.bf16.gmra.mxu0 %v4071
  %v4334 = vpop.f32.mrf.mxu0
  %v4335 = vadd.f32 %v4317, %v4334
  %v4336 = vpop.f32.mrf.mxu0
  %v4337 = vadd.f32 %v4319, %v4336
  %4338 = vmatmul.bf16.gmra.mxu0 %v4082
  %v4339 = vpop.f32.mrf.mxu0
  %v4340 = vadd.f32 %v4322, %v4339
  %v4341 = vpop.f32.mrf.mxu0
  %4342 = vdwg.mxu0
  %4343 = vmatpush.bf16.msra.mxu0 %v1230
  %4344 = vmatpush.bf16.msra.mxu0 %v1228
  %4345 = vmatpush.bf16.msra.mxu0 %v1226
  %4346 = vmatpush.bf16.msra.mxu0 %v1224
  %4347 = vmatpush.bf16.msra.mxu0 %v1222
  %4348 = vmatpush.bf16.msra.mxu0 %v1220
  %4349 = vmatpush.bf16.msra.mxu0 %v1218
  %4350 = vmatpush.bf16.msra.mxu0 %v1216
  %4351 = vmatmul.bf16.gmra.mxu0 %v4072
  %v4352 = vpop.f32.mrf.mxu0
  %v4353 = vadd.f32 %v4335, %v4352
  %v4354 = vpop.f32.mrf.mxu0
  %v4355 = vadd.f32 %v4337, %v4354
  %4356 = vmatmul.bf16.gmra.mxu0 %v4083
  %v4357 = vpop.f32.mrf.mxu0
  %v4358 = vadd.f32 %v4340, %v4357
  %v4359 = vpop.f32.mrf.mxu0
  %4360 = vdwg.mxu0
  %4361 = vmatpush.bf16.msra.mxu0 %v1246
  %4362 = vmatpush.bf16.msra.mxu0 %v1244
  %4363 = vmatpush.bf16.msra.mxu0 %v1242
  %4364 = vmatpush.bf16.msra.mxu0 %v1240
  %4365 = vmatpush.bf16.msra.mxu0 %v1238
  %4366 = vmatpush.bf16.msra.mxu0 %v1236
  %4367 = vmatpush.bf16.msra.mxu0 %v1234
  %4368 = vmatpush.bf16.msra.mxu0 %v1232
  %4369 = vmatmul.bf16.gmra.mxu0 %v4073
  %v4370 = vpop.f32.mrf.mxu0
  %v4371 = vadd.f32 %v4353, %v4370
  %v4372 = vpop.f32.mrf.mxu0
  %v4373 = vadd.f32 %v4355, %v4372
  %4374 = vmatmul.bf16.gmra.mxu0 %v4084
  %v4375 = vpop.f32.mrf.mxu0
  %v4376 = vadd.f32 %v4358, %v4375
  %v4377 = vpop.f32.mrf.mxu0
  %4378 = vdwg.mxu0
  %4379 = vmatpush.bf16.msra.mxu0 %v1262
  %4380 = vmatpush.bf16.msra.mxu0 %v1260
  %4381 = vmatpush.bf16.msra.mxu0 %v1258
  %4382 = vmatpush.bf16.msra.mxu0 %v1256
  %4383 = vmatpush.bf16.msra.mxu0 %v1254
  %4384 = vmatpush.bf16.msra.mxu0 %v1252
  %4385 = vmatpush.bf16.msra.mxu0 %v1250
  %4386 = vmatpush.bf16.msra.mxu0 %v1248
  %4387 = vmatmul.bf16.gmra.mxu0 %v4074
  %v4388 = vpop.f32.mrf.mxu0
  %v4389 = vadd.f32 %v4371, %v4388
  %v4390 = vpop.f32.mrf.mxu0
  %v4391 = vadd.f32 %v4373, %v4390
  %4392 = vmatmul.bf16.gmra.mxu0 %v4085
  %v4393 = vpop.f32.mrf.mxu0
  %v4394 = vadd.f32 %v4376, %v4393
  %v4395 = vpop.f32.mrf.mxu0
  %4396 = vdwg.mxu0
  %4397 = vmatpush.bf16.msra.mxu0 %v1278
  %4398 = vmatpush.bf16.msra.mxu0 %v1276
  %4399 = vmatpush.bf16.msra.mxu0 %v1274
  %4400 = vmatpush.bf16.msra.mxu0 %v1272
  %4401 = vmatpush.bf16.msra.mxu0 %v1270
  %4402 = vmatpush.bf16.msra.mxu0 %v1268
  %4403 = vmatpush.bf16.msra.mxu0 %v1266
  %4404 = vmatpush.bf16.msra.mxu0 %v1264
  %4405 = vmatmul.bf16.gmra.mxu0 %v4075
  %v4406 = vpop.f32.mrf.mxu0
  %v4407 = vadd.f32 %v4389, %v4406
  %v4408 = vpop.f32.mrf.mxu0
  %v4409 = vadd.f32 %v4391, %v4408
  %4410 = vmatmul.bf16.gmra.mxu0 %v4086
  %v4411 = vpop.f32.mrf.mxu0
  %v4412 = vadd.f32 %v4394, %v4411
  %v4413 = vpop.f32.mrf.mxu0
  %4414 = vdwg.mxu0
  %4415 = vmatpush.bf16.msra.mxu0 %v1294
  %4416 = vmatpush.bf16.msra.mxu0 %v1292
  %4417 = vmatpush.bf16.msra.mxu0 %v1290
  %4418 = vmatpush.bf16.msra.mxu0 %v1288
  %4419 = vmatpush.bf16.msra.mxu0 %v1286
  %4420 = vmatpush.bf16.msra.mxu0 %v1284
  %4421 = vmatpush.bf16.msra.mxu0 %v1282
  %4422 = vmatpush.bf16.msra.mxu0 %v1280
  %4423 = vmatmul.bf16.gmra.mxu0 %v4076
  %v4424 = vpop.f32.mrf.mxu0
  %v4425 = vadd.f32 %v4407, %v4424
  %v4426 = vpop.f32.mrf.mxu0
  %v4427 = vadd.f32 %v4409, %v4426
  %4428 = vmatmul.bf16.gmra.mxu0 %v4087
  %v4429 = vpop.f32.mrf.mxu0
  %v4430 = vadd.f32 %v4412, %v4429
  %v4431 = vpop.f32.mrf.mxu0
  %4432 = vdwg.mxu0
  %4433 = vmatpush.bf16.msra.mxu0 %v1310
  %4434 = vmatpush.bf16.msra.mxu0 %v1308
  %4435 = vmatpush.bf16.msra.mxu0 %v1306
  %4436 = vmatpush.bf16.msra.mxu0 %v1304
  %4437 = vmatpush.bf16.msra.mxu0 %v1302
  %4438 = vmatpush.bf16.msra.mxu0 %v1300
  %4439 = vmatpush.bf16.msra.mxu0 %v1298
  %4440 = vmatpush.bf16.msra.mxu0 %v1296
  %4441 = vmatmul.bf16.gmra.mxu0 %v4077
  %v4442 = vpop.f32.mrf.mxu0
  %v4443 = vadd.f32 %v4425, %v4442
  %v4444 = vpop.f32.mrf.mxu0
  %v4445 = vadd.f32 %v4427, %v4444
  %4446 = vmatmul.bf16.gmra.mxu0 %v4088
  %v4447 = vpop.f32.mrf.mxu0
  %v4448 = vadd.f32 %v4430, %v4447
  %v4449 = vpop.f32.mrf.mxu0
  %4450 = vdwg.mxu0
  %4451 = vmatpush.bf16.msra.mxu0 %v1326
  %4452 = vmatpush.bf16.msra.mxu0 %v1324
  %4453 = vmatpush.bf16.msra.mxu0 %v1322
  %4454 = vmatpush.bf16.msra.mxu0 %v1320
  %4455 = vmatpush.bf16.msra.mxu0 %v1318
  %4456 = vmatpush.bf16.msra.mxu0 %v1316
  %4457 = vmatpush.bf16.msra.mxu0 %v1314
  %4458 = vmatpush.bf16.msra.mxu0 %v1312
  %4459 = vmatmul.bf16.gmra.mxu0 %v4078
  %v4460 = vpop.f32.mrf.mxu0
  %v4461 = vadd.f32 %v4443, %v4460
  %v4462 = vpop.f32.mrf.mxu0
  %v4463 = vadd.f32 %v4445, %v4462
  %4464 = vmatmul.bf16.gmra.mxu0 %v4089
  %v4465 = vpop.f32.mrf.mxu0
  %v4466 = vadd.f32 %v4448, %v4465
  %v4467 = vpop.f32.mrf.mxu0
  %4468 = vdwg.mxu0
  %4469 = vmatpush.bf16.msra.mxu0 %v1342
  %4470 = vmatpush.bf16.msra.mxu0 %v1340
  %4471 = vmatpush.bf16.msra.mxu0 %v1338
  %4472 = vmatpush.bf16.msra.mxu0 %v1336
  %4473 = vmatpush.bf16.msra.mxu0 %v1334
  %4474 = vmatpush.bf16.msra.mxu0 %v1332
  %4475 = vmatpush.bf16.msra.mxu0 %v1330
  %4476 = vmatpush.bf16.msra.mxu0 %v1328
  %4477 = vmatmul.bf16.gmra.mxu0 %v4079
  %v4478 = vpop.f32.mrf.mxu0
  %v4479 = vadd.f32 %v4461, %v4478
  %v4480 = vpop.f32.mrf.mxu0
  %v4481 = vadd.f32 %v4463, %v4480
  %4482 = vmatmul.bf16.gmra.mxu0 %v4090
  %v4483 = vpop.f32.mrf.mxu0
  %v4484 = vadd.f32 %v4466, %v4483
  %v4485 = vpop.f32.mrf.mxu0
  %4486 = vdwg.mxu0
  %v4487 = vmul.f32 %v4281, %v203
  %v4488 = vmul.f32 %v4479, %v204
  %v4489 = vmul.f32 %v4283, %v205
  %v4490 = vmul.f32 %v4481, %v206
  %v4491 = vmul.f32 %v4286, %v207
  %v4492 = vmul.f32 %v4484, %v208
  %v4493 = vadd.f32 %v4487, %v4489
  %v4494 = vsel %vm1922, %v4491, 0.0
  %v4495 = vadd.f32 %v4493, %v4494
  %v4496 = vrot.slane %v4495, 4
  %v4497 = vadd.f32 %v4495, %v4496
  %v4498 = vrot.slane %v4497, 2
  %v4499 = vadd.f32 %v4497, %v4498
  %v4500 = vrot.slane %v4499, 1
  %v4501 = vadd.f32 %v4499, %v4500
  %v4502 = vsel %vm1931, %v4488, 0.0
  %v4503 = vsel %vm1931, %v4490, 0.0
  %v4504 = vadd.f32 %v4502, %v4503
  %v4505 = vsel %vm1935, %v4492, 0.0
  %v4506 = vadd.f32 %v4504, %v4505
  %v4507 = vrot.slane %v4506, 4
  %v4508 = vadd.f32 %v4506, %v4507
  %v4509 = vrot.slane %v4508, 2
  %v4510 = vadd.f32 %v4508, %v4509
  %v4511 = vrot.slane %v4510, 1
  %v4512 = vadd.f32 %v4510, %v4511
  %v4514 = vsel %vm1931, %v4512, 0
  %4516 = vmatpush.msra.mxu0 %v224
  %4517 = vmatpush.msra.mxu0 %v223
  %4518 = vmatpush.msra.mxu0 %v222
  %4519 = vmatpush.msra.mxu0 %v221
  %4520 = vmatpush.msra.mxu0 %v220
  %4521 = vmatpush.msra.mxu0 %v219
  %4522 = vmatpush.msra.mxu0 %v218
  %4523 = vmatpush.msra.mxu0 %v217
  %4524 = vmatpush.msra.mxu0 %v216
  %4525 = vmatpush.msra.mxu0 %v215
  %4526 = vmatpush.msra.mxu0 %v214
  %4527 = vmatpush.msra.mxu0 %v213
  %4528 = vmatpush.msra.mxu0 %v212
  %4529 = vmatpush.msra.mxu0 %v211
  %4530 = vmatpush.msra.mxu0 %v210
  %4531 = vmatpush.msra.mxu0 %v209
  %4532 = vmatmul.f32.gmra.mxu0 %v4501
  %v4533 = vpop.f32.mrf.mxu0
  %v4534 = vadd.f32 %v234, %v4533
  %4535 = vdwg.mxu0
  %4536 = vmatpush.msra.mxu0 0.0
  %4537 = vmatpush.msra.mxu0 0.0
  %4538 = vmatpush.msra.mxu0 0.0
  %4539 = vmatpush.msra.mxu0 0.0
  %4540 = vmatpush.msra.mxu0 0.0
  %4541 = vmatpush.msra.mxu0 0.0
  %4542 = vmatpush.msra.mxu0 0.0
  %4543 = vmatpush.msra.mxu0 %v233
  %4544 = vmatpush.msra.mxu0 %v232
  %4545 = vmatpush.msra.mxu0 %v231
  %4546 = vmatpush.msra.mxu0 %v230
  %4547 = vmatpush.msra.mxu0 %v229
  %4548 = vmatpush.msra.mxu0 %v228
  %4549 = vmatpush.msra.mxu0 %v227
  %4550 = vmatpush.msra.mxu0 %v226
  %4551 = vmatpush.msra.mxu0 %v225
  %4552 = vmatmul.f32.gmra.mxu0 %v4514
  %v4553 = vpop.f32.mrf.mxu0
  %v4554 = vadd.f32 %v4534, %v4553
  %4555 = vdwg.mxu0
  %4556 = vst.msk [vmem:[%s6 + $0x3] sm:$0x1] %vm1987, %v4554
  %s4557 = scalar_lea.vmem %s0, 704
  %v4558 = vld [vmem:[%s4557] sm:$0xff]
  %v4559 = vld [vmem:[%s4557 + $0x8] sm:$0xff]
  %v4560 = vld [vmem:[%s4557 + $0x10] sm:$0xff]
  %v4561 = vld [vmem:[%s4557 + $0x18] sm:$0xff]
  %v4562 = vld [vmem:[%s4557 + $0x20] sm:$0xff]
  %v4563 = vld [vmem:[%s4557 + $0x28] sm:$0xf]
  %v4564 = vld [vmem:[%s4557 + $0x2c] sm:$0xff]
  %v4565 = vld [vmem:[%s4557 + $0x34] sm:$0xff]
  %v4566 = vld [vmem:[%s4557 + $0x3c] sm:$0xff]
  %v4567 = vld [vmem:[%s4557 + $0x44] sm:$0xff]
  %v4568 = vld [vmem:[%s4557 + $0x4c] sm:$0xff]
  %v4569 = vld [vmem:[%s4557 + $0x54] sm:$0xf]
  %v4570 = vld [vmem:[%s4557 + $0x58] sm:$0xff]
  %v4571 = vld [vmem:[%s4557 + $0x60] sm:$0xff]
  %v4572 = vld [vmem:[%s4557 + $0x68] sm:$0xff]
  %v4573 = vld [vmem:[%s4557 + $0x70] sm:$0xff]
  %v4574 = vld [vmem:[%s4557 + $0x78] sm:$0xff]
  %v4575 = vld [vmem:[%s4557 + $0x80] sm:$0xf]
  %v4576 = vld [vmem:[%s4557 + $0x84] sm:$0xff]
  %v4577 = vld [vmem:[%s4557 + $0x8c] sm:$0xff]
  %v4578 = vld [vmem:[%s4557 + $0x94] sm:$0xff]
  %v4579 = vld [vmem:[%s4557 + $0x9c] sm:$0xff]
  %v4580 = vld [vmem:[%s4557 + $0xa4] sm:$0xff]
  %v4581 = vld [vmem:[%s4557 + $0xac] sm:$0xf]
  %v4606 = vunpack.c.l.b16 %v4558
  %v4607 = vunpack.c.h.b16 %v4558
  %v4608 = vunpack.c.l.b16 %v4559
  %v4609 = vunpack.c.h.b16 %v4559
  %v4610 = vunpack.c.l.b16 %v4560
  %v4611 = vunpack.c.h.b16 %v4560
  %v4612 = vunpack.c.l.b16 %v4561
  %v4613 = vunpack.c.h.b16 %v4561
  %v4614 = vunpack.c.l.b16 %v4562
  %v4615 = vunpack.c.h.b16 %v4562
  %v4616 = vunpack.c.l.b16 %v4563
  %v4617 = vunpack.c.l.b16 %v4564
  %v4618 = vunpack.c.h.b16 %v4564
  %v4619 = vunpack.c.l.b16 %v4565
  %v4620 = vunpack.c.h.b16 %v4565
  %v4621 = vunpack.c.l.b16 %v4566
  %v4622 = vunpack.c.h.b16 %v4566
  %v4623 = vunpack.c.l.b16 %v4567
  %v4624 = vunpack.c.h.b16 %v4567
  %v4625 = vunpack.c.l.b16 %v4568
  %v4626 = vunpack.c.h.b16 %v4568
  %v4627 = vunpack.c.l.b16 %v4569
  %v4628 = vunpack.c.l.b16 %v4570
  %v4629 = vunpack.c.h.b16 %v4570
  %v4630 = vunpack.c.l.b16 %v4571
  %v4631 = vunpack.c.h.b16 %v4571
  %v4632 = vunpack.c.l.b16 %v4572
  %v4633 = vunpack.c.h.b16 %v4572
  %v4634 = vunpack.c.l.b16 %v4573
  %v4635 = vunpack.c.h.b16 %v4573
  %v4636 = vunpack.c.l.b16 %v4574
  %v4637 = vunpack.c.h.b16 %v4574
  %v4638 = vunpack.c.l.b16 %v4575
  %v4639 = vunpack.c.l.b16 %v4576
  %v4640 = vunpack.c.h.b16 %v4576
  %v4641 = vunpack.c.l.b16 %v4577
  %v4642 = vunpack.c.h.b16 %v4577
  %v4643 = vunpack.c.l.b16 %v4578
  %v4644 = vunpack.c.h.b16 %v4578
  %v4645 = vunpack.c.l.b16 %v4579
  %v4646 = vunpack.c.h.b16 %v4579
  %v4647 = vunpack.c.l.b16 %v4580
  %v4648 = vunpack.c.h.b16 %v4580
  %v4649 = vunpack.c.l.b16 %v4581
  %v4650 = vpack.c.b16 %v4617, %v4606
  %v4651 = vpack.c.b16 %v4618, %v4607
  %v4652 = vpack.c.b16 %v4619, %v4608
  %v4653 = vpack.c.b16 %v4620, %v4609
  %v4654 = vpack.c.b16 %v4621, %v4610
  %v4655 = vpack.c.b16 %v4622, %v4611
  %v4656 = vpack.c.b16 %v4623, %v4612
  %v4657 = vpack.c.b16 %v4624, %v4613
  %v4658 = vpack.c.b16 %v4625, %v4614
  %v4659 = vpack.c.b16 %v4626, %v4615
  %v4660 = vpack.c.b16 %v4627, %v4616
  %v4661 = vpack.c.b16 %v4639, %v4628
  %v4662 = vpack.c.b16 %v4640, %v4629
  %v4663 = vpack.c.b16 %v4641, %v4630
  %v4664 = vpack.c.b16 %v4642, %v4631
  %v4665 = vpack.c.b16 %v4643, %v4632
  %v4666 = vpack.c.b16 %v4644, %v4633
  %v4667 = vpack.c.b16 %v4645, %v4634
  %v4668 = vpack.c.b16 %v4646, %v4635
  %v4669 = vpack.c.b16 %v4647, %v4636
  %v4670 = vpack.c.b16 %v4648, %v4637
  %v4671 = vpack.c.b16 %v4649, %v4638
  %4694 = vmatpush.bf16.msra.mxu0 0
  %4695 = vmatpush.bf16.msra.mxu0 0
  %4696 = vmatpush.bf16.msra.mxu0 0
  %4697 = vmatpush.bf16.msra.mxu0 0
  %4698 = vmatpush.bf16.msra.mxu0 0
  %4699 = vmatpush.bf16.msra.mxu0 0
  %4700 = vmatpush.bf16.msra.mxu0 %v4661
  %4701 = vmatpush.bf16.msra.mxu0 %v4650
  %4702 = vmatmul.bf16.gmra.mxu0 %v381
  %v4703 = vpop.f32.mrf.mxu0
  %v4704 = vadd.f32 0.0, %v4703
  %v4705 = vpop.f32.mrf.mxu0
  %v4706 = vadd.f32 0.0, %v4705
  %4707 = vmatmul.bf16.gmra.mxu0 %v384
  %v4708 = vpop.f32.mrf.mxu0
  %v4709 = vadd.f32 0.0, %v4708
  %v4710 = vpop.f32.mrf.mxu0
  %4711 = vdwg.mxu0
  %4712 = vmatpush.bf16.msra.mxu0 0
  %4713 = vmatpush.bf16.msra.mxu0 0
  %4714 = vmatpush.bf16.msra.mxu0 0
  %4715 = vmatpush.bf16.msra.mxu0 0
  %4716 = vmatpush.bf16.msra.mxu0 0
  %4717 = vmatpush.bf16.msra.mxu0 0
  %4718 = vmatpush.bf16.msra.mxu0 %v4662
  %4719 = vmatpush.bf16.msra.mxu0 %v4651
  %4720 = vmatmul.bf16.gmra.mxu0 %v381
  %v4721 = vpop.f32.mrf.mxu0
  %v4722 = vadd.f32 0.0, %v4721
  %v4723 = vpop.f32.mrf.mxu0
  %v4724 = vadd.f32 0.0, %v4723
  %4725 = vmatmul.bf16.gmra.mxu0 %v384
  %v4726 = vpop.f32.mrf.mxu0
  %v4727 = vadd.f32 0.0, %v4726
  %v4728 = vpop.f32.mrf.mxu0
  %4729 = vdwg.mxu0
  %4730 = vmatpush.bf16.msra.mxu0 0
  %4731 = vmatpush.bf16.msra.mxu0 0
  %4732 = vmatpush.bf16.msra.mxu0 0
  %4733 = vmatpush.bf16.msra.mxu0 0
  %4734 = vmatpush.bf16.msra.mxu0 0
  %4735 = vmatpush.bf16.msra.mxu0 0
  %4736 = vmatpush.bf16.msra.mxu0 %v4663
  %4737 = vmatpush.bf16.msra.mxu0 %v4652
  %4738 = vmatmul.bf16.gmra.mxu0 %v381
  %v4739 = vpop.f32.mrf.mxu0
  %v4740 = vadd.f32 0.0, %v4739
  %v4741 = vpop.f32.mrf.mxu0
  %v4742 = vadd.f32 0.0, %v4741
  %4743 = vmatmul.bf16.gmra.mxu0 %v384
  %v4744 = vpop.f32.mrf.mxu0
  %v4745 = vadd.f32 0.0, %v4744
  %v4746 = vpop.f32.mrf.mxu0
  %4747 = vdwg.mxu0
  %4748 = vmatpush.bf16.msra.mxu0 0
  %4749 = vmatpush.bf16.msra.mxu0 0
  %4750 = vmatpush.bf16.msra.mxu0 0
  %4751 = vmatpush.bf16.msra.mxu0 0
  %4752 = vmatpush.bf16.msra.mxu0 0
  %4753 = vmatpush.bf16.msra.mxu0 0
  %4754 = vmatpush.bf16.msra.mxu0 %v4664
  %4755 = vmatpush.bf16.msra.mxu0 %v4653
  %4756 = vmatmul.bf16.gmra.mxu0 %v381
  %v4757 = vpop.f32.mrf.mxu0
  %v4758 = vadd.f32 0.0, %v4757
  %v4759 = vpop.f32.mrf.mxu0
  %v4760 = vadd.f32 0.0, %v4759
  %4761 = vmatmul.bf16.gmra.mxu0 %v384
  %v4762 = vpop.f32.mrf.mxu0
  %v4763 = vadd.f32 0.0, %v4762
  %v4764 = vpop.f32.mrf.mxu0
  %4765 = vdwg.mxu0
  %4766 = vmatpush.bf16.msra.mxu0 0
  %4767 = vmatpush.bf16.msra.mxu0 0
  %4768 = vmatpush.bf16.msra.mxu0 0
  %4769 = vmatpush.bf16.msra.mxu0 0
  %4770 = vmatpush.bf16.msra.mxu0 0
  %4771 = vmatpush.bf16.msra.mxu0 0
  %4772 = vmatpush.bf16.msra.mxu0 %v4665
  %4773 = vmatpush.bf16.msra.mxu0 %v4654
  %4774 = vmatmul.bf16.gmra.mxu0 %v381
  %v4775 = vpop.f32.mrf.mxu0
  %v4776 = vadd.f32 0.0, %v4775
  %v4777 = vpop.f32.mrf.mxu0
  %v4778 = vadd.f32 0.0, %v4777
  %4779 = vmatmul.bf16.gmra.mxu0 %v384
  %v4780 = vpop.f32.mrf.mxu0
  %v4781 = vadd.f32 0.0, %v4780
  %v4782 = vpop.f32.mrf.mxu0
  %4783 = vdwg.mxu0
  %4784 = vmatpush.bf16.msra.mxu0 0
  %4785 = vmatpush.bf16.msra.mxu0 0
  %4786 = vmatpush.bf16.msra.mxu0 0
  %4787 = vmatpush.bf16.msra.mxu0 0
  %4788 = vmatpush.bf16.msra.mxu0 0
  %4789 = vmatpush.bf16.msra.mxu0 0
  %4790 = vmatpush.bf16.msra.mxu0 %v4666
  %4791 = vmatpush.bf16.msra.mxu0 %v4655
  %4792 = vmatmul.bf16.gmra.mxu0 %v381
  %v4793 = vpop.f32.mrf.mxu0
  %v4794 = vadd.f32 0.0, %v4793
  %v4795 = vpop.f32.mrf.mxu0
  %v4796 = vadd.f32 0.0, %v4795
  %4797 = vmatmul.bf16.gmra.mxu0 %v384
  %v4798 = vpop.f32.mrf.mxu0
  %v4799 = vadd.f32 0.0, %v4798
  %v4800 = vpop.f32.mrf.mxu0
  %4801 = vdwg.mxu0
  %4802 = vmatpush.bf16.msra.mxu0 0
  %4803 = vmatpush.bf16.msra.mxu0 0
  %4804 = vmatpush.bf16.msra.mxu0 0
  %4805 = vmatpush.bf16.msra.mxu0 0
  %4806 = vmatpush.bf16.msra.mxu0 0
  %4807 = vmatpush.bf16.msra.mxu0 0
  %4808 = vmatpush.bf16.msra.mxu0 %v4667
  %4809 = vmatpush.bf16.msra.mxu0 %v4656
  %4810 = vmatmul.bf16.gmra.mxu0 %v381
  %v4811 = vpop.f32.mrf.mxu0
  %v4812 = vadd.f32 0.0, %v4811
  %v4813 = vpop.f32.mrf.mxu0
  %v4814 = vadd.f32 0.0, %v4813
  %4815 = vmatmul.bf16.gmra.mxu0 %v384
  %v4816 = vpop.f32.mrf.mxu0
  %v4817 = vadd.f32 0.0, %v4816
  %v4818 = vpop.f32.mrf.mxu0
  %4819 = vdwg.mxu0
  %4820 = vmatpush.bf16.msra.mxu0 0
  %4821 = vmatpush.bf16.msra.mxu0 0
  %4822 = vmatpush.bf16.msra.mxu0 0
  %4823 = vmatpush.bf16.msra.mxu0 0
  %4824 = vmatpush.bf16.msra.mxu0 0
  %4825 = vmatpush.bf16.msra.mxu0 0
  %4826 = vmatpush.bf16.msra.mxu0 %v4668
  %4827 = vmatpush.bf16.msra.mxu0 %v4657
  %4828 = vmatmul.bf16.gmra.mxu0 %v381
  %v4829 = vpop.f32.mrf.mxu0
  %v4830 = vadd.f32 0.0, %v4829
  %v4831 = vpop.f32.mrf.mxu0
  %v4832 = vadd.f32 0.0, %v4831
  %4833 = vmatmul.bf16.gmra.mxu0 %v384
  %v4834 = vpop.f32.mrf.mxu0
  %v4835 = vadd.f32 0.0, %v4834
  %v4836 = vpop.f32.mrf.mxu0
  %4837 = vdwg.mxu0
  %4838 = vmatpush.bf16.msra.mxu0 0
  %4839 = vmatpush.bf16.msra.mxu0 0
  %4840 = vmatpush.bf16.msra.mxu0 0
  %4841 = vmatpush.bf16.msra.mxu0 0
  %4842 = vmatpush.bf16.msra.mxu0 0
  %4843 = vmatpush.bf16.msra.mxu0 0
  %4844 = vmatpush.bf16.msra.mxu0 %v4669
  %4845 = vmatpush.bf16.msra.mxu0 %v4658
  %4846 = vmatmul.bf16.gmra.mxu0 %v381
  %v4847 = vpop.f32.mrf.mxu0
  %v4848 = vadd.f32 0.0, %v4847
  %v4849 = vpop.f32.mrf.mxu0
  %v4850 = vadd.f32 0.0, %v4849
  %4851 = vmatmul.bf16.gmra.mxu0 %v384
  %v4852 = vpop.f32.mrf.mxu0
  %v4853 = vadd.f32 0.0, %v4852
  %v4854 = vpop.f32.mrf.mxu0
  %4855 = vdwg.mxu0
  %4856 = vmatpush.bf16.msra.mxu0 0
  %4857 = vmatpush.bf16.msra.mxu0 0
  %4858 = vmatpush.bf16.msra.mxu0 0
  %4859 = vmatpush.bf16.msra.mxu0 0
  %4860 = vmatpush.bf16.msra.mxu0 0
  %4861 = vmatpush.bf16.msra.mxu0 0
  %4862 = vmatpush.bf16.msra.mxu0 %v4670
  %4863 = vmatpush.bf16.msra.mxu0 %v4659
  %4864 = vmatmul.bf16.gmra.mxu0 %v381
  %v4865 = vpop.f32.mrf.mxu0
  %v4866 = vadd.f32 0.0, %v4865
  %v4867 = vpop.f32.mrf.mxu0
  %v4868 = vadd.f32 0.0, %v4867
  %4869 = vmatmul.bf16.gmra.mxu0 %v384
  %v4870 = vpop.f32.mrf.mxu0
  %v4871 = vadd.f32 0.0, %v4870
  %v4872 = vpop.f32.mrf.mxu0
  %4873 = vdwg.mxu0
  %4874 = vmatpush.bf16.msra.mxu0 0
  %4875 = vmatpush.bf16.msra.mxu0 0
  %4876 = vmatpush.bf16.msra.mxu0 0
  %4877 = vmatpush.bf16.msra.mxu0 0
  %4878 = vmatpush.bf16.msra.mxu0 0
  %4879 = vmatpush.bf16.msra.mxu0 0
  %4880 = vmatpush.bf16.msra.mxu0 %v4671
  %4881 = vmatpush.bf16.msra.mxu0 %v4660
  %4882 = vmatmul.bf16.gmra.mxu0 %v381
  %v4883 = vpop.f32.mrf.mxu0
  %v4884 = vadd.f32 0.0, %v4883
  %v4885 = vpop.f32.mrf.mxu0
  %v4886 = vadd.f32 0.0, %v4885
  %4887 = vmatmul.bf16.gmra.mxu0 %v384
  %v4888 = vpop.f32.mrf.mxu0
  %v4889 = vadd.f32 0.0, %v4888
  %v4890 = vpop.f32.mrf.mxu0
  %4891 = vdwg.mxu0
  %v4892 = vmax.f32 %v4704, 0.0
  %v4893 = vmax.f32 %v4722, 0.0
  %v4894 = vmax.f32 %v4740, 0.0
  %v4895 = vmax.f32 %v4758, 0.0
  %v4896 = vmax.f32 %v4776, 0.0
  %v4897 = vmax.f32 %v4794, 0.0
  %v4898 = vmax.f32 %v4812, 0.0
  %v4899 = vmax.f32 %v4830, 0.0
  %v4900 = vmax.f32 %v4848, 0.0
  %v4901 = vmax.f32 %v4866, 0.0
  %v4902 = vmax.f32 %v4884, 0.0
  %v4903 = vmax.f32 %v4706, 0.0
  %v4904 = vmax.f32 %v4724, 0.0
  %v4905 = vmax.f32 %v4742, 0.0
  %v4906 = vmax.f32 %v4760, 0.0
  %v4907 = vmax.f32 %v4778, 0.0
  %v4908 = vmax.f32 %v4796, 0.0
  %v4909 = vmax.f32 %v4814, 0.0
  %v4910 = vmax.f32 %v4832, 0.0
  %v4911 = vmax.f32 %v4850, 0.0
  %v4912 = vmax.f32 %v4868, 0.0
  %v4913 = vmax.f32 %v4886, 0.0
  %v4914 = vmax.f32 %v4709, 0.0
  %v4915 = vmax.f32 %v4727, 0.0
  %v4916 = vmax.f32 %v4745, 0.0
  %v4917 = vmax.f32 %v4763, 0.0
  %v4918 = vmax.f32 %v4781, 0.0
  %v4919 = vmax.f32 %v4799, 0.0
  %v4920 = vmax.f32 %v4817, 0.0
  %v4921 = vmax.f32 %v4835, 0.0
  %v4922 = vmax.f32 %v4853, 0.0
  %v4923 = vmax.f32 %v4871, 0.0
  %v4924 = vmax.f32 %v4889, 0.0
  %v4925 = vpack.c.bf16 %v4903, %v4892
  %v4926 = vpack.c.bf16 %v4904, %v4893
  %v4927 = vpack.c.bf16 %v4905, %v4894
  %v4928 = vpack.c.bf16 %v4906, %v4895
  %v4929 = vpack.c.bf16 %v4907, %v4896
  %v4930 = vpack.c.bf16 %v4908, %v4897
  %v4931 = vpack.c.bf16 %v4909, %v4898
  %v4932 = vpack.c.bf16 %v4910, %v4899
  %v4933 = vpack.c.bf16 %v4911, %v4900
  %v4934 = vpack.c.bf16 %v4912, %v4901
  %v4935 = vpack.c.bf16 %v4913, %v4902
  %v4936 = vpack.c.bf16 %v4914, %v4914
  %v4937 = vpack.c.bf16 %v4915, %v4915
  %v4938 = vpack.c.bf16 %v4916, %v4916
  %v4939 = vpack.c.bf16 %v4917, %v4917
  %v4940 = vpack.c.bf16 %v4918, %v4918
  %v4941 = vpack.c.bf16 %v4919, %v4919
  %v4942 = vpack.c.bf16 %v4920, %v4920
  %v4943 = vpack.c.bf16 %v4921, %v4921
  %v4944 = vpack.c.bf16 %v4922, %v4922
  %v4945 = vpack.c.bf16 %v4923, %v4923
  %v4946 = vpack.c.bf16 %v4924, %v4924
  %4947 = vmatpush.bf16.msra.mxu0 %v1181
  %4948 = vmatpush.bf16.msra.mxu0 %v1179
  %4949 = vmatpush.bf16.msra.mxu0 %v1177
  %4950 = vmatpush.bf16.msra.mxu0 %v1175
  %4951 = vmatpush.bf16.msra.mxu0 %v1173
  %4952 = vmatpush.bf16.msra.mxu0 %v1171
  %4953 = vmatpush.bf16.msra.mxu0 %v1169
  %4954 = vmatpush.bf16.msra.mxu0 %v1167
  %4955 = vmatmul.bf16.gmra.mxu0 %v4925
  %v4956 = vpop.f32.mrf.mxu0
  %v4957 = vadd.f32 0.0, %v4956
  %v4958 = vpop.f32.mrf.mxu0
  %v4959 = vadd.f32 0.0, %v4958
  %4960 = vmatmul.bf16.gmra.mxu0 %v4936
  %v4961 = vpop.f32.mrf.mxu0
  %v4962 = vadd.f32 0.0, %v4961
  %v4963 = vpop.f32.mrf.mxu0
  %4964 = vdwg.mxu0
  %4965 = vmatpush.bf16.msra.mxu0 %v1197
  %4966 = vmatpush.bf16.msra.mxu0 %v1195
  %4967 = vmatpush.bf16.msra.mxu0 %v1193
  %4968 = vmatpush.bf16.msra.mxu0 %v1191
  %4969 = vmatpush.bf16.msra.mxu0 %v1189
  %4970 = vmatpush.bf16.msra.mxu0 %v1187
  %4971 = vmatpush.bf16.msra.mxu0 %v1185
  %4972 = vmatpush.bf16.msra.mxu0 %v1183
  %4973 = vmatmul.bf16.gmra.mxu0 %v4926
  %v4974 = vpop.f32.mrf.mxu0
  %v4975 = vadd.f32 %v4957, %v4974
  %v4976 = vpop.f32.mrf.mxu0
  %v4977 = vadd.f32 %v4959, %v4976
  %4978 = vmatmul.bf16.gmra.mxu0 %v4937
  %v4979 = vpop.f32.mrf.mxu0
  %v4980 = vadd.f32 %v4962, %v4979
  %v4981 = vpop.f32.mrf.mxu0
  %4982 = vdwg.mxu0
  %4983 = vmatpush.bf16.msra.mxu0 %v1213
  %4984 = vmatpush.bf16.msra.mxu0 %v1211
  %4985 = vmatpush.bf16.msra.mxu0 %v1209
  %4986 = vmatpush.bf16.msra.mxu0 %v1207
  %4987 = vmatpush.bf16.msra.mxu0 %v1205
  %4988 = vmatpush.bf16.msra.mxu0 %v1203
  %4989 = vmatpush.bf16.msra.mxu0 %v1201
  %4990 = vmatpush.bf16.msra.mxu0 %v1199
  %4991 = vmatmul.bf16.gmra.mxu0 %v4927
  %v4992 = vpop.f32.mrf.mxu0
  %v4993 = vadd.f32 %v4975, %v4992
  %v4994 = vpop.f32.mrf.mxu0
  %v4995 = vadd.f32 %v4977, %v4994
  %4996 = vmatmul.bf16.gmra.mxu0 %v4938
  %v4997 = vpop.f32.mrf.mxu0
  %v4998 = vadd.f32 %v4980, %v4997
  %v4999 = vpop.f32.mrf.mxu0
  %5000 = vdwg.mxu0
  %5001 = vmatpush.bf16.msra.mxu0 %v1229
  %5002 = vmatpush.bf16.msra.mxu0 %v1227
  %5003 = vmatpush.bf16.msra.mxu0 %v1225
  %5004 = vmatpush.bf16.msra.mxu0 %v1223
  %5005 = vmatpush.bf16.msra.mxu0 %v1221
  %5006 = vmatpush.bf16.msra.mxu0 %v1219
  %5007 = vmatpush.bf16.msra.mxu0 %v1217
  %5008 = vmatpush.bf16.msra.mxu0 %v1215
  %5009 = vmatmul.bf16.gmra.mxu0 %v4928
  %v5010 = vpop.f32.mrf.mxu0
  %v5011 = vadd.f32 %v4993, %v5010
  %v5012 = vpop.f32.mrf.mxu0
  %v5013 = vadd.f32 %v4995, %v5012
  %5014 = vmatmul.bf16.gmra.mxu0 %v4939
  %v5015 = vpop.f32.mrf.mxu0
  %v5016 = vadd.f32 %v4998, %v5015
  %v5017 = vpop.f32.mrf.mxu0
  %5018 = vdwg.mxu0
  %5019 = vmatpush.bf16.msra.mxu0 %v1245
  %5020 = vmatpush.bf16.msra.mxu0 %v1243
  %5021 = vmatpush.bf16.msra.mxu0 %v1241
  %5022 = vmatpush.bf16.msra.mxu0 %v1239
  %5023 = vmatpush.bf16.msra.mxu0 %v1237
  %5024 = vmatpush.bf16.msra.mxu0 %v1235
  %5025 = vmatpush.bf16.msra.mxu0 %v1233
  %5026 = vmatpush.bf16.msra.mxu0 %v1231
  %5027 = vmatmul.bf16.gmra.mxu0 %v4929
  %v5028 = vpop.f32.mrf.mxu0
  %v5029 = vadd.f32 %v5011, %v5028
  %v5030 = vpop.f32.mrf.mxu0
  %v5031 = vadd.f32 %v5013, %v5030
  %5032 = vmatmul.bf16.gmra.mxu0 %v4940
  %v5033 = vpop.f32.mrf.mxu0
  %v5034 = vadd.f32 %v5016, %v5033
  %v5035 = vpop.f32.mrf.mxu0
  %5036 = vdwg.mxu0
  %5037 = vmatpush.bf16.msra.mxu0 %v1261
  %5038 = vmatpush.bf16.msra.mxu0 %v1259
  %5039 = vmatpush.bf16.msra.mxu0 %v1257
  %5040 = vmatpush.bf16.msra.mxu0 %v1255
  %5041 = vmatpush.bf16.msra.mxu0 %v1253
  %5042 = vmatpush.bf16.msra.mxu0 %v1251
  %5043 = vmatpush.bf16.msra.mxu0 %v1249
  %5044 = vmatpush.bf16.msra.mxu0 %v1247
  %5045 = vmatmul.bf16.gmra.mxu0 %v4930
  %v5046 = vpop.f32.mrf.mxu0
  %v5047 = vadd.f32 %v5029, %v5046
  %v5048 = vpop.f32.mrf.mxu0
  %v5049 = vadd.f32 %v5031, %v5048
  %5050 = vmatmul.bf16.gmra.mxu0 %v4941
  %v5051 = vpop.f32.mrf.mxu0
  %v5052 = vadd.f32 %v5034, %v5051
  %v5053 = vpop.f32.mrf.mxu0
  %5054 = vdwg.mxu0
  %5055 = vmatpush.bf16.msra.mxu0 %v1277
  %5056 = vmatpush.bf16.msra.mxu0 %v1275
  %5057 = vmatpush.bf16.msra.mxu0 %v1273
  %5058 = vmatpush.bf16.msra.mxu0 %v1271
  %5059 = vmatpush.bf16.msra.mxu0 %v1269
  %5060 = vmatpush.bf16.msra.mxu0 %v1267
  %5061 = vmatpush.bf16.msra.mxu0 %v1265
  %5062 = vmatpush.bf16.msra.mxu0 %v1263
  %5063 = vmatmul.bf16.gmra.mxu0 %v4931
  %v5064 = vpop.f32.mrf.mxu0
  %v5065 = vadd.f32 %v5047, %v5064
  %v5066 = vpop.f32.mrf.mxu0
  %v5067 = vadd.f32 %v5049, %v5066
  %5068 = vmatmul.bf16.gmra.mxu0 %v4942
  %v5069 = vpop.f32.mrf.mxu0
  %v5070 = vadd.f32 %v5052, %v5069
  %v5071 = vpop.f32.mrf.mxu0
  %5072 = vdwg.mxu0
  %5073 = vmatpush.bf16.msra.mxu0 %v1293
  %5074 = vmatpush.bf16.msra.mxu0 %v1291
  %5075 = vmatpush.bf16.msra.mxu0 %v1289
  %5076 = vmatpush.bf16.msra.mxu0 %v1287
  %5077 = vmatpush.bf16.msra.mxu0 %v1285
  %5078 = vmatpush.bf16.msra.mxu0 %v1283
  %5079 = vmatpush.bf16.msra.mxu0 %v1281
  %5080 = vmatpush.bf16.msra.mxu0 %v1279
  %5081 = vmatmul.bf16.gmra.mxu0 %v4932
  %v5082 = vpop.f32.mrf.mxu0
  %v5083 = vadd.f32 %v5065, %v5082
  %v5084 = vpop.f32.mrf.mxu0
  %v5085 = vadd.f32 %v5067, %v5084
  %5086 = vmatmul.bf16.gmra.mxu0 %v4943
  %v5087 = vpop.f32.mrf.mxu0
  %v5088 = vadd.f32 %v5070, %v5087
  %v5089 = vpop.f32.mrf.mxu0
  %5090 = vdwg.mxu0
  %5091 = vmatpush.bf16.msra.mxu0 %v1309
  %5092 = vmatpush.bf16.msra.mxu0 %v1307
  %5093 = vmatpush.bf16.msra.mxu0 %v1305
  %5094 = vmatpush.bf16.msra.mxu0 %v1303
  %5095 = vmatpush.bf16.msra.mxu0 %v1301
  %5096 = vmatpush.bf16.msra.mxu0 %v1299
  %5097 = vmatpush.bf16.msra.mxu0 %v1297
  %5098 = vmatpush.bf16.msra.mxu0 %v1295
  %5099 = vmatmul.bf16.gmra.mxu0 %v4933
  %v5100 = vpop.f32.mrf.mxu0
  %v5101 = vadd.f32 %v5083, %v5100
  %v5102 = vpop.f32.mrf.mxu0
  %v5103 = vadd.f32 %v5085, %v5102
  %5104 = vmatmul.bf16.gmra.mxu0 %v4944
  %v5105 = vpop.f32.mrf.mxu0
  %v5106 = vadd.f32 %v5088, %v5105
  %v5107 = vpop.f32.mrf.mxu0
  %5108 = vdwg.mxu0
  %5109 = vmatpush.bf16.msra.mxu0 %v1325
  %5110 = vmatpush.bf16.msra.mxu0 %v1323
  %5111 = vmatpush.bf16.msra.mxu0 %v1321
  %5112 = vmatpush.bf16.msra.mxu0 %v1319
  %5113 = vmatpush.bf16.msra.mxu0 %v1317
  %5114 = vmatpush.bf16.msra.mxu0 %v1315
  %5115 = vmatpush.bf16.msra.mxu0 %v1313
  %5116 = vmatpush.bf16.msra.mxu0 %v1311
  %5117 = vmatmul.bf16.gmra.mxu0 %v4934
  %v5118 = vpop.f32.mrf.mxu0
  %v5119 = vadd.f32 %v5101, %v5118
  %v5120 = vpop.f32.mrf.mxu0
  %v5121 = vadd.f32 %v5103, %v5120
  %5122 = vmatmul.bf16.gmra.mxu0 %v4945
  %v5123 = vpop.f32.mrf.mxu0
  %v5124 = vadd.f32 %v5106, %v5123
  %v5125 = vpop.f32.mrf.mxu0
  %5126 = vdwg.mxu0
  %5127 = vmatpush.bf16.msra.mxu0 %v1341
  %5128 = vmatpush.bf16.msra.mxu0 %v1339
  %5129 = vmatpush.bf16.msra.mxu0 %v1337
  %5130 = vmatpush.bf16.msra.mxu0 %v1335
  %5131 = vmatpush.bf16.msra.mxu0 %v1333
  %5132 = vmatpush.bf16.msra.mxu0 %v1331
  %5133 = vmatpush.bf16.msra.mxu0 %v1329
  %5134 = vmatpush.bf16.msra.mxu0 %v1327
  %5135 = vmatmul.bf16.gmra.mxu0 %v4935
  %v5136 = vpop.f32.mrf.mxu0
  %v5137 = vadd.f32 %v5119, %v5136
  %v5138 = vpop.f32.mrf.mxu0
  %v5139 = vadd.f32 %v5121, %v5138
  %5140 = vmatmul.bf16.gmra.mxu0 %v4946
  %v5141 = vpop.f32.mrf.mxu0
  %v5142 = vadd.f32 %v5124, %v5141
  %v5143 = vpop.f32.mrf.mxu0
  %5144 = vdwg.mxu0
  %5145 = vmatpush.bf16.msra.mxu0 %v1182
  %5146 = vmatpush.bf16.msra.mxu0 %v1180
  %5147 = vmatpush.bf16.msra.mxu0 %v1178
  %5148 = vmatpush.bf16.msra.mxu0 %v1176
  %5149 = vmatpush.bf16.msra.mxu0 %v1174
  %5150 = vmatpush.bf16.msra.mxu0 %v1172
  %5151 = vmatpush.bf16.msra.mxu0 %v1170
  %5152 = vmatpush.bf16.msra.mxu0 %v1168
  %5153 = vmatmul.bf16.gmra.mxu0 %v4925
  %v5154 = vpop.f32.mrf.mxu0
  %v5155 = vadd.f32 0.0, %v5154
  %v5156 = vpop.f32.mrf.mxu0
  %v5157 = vadd.f32 0.0, %v5156
  %5158 = vmatmul.bf16.gmra.mxu0 %v4936
  %v5159 = vpop.f32.mrf.mxu0
  %v5160 = vadd.f32 0.0, %v5159
  %v5161 = vpop.f32.mrf.mxu0
  %5162 = vdwg.mxu0
  %5163 = vmatpush.bf16.msra.mxu0 %v1198
  %5164 = vmatpush.bf16.msra.mxu0 %v1196
  %5165 = vmatpush.bf16.msra.mxu0 %v1194
  %5166 = vmatpush.bf16.msra.mxu0 %v1192
  %5167 = vmatpush.bf16.msra.mxu0 %v1190
  %5168 = vmatpush.bf16.msra.mxu0 %v1188
  %5169 = vmatpush.bf16.msra.mxu0 %v1186
  %5170 = vmatpush.bf16.msra.mxu0 %v1184
  %5171 = vmatmul.bf16.gmra.mxu0 %v4926
  %v5172 = vpop.f32.mrf.mxu0
  %v5173 = vadd.f32 %v5155, %v5172
  %v5174 = vpop.f32.mrf.mxu0
  %v5175 = vadd.f32 %v5157, %v5174
  %5176 = vmatmul.bf16.gmra.mxu0 %v4937
  %v5177 = vpop.f32.mrf.mxu0
  %v5178 = vadd.f32 %v5160, %v5177
  %v5179 = vpop.f32.mrf.mxu0
  %5180 = vdwg.mxu0
  %5181 = vmatpush.bf16.msra.mxu0 %v1214
  %5182 = vmatpush.bf16.msra.mxu0 %v1212
  %5183 = vmatpush.bf16.msra.mxu0 %v1210
  %5184 = vmatpush.bf16.msra.mxu0 %v1208
  %5185 = vmatpush.bf16.msra.mxu0 %v1206
  %5186 = vmatpush.bf16.msra.mxu0 %v1204
  %5187 = vmatpush.bf16.msra.mxu0 %v1202
  %5188 = vmatpush.bf16.msra.mxu0 %v1200
  %5189 = vmatmul.bf16.gmra.mxu0 %v4927
  %v5190 = vpop.f32.mrf.mxu0
  %v5191 = vadd.f32 %v5173, %v5190
  %v5192 = vpop.f32.mrf.mxu0
  %v5193 = vadd.f32 %v5175, %v5192
  %5194 = vmatmul.bf16.gmra.mxu0 %v4938
  %v5195 = vpop.f32.mrf.mxu0
  %v5196 = vadd.f32 %v5178, %v5195
  %v5197 = vpop.f32.mrf.mxu0
  %5198 = vdwg.mxu0
  %5199 = vmatpush.bf16.msra.mxu0 %v1230
  %5200 = vmatpush.bf16.msra.mxu0 %v1228
  %5201 = vmatpush.bf16.msra.mxu0 %v1226
  %5202 = vmatpush.bf16.msra.mxu0 %v1224
  %5203 = vmatpush.bf16.msra.mxu0 %v1222
  %5204 = vmatpush.bf16.msra.mxu0 %v1220
  %5205 = vmatpush.bf16.msra.mxu0 %v1218
  %5206 = vmatpush.bf16.msra.mxu0 %v1216
  %5207 = vmatmul.bf16.gmra.mxu0 %v4928
  %v5208 = vpop.f32.mrf.mxu0
  %v5209 = vadd.f32 %v5191, %v5208
  %v5210 = vpop.f32.mrf.mxu0
  %v5211 = vadd.f32 %v5193, %v5210
  %5212 = vmatmul.bf16.gmra.mxu0 %v4939
  %v5213 = vpop.f32.mrf.mxu0
  %v5214 = vadd.f32 %v5196, %v5213
  %v5215 = vpop.f32.mrf.mxu0
  %5216 = vdwg.mxu0
  %5217 = vmatpush.bf16.msra.mxu0 %v1246
  %5218 = vmatpush.bf16.msra.mxu0 %v1244
  %5219 = vmatpush.bf16.msra.mxu0 %v1242
  %5220 = vmatpush.bf16.msra.mxu0 %v1240
  %5221 = vmatpush.bf16.msra.mxu0 %v1238
  %5222 = vmatpush.bf16.msra.mxu0 %v1236
  %5223 = vmatpush.bf16.msra.mxu0 %v1234
  %5224 = vmatpush.bf16.msra.mxu0 %v1232
  %5225 = vmatmul.bf16.gmra.mxu0 %v4929
  %v5226 = vpop.f32.mrf.mxu0
  %v5227 = vadd.f32 %v5209, %v5226
  %v5228 = vpop.f32.mrf.mxu0
  %v5229 = vadd.f32 %v5211, %v5228
  %5230 = vmatmul.bf16.gmra.mxu0 %v4940
  %v5231 = vpop.f32.mrf.mxu0
  %v5232 = vadd.f32 %v5214, %v5231
  %v5233 = vpop.f32.mrf.mxu0
  %5234 = vdwg.mxu0
  %5235 = vmatpush.bf16.msra.mxu0 %v1262
  %5236 = vmatpush.bf16.msra.mxu0 %v1260
  %5237 = vmatpush.bf16.msra.mxu0 %v1258
  %5238 = vmatpush.bf16.msra.mxu0 %v1256
  %5239 = vmatpush.bf16.msra.mxu0 %v1254
  %5240 = vmatpush.bf16.msra.mxu0 %v1252
  %5241 = vmatpush.bf16.msra.mxu0 %v1250
  %5242 = vmatpush.bf16.msra.mxu0 %v1248
  %5243 = vmatmul.bf16.gmra.mxu0 %v4930
  %v5244 = vpop.f32.mrf.mxu0
  %v5245 = vadd.f32 %v5227, %v5244
  %v5246 = vpop.f32.mrf.mxu0
  %v5247 = vadd.f32 %v5229, %v5246
  %5248 = vmatmul.bf16.gmra.mxu0 %v4941
  %v5249 = vpop.f32.mrf.mxu0
  %v5250 = vadd.f32 %v5232, %v5249
  %v5251 = vpop.f32.mrf.mxu0
  %5252 = vdwg.mxu0
  %5253 = vmatpush.bf16.msra.mxu0 %v1278
  %5254 = vmatpush.bf16.msra.mxu0 %v1276
  %5255 = vmatpush.bf16.msra.mxu0 %v1274
  %5256 = vmatpush.bf16.msra.mxu0 %v1272
  %5257 = vmatpush.bf16.msra.mxu0 %v1270
  %5258 = vmatpush.bf16.msra.mxu0 %v1268
  %5259 = vmatpush.bf16.msra.mxu0 %v1266
  %5260 = vmatpush.bf16.msra.mxu0 %v1264
  %5261 = vmatmul.bf16.gmra.mxu0 %v4931
  %v5262 = vpop.f32.mrf.mxu0
  %v5263 = vadd.f32 %v5245, %v5262
  %v5264 = vpop.f32.mrf.mxu0
  %v5265 = vadd.f32 %v5247, %v5264
  %5266 = vmatmul.bf16.gmra.mxu0 %v4942
  %v5267 = vpop.f32.mrf.mxu0
  %v5268 = vadd.f32 %v5250, %v5267
  %v5269 = vpop.f32.mrf.mxu0
  %5270 = vdwg.mxu0
  %5271 = vmatpush.bf16.msra.mxu0 %v1294
  %5272 = vmatpush.bf16.msra.mxu0 %v1292
  %5273 = vmatpush.bf16.msra.mxu0 %v1290
  %5274 = vmatpush.bf16.msra.mxu0 %v1288
  %5275 = vmatpush.bf16.msra.mxu0 %v1286
  %5276 = vmatpush.bf16.msra.mxu0 %v1284
  %5277 = vmatpush.bf16.msra.mxu0 %v1282
  %5278 = vmatpush.bf16.msra.mxu0 %v1280
  %5279 = vmatmul.bf16.gmra.mxu0 %v4932
  %v5280 = vpop.f32.mrf.mxu0
  %v5281 = vadd.f32 %v5263, %v5280
  %v5282 = vpop.f32.mrf.mxu0
  %v5283 = vadd.f32 %v5265, %v5282
  %5284 = vmatmul.bf16.gmra.mxu0 %v4943
  %v5285 = vpop.f32.mrf.mxu0
  %v5286 = vadd.f32 %v5268, %v5285
  %v5287 = vpop.f32.mrf.mxu0
  %5288 = vdwg.mxu0
  %5289 = vmatpush.bf16.msra.mxu0 %v1310
  %5290 = vmatpush.bf16.msra.mxu0 %v1308
  %5291 = vmatpush.bf16.msra.mxu0 %v1306
  %5292 = vmatpush.bf16.msra.mxu0 %v1304
  %5293 = vmatpush.bf16.msra.mxu0 %v1302
  %5294 = vmatpush.bf16.msra.mxu0 %v1300
  %5295 = vmatpush.bf16.msra.mxu0 %v1298
  %5296 = vmatpush.bf16.msra.mxu0 %v1296
  %5297 = vmatmul.bf16.gmra.mxu0 %v4933
  %v5298 = vpop.f32.mrf.mxu0
  %v5299 = vadd.f32 %v5281, %v5298
  %v5300 = vpop.f32.mrf.mxu0
  %v5301 = vadd.f32 %v5283, %v5300
  %5302 = vmatmul.bf16.gmra.mxu0 %v4944
  %v5303 = vpop.f32.mrf.mxu0
  %v5304 = vadd.f32 %v5286, %v5303
  %v5305 = vpop.f32.mrf.mxu0
  %5306 = vdwg.mxu0
  %5307 = vmatpush.bf16.msra.mxu0 %v1326
  %5308 = vmatpush.bf16.msra.mxu0 %v1324
  %5309 = vmatpush.bf16.msra.mxu0 %v1322
  %5310 = vmatpush.bf16.msra.mxu0 %v1320
  %5311 = vmatpush.bf16.msra.mxu0 %v1318
  %5312 = vmatpush.bf16.msra.mxu0 %v1316
  %5313 = vmatpush.bf16.msra.mxu0 %v1314
  %5314 = vmatpush.bf16.msra.mxu0 %v1312
  %5315 = vmatmul.bf16.gmra.mxu0 %v4934
  %v5316 = vpop.f32.mrf.mxu0
  %v5317 = vadd.f32 %v5299, %v5316
  %v5318 = vpop.f32.mrf.mxu0
  %v5319 = vadd.f32 %v5301, %v5318
  %5320 = vmatmul.bf16.gmra.mxu0 %v4945
  %v5321 = vpop.f32.mrf.mxu0
  %v5322 = vadd.f32 %v5304, %v5321
  %v5323 = vpop.f32.mrf.mxu0
  %5324 = vdwg.mxu0
  %5325 = vmatpush.bf16.msra.mxu0 %v1342
  %5326 = vmatpush.bf16.msra.mxu0 %v1340
  %5327 = vmatpush.bf16.msra.mxu0 %v1338
  %5328 = vmatpush.bf16.msra.mxu0 %v1336
  %5329 = vmatpush.bf16.msra.mxu0 %v1334
  %5330 = vmatpush.bf16.msra.mxu0 %v1332
  %5331 = vmatpush.bf16.msra.mxu0 %v1330
  %5332 = vmatpush.bf16.msra.mxu0 %v1328
  %5333 = vmatmul.bf16.gmra.mxu0 %v4935
  %v5334 = vpop.f32.mrf.mxu0
  %v5335 = vadd.f32 %v5317, %v5334
  %v5336 = vpop.f32.mrf.mxu0
  %v5337 = vadd.f32 %v5319, %v5336
  %5338 = vmatmul.bf16.gmra.mxu0 %v4946
  %v5339 = vpop.f32.mrf.mxu0
  %v5340 = vadd.f32 %v5322, %v5339
  %v5341 = vpop.f32.mrf.mxu0
  %5342 = vdwg.mxu0
  %v5343 = vmul.f32 %v5137, %v203
  %v5344 = vmul.f32 %v5335, %v204
  %v5345 = vmul.f32 %v5139, %v205
  %v5346 = vmul.f32 %v5337, %v206
  %v5347 = vmul.f32 %v5142, %v207
  %v5348 = vmul.f32 %v5340, %v208
  %v5349 = vadd.f32 %v5343, %v5345
  %v5350 = vsel %vm1922, %v5347, 0.0
  %v5351 = vadd.f32 %v5349, %v5350
  %v5352 = vrot.slane %v5351, 4
  %v5353 = vadd.f32 %v5351, %v5352
  %v5354 = vrot.slane %v5353, 2
  %v5355 = vadd.f32 %v5353, %v5354
  %v5356 = vrot.slane %v5355, 1
  %v5357 = vadd.f32 %v5355, %v5356
  %v5358 = vsel %vm1931, %v5344, 0.0
  %v5359 = vsel %vm1931, %v5346, 0.0
  %v5360 = vadd.f32 %v5358, %v5359
  %v5361 = vsel %vm1935, %v5348, 0.0
  %v5362 = vadd.f32 %v5360, %v5361
  %v5363 = vrot.slane %v5362, 4
  %v5364 = vadd.f32 %v5362, %v5363
  %v5365 = vrot.slane %v5364, 2
  %v5366 = vadd.f32 %v5364, %v5365
  %v5367 = vrot.slane %v5366, 1
  %v5368 = vadd.f32 %v5366, %v5367
  %v5370 = vsel %vm1931, %v5368, 0
  %5372 = vmatpush.msra.mxu0 %v224
  %5373 = vmatpush.msra.mxu0 %v223
  %5374 = vmatpush.msra.mxu0 %v222
  %5375 = vmatpush.msra.mxu0 %v221
  %5376 = vmatpush.msra.mxu0 %v220
  %5377 = vmatpush.msra.mxu0 %v219
  %5378 = vmatpush.msra.mxu0 %v218
  %5379 = vmatpush.msra.mxu0 %v217
  %5380 = vmatpush.msra.mxu0 %v216
  %5381 = vmatpush.msra.mxu0 %v215
  %5382 = vmatpush.msra.mxu0 %v214
  %5383 = vmatpush.msra.mxu0 %v213
  %5384 = vmatpush.msra.mxu0 %v212
  %5385 = vmatpush.msra.mxu0 %v211
  %5386 = vmatpush.msra.mxu0 %v210
  %5387 = vmatpush.msra.mxu0 %v209
  %5388 = vmatmul.f32.gmra.mxu0 %v5357
  %v5389 = vpop.f32.mrf.mxu0
  %v5390 = vadd.f32 %v234, %v5389
  %5391 = vdwg.mxu0
  %5392 = vmatpush.msra.mxu0 0.0
  %5393 = vmatpush.msra.mxu0 0.0
  %5394 = vmatpush.msra.mxu0 0.0
  %5395 = vmatpush.msra.mxu0 0.0
  %5396 = vmatpush.msra.mxu0 0.0
  %5397 = vmatpush.msra.mxu0 0.0
  %5398 = vmatpush.msra.mxu0 0.0
  %5399 = vmatpush.msra.mxu0 %v233
  %5400 = vmatpush.msra.mxu0 %v232
  %5401 = vmatpush.msra.mxu0 %v231
  %5402 = vmatpush.msra.mxu0 %v230
  %5403 = vmatpush.msra.mxu0 %v229
  %5404 = vmatpush.msra.mxu0 %v228
  %5405 = vmatpush.msra.mxu0 %v227
  %5406 = vmatpush.msra.mxu0 %v226
  %5407 = vmatpush.msra.mxu0 %v225
  %5408 = vmatmul.f32.gmra.mxu0 %v5370
  %v5409 = vpop.f32.mrf.mxu0
  %v5410 = vadd.f32 %v5390, %v5409
  %5411 = vdwg.mxu0
  %5412 = vst.msk [vmem:[%s6 + $0x4] sm:$0x1] %vm1987, %v5410
  %s5413 = scalar_lea.vmem %s0, 880
  %v5414 = vld [vmem:[%s5413] sm:$0xff]
  %v5415 = vld [vmem:[%s5413 + $0x8] sm:$0xff]
  %v5416 = vld [vmem:[%s5413 + $0x10] sm:$0xff]
  %v5417 = vld [vmem:[%s5413 + $0x18] sm:$0xff]
  %v5418 = vld [vmem:[%s5413 + $0x20] sm:$0xff]
  %v5419 = vld [vmem:[%s5413 + $0x28] sm:$0xf]
  %v5420 = vld [vmem:[%s5413 + $0x2c] sm:$0xff]
  %v5421 = vld [vmem:[%s5413 + $0x34] sm:$0xff]
  %v5422 = vld [vmem:[%s5413 + $0x3c] sm:$0xff]
  %v5423 = vld [vmem:[%s5413 + $0x44] sm:$0xff]
  %v5424 = vld [vmem:[%s5413 + $0x4c] sm:$0xff]
  %v5425 = vld [vmem:[%s5413 + $0x54] sm:$0xf]
  %v5426 = vld [vmem:[%s5413 + $0x58] sm:$0xff]
  %v5427 = vld [vmem:[%s5413 + $0x60] sm:$0xff]
  %v5428 = vld [vmem:[%s5413 + $0x68] sm:$0xff]
  %v5429 = vld [vmem:[%s5413 + $0x70] sm:$0xff]
  %v5430 = vld [vmem:[%s5413 + $0x78] sm:$0xff]
  %v5431 = vld [vmem:[%s5413 + $0x80] sm:$0xf]
  %v5432 = vld [vmem:[%s5413 + $0x84] sm:$0xff]
  %v5433 = vld [vmem:[%s5413 + $0x8c] sm:$0xff]
  %v5434 = vld [vmem:[%s5413 + $0x94] sm:$0xff]
  %v5435 = vld [vmem:[%s5413 + $0x9c] sm:$0xff]
  %v5436 = vld [vmem:[%s5413 + $0xa4] sm:$0xff]
  %v5437 = vld [vmem:[%s5413 + $0xac] sm:$0xf]
  %v5462 = vunpack.c.l.b16 %v5414
  %v5463 = vunpack.c.h.b16 %v5414
  %v5464 = vunpack.c.l.b16 %v5415
  %v5465 = vunpack.c.h.b16 %v5415
  %v5466 = vunpack.c.l.b16 %v5416
  %v5467 = vunpack.c.h.b16 %v5416
  %v5468 = vunpack.c.l.b16 %v5417
  %v5469 = vunpack.c.h.b16 %v5417
  %v5470 = vunpack.c.l.b16 %v5418
  %v5471 = vunpack.c.h.b16 %v5418
  %v5472 = vunpack.c.l.b16 %v5419
  %v5473 = vunpack.c.l.b16 %v5420
  %v5474 = vunpack.c.h.b16 %v5420
  %v5475 = vunpack.c.l.b16 %v5421
  %v5476 = vunpack.c.h.b16 %v5421
  %v5477 = vunpack.c.l.b16 %v5422
  %v5478 = vunpack.c.h.b16 %v5422
  %v5479 = vunpack.c.l.b16 %v5423
  %v5480 = vunpack.c.h.b16 %v5423
  %v5481 = vunpack.c.l.b16 %v5424
  %v5482 = vunpack.c.h.b16 %v5424
  %v5483 = vunpack.c.l.b16 %v5425
  %v5484 = vunpack.c.l.b16 %v5426
  %v5485 = vunpack.c.h.b16 %v5426
  %v5486 = vunpack.c.l.b16 %v5427
  %v5487 = vunpack.c.h.b16 %v5427
  %v5488 = vunpack.c.l.b16 %v5428
  %v5489 = vunpack.c.h.b16 %v5428
  %v5490 = vunpack.c.l.b16 %v5429
  %v5491 = vunpack.c.h.b16 %v5429
  %v5492 = vunpack.c.l.b16 %v5430
  %v5493 = vunpack.c.h.b16 %v5430
  %v5494 = vunpack.c.l.b16 %v5431
  %v5495 = vunpack.c.l.b16 %v5432
  %v5496 = vunpack.c.h.b16 %v5432
  %v5497 = vunpack.c.l.b16 %v5433
  %v5498 = vunpack.c.h.b16 %v5433
  %v5499 = vunpack.c.l.b16 %v5434
  %v5500 = vunpack.c.h.b16 %v5434
  %v5501 = vunpack.c.l.b16 %v5435
  %v5502 = vunpack.c.h.b16 %v5435
  %v5503 = vunpack.c.l.b16 %v5436
  %v5504 = vunpack.c.h.b16 %v5436
  %v5505 = vunpack.c.l.b16 %v5437
  %v5506 = vpack.c.b16 %v5473, %v5462
  %v5507 = vpack.c.b16 %v5474, %v5463
  %v5508 = vpack.c.b16 %v5475, %v5464
  %v5509 = vpack.c.b16 %v5476, %v5465
  %v5510 = vpack.c.b16 %v5477, %v5466
  %v5511 = vpack.c.b16 %v5478, %v5467
  %v5512 = vpack.c.b16 %v5479, %v5468
  %v5513 = vpack.c.b16 %v5480, %v5469
  %v5514 = vpack.c.b16 %v5481, %v5470
  %v5515 = vpack.c.b16 %v5482, %v5471
  %v5516 = vpack.c.b16 %v5483, %v5472
  %v5517 = vpack.c.b16 %v5495, %v5484
  %v5518 = vpack.c.b16 %v5496, %v5485
  %v5519 = vpack.c.b16 %v5497, %v5486
  %v5520 = vpack.c.b16 %v5498, %v5487
  %v5521 = vpack.c.b16 %v5499, %v5488
  %v5522 = vpack.c.b16 %v5500, %v5489
  %v5523 = vpack.c.b16 %v5501, %v5490
  %v5524 = vpack.c.b16 %v5502, %v5491
  %v5525 = vpack.c.b16 %v5503, %v5492
  %v5526 = vpack.c.b16 %v5504, %v5493
  %v5527 = vpack.c.b16 %v5505, %v5494
  %5550 = vmatpush.bf16.msra.mxu0 0
  %5551 = vmatpush.bf16.msra.mxu0 0
  %5552 = vmatpush.bf16.msra.mxu0 0
  %5553 = vmatpush.bf16.msra.mxu0 0
  %5554 = vmatpush.bf16.msra.mxu0 0
  %5555 = vmatpush.bf16.msra.mxu0 0
  %5556 = vmatpush.bf16.msra.mxu0 %v5517
  %5557 = vmatpush.bf16.msra.mxu0 %v5506
  %5558 = vmatmul.bf16.gmra.mxu0 %v381
  %v5559 = vpop.f32.mrf.mxu0
  %v5560 = vadd.f32 0.0, %v5559
  %v5561 = vpop.f32.mrf.mxu0
  %v5562 = vadd.f32 0.0, %v5561
  %5563 = vmatmul.bf16.gmra.mxu0 %v384
  %v5564 = vpop.f32.mrf.mxu0
  %v5565 = vadd.f32 0.0, %v5564
  %v5566 = vpop.f32.mrf.mxu0
  %5567 = vdwg.mxu0
  %5568 = vmatpush.bf16.msra.mxu0 0
  %5569 = vmatpush.bf16.msra.mxu0 0
  %5570 = vmatpush.bf16.msra.mxu0 0
  %5571 = vmatpush.bf16.msra.mxu0 0
  %5572 = vmatpush.bf16.msra.mxu0 0
  %5573 = vmatpush.bf16.msra.mxu0 0
  %5574 = vmatpush.bf16.msra.mxu0 %v5518
  %5575 = vmatpush.bf16.msra.mxu0 %v5507
  %5576 = vmatmul.bf16.gmra.mxu0 %v381
  %v5577 = vpop.f32.mrf.mxu0
  %v5578 = vadd.f32 0.0, %v5577
  %v5579 = vpop.f32.mrf.mxu0
  %v5580 = vadd.f32 0.0, %v5579
  %5581 = vmatmul.bf16.gmra.mxu0 %v384
  %v5582 = vpop.f32.mrf.mxu0
  %v5583 = vadd.f32 0.0, %v5582
  %v5584 = vpop.f32.mrf.mxu0
  %5585 = vdwg.mxu0
  %5586 = vmatpush.bf16.msra.mxu0 0
  %5587 = vmatpush.bf16.msra.mxu0 0
  %5588 = vmatpush.bf16.msra.mxu0 0
  %5589 = vmatpush.bf16.msra.mxu0 0
  %5590 = vmatpush.bf16.msra.mxu0 0
  %5591 = vmatpush.bf16.msra.mxu0 0
  %5592 = vmatpush.bf16.msra.mxu0 %v5519
  %5593 = vmatpush.bf16.msra.mxu0 %v5508
  %5594 = vmatmul.bf16.gmra.mxu0 %v381
  %v5595 = vpop.f32.mrf.mxu0
  %v5596 = vadd.f32 0.0, %v5595
  %v5597 = vpop.f32.mrf.mxu0
  %v5598 = vadd.f32 0.0, %v5597
  %5599 = vmatmul.bf16.gmra.mxu0 %v384
  %v5600 = vpop.f32.mrf.mxu0
  %v5601 = vadd.f32 0.0, %v5600
  %v5602 = vpop.f32.mrf.mxu0
  %5603 = vdwg.mxu0
  %5604 = vmatpush.bf16.msra.mxu0 0
  %5605 = vmatpush.bf16.msra.mxu0 0
  %5606 = vmatpush.bf16.msra.mxu0 0
  %5607 = vmatpush.bf16.msra.mxu0 0
  %5608 = vmatpush.bf16.msra.mxu0 0
  %5609 = vmatpush.bf16.msra.mxu0 0
  %5610 = vmatpush.bf16.msra.mxu0 %v5520
  %5611 = vmatpush.bf16.msra.mxu0 %v5509
  %5612 = vmatmul.bf16.gmra.mxu0 %v381
  %v5613 = vpop.f32.mrf.mxu0
  %v5614 = vadd.f32 0.0, %v5613
  %v5615 = vpop.f32.mrf.mxu0
  %v5616 = vadd.f32 0.0, %v5615
  %5617 = vmatmul.bf16.gmra.mxu0 %v384
  %v5618 = vpop.f32.mrf.mxu0
  %v5619 = vadd.f32 0.0, %v5618
  %v5620 = vpop.f32.mrf.mxu0
  %5621 = vdwg.mxu0
  %5622 = vmatpush.bf16.msra.mxu0 0
  %5623 = vmatpush.bf16.msra.mxu0 0
  %5624 = vmatpush.bf16.msra.mxu0 0
  %5625 = vmatpush.bf16.msra.mxu0 0
  %5626 = vmatpush.bf16.msra.mxu0 0
  %5627 = vmatpush.bf16.msra.mxu0 0
  %5628 = vmatpush.bf16.msra.mxu0 %v5521
  %5629 = vmatpush.bf16.msra.mxu0 %v5510
  %5630 = vmatmul.bf16.gmra.mxu0 %v381
  %v5631 = vpop.f32.mrf.mxu0
  %v5632 = vadd.f32 0.0, %v5631
  %v5633 = vpop.f32.mrf.mxu0
  %v5634 = vadd.f32 0.0, %v5633
  %5635 = vmatmul.bf16.gmra.mxu0 %v384
  %v5636 = vpop.f32.mrf.mxu0
  %v5637 = vadd.f32 0.0, %v5636
  %v5638 = vpop.f32.mrf.mxu0
  %5639 = vdwg.mxu0
  %5640 = vmatpush.bf16.msra.mxu0 0
  %5641 = vmatpush.bf16.msra.mxu0 0
  %5642 = vmatpush.bf16.msra.mxu0 0
  %5643 = vmatpush.bf16.msra.mxu0 0
  %5644 = vmatpush.bf16.msra.mxu0 0
  %5645 = vmatpush.bf16.msra.mxu0 0
  %5646 = vmatpush.bf16.msra.mxu0 %v5522
  %5647 = vmatpush.bf16.msra.mxu0 %v5511
  %5648 = vmatmul.bf16.gmra.mxu0 %v381
  %v5649 = vpop.f32.mrf.mxu0
  %v5650 = vadd.f32 0.0, %v5649
  %v5651 = vpop.f32.mrf.mxu0
  %v5652 = vadd.f32 0.0, %v5651
  %5653 = vmatmul.bf16.gmra.mxu0 %v384
  %v5654 = vpop.f32.mrf.mxu0
  %v5655 = vadd.f32 0.0, %v5654
  %v5656 = vpop.f32.mrf.mxu0
  %5657 = vdwg.mxu0
  %5658 = vmatpush.bf16.msra.mxu0 0
  %5659 = vmatpush.bf16.msra.mxu0 0
  %5660 = vmatpush.bf16.msra.mxu0 0
  %5661 = vmatpush.bf16.msra.mxu0 0
  %5662 = vmatpush.bf16.msra.mxu0 0
  %5663 = vmatpush.bf16.msra.mxu0 0
  %5664 = vmatpush.bf16.msra.mxu0 %v5523
  %5665 = vmatpush.bf16.msra.mxu0 %v5512
  %5666 = vmatmul.bf16.gmra.mxu0 %v381
  %v5667 = vpop.f32.mrf.mxu0
  %v5668 = vadd.f32 0.0, %v5667
  %v5669 = vpop.f32.mrf.mxu0
  %v5670 = vadd.f32 0.0, %v5669
  %5671 = vmatmul.bf16.gmra.mxu0 %v384
  %v5672 = vpop.f32.mrf.mxu0
  %v5673 = vadd.f32 0.0, %v5672
  %v5674 = vpop.f32.mrf.mxu0
  %5675 = vdwg.mxu0
  %5676 = vmatpush.bf16.msra.mxu0 0
  %5677 = vmatpush.bf16.msra.mxu0 0
  %5678 = vmatpush.bf16.msra.mxu0 0
  %5679 = vmatpush.bf16.msra.mxu0 0
  %5680 = vmatpush.bf16.msra.mxu0 0
  %5681 = vmatpush.bf16.msra.mxu0 0
  %5682 = vmatpush.bf16.msra.mxu0 %v5524
  %5683 = vmatpush.bf16.msra.mxu0 %v5513
  %5684 = vmatmul.bf16.gmra.mxu0 %v381
  %v5685 = vpop.f32.mrf.mxu0
  %v5686 = vadd.f32 0.0, %v5685
  %v5687 = vpop.f32.mrf.mxu0
  %v5688 = vadd.f32 0.0, %v5687
  %5689 = vmatmul.bf16.gmra.mxu0 %v384
  %v5690 = vpop.f32.mrf.mxu0
  %v5691 = vadd.f32 0.0, %v5690
  %v5692 = vpop.f32.mrf.mxu0
  %5693 = vdwg.mxu0
  %5694 = vmatpush.bf16.msra.mxu0 0
  %5695 = vmatpush.bf16.msra.mxu0 0
  %5696 = vmatpush.bf16.msra.mxu0 0
  %5697 = vmatpush.bf16.msra.mxu0 0
  %5698 = vmatpush.bf16.msra.mxu0 0
  %5699 = vmatpush.bf16.msra.mxu0 0
  %5700 = vmatpush.bf16.msra.mxu0 %v5525
  %5701 = vmatpush.bf16.msra.mxu0 %v5514
  %5702 = vmatmul.bf16.gmra.mxu0 %v381
  %v5703 = vpop.f32.mrf.mxu0
  %v5704 = vadd.f32 0.0, %v5703
  %v5705 = vpop.f32.mrf.mxu0
  %v5706 = vadd.f32 0.0, %v5705
  %5707 = vmatmul.bf16.gmra.mxu0 %v384
  %v5708 = vpop.f32.mrf.mxu0
  %v5709 = vadd.f32 0.0, %v5708
  %v5710 = vpop.f32.mrf.mxu0
  %5711 = vdwg.mxu0
  %5712 = vmatpush.bf16.msra.mxu0 0
  %5713 = vmatpush.bf16.msra.mxu0 0
  %5714 = vmatpush.bf16.msra.mxu0 0
  %5715 = vmatpush.bf16.msra.mxu0 0
  %5716 = vmatpush.bf16.msra.mxu0 0
  %5717 = vmatpush.bf16.msra.mxu0 0
  %5718 = vmatpush.bf16.msra.mxu0 %v5526
  %5719 = vmatpush.bf16.msra.mxu0 %v5515
  %5720 = vmatmul.bf16.gmra.mxu0 %v381
  %v5721 = vpop.f32.mrf.mxu0
  %v5722 = vadd.f32 0.0, %v5721
  %v5723 = vpop.f32.mrf.mxu0
  %v5724 = vadd.f32 0.0, %v5723
  %5725 = vmatmul.bf16.gmra.mxu0 %v384
  %v5726 = vpop.f32.mrf.mxu0
  %v5727 = vadd.f32 0.0, %v5726
  %v5728 = vpop.f32.mrf.mxu0
  %5729 = vdwg.mxu0
  %5730 = vmatpush.bf16.msra.mxu0 0
  %5731 = vmatpush.bf16.msra.mxu0 0
  %5732 = vmatpush.bf16.msra.mxu0 0
  %5733 = vmatpush.bf16.msra.mxu0 0
  %5734 = vmatpush.bf16.msra.mxu0 0
  %5735 = vmatpush.bf16.msra.mxu0 0
  %5736 = vmatpush.bf16.msra.mxu0 %v5527
  %5737 = vmatpush.bf16.msra.mxu0 %v5516
  %5738 = vmatmul.bf16.gmra.mxu0 %v381
  %v5739 = vpop.f32.mrf.mxu0
  %v5740 = vadd.f32 0.0, %v5739
  %v5741 = vpop.f32.mrf.mxu0
  %v5742 = vadd.f32 0.0, %v5741
  %5743 = vmatmul.bf16.gmra.mxu0 %v384
  %v5744 = vpop.f32.mrf.mxu0
  %v5745 = vadd.f32 0.0, %v5744
  %v5746 = vpop.f32.mrf.mxu0
  %5747 = vdwg.mxu0
  %v5748 = vmax.f32 %v5560, 0.0
  %v5749 = vmax.f32 %v5578, 0.0
  %v5750 = vmax.f32 %v5596, 0.0
  %v5751 = vmax.f32 %v5614, 0.0
  %v5752 = vmax.f32 %v5632, 0.0
  %v5753 = vmax.f32 %v5650, 0.0
  %v5754 = vmax.f32 %v5668, 0.0
  %v5755 = vmax.f32 %v5686, 0.0
  %v5756 = vmax.f32 %v5704, 0.0
  %v5757 = vmax.f32 %v5722, 0.0
  %v5758 = vmax.f32 %v5740, 0.0
  %v5759 = vmax.f32 %v5562, 0.0
  %v5760 = vmax.f32 %v5580, 0.0
  %v5761 = vmax.f32 %v5598, 0.0
  %v5762 = vmax.f32 %v5616, 0.0
  %v5763 = vmax.f32 %v5634, 0.0
  %v5764 = vmax.f32 %v5652, 0.0
  %v5765 = vmax.f32 %v5670, 0.0
  %v5766 = vmax.f32 %v5688, 0.0
  %v5767 = vmax.f32 %v5706, 0.0
  %v5768 = vmax.f32 %v5724, 0.0
  %v5769 = vmax.f32 %v5742, 0.0
  %v5770 = vmax.f32 %v5565, 0.0
  %v5771 = vmax.f32 %v5583, 0.0
  %v5772 = vmax.f32 %v5601, 0.0
  %v5773 = vmax.f32 %v5619, 0.0
  %v5774 = vmax.f32 %v5637, 0.0
  %v5775 = vmax.f32 %v5655, 0.0
  %v5776 = vmax.f32 %v5673, 0.0
  %v5777 = vmax.f32 %v5691, 0.0
  %v5778 = vmax.f32 %v5709, 0.0
  %v5779 = vmax.f32 %v5727, 0.0
  %v5780 = vmax.f32 %v5745, 0.0
  %v5781 = vpack.c.bf16 %v5759, %v5748
  %v5782 = vpack.c.bf16 %v5760, %v5749
  %v5783 = vpack.c.bf16 %v5761, %v5750
  %v5784 = vpack.c.bf16 %v5762, %v5751
  %v5785 = vpack.c.bf16 %v5763, %v5752
  %v5786 = vpack.c.bf16 %v5764, %v5753
  %v5787 = vpack.c.bf16 %v5765, %v5754
  %v5788 = vpack.c.bf16 %v5766, %v5755
  %v5789 = vpack.c.bf16 %v5767, %v5756
  %v5790 = vpack.c.bf16 %v5768, %v5757
  %v5791 = vpack.c.bf16 %v5769, %v5758
  %v5792 = vpack.c.bf16 %v5770, %v5770
  %v5793 = vpack.c.bf16 %v5771, %v5771
  %v5794 = vpack.c.bf16 %v5772, %v5772
  %v5795 = vpack.c.bf16 %v5773, %v5773
  %v5796 = vpack.c.bf16 %v5774, %v5774
  %v5797 = vpack.c.bf16 %v5775, %v5775
  %v5798 = vpack.c.bf16 %v5776, %v5776
  %v5799 = vpack.c.bf16 %v5777, %v5777
  %v5800 = vpack.c.bf16 %v5778, %v5778
  %v5801 = vpack.c.bf16 %v5779, %v5779
  %v5802 = vpack.c.bf16 %v5780, %v5780
  %5803 = vmatpush.bf16.msra.mxu0 %v1181
  %5804 = vmatpush.bf16.msra.mxu0 %v1179
  %5805 = vmatpush.bf16.msra.mxu0 %v1177
  %5806 = vmatpush.bf16.msra.mxu0 %v1175
  %5807 = vmatpush.bf16.msra.mxu0 %v1173
  %5808 = vmatpush.bf16.msra.mxu0 %v1171
  %5809 = vmatpush.bf16.msra.mxu0 %v1169
  %5810 = vmatpush.bf16.msra.mxu0 %v1167
  %5811 = vmatmul.bf16.gmra.mxu0 %v5781
  %v5812 = vpop.f32.mrf.mxu0
  %v5813 = vadd.f32 0.0, %v5812
  %v5814 = vpop.f32.mrf.mxu0
  %v5815 = vadd.f32 0.0, %v5814
  %5816 = vmatmul.bf16.gmra.mxu0 %v5792
  %v5817 = vpop.f32.mrf.mxu0
  %v5818 = vadd.f32 0.0, %v5817
  %v5819 = vpop.f32.mrf.mxu0
  %5820 = vdwg.mxu0
  %5821 = vmatpush.bf16.msra.mxu0 %v1197
  %5822 = vmatpush.bf16.msra.mxu0 %v1195
  %5823 = vmatpush.bf16.msra.mxu0 %v1193
  %5824 = vmatpush.bf16.msra.mxu0 %v1191
  %5825 = vmatpush.bf16.msra.mxu0 %v1189
  %5826 = vmatpush.bf16.msra.mxu0 %v1187
  %5827 = vmatpush.bf16.msra.mxu0 %v1185
  %5828 = vmatpush.bf16.msra.mxu0 %v1183
  %5829 = vmatmul.bf16.gmra.mxu0 %v5782
  %v5830 = vpop.f32.mrf.mxu0
  %v5831 = vadd.f32 %v5813, %v5830
  %v5832 = vpop.f32.mrf.mxu0
  %v5833 = vadd.f32 %v5815, %v5832
  %5834 = vmatmul.bf16.gmra.mxu0 %v5793
  %v5835 = vpop.f32.mrf.mxu0
  %v5836 = vadd.f32 %v5818, %v5835
  %v5837 = vpop.f32.mrf.mxu0
  %5838 = vdwg.mxu0
  %5839 = vmatpush.bf16.msra.mxu0 %v1213
  %5840 = vmatpush.bf16.msra.mxu0 %v1211
  %5841 = vmatpush.bf16.msra.mxu0 %v1209
  %5842 = vmatpush.bf16.msra.mxu0 %v1207
  %5843 = vmatpush.bf16.msra.mxu0 %v1205
  %5844 = vmatpush.bf16.msra.mxu0 %v1203
  %5845 = vmatpush.bf16.msra.mxu0 %v1201
  %5846 = vmatpush.bf16.msra.mxu0 %v1199
  %5847 = vmatmul.bf16.gmra.mxu0 %v5783
  %v5848 = vpop.f32.mrf.mxu0
  %v5849 = vadd.f32 %v5831, %v5848
  %v5850 = vpop.f32.mrf.mxu0
  %v5851 = vadd.f32 %v5833, %v5850
  %5852 = vmatmul.bf16.gmra.mxu0 %v5794
  %v5853 = vpop.f32.mrf.mxu0
  %v5854 = vadd.f32 %v5836, %v5853
  %v5855 = vpop.f32.mrf.mxu0
  %5856 = vdwg.mxu0
  %5857 = vmatpush.bf16.msra.mxu0 %v1229
  %5858 = vmatpush.bf16.msra.mxu0 %v1227
  %5859 = vmatpush.bf16.msra.mxu0 %v1225
  %5860 = vmatpush.bf16.msra.mxu0 %v1223
  %5861 = vmatpush.bf16.msra.mxu0 %v1221
  %5862 = vmatpush.bf16.msra.mxu0 %v1219
  %5863 = vmatpush.bf16.msra.mxu0 %v1217
  %5864 = vmatpush.bf16.msra.mxu0 %v1215
  %5865 = vmatmul.bf16.gmra.mxu0 %v5784
  %v5866 = vpop.f32.mrf.mxu0
  %v5867 = vadd.f32 %v5849, %v5866
  %v5868 = vpop.f32.mrf.mxu0
  %v5869 = vadd.f32 %v5851, %v5868
  %5870 = vmatmul.bf16.gmra.mxu0 %v5795
  %v5871 = vpop.f32.mrf.mxu0
  %v5872 = vadd.f32 %v5854, %v5871
  %v5873 = vpop.f32.mrf.mxu0
  %5874 = vdwg.mxu0
  %5875 = vmatpush.bf16.msra.mxu0 %v1245
  %5876 = vmatpush.bf16.msra.mxu0 %v1243
  %5877 = vmatpush.bf16.msra.mxu0 %v1241
  %5878 = vmatpush.bf16.msra.mxu0 %v1239
  %5879 = vmatpush.bf16.msra.mxu0 %v1237
  %5880 = vmatpush.bf16.msra.mxu0 %v1235
  %5881 = vmatpush.bf16.msra.mxu0 %v1233
  %5882 = vmatpush.bf16.msra.mxu0 %v1231
  %5883 = vmatmul.bf16.gmra.mxu0 %v5785
  %v5884 = vpop.f32.mrf.mxu0
  %v5885 = vadd.f32 %v5867, %v5884
  %v5886 = vpop.f32.mrf.mxu0
  %v5887 = vadd.f32 %v5869, %v5886
  %5888 = vmatmul.bf16.gmra.mxu0 %v5796
  %v5889 = vpop.f32.mrf.mxu0
  %v5890 = vadd.f32 %v5872, %v5889
  %v5891 = vpop.f32.mrf.mxu0
  %5892 = vdwg.mxu0
  %5893 = vmatpush.bf16.msra.mxu0 %v1261
  %5894 = vmatpush.bf16.msra.mxu0 %v1259
  %5895 = vmatpush.bf16.msra.mxu0 %v1257
  %5896 = vmatpush.bf16.msra.mxu0 %v1255
  %5897 = vmatpush.bf16.msra.mxu0 %v1253
  %5898 = vmatpush.bf16.msra.mxu0 %v1251
  %5899 = vmatpush.bf16.msra.mxu0 %v1249
  %5900 = vmatpush.bf16.msra.mxu0 %v1247
  %5901 = vmatmul.bf16.gmra.mxu0 %v5786
  %v5902 = vpop.f32.mrf.mxu0
  %v5903 = vadd.f32 %v5885, %v5902
  %v5904 = vpop.f32.mrf.mxu0
  %v5905 = vadd.f32 %v5887, %v5904
  %5906 = vmatmul.bf16.gmra.mxu0 %v5797
  %v5907 = vpop.f32.mrf.mxu0
  %v5908 = vadd.f32 %v5890, %v5907
  %v5909 = vpop.f32.mrf.mxu0
  %5910 = vdwg.mxu0
  %5911 = vmatpush.bf16.msra.mxu0 %v1277
  %5912 = vmatpush.bf16.msra.mxu0 %v1275
  %5913 = vmatpush.bf16.msra.mxu0 %v1273
  %5914 = vmatpush.bf16.msra.mxu0 %v1271
  %5915 = vmatpush.bf16.msra.mxu0 %v1269
  %5916 = vmatpush.bf16.msra.mxu0 %v1267
  %5917 = vmatpush.bf16.msra.mxu0 %v1265
  %5918 = vmatpush.bf16.msra.mxu0 %v1263
  %5919 = vmatmul.bf16.gmra.mxu0 %v5787
  %v5920 = vpop.f32.mrf.mxu0
  %v5921 = vadd.f32 %v5903, %v5920
  %v5922 = vpop.f32.mrf.mxu0
  %v5923 = vadd.f32 %v5905, %v5922
  %5924 = vmatmul.bf16.gmra.mxu0 %v5798
  %v5925 = vpop.f32.mrf.mxu0
  %v5926 = vadd.f32 %v5908, %v5925
  %v5927 = vpop.f32.mrf.mxu0
  %5928 = vdwg.mxu0
  %5929 = vmatpush.bf16.msra.mxu0 %v1293
  %5930 = vmatpush.bf16.msra.mxu0 %v1291
  %5931 = vmatpush.bf16.msra.mxu0 %v1289
  %5932 = vmatpush.bf16.msra.mxu0 %v1287
  %5933 = vmatpush.bf16.msra.mxu0 %v1285
  %5934 = vmatpush.bf16.msra.mxu0 %v1283
  %5935 = vmatpush.bf16.msra.mxu0 %v1281
  %5936 = vmatpush.bf16.msra.mxu0 %v1279
  %5937 = vmatmul.bf16.gmra.mxu0 %v5788
  %v5938 = vpop.f32.mrf.mxu0
  %v5939 = vadd.f32 %v5921, %v5938
  %v5940 = vpop.f32.mrf.mxu0
  %v5941 = vadd.f32 %v5923, %v5940
  %5942 = vmatmul.bf16.gmra.mxu0 %v5799
  %v5943 = vpop.f32.mrf.mxu0
  %v5944 = vadd.f32 %v5926, %v5943
  %v5945 = vpop.f32.mrf.mxu0
  %5946 = vdwg.mxu0
  %5947 = vmatpush.bf16.msra.mxu0 %v1309
  %5948 = vmatpush.bf16.msra.mxu0 %v1307
  %5949 = vmatpush.bf16.msra.mxu0 %v1305
  %5950 = vmatpush.bf16.msra.mxu0 %v1303
  %5951 = vmatpush.bf16.msra.mxu0 %v1301
  %5952 = vmatpush.bf16.msra.mxu0 %v1299
  %5953 = vmatpush.bf16.msra.mxu0 %v1297
  %5954 = vmatpush.bf16.msra.mxu0 %v1295
  %5955 = vmatmul.bf16.gmra.mxu0 %v5789
  %v5956 = vpop.f32.mrf.mxu0
  %v5957 = vadd.f32 %v5939, %v5956
  %v5958 = vpop.f32.mrf.mxu0
  %v5959 = vadd.f32 %v5941, %v5958
  %5960 = vmatmul.bf16.gmra.mxu0 %v5800
  %v5961 = vpop.f32.mrf.mxu0
  %v5962 = vadd.f32 %v5944, %v5961
  %v5963 = vpop.f32.mrf.mxu0
  %5964 = vdwg.mxu0
  %5965 = vmatpush.bf16.msra.mxu0 %v1325
  %5966 = vmatpush.bf16.msra.mxu0 %v1323
  %5967 = vmatpush.bf16.msra.mxu0 %v1321
  %5968 = vmatpush.bf16.msra.mxu0 %v1319
  %5969 = vmatpush.bf16.msra.mxu0 %v1317
  %5970 = vmatpush.bf16.msra.mxu0 %v1315
  %5971 = vmatpush.bf16.msra.mxu0 %v1313
  %5972 = vmatpush.bf16.msra.mxu0 %v1311
  %5973 = vmatmul.bf16.gmra.mxu0 %v5790
  %v5974 = vpop.f32.mrf.mxu0
  %v5975 = vadd.f32 %v5957, %v5974
  %v5976 = vpop.f32.mrf.mxu0
  %v5977 = vadd.f32 %v5959, %v5976
  %5978 = vmatmul.bf16.gmra.mxu0 %v5801
  %v5979 = vpop.f32.mrf.mxu0
  %v5980 = vadd.f32 %v5962, %v5979
  %v5981 = vpop.f32.mrf.mxu0
  %5982 = vdwg.mxu0
  %5983 = vmatpush.bf16.msra.mxu0 %v1341
  %5984 = vmatpush.bf16.msra.mxu0 %v1339
  %5985 = vmatpush.bf16.msra.mxu0 %v1337
  %5986 = vmatpush.bf16.msra.mxu0 %v1335
  %5987 = vmatpush.bf16.msra.mxu0 %v1333
  %5988 = vmatpush.bf16.msra.mxu0 %v1331
  %5989 = vmatpush.bf16.msra.mxu0 %v1329
  %5990 = vmatpush.bf16.msra.mxu0 %v1327
  %5991 = vmatmul.bf16.gmra.mxu0 %v5791
  %v5992 = vpop.f32.mrf.mxu0
  %v5993 = vadd.f32 %v5975, %v5992
  %v5994 = vpop.f32.mrf.mxu0
  %v5995 = vadd.f32 %v5977, %v5994
  %5996 = vmatmul.bf16.gmra.mxu0 %v5802
  %v5997 = vpop.f32.mrf.mxu0
  %v5998 = vadd.f32 %v5980, %v5997
  %v5999 = vpop.f32.mrf.mxu0
  %6000 = vdwg.mxu0
  %6001 = vmatpush.bf16.msra.mxu0 %v1182
  %6002 = vmatpush.bf16.msra.mxu0 %v1180
  %6003 = vmatpush.bf16.msra.mxu0 %v1178
  %6004 = vmatpush.bf16.msra.mxu0 %v1176
  %6005 = vmatpush.bf16.msra.mxu0 %v1174
  %6006 = vmatpush.bf16.msra.mxu0 %v1172
  %6007 = vmatpush.bf16.msra.mxu0 %v1170
  %6008 = vmatpush.bf16.msra.mxu0 %v1168
  %6009 = vmatmul.bf16.gmra.mxu0 %v5781
  %v6010 = vpop.f32.mrf.mxu0
  %v6011 = vadd.f32 0.0, %v6010
  %v6012 = vpop.f32.mrf.mxu0
  %v6013 = vadd.f32 0.0, %v6012
  %6014 = vmatmul.bf16.gmra.mxu0 %v5792
  %v6015 = vpop.f32.mrf.mxu0
  %v6016 = vadd.f32 0.0, %v6015
  %v6017 = vpop.f32.mrf.mxu0
  %6018 = vdwg.mxu0
  %6019 = vmatpush.bf16.msra.mxu0 %v1198
  %6020 = vmatpush.bf16.msra.mxu0 %v1196
  %6021 = vmatpush.bf16.msra.mxu0 %v1194
  %6022 = vmatpush.bf16.msra.mxu0 %v1192
  %6023 = vmatpush.bf16.msra.mxu0 %v1190
  %6024 = vmatpush.bf16.msra.mxu0 %v1188
  %6025 = vmatpush.bf16.msra.mxu0 %v1186
  %6026 = vmatpush.bf16.msra.mxu0 %v1184
  %6027 = vmatmul.bf16.gmra.mxu0 %v5782
  %v6028 = vpop.f32.mrf.mxu0
  %v6029 = vadd.f32 %v6011, %v6028
  %v6030 = vpop.f32.mrf.mxu0
  %v6031 = vadd.f32 %v6013, %v6030
  %6032 = vmatmul.bf16.gmra.mxu0 %v5793
  %v6033 = vpop.f32.mrf.mxu0
  %v6034 = vadd.f32 %v6016, %v6033
  %v6035 = vpop.f32.mrf.mxu0
  %6036 = vdwg.mxu0
  %6037 = vmatpush.bf16.msra.mxu0 %v1214
  %6038 = vmatpush.bf16.msra.mxu0 %v1212
  %6039 = vmatpush.bf16.msra.mxu0 %v1210
  %6040 = vmatpush.bf16.msra.mxu0 %v1208
  %6041 = vmatpush.bf16.msra.mxu0 %v1206
  %6042 = vmatpush.bf16.msra.mxu0 %v1204
  %6043 = vmatpush.bf16.msra.mxu0 %v1202
  %6044 = vmatpush.bf16.msra.mxu0 %v1200
  %6045 = vmatmul.bf16.gmra.mxu0 %v5783
  %v6046 = vpop.f32.mrf.mxu0
  %v6047 = vadd.f32 %v6029, %v6046
  %v6048 = vpop.f32.mrf.mxu0
  %v6049 = vadd.f32 %v6031, %v6048
  %6050 = vmatmul.bf16.gmra.mxu0 %v5794
  %v6051 = vpop.f32.mrf.mxu0
  %v6052 = vadd.f32 %v6034, %v6051
  %v6053 = vpop.f32.mrf.mxu0
  %6054 = vdwg.mxu0
  %6055 = vmatpush.bf16.msra.mxu0 %v1230
  %6056 = vmatpush.bf16.msra.mxu0 %v1228
  %6057 = vmatpush.bf16.msra.mxu0 %v1226
  %6058 = vmatpush.bf16.msra.mxu0 %v1224
  %6059 = vmatpush.bf16.msra.mxu0 %v1222
  %6060 = vmatpush.bf16.msra.mxu0 %v1220
  %6061 = vmatpush.bf16.msra.mxu0 %v1218
  %6062 = vmatpush.bf16.msra.mxu0 %v1216
  %6063 = vmatmul.bf16.gmra.mxu0 %v5784
  %v6064 = vpop.f32.mrf.mxu0
  %v6065 = vadd.f32 %v6047, %v6064
  %v6066 = vpop.f32.mrf.mxu0
  %v6067 = vadd.f32 %v6049, %v6066
  %6068 = vmatmul.bf16.gmra.mxu0 %v5795
  %v6069 = vpop.f32.mrf.mxu0
  %v6070 = vadd.f32 %v6052, %v6069
  %v6071 = vpop.f32.mrf.mxu0
  %6072 = vdwg.mxu0
  %6073 = vmatpush.bf16.msra.mxu0 %v1246
  %6074 = vmatpush.bf16.msra.mxu0 %v1244
  %6075 = vmatpush.bf16.msra.mxu0 %v1242
  %6076 = vmatpush.bf16.msra.mxu0 %v1240
  %6077 = vmatpush.bf16.msra.mxu0 %v1238
  %6078 = vmatpush.bf16.msra.mxu0 %v1236
  %6079 = vmatpush.bf16.msra.mxu0 %v1234
  %6080 = vmatpush.bf16.msra.mxu0 %v1232
  %6081 = vmatmul.bf16.gmra.mxu0 %v5785
  %v6082 = vpop.f32.mrf.mxu0
  %v6083 = vadd.f32 %v6065, %v6082
  %v6084 = vpop.f32.mrf.mxu0
  %v6085 = vadd.f32 %v6067, %v6084
  %6086 = vmatmul.bf16.gmra.mxu0 %v5796
  %v6087 = vpop.f32.mrf.mxu0
  %v6088 = vadd.f32 %v6070, %v6087
  %v6089 = vpop.f32.mrf.mxu0
  %6090 = vdwg.mxu0
  %6091 = vmatpush.bf16.msra.mxu0 %v1262
  %6092 = vmatpush.bf16.msra.mxu0 %v1260
  %6093 = vmatpush.bf16.msra.mxu0 %v1258
  %6094 = vmatpush.bf16.msra.mxu0 %v1256
  %6095 = vmatpush.bf16.msra.mxu0 %v1254
  %6096 = vmatpush.bf16.msra.mxu0 %v1252
  %6097 = vmatpush.bf16.msra.mxu0 %v1250
  %6098 = vmatpush.bf16.msra.mxu0 %v1248
  %6099 = vmatmul.bf16.gmra.mxu0 %v5786
  %v6100 = vpop.f32.mrf.mxu0
  %v6101 = vadd.f32 %v6083, %v6100
  %v6102 = vpop.f32.mrf.mxu0
  %v6103 = vadd.f32 %v6085, %v6102
  %6104 = vmatmul.bf16.gmra.mxu0 %v5797
  %v6105 = vpop.f32.mrf.mxu0
  %v6106 = vadd.f32 %v6088, %v6105
  %v6107 = vpop.f32.mrf.mxu0
  %6108 = vdwg.mxu0
  %6109 = vmatpush.bf16.msra.mxu0 %v1278
  %6110 = vmatpush.bf16.msra.mxu0 %v1276
  %6111 = vmatpush.bf16.msra.mxu0 %v1274
  %6112 = vmatpush.bf16.msra.mxu0 %v1272
  %6113 = vmatpush.bf16.msra.mxu0 %v1270
  %6114 = vmatpush.bf16.msra.mxu0 %v1268
  %6115 = vmatpush.bf16.msra.mxu0 %v1266
  %6116 = vmatpush.bf16.msra.mxu0 %v1264
  %6117 = vmatmul.bf16.gmra.mxu0 %v5787
  %v6118 = vpop.f32.mrf.mxu0
  %v6119 = vadd.f32 %v6101, %v6118
  %v6120 = vpop.f32.mrf.mxu0
  %v6121 = vadd.f32 %v6103, %v6120
  %6122 = vmatmul.bf16.gmra.mxu0 %v5798
  %v6123 = vpop.f32.mrf.mxu0
  %v6124 = vadd.f32 %v6106, %v6123
  %v6125 = vpop.f32.mrf.mxu0
  %6126 = vdwg.mxu0
  %6127 = vmatpush.bf16.msra.mxu0 %v1294
  %6128 = vmatpush.bf16.msra.mxu0 %v1292
  %6129 = vmatpush.bf16.msra.mxu0 %v1290
  %6130 = vmatpush.bf16.msra.mxu0 %v1288
  %6131 = vmatpush.bf16.msra.mxu0 %v1286
  %6132 = vmatpush.bf16.msra.mxu0 %v1284
  %6133 = vmatpush.bf16.msra.mxu0 %v1282
  %6134 = vmatpush.bf16.msra.mxu0 %v1280
  %6135 = vmatmul.bf16.gmra.mxu0 %v5788
  %v6136 = vpop.f32.mrf.mxu0
  %v6137 = vadd.f32 %v6119, %v6136
  %v6138 = vpop.f32.mrf.mxu0
  %v6139 = vadd.f32 %v6121, %v6138
  %6140 = vmatmul.bf16.gmra.mxu0 %v5799
  %v6141 = vpop.f32.mrf.mxu0
  %v6142 = vadd.f32 %v6124, %v6141
  %v6143 = vpop.f32.mrf.mxu0
  %6144 = vdwg.mxu0
  %6145 = vmatpush.bf16.msra.mxu0 %v1310
  %6146 = vmatpush.bf16.msra.mxu0 %v1308
  %6147 = vmatpush.bf16.msra.mxu0 %v1306
  %6148 = vmatpush.bf16.msra.mxu0 %v1304
  %6149 = vmatpush.bf16.msra.mxu0 %v1302
  %6150 = vmatpush.bf16.msra.mxu0 %v1300
  %6151 = vmatpush.bf16.msra.mxu0 %v1298
  %6152 = vmatpush.bf16.msra.mxu0 %v1296
  %6153 = vmatmul.bf16.gmra.mxu0 %v5789
  %v6154 = vpop.f32.mrf.mxu0
  %v6155 = vadd.f32 %v6137, %v6154
  %v6156 = vpop.f32.mrf.mxu0
  %v6157 = vadd.f32 %v6139, %v6156
  %6158 = vmatmul.bf16.gmra.mxu0 %v5800
  %v6159 = vpop.f32.mrf.mxu0
  %v6160 = vadd.f32 %v6142, %v6159
  %v6161 = vpop.f32.mrf.mxu0
  %6162 = vdwg.mxu0
  %6163 = vmatpush.bf16.msra.mxu0 %v1326
  %6164 = vmatpush.bf16.msra.mxu0 %v1324
  %6165 = vmatpush.bf16.msra.mxu0 %v1322
  %6166 = vmatpush.bf16.msra.mxu0 %v1320
  %6167 = vmatpush.bf16.msra.mxu0 %v1318
  %6168 = vmatpush.bf16.msra.mxu0 %v1316
  %6169 = vmatpush.bf16.msra.mxu0 %v1314
  %6170 = vmatpush.bf16.msra.mxu0 %v1312
  %6171 = vmatmul.bf16.gmra.mxu0 %v5790
  %v6172 = vpop.f32.mrf.mxu0
  %v6173 = vadd.f32 %v6155, %v6172
  %v6174 = vpop.f32.mrf.mxu0
  %v6175 = vadd.f32 %v6157, %v6174
  %6176 = vmatmul.bf16.gmra.mxu0 %v5801
  %v6177 = vpop.f32.mrf.mxu0
  %v6178 = vadd.f32 %v6160, %v6177
  %v6179 = vpop.f32.mrf.mxu0
  %6180 = vdwg.mxu0
  %6181 = vmatpush.bf16.msra.mxu0 %v1342
  %6182 = vmatpush.bf16.msra.mxu0 %v1340
  %6183 = vmatpush.bf16.msra.mxu0 %v1338
  %6184 = vmatpush.bf16.msra.mxu0 %v1336
  %6185 = vmatpush.bf16.msra.mxu0 %v1334
  %6186 = vmatpush.bf16.msra.mxu0 %v1332
  %6187 = vmatpush.bf16.msra.mxu0 %v1330
  %6188 = vmatpush.bf16.msra.mxu0 %v1328
  %6189 = vmatmul.bf16.gmra.mxu0 %v5791
  %v6190 = vpop.f32.mrf.mxu0
  %v6191 = vadd.f32 %v6173, %v6190
  %v6192 = vpop.f32.mrf.mxu0
  %v6193 = vadd.f32 %v6175, %v6192
  %6194 = vmatmul.bf16.gmra.mxu0 %v5802
  %v6195 = vpop.f32.mrf.mxu0
  %v6196 = vadd.f32 %v6178, %v6195
  %v6197 = vpop.f32.mrf.mxu0
  %6198 = vdwg.mxu0
  %v6199 = vmul.f32 %v5993, %v203
  %v6200 = vmul.f32 %v6191, %v204
  %v6201 = vmul.f32 %v5995, %v205
  %v6202 = vmul.f32 %v6193, %v206
  %v6203 = vmul.f32 %v5998, %v207
  %v6204 = vmul.f32 %v6196, %v208
  %v6205 = vadd.f32 %v6199, %v6201
  %v6206 = vsel %vm1922, %v6203, 0.0
  %v6207 = vadd.f32 %v6205, %v6206
  %v6208 = vrot.slane %v6207, 4
  %v6209 = vadd.f32 %v6207, %v6208
  %v6210 = vrot.slane %v6209, 2
  %v6211 = vadd.f32 %v6209, %v6210
  %v6212 = vrot.slane %v6211, 1
  %v6213 = vadd.f32 %v6211, %v6212
  %v6214 = vsel %vm1931, %v6200, 0.0
  %v6215 = vsel %vm1931, %v6202, 0.0
  %v6216 = vadd.f32 %v6214, %v6215
  %v6217 = vsel %vm1935, %v6204, 0.0
  %v6218 = vadd.f32 %v6216, %v6217
  %v6219 = vrot.slane %v6218, 4
  %v6220 = vadd.f32 %v6218, %v6219
  %v6221 = vrot.slane %v6220, 2
  %v6222 = vadd.f32 %v6220, %v6221
  %v6223 = vrot.slane %v6222, 1
  %v6224 = vadd.f32 %v6222, %v6223
  %v6226 = vsel %vm1931, %v6224, 0
  %6228 = vmatpush.msra.mxu0 %v224
  %6229 = vmatpush.msra.mxu0 %v223
  %6230 = vmatpush.msra.mxu0 %v222
  %6231 = vmatpush.msra.mxu0 %v221
  %6232 = vmatpush.msra.mxu0 %v220
  %6233 = vmatpush.msra.mxu0 %v219
  %6234 = vmatpush.msra.mxu0 %v218
  %6235 = vmatpush.msra.mxu0 %v217
  %6236 = vmatpush.msra.mxu0 %v216
  %6237 = vmatpush.msra.mxu0 %v215
  %6238 = vmatpush.msra.mxu0 %v214
  %6239 = vmatpush.msra.mxu0 %v213
  %6240 = vmatpush.msra.mxu0 %v212
  %6241 = vmatpush.msra.mxu0 %v211
  %6242 = vmatpush.msra.mxu0 %v210
  %6243 = vmatpush.msra.mxu0 %v209
  %6244 = vmatmul.f32.gmra.mxu0 %v6213
  %v6245 = vpop.f32.mrf.mxu0
  %v6246 = vadd.f32 %v234, %v6245
  %6247 = vdwg.mxu0
  %6248 = vmatpush.msra.mxu0 0.0
  %6249 = vmatpush.msra.mxu0 0.0
  %6250 = vmatpush.msra.mxu0 0.0
  %6251 = vmatpush.msra.mxu0 0.0
  %6252 = vmatpush.msra.mxu0 0.0
  %6253 = vmatpush.msra.mxu0 0.0
  %6254 = vmatpush.msra.mxu0 0.0
  %6255 = vmatpush.msra.mxu0 %v233
  %6256 = vmatpush.msra.mxu0 %v232
  %6257 = vmatpush.msra.mxu0 %v231
  %6258 = vmatpush.msra.mxu0 %v230
  %6259 = vmatpush.msra.mxu0 %v229
  %6260 = vmatpush.msra.mxu0 %v228
  %6261 = vmatpush.msra.mxu0 %v227
  %6262 = vmatpush.msra.mxu0 %v226
  %6263 = vmatpush.msra.mxu0 %v225
  %6264 = vmatmul.f32.gmra.mxu0 %v6226
  %v6265 = vpop.f32.mrf.mxu0
  %v6266 = vadd.f32 %v6246, %v6265
  %6267 = vdwg.mxu0
  %6268 = vst.msk [vmem:[%s6 + $0x5] sm:$0x1] %vm1987, %v6266
  %s6269 = scalar_lea.vmem %s0, 1056
  %v6270 = vld [vmem:[%s6269] sm:$0xff]
  %v6271 = vld [vmem:[%s6269 + $0x8] sm:$0xff]
  %v6272 = vld [vmem:[%s6269 + $0x10] sm:$0xff]
  %v6273 = vld [vmem:[%s6269 + $0x18] sm:$0xff]
  %v6274 = vld [vmem:[%s6269 + $0x20] sm:$0xff]
  %v6275 = vld [vmem:[%s6269 + $0x28] sm:$0xf]
  %v6276 = vld [vmem:[%s6269 + $0x2c] sm:$0xff]
  %v6277 = vld [vmem:[%s6269 + $0x34] sm:$0xff]
  %v6278 = vld [vmem:[%s6269 + $0x3c] sm:$0xff]
  %v6279 = vld [vmem:[%s6269 + $0x44] sm:$0xff]
  %v6280 = vld [vmem:[%s6269 + $0x4c] sm:$0xff]
  %v6281 = vld [vmem:[%s6269 + $0x54] sm:$0xf]
  %v6282 = vld [vmem:[%s6269 + $0x58] sm:$0xff]
  %v6283 = vld [vmem:[%s6269 + $0x60] sm:$0xff]
  %v6284 = vld [vmem:[%s6269 + $0x68] sm:$0xff]
  %v6285 = vld [vmem:[%s6269 + $0x70] sm:$0xff]
  %v6286 = vld [vmem:[%s6269 + $0x78] sm:$0xff]
  %v6287 = vld [vmem:[%s6269 + $0x80] sm:$0xf]
  %v6288 = vld [vmem:[%s6269 + $0x84] sm:$0xff]
  %v6289 = vld [vmem:[%s6269 + $0x8c] sm:$0xff]
  %v6290 = vld [vmem:[%s6269 + $0x94] sm:$0xff]
  %v6291 = vld [vmem:[%s6269 + $0x9c] sm:$0xff]
  %v6292 = vld [vmem:[%s6269 + $0xa4] sm:$0xff]
  %v6293 = vld [vmem:[%s6269 + $0xac] sm:$0xf]
  %v6318 = vunpack.c.l.b16 %v6270
  %v6319 = vunpack.c.h.b16 %v6270
  %v6320 = vunpack.c.l.b16 %v6271
  %v6321 = vunpack.c.h.b16 %v6271
  %v6322 = vunpack.c.l.b16 %v6272
  %v6323 = vunpack.c.h.b16 %v6272
  %v6324 = vunpack.c.l.b16 %v6273
  %v6325 = vunpack.c.h.b16 %v6273
  %v6326 = vunpack.c.l.b16 %v6274
  %v6327 = vunpack.c.h.b16 %v6274
  %v6328 = vunpack.c.l.b16 %v6275
  %v6329 = vunpack.c.l.b16 %v6276
  %v6330 = vunpack.c.h.b16 %v6276
  %v6331 = vunpack.c.l.b16 %v6277
  %v6332 = vunpack.c.h.b16 %v6277
  %v6333 = vunpack.c.l.b16 %v6278
  %v6334 = vunpack.c.h.b16 %v6278
  %v6335 = vunpack.c.l.b16 %v6279
  %v6336 = vunpack.c.h.b16 %v6279
  %v6337 = vunpack.c.l.b16 %v6280
  %v6338 = vunpack.c.h.b16 %v6280
  %v6339 = vunpack.c.l.b16 %v6281
  %v6340 = vunpack.c.l.b16 %v6282
  %v6341 = vunpack.c.h.b16 %v6282
  %v6342 = vunpack.c.l.b16 %v6283
  %v6343 = vunpack.c.h.b16 %v6283
  %v6344 = vunpack.c.l.b16 %v6284
  %v6345 = vunpack.c.h.b16 %v6284
  %v6346 = vunpack.c.l.b16 %v6285
  %v6347 = vunpack.c.h.b16 %v6285
  %v6348 = vunpack.c.l.b16 %v6286
  %v6349 = vunpack.c.h.b16 %v6286
  %v6350 = vunpack.c.l.b16 %v6287
  %v6351 = vunpack.c.l.b16 %v6288
  %v6352 = vunpack.c.h.b16 %v6288
  %v6353 = vunpack.c.l.b16 %v6289
  %v6354 = vunpack.c.h.b16 %v6289
  %v6355 = vunpack.c.l.b16 %v6290
  %v6356 = vunpack.c.h.b16 %v6290
  %v6357 = vunpack.c.l.b16 %v6291
  %v6358 = vunpack.c.h.b16 %v6291
  %v6359 = vunpack.c.l.b16 %v6292
  %v6360 = vunpack.c.h.b16 %v6292
  %v6361 = vunpack.c.l.b16 %v6293
  %v6362 = vpack.c.b16 %v6329, %v6318
  %v6363 = vpack.c.b16 %v6330, %v6319
  %v6364 = vpack.c.b16 %v6331, %v6320
  %v6365 = vpack.c.b16 %v6332, %v6321
  %v6366 = vpack.c.b16 %v6333, %v6322
  %v6367 = vpack.c.b16 %v6334, %v6323
  %v6368 = vpack.c.b16 %v6335, %v6324
  %v6369 = vpack.c.b16 %v6336, %v6325
  %v6370 = vpack.c.b16 %v6337, %v6326
  %v6371 = vpack.c.b16 %v6338, %v6327
  %v6372 = vpack.c.b16 %v6339, %v6328
  %v6373 = vpack.c.b16 %v6351, %v6340
  %v6374 = vpack.c.b16 %v6352, %v6341
  %v6375 = vpack.c.b16 %v6353, %v6342
  %v6376 = vpack.c.b16 %v6354, %v6343
  %v6377 = vpack.c.b16 %v6355, %v6344
  %v6378 = vpack.c.b16 %v6356, %v6345
  %v6379 = vpack.c.b16 %v6357, %v6346
  %v6380 = vpack.c.b16 %v6358, %v6347
  %v6381 = vpack.c.b16 %v6359, %v6348
  %v6382 = vpack.c.b16 %v6360, %v6349
  %v6383 = vpack.c.b16 %v6361, %v6350
  %6406 = vmatpush.bf16.msra.mxu0 0
  %6407 = vmatpush.bf16.msra.mxu0 0
  %6408 = vmatpush.bf16.msra.mxu0 0
  %6409 = vmatpush.bf16.msra.mxu0 0
  %6410 = vmatpush.bf16.msra.mxu0 0
  %6411 = vmatpush.bf16.msra.mxu0 0
  %6412 = vmatpush.bf16.msra.mxu0 %v6373
  %6413 = vmatpush.bf16.msra.mxu0 %v6362
  %6414 = vmatmul.bf16.gmra.mxu0 %v381
  %v6415 = vpop.f32.mrf.mxu0
  %v6416 = vadd.f32 0.0, %v6415
  %v6417 = vpop.f32.mrf.mxu0
  %v6418 = vadd.f32 0.0, %v6417
  %6419 = vmatmul.bf16.gmra.mxu0 %v384
  %v6420 = vpop.f32.mrf.mxu0
  %v6421 = vadd.f32 0.0, %v6420
  %v6422 = vpop.f32.mrf.mxu0
  %6423 = vdwg.mxu0
  %6424 = vmatpush.bf16.msra.mxu0 0
  %6425 = vmatpush.bf16.msra.mxu0 0
  %6426 = vmatpush.bf16.msra.mxu0 0
  %6427 = vmatpush.bf16.msra.mxu0 0
  %6428 = vmatpush.bf16.msra.mxu0 0
  %6429 = vmatpush.bf16.msra.mxu0 0
  %6430 = vmatpush.bf16.msra.mxu0 %v6374
  %6431 = vmatpush.bf16.msra.mxu0 %v6363
  %6432 = vmatmul.bf16.gmra.mxu0 %v381
  %v6433 = vpop.f32.mrf.mxu0
  %v6434 = vadd.f32 0.0, %v6433
  %v6435 = vpop.f32.mrf.mxu0
  %v6436 = vadd.f32 0.0, %v6435
  %6437 = vmatmul.bf16.gmra.mxu0 %v384
  %v6438 = vpop.f32.mrf.mxu0
  %v6439 = vadd.f32 0.0, %v6438
  %v6440 = vpop.f32.mrf.mxu0
  %6441 = vdwg.mxu0
  %6442 = vmatpush.bf16.msra.mxu0 0
  %6443 = vmatpush.bf16.msra.mxu0 0
  %6444 = vmatpush.bf16.msra.mxu0 0
  %6445 = vmatpush.bf16.msra.mxu0 0
  %6446 = vmatpush.bf16.msra.mxu0 0
  %6447 = vmatpush.bf16.msra.mxu0 0
  %6448 = vmatpush.bf16.msra.mxu0 %v6375
  %6449 = vmatpush.bf16.msra.mxu0 %v6364
  %6450 = vmatmul.bf16.gmra.mxu0 %v381
  %v6451 = vpop.f32.mrf.mxu0
  %v6452 = vadd.f32 0.0, %v6451
  %v6453 = vpop.f32.mrf.mxu0
  %v6454 = vadd.f32 0.0, %v6453
  %6455 = vmatmul.bf16.gmra.mxu0 %v384
  %v6456 = vpop.f32.mrf.mxu0
  %v6457 = vadd.f32 0.0, %v6456
  %v6458 = vpop.f32.mrf.mxu0
  %6459 = vdwg.mxu0
  %6460 = vmatpush.bf16.msra.mxu0 0
  %6461 = vmatpush.bf16.msra.mxu0 0
  %6462 = vmatpush.bf16.msra.mxu0 0
  %6463 = vmatpush.bf16.msra.mxu0 0
  %6464 = vmatpush.bf16.msra.mxu0 0
  %6465 = vmatpush.bf16.msra.mxu0 0
  %6466 = vmatpush.bf16.msra.mxu0 %v6376
  %6467 = vmatpush.bf16.msra.mxu0 %v6365
  %6468 = vmatmul.bf16.gmra.mxu0 %v381
  %v6469 = vpop.f32.mrf.mxu0
  %v6470 = vadd.f32 0.0, %v6469
  %v6471 = vpop.f32.mrf.mxu0
  %v6472 = vadd.f32 0.0, %v6471
  %6473 = vmatmul.bf16.gmra.mxu0 %v384
  %v6474 = vpop.f32.mrf.mxu0
  %v6475 = vadd.f32 0.0, %v6474
  %v6476 = vpop.f32.mrf.mxu0
  %6477 = vdwg.mxu0
  %6478 = vmatpush.bf16.msra.mxu0 0
  %6479 = vmatpush.bf16.msra.mxu0 0
  %6480 = vmatpush.bf16.msra.mxu0 0
  %6481 = vmatpush.bf16.msra.mxu0 0
  %6482 = vmatpush.bf16.msra.mxu0 0
  %6483 = vmatpush.bf16.msra.mxu0 0
  %6484 = vmatpush.bf16.msra.mxu0 %v6377
  %6485 = vmatpush.bf16.msra.mxu0 %v6366
  %6486 = vmatmul.bf16.gmra.mxu0 %v381
  %v6487 = vpop.f32.mrf.mxu0
  %v6488 = vadd.f32 0.0, %v6487
  %v6489 = vpop.f32.mrf.mxu0
  %v6490 = vadd.f32 0.0, %v6489
  %6491 = vmatmul.bf16.gmra.mxu0 %v384
  %v6492 = vpop.f32.mrf.mxu0
  %v6493 = vadd.f32 0.0, %v6492
  %v6494 = vpop.f32.mrf.mxu0
  %6495 = vdwg.mxu0
  %6496 = vmatpush.bf16.msra.mxu0 0
  %6497 = vmatpush.bf16.msra.mxu0 0
  %6498 = vmatpush.bf16.msra.mxu0 0
  %6499 = vmatpush.bf16.msra.mxu0 0
  %6500 = vmatpush.bf16.msra.mxu0 0
  %6501 = vmatpush.bf16.msra.mxu0 0
  %6502 = vmatpush.bf16.msra.mxu0 %v6378
  %6503 = vmatpush.bf16.msra.mxu0 %v6367
  %6504 = vmatmul.bf16.gmra.mxu0 %v381
  %v6505 = vpop.f32.mrf.mxu0
  %v6506 = vadd.f32 0.0, %v6505
  %v6507 = vpop.f32.mrf.mxu0
  %v6508 = vadd.f32 0.0, %v6507
  %6509 = vmatmul.bf16.gmra.mxu0 %v384
  %v6510 = vpop.f32.mrf.mxu0
  %v6511 = vadd.f32 0.0, %v6510
  %v6512 = vpop.f32.mrf.mxu0
  %6513 = vdwg.mxu0
  %6514 = vmatpush.bf16.msra.mxu0 0
  %6515 = vmatpush.bf16.msra.mxu0 0
  %6516 = vmatpush.bf16.msra.mxu0 0
  %6517 = vmatpush.bf16.msra.mxu0 0
  %6518 = vmatpush.bf16.msra.mxu0 0
  %6519 = vmatpush.bf16.msra.mxu0 0
  %6520 = vmatpush.bf16.msra.mxu0 %v6379
  %6521 = vmatpush.bf16.msra.mxu0 %v6368
  %6522 = vmatmul.bf16.gmra.mxu0 %v381
  %v6523 = vpop.f32.mrf.mxu0
  %v6524 = vadd.f32 0.0, %v6523
  %v6525 = vpop.f32.mrf.mxu0
  %v6526 = vadd.f32 0.0, %v6525
  %6527 = vmatmul.bf16.gmra.mxu0 %v384
  %v6528 = vpop.f32.mrf.mxu0
  %v6529 = vadd.f32 0.0, %v6528
  %v6530 = vpop.f32.mrf.mxu0
  %6531 = vdwg.mxu0
  %6532 = vmatpush.bf16.msra.mxu0 0
  %6533 = vmatpush.bf16.msra.mxu0 0
  %6534 = vmatpush.bf16.msra.mxu0 0
  %6535 = vmatpush.bf16.msra.mxu0 0
  %6536 = vmatpush.bf16.msra.mxu0 0
  %6537 = vmatpush.bf16.msra.mxu0 0
  %6538 = vmatpush.bf16.msra.mxu0 %v6380
  %6539 = vmatpush.bf16.msra.mxu0 %v6369
  %6540 = vmatmul.bf16.gmra.mxu0 %v381
  %v6541 = vpop.f32.mrf.mxu0
  %v6542 = vadd.f32 0.0, %v6541
  %v6543 = vpop.f32.mrf.mxu0
  %v6544 = vadd.f32 0.0, %v6543
  %6545 = vmatmul.bf16.gmra.mxu0 %v384
  %v6546 = vpop.f32.mrf.mxu0
  %v6547 = vadd.f32 0.0, %v6546
  %v6548 = vpop.f32.mrf.mxu0
  %6549 = vdwg.mxu0
  %6550 = vmatpush.bf16.msra.mxu0 0
  %6551 = vmatpush.bf16.msra.mxu0 0
  %6552 = vmatpush.bf16.msra.mxu0 0
  %6553 = vmatpush.bf16.msra.mxu0 0
  %6554 = vmatpush.bf16.msra.mxu0 0
  %6555 = vmatpush.bf16.msra.mxu0 0
  %6556 = vmatpush.bf16.msra.mxu0 %v6381
  %6557 = vmatpush.bf16.msra.mxu0 %v6370
  %6558 = vmatmul.bf16.gmra.mxu0 %v381
  %v6559 = vpop.f32.mrf.mxu0
  %v6560 = vadd.f32 0.0, %v6559
  %v6561 = vpop.f32.mrf.mxu0
  %v6562 = vadd.f32 0.0, %v6561
  %6563 = vmatmul.bf16.gmra.mxu0 %v384
  %v6564 = vpop.f32.mrf.mxu0
  %v6565 = vadd.f32 0.0, %v6564
  %v6566 = vpop.f32.mrf.mxu0
  %6567 = vdwg.mxu0
  %6568 = vmatpush.bf16.msra.mxu0 0
  %6569 = vmatpush.bf16.msra.mxu0 0
  %6570 = vmatpush.bf16.msra.mxu0 0
  %6571 = vmatpush.bf16.msra.mxu0 0
  %6572 = vmatpush.bf16.msra.mxu0 0
  %6573 = vmatpush.bf16.msra.mxu0 0
  %6574 = vmatpush.bf16.msra.mxu0 %v6382
  %6575 = vmatpush.bf16.msra.mxu0 %v6371
  %6576 = vmatmul.bf16.gmra.mxu0 %v381
  %v6577 = vpop.f32.mrf.mxu0
  %v6578 = vadd.f32 0.0, %v6577
  %v6579 = vpop.f32.mrf.mxu0
  %v6580 = vadd.f32 0.0, %v6579
  %6581 = vmatmul.bf16.gmra.mxu0 %v384
  %v6582 = vpop.f32.mrf.mxu0
  %v6583 = vadd.f32 0.0, %v6582
  %v6584 = vpop.f32.mrf.mxu0
  %6585 = vdwg.mxu0
  %6586 = vmatpush.bf16.msra.mxu0 0
  %6587 = vmatpush.bf16.msra.mxu0 0
  %6588 = vmatpush.bf16.msra.mxu0 0
  %6589 = vmatpush.bf16.msra.mxu0 0
  %6590 = vmatpush.bf16.msra.mxu0 0
  %6591 = vmatpush.bf16.msra.mxu0 0
  %6592 = vmatpush.bf16.msra.mxu0 %v6383
  %6593 = vmatpush.bf16.msra.mxu0 %v6372
  %6594 = vmatmul.bf16.gmra.mxu0 %v381
  %v6595 = vpop.f32.mrf.mxu0
  %v6596 = vadd.f32 0.0, %v6595
  %v6597 = vpop.f32.mrf.mxu0
  %v6598 = vadd.f32 0.0, %v6597
  %6599 = vmatmul.bf16.gmra.mxu0 %v384
  %v6600 = vpop.f32.mrf.mxu0
  %v6601 = vadd.f32 0.0, %v6600
  %v6602 = vpop.f32.mrf.mxu0
  %6603 = vdwg.mxu0
  %v6604 = vmax.f32 %v6416, 0.0
  %v6605 = vmax.f32 %v6434, 0.0
  %v6606 = vmax.f32 %v6452, 0.0
  %v6607 = vmax.f32 %v6470, 0.0
  %v6608 = vmax.f32 %v6488, 0.0
  %v6609 = vmax.f32 %v6506, 0.0
  %v6610 = vmax.f32 %v6524, 0.0
  %v6611 = vmax.f32 %v6542, 0.0
  %v6612 = vmax.f32 %v6560, 0.0
  %v6613 = vmax.f32 %v6578, 0.0
  %v6614 = vmax.f32 %v6596, 0.0
  %v6615 = vmax.f32 %v6418, 0.0
  %v6616 = vmax.f32 %v6436, 0.0
  %v6617 = vmax.f32 %v6454, 0.0
  %v6618 = vmax.f32 %v6472, 0.0
  %v6619 = vmax.f32 %v6490, 0.0
  %v6620 = vmax.f32 %v6508, 0.0
  %v6621 = vmax.f32 %v6526, 0.0
  %v6622 = vmax.f32 %v6544, 0.0
  %v6623 = vmax.f32 %v6562, 0.0
  %v6624 = vmax.f32 %v6580, 0.0
  %v6625 = vmax.f32 %v6598, 0.0
  %v6626 = vmax.f32 %v6421, 0.0
  %v6627 = vmax.f32 %v6439, 0.0
  %v6628 = vmax.f32 %v6457, 0.0
  %v6629 = vmax.f32 %v6475, 0.0
  %v6630 = vmax.f32 %v6493, 0.0
  %v6631 = vmax.f32 %v6511, 0.0
  %v6632 = vmax.f32 %v6529, 0.0
  %v6633 = vmax.f32 %v6547, 0.0
  %v6634 = vmax.f32 %v6565, 0.0
  %v6635 = vmax.f32 %v6583, 0.0
  %v6636 = vmax.f32 %v6601, 0.0
  %v6637 = vpack.c.bf16 %v6615, %v6604
  %v6638 = vpack.c.bf16 %v6616, %v6605
  %v6639 = vpack.c.bf16 %v6617, %v6606
  %v6640 = vpack.c.bf16 %v6618, %v6607
  %v6641 = vpack.c.bf16 %v6619, %v6608
  %v6642 = vpack.c.bf16 %v6620, %v6609
  %v6643 = vpack.c.bf16 %v6621, %v6610
  %v6644 = vpack.c.bf16 %v6622, %v6611
  %v6645 = vpack.c.bf16 %v6623, %v6612
  %v6646 = vpack.c.bf16 %v6624, %v6613
  %v6647 = vpack.c.bf16 %v6625, %v6614
  %v6648 = vpack.c.bf16 %v6626, %v6626
  %v6649 = vpack.c.bf16 %v6627, %v6627
  %v6650 = vpack.c.bf16 %v6628, %v6628
  %v6651 = vpack.c.bf16 %v6629, %v6629
  %v6652 = vpack.c.bf16 %v6630, %v6630
  %v6653 = vpack.c.bf16 %v6631, %v6631
  %v6654 = vpack.c.bf16 %v6632, %v6632
  %v6655 = vpack.c.bf16 %v6633, %v6633
  %v6656 = vpack.c.bf16 %v6634, %v6634
  %v6657 = vpack.c.bf16 %v6635, %v6635
  %v6658 = vpack.c.bf16 %v6636, %v6636
  %6659 = vmatpush.bf16.msra.mxu0 %v1181
  %6660 = vmatpush.bf16.msra.mxu0 %v1179
  %6661 = vmatpush.bf16.msra.mxu0 %v1177
  %6662 = vmatpush.bf16.msra.mxu0 %v1175
  %6663 = vmatpush.bf16.msra.mxu0 %v1173
  %6664 = vmatpush.bf16.msra.mxu0 %v1171
  %6665 = vmatpush.bf16.msra.mxu0 %v1169
  %6666 = vmatpush.bf16.msra.mxu0 %v1167
  %6667 = vmatmul.bf16.gmra.mxu0 %v6637
  %v6668 = vpop.f32.mrf.mxu0
  %v6669 = vadd.f32 0.0, %v6668
  %v6670 = vpop.f32.mrf.mxu0
  %v6671 = vadd.f32 0.0, %v6670
  %6672 = vmatmul.bf16.gmra.mxu0 %v6648
  %v6673 = vpop.f32.mrf.mxu0
  %v6674 = vadd.f32 0.0, %v6673
  %v6675 = vpop.f32.mrf.mxu0
  %6676 = vdwg.mxu0
  %6677 = vmatpush.bf16.msra.mxu0 %v1197
  %6678 = vmatpush.bf16.msra.mxu0 %v1195
  %6679 = vmatpush.bf16.msra.mxu0 %v1193
  %6680 = vmatpush.bf16.msra.mxu0 %v1191
  %6681 = vmatpush.bf16.msra.mxu0 %v1189
  %6682 = vmatpush.bf16.msra.mxu0 %v1187
  %6683 = vmatpush.bf16.msra.mxu0 %v1185
  %6684 = vmatpush.bf16.msra.mxu0 %v1183
  %6685 = vmatmul.bf16.gmra.mxu0 %v6638
  %v6686 = vpop.f32.mrf.mxu0
  %v6687 = vadd.f32 %v6669, %v6686
  %v6688 = vpop.f32.mrf.mxu0
  %v6689 = vadd.f32 %v6671, %v6688
  %6690 = vmatmul.bf16.gmra.mxu0 %v6649
  %v6691 = vpop.f32.mrf.mxu0
  %v6692 = vadd.f32 %v6674, %v6691
  %v6693 = vpop.f32.mrf.mxu0
  %6694 = vdwg.mxu0
  %6695 = vmatpush.bf16.msra.mxu0 %v1213
  %6696 = vmatpush.bf16.msra.mxu0 %v1211
  %6697 = vmatpush.bf16.msra.mxu0 %v1209
  %6698 = vmatpush.bf16.msra.mxu0 %v1207
  %6699 = vmatpush.bf16.msra.mxu0 %v1205
  %6700 = vmatpush.bf16.msra.mxu0 %v1203
  %6701 = vmatpush.bf16.msra.mxu0 %v1201
  %6702 = vmatpush.bf16.msra.mxu0 %v1199
  %6703 = vmatmul.bf16.gmra.mxu0 %v6639
  %v6704 = vpop.f32.mrf.mxu0
  %v6705 = vadd.f32 %v6687, %v6704
  %v6706 = vpop.f32.mrf.mxu0
  %v6707 = vadd.f32 %v6689, %v6706
  %6708 = vmatmul.bf16.gmra.mxu0 %v6650
  %v6709 = vpop.f32.mrf.mxu0
  %v6710 = vadd.f32 %v6692, %v6709
  %v6711 = vpop.f32.mrf.mxu0
  %6712 = vdwg.mxu0
  %6713 = vmatpush.bf16.msra.mxu0 %v1229
  %6714 = vmatpush.bf16.msra.mxu0 %v1227
  %6715 = vmatpush.bf16.msra.mxu0 %v1225
  %6716 = vmatpush.bf16.msra.mxu0 %v1223
  %6717 = vmatpush.bf16.msra.mxu0 %v1221
  %6718 = vmatpush.bf16.msra.mxu0 %v1219
  %6719 = vmatpush.bf16.msra.mxu0 %v1217
  %6720 = vmatpush.bf16.msra.mxu0 %v1215
  %6721 = vmatmul.bf16.gmra.mxu0 %v6640
  %v6722 = vpop.f32.mrf.mxu0
  %v6723 = vadd.f32 %v6705, %v6722
  %v6724 = vpop.f32.mrf.mxu0
  %v6725 = vadd.f32 %v6707, %v6724
  %6726 = vmatmul.bf16.gmra.mxu0 %v6651
  %v6727 = vpop.f32.mrf.mxu0
  %v6728 = vadd.f32 %v6710, %v6727
  %v6729 = vpop.f32.mrf.mxu0
  %6730 = vdwg.mxu0
  %6731 = vmatpush.bf16.msra.mxu0 %v1245
  %6732 = vmatpush.bf16.msra.mxu0 %v1243
  %6733 = vmatpush.bf16.msra.mxu0 %v1241
  %6734 = vmatpush.bf16.msra.mxu0 %v1239
  %6735 = vmatpush.bf16.msra.mxu0 %v1237
  %6736 = vmatpush.bf16.msra.mxu0 %v1235
  %6737 = vmatpush.bf16.msra.mxu0 %v1233
  %6738 = vmatpush.bf16.msra.mxu0 %v1231
  %6739 = vmatmul.bf16.gmra.mxu0 %v6641
  %v6740 = vpop.f32.mrf.mxu0
  %v6741 = vadd.f32 %v6723, %v6740
  %v6742 = vpop.f32.mrf.mxu0
  %v6743 = vadd.f32 %v6725, %v6742
  %6744 = vmatmul.bf16.gmra.mxu0 %v6652
  %v6745 = vpop.f32.mrf.mxu0
  %v6746 = vadd.f32 %v6728, %v6745
  %v6747 = vpop.f32.mrf.mxu0
  %6748 = vdwg.mxu0
  %6749 = vmatpush.bf16.msra.mxu0 %v1261
  %6750 = vmatpush.bf16.msra.mxu0 %v1259
  %6751 = vmatpush.bf16.msra.mxu0 %v1257
  %6752 = vmatpush.bf16.msra.mxu0 %v1255
  %6753 = vmatpush.bf16.msra.mxu0 %v1253
  %6754 = vmatpush.bf16.msra.mxu0 %v1251
  %6755 = vmatpush.bf16.msra.mxu0 %v1249
  %6756 = vmatpush.bf16.msra.mxu0 %v1247
  %6757 = vmatmul.bf16.gmra.mxu0 %v6642
  %v6758 = vpop.f32.mrf.mxu0
  %v6759 = vadd.f32 %v6741, %v6758
  %v6760 = vpop.f32.mrf.mxu0
  %v6761 = vadd.f32 %v6743, %v6760
  %6762 = vmatmul.bf16.gmra.mxu0 %v6653
  %v6763 = vpop.f32.mrf.mxu0
  %v6764 = vadd.f32 %v6746, %v6763
  %v6765 = vpop.f32.mrf.mxu0
  %6766 = vdwg.mxu0
  %6767 = vmatpush.bf16.msra.mxu0 %v1277
  %6768 = vmatpush.bf16.msra.mxu0 %v1275
  %6769 = vmatpush.bf16.msra.mxu0 %v1273
  %6770 = vmatpush.bf16.msra.mxu0 %v1271
  %6771 = vmatpush.bf16.msra.mxu0 %v1269
  %6772 = vmatpush.bf16.msra.mxu0 %v1267
  %6773 = vmatpush.bf16.msra.mxu0 %v1265
  %6774 = vmatpush.bf16.msra.mxu0 %v1263
  %6775 = vmatmul.bf16.gmra.mxu0 %v6643
  %v6776 = vpop.f32.mrf.mxu0
  %v6777 = vadd.f32 %v6759, %v6776
  %v6778 = vpop.f32.mrf.mxu0
  %v6779 = vadd.f32 %v6761, %v6778
  %6780 = vmatmul.bf16.gmra.mxu0 %v6654
  %v6781 = vpop.f32.mrf.mxu0
  %v6782 = vadd.f32 %v6764, %v6781
  %v6783 = vpop.f32.mrf.mxu0
  %6784 = vdwg.mxu0
  %6785 = vmatpush.bf16.msra.mxu0 %v1293
  %6786 = vmatpush.bf16.msra.mxu0 %v1291
  %6787 = vmatpush.bf16.msra.mxu0 %v1289
  %6788 = vmatpush.bf16.msra.mxu0 %v1287
  %6789 = vmatpush.bf16.msra.mxu0 %v1285
  %6790 = vmatpush.bf16.msra.mxu0 %v1283
  %6791 = vmatpush.bf16.msra.mxu0 %v1281
  %6792 = vmatpush.bf16.msra.mxu0 %v1279
  %6793 = vmatmul.bf16.gmra.mxu0 %v6644
  %v6794 = vpop.f32.mrf.mxu0
  %v6795 = vadd.f32 %v6777, %v6794
  %v6796 = vpop.f32.mrf.mxu0
  %v6797 = vadd.f32 %v6779, %v6796
  %6798 = vmatmul.bf16.gmra.mxu0 %v6655
  %v6799 = vpop.f32.mrf.mxu0
  %v6800 = vadd.f32 %v6782, %v6799
  %v6801 = vpop.f32.mrf.mxu0
  %6802 = vdwg.mxu0
  %6803 = vmatpush.bf16.msra.mxu0 %v1309
  %6804 = vmatpush.bf16.msra.mxu0 %v1307
  %6805 = vmatpush.bf16.msra.mxu0 %v1305
  %6806 = vmatpush.bf16.msra.mxu0 %v1303
  %6807 = vmatpush.bf16.msra.mxu0 %v1301
  %6808 = vmatpush.bf16.msra.mxu0 %v1299
  %6809 = vmatpush.bf16.msra.mxu0 %v1297
  %6810 = vmatpush.bf16.msra.mxu0 %v1295
  %6811 = vmatmul.bf16.gmra.mxu0 %v6645
  %v6812 = vpop.f32.mrf.mxu0
  %v6813 = vadd.f32 %v6795, %v6812
  %v6814 = vpop.f32.mrf.mxu0
  %v6815 = vadd.f32 %v6797, %v6814
  %6816 = vmatmul.bf16.gmra.mxu0 %v6656
  %v6817 = vpop.f32.mrf.mxu0
  %v6818 = vadd.f32 %v6800, %v6817
  %v6819 = vpop.f32.mrf.mxu0
  %6820 = vdwg.mxu0
  %6821 = vmatpush.bf16.msra.mxu0 %v1325
  %6822 = vmatpush.bf16.msra.mxu0 %v1323
  %6823 = vmatpush.bf16.msra.mxu0 %v1321
  %6824 = vmatpush.bf16.msra.mxu0 %v1319
  %6825 = vmatpush.bf16.msra.mxu0 %v1317
  %6826 = vmatpush.bf16.msra.mxu0 %v1315
  %6827 = vmatpush.bf16.msra.mxu0 %v1313
  %6828 = vmatpush.bf16.msra.mxu0 %v1311
  %6829 = vmatmul.bf16.gmra.mxu0 %v6646
  %v6830 = vpop.f32.mrf.mxu0
  %v6831 = vadd.f32 %v6813, %v6830
  %v6832 = vpop.f32.mrf.mxu0
  %v6833 = vadd.f32 %v6815, %v6832
  %6834 = vmatmul.bf16.gmra.mxu0 %v6657
  %v6835 = vpop.f32.mrf.mxu0
  %v6836 = vadd.f32 %v6818, %v6835
  %v6837 = vpop.f32.mrf.mxu0
  %6838 = vdwg.mxu0
  %6839 = vmatpush.bf16.msra.mxu0 %v1341
  %6840 = vmatpush.bf16.msra.mxu0 %v1339
  %6841 = vmatpush.bf16.msra.mxu0 %v1337
  %6842 = vmatpush.bf16.msra.mxu0 %v1335
  %6843 = vmatpush.bf16.msra.mxu0 %v1333
  %6844 = vmatpush.bf16.msra.mxu0 %v1331
  %6845 = vmatpush.bf16.msra.mxu0 %v1329
  %6846 = vmatpush.bf16.msra.mxu0 %v1327
  %6847 = vmatmul.bf16.gmra.mxu0 %v6647
  %v6848 = vpop.f32.mrf.mxu0
  %v6849 = vadd.f32 %v6831, %v6848
  %v6850 = vpop.f32.mrf.mxu0
  %v6851 = vadd.f32 %v6833, %v6850
  %6852 = vmatmul.bf16.gmra.mxu0 %v6658
  %v6853 = vpop.f32.mrf.mxu0
  %v6854 = vadd.f32 %v6836, %v6853
  %v6855 = vpop.f32.mrf.mxu0
  %6856 = vdwg.mxu0
  %6857 = vmatpush.bf16.msra.mxu0 %v1182
  %6858 = vmatpush.bf16.msra.mxu0 %v1180
  %6859 = vmatpush.bf16.msra.mxu0 %v1178
  %6860 = vmatpush.bf16.msra.mxu0 %v1176
  %6861 = vmatpush.bf16.msra.mxu0 %v1174
  %6862 = vmatpush.bf16.msra.mxu0 %v1172
  %6863 = vmatpush.bf16.msra.mxu0 %v1170
  %6864 = vmatpush.bf16.msra.mxu0 %v1168
  %6865 = vmatmul.bf16.gmra.mxu0 %v6637
  %v6866 = vpop.f32.mrf.mxu0
  %v6867 = vadd.f32 0.0, %v6866
  %v6868 = vpop.f32.mrf.mxu0
  %v6869 = vadd.f32 0.0, %v6868
  %6870 = vmatmul.bf16.gmra.mxu0 %v6648
  %v6871 = vpop.f32.mrf.mxu0
  %v6872 = vadd.f32 0.0, %v6871
  %v6873 = vpop.f32.mrf.mxu0
  %6874 = vdwg.mxu0
  %6875 = vmatpush.bf16.msra.mxu0 %v1198
  %6876 = vmatpush.bf16.msra.mxu0 %v1196
  %6877 = vmatpush.bf16.msra.mxu0 %v1194
  %6878 = vmatpush.bf16.msra.mxu0 %v1192
  %6879 = vmatpush.bf16.msra.mxu0 %v1190
  %6880 = vmatpush.bf16.msra.mxu0 %v1188
  %6881 = vmatpush.bf16.msra.mxu0 %v1186
  %6882 = vmatpush.bf16.msra.mxu0 %v1184
  %6883 = vmatmul.bf16.gmra.mxu0 %v6638
  %v6884 = vpop.f32.mrf.mxu0
  %v6885 = vadd.f32 %v6867, %v6884
  %v6886 = vpop.f32.mrf.mxu0
  %v6887 = vadd.f32 %v6869, %v6886
  %6888 = vmatmul.bf16.gmra.mxu0 %v6649
  %v6889 = vpop.f32.mrf.mxu0
  %v6890 = vadd.f32 %v6872, %v6889
  %v6891 = vpop.f32.mrf.mxu0
  %6892 = vdwg.mxu0
  %6893 = vmatpush.bf16.msra.mxu0 %v1214
  %6894 = vmatpush.bf16.msra.mxu0 %v1212
  %6895 = vmatpush.bf16.msra.mxu0 %v1210
  %6896 = vmatpush.bf16.msra.mxu0 %v1208
  %6897 = vmatpush.bf16.msra.mxu0 %v1206
  %6898 = vmatpush.bf16.msra.mxu0 %v1204
  %6899 = vmatpush.bf16.msra.mxu0 %v1202
  %6900 = vmatpush.bf16.msra.mxu0 %v1200
  %6901 = vmatmul.bf16.gmra.mxu0 %v6639
  %v6902 = vpop.f32.mrf.mxu0
  %v6903 = vadd.f32 %v6885, %v6902
  %v6904 = vpop.f32.mrf.mxu0
  %v6905 = vadd.f32 %v6887, %v6904
  %6906 = vmatmul.bf16.gmra.mxu0 %v6650
  %v6907 = vpop.f32.mrf.mxu0
  %v6908 = vadd.f32 %v6890, %v6907
  %v6909 = vpop.f32.mrf.mxu0
  %6910 = vdwg.mxu0
  %6911 = vmatpush.bf16.msra.mxu0 %v1230
  %6912 = vmatpush.bf16.msra.mxu0 %v1228
  %6913 = vmatpush.bf16.msra.mxu0 %v1226
  %6914 = vmatpush.bf16.msra.mxu0 %v1224
  %6915 = vmatpush.bf16.msra.mxu0 %v1222
  %6916 = vmatpush.bf16.msra.mxu0 %v1220
  %6917 = vmatpush.bf16.msra.mxu0 %v1218
  %6918 = vmatpush.bf16.msra.mxu0 %v1216
  %6919 = vmatmul.bf16.gmra.mxu0 %v6640
  %v6920 = vpop.f32.mrf.mxu0
  %v6921 = vadd.f32 %v6903, %v6920
  %v6922 = vpop.f32.mrf.mxu0
  %v6923 = vadd.f32 %v6905, %v6922
  %6924 = vmatmul.bf16.gmra.mxu0 %v6651
  %v6925 = vpop.f32.mrf.mxu0
  %v6926 = vadd.f32 %v6908, %v6925
  %v6927 = vpop.f32.mrf.mxu0
  %6928 = vdwg.mxu0
  %6929 = vmatpush.bf16.msra.mxu0 %v1246
  %6930 = vmatpush.bf16.msra.mxu0 %v1244
  %6931 = vmatpush.bf16.msra.mxu0 %v1242
  %6932 = vmatpush.bf16.msra.mxu0 %v1240
  %6933 = vmatpush.bf16.msra.mxu0 %v1238
  %6934 = vmatpush.bf16.msra.mxu0 %v1236
  %6935 = vmatpush.bf16.msra.mxu0 %v1234
  %6936 = vmatpush.bf16.msra.mxu0 %v1232
  %6937 = vmatmul.bf16.gmra.mxu0 %v6641
  %v6938 = vpop.f32.mrf.mxu0
  %v6939 = vadd.f32 %v6921, %v6938
  %v6940 = vpop.f32.mrf.mxu0
  %v6941 = vadd.f32 %v6923, %v6940
  %6942 = vmatmul.bf16.gmra.mxu0 %v6652
  %v6943 = vpop.f32.mrf.mxu0
  %v6944 = vadd.f32 %v6926, %v6943
  %v6945 = vpop.f32.mrf.mxu0
  %6946 = vdwg.mxu0
  %6947 = vmatpush.bf16.msra.mxu0 %v1262
  %6948 = vmatpush.bf16.msra.mxu0 %v1260
  %6949 = vmatpush.bf16.msra.mxu0 %v1258
  %6950 = vmatpush.bf16.msra.mxu0 %v1256
  %6951 = vmatpush.bf16.msra.mxu0 %v1254
  %6952 = vmatpush.bf16.msra.mxu0 %v1252
  %6953 = vmatpush.bf16.msra.mxu0 %v1250
  %6954 = vmatpush.bf16.msra.mxu0 %v1248
  %6955 = vmatmul.bf16.gmra.mxu0 %v6642
  %v6956 = vpop.f32.mrf.mxu0
  %v6957 = vadd.f32 %v6939, %v6956
  %v6958 = vpop.f32.mrf.mxu0
  %v6959 = vadd.f32 %v6941, %v6958
  %6960 = vmatmul.bf16.gmra.mxu0 %v6653
  %v6961 = vpop.f32.mrf.mxu0
  %v6962 = vadd.f32 %v6944, %v6961
  %v6963 = vpop.f32.mrf.mxu0
  %6964 = vdwg.mxu0
  %6965 = vmatpush.bf16.msra.mxu0 %v1278
  %6966 = vmatpush.bf16.msra.mxu0 %v1276
  %6967 = vmatpush.bf16.msra.mxu0 %v1274
  %6968 = vmatpush.bf16.msra.mxu0 %v1272
  %6969 = vmatpush.bf16.msra.mxu0 %v1270
  %6970 = vmatpush.bf16.msra.mxu0 %v1268
  %6971 = vmatpush.bf16.msra.mxu0 %v1266
  %6972 = vmatpush.bf16.msra.mxu0 %v1264
  %6973 = vmatmul.bf16.gmra.mxu0 %v6643
  %v6974 = vpop.f32.mrf.mxu0
  %v6975 = vadd.f32 %v6957, %v6974
  %v6976 = vpop.f32.mrf.mxu0
  %v6977 = vadd.f32 %v6959, %v6976
  %6978 = vmatmul.bf16.gmra.mxu0 %v6654
  %v6979 = vpop.f32.mrf.mxu0
  %v6980 = vadd.f32 %v6962, %v6979
  %v6981 = vpop.f32.mrf.mxu0
  %6982 = vdwg.mxu0
  %6983 = vmatpush.bf16.msra.mxu0 %v1294
  %6984 = vmatpush.bf16.msra.mxu0 %v1292
  %6985 = vmatpush.bf16.msra.mxu0 %v1290
  %6986 = vmatpush.bf16.msra.mxu0 %v1288
  %6987 = vmatpush.bf16.msra.mxu0 %v1286
  %6988 = vmatpush.bf16.msra.mxu0 %v1284
  %6989 = vmatpush.bf16.msra.mxu0 %v1282
  %6990 = vmatpush.bf16.msra.mxu0 %v1280
  %6991 = vmatmul.bf16.gmra.mxu0 %v6644
  %v6992 = vpop.f32.mrf.mxu0
  %v6993 = vadd.f32 %v6975, %v6992
  %v6994 = vpop.f32.mrf.mxu0
  %v6995 = vadd.f32 %v6977, %v6994
  %6996 = vmatmul.bf16.gmra.mxu0 %v6655
  %v6997 = vpop.f32.mrf.mxu0
  %v6998 = vadd.f32 %v6980, %v6997
  %v6999 = vpop.f32.mrf.mxu0
  %7000 = vdwg.mxu0
  %7001 = vmatpush.bf16.msra.mxu0 %v1310
  %7002 = vmatpush.bf16.msra.mxu0 %v1308
  %7003 = vmatpush.bf16.msra.mxu0 %v1306
  %7004 = vmatpush.bf16.msra.mxu0 %v1304
  %7005 = vmatpush.bf16.msra.mxu0 %v1302
  %7006 = vmatpush.bf16.msra.mxu0 %v1300
  %7007 = vmatpush.bf16.msra.mxu0 %v1298
  %7008 = vmatpush.bf16.msra.mxu0 %v1296
  %7009 = vmatmul.bf16.gmra.mxu0 %v6645
  %v7010 = vpop.f32.mrf.mxu0
  %v7011 = vadd.f32 %v6993, %v7010
  %v7012 = vpop.f32.mrf.mxu0
  %v7013 = vadd.f32 %v6995, %v7012
  %7014 = vmatmul.bf16.gmra.mxu0 %v6656
  %v7015 = vpop.f32.mrf.mxu0
  %v7016 = vadd.f32 %v6998, %v7015
  %v7017 = vpop.f32.mrf.mxu0
  %7018 = vdwg.mxu0
  %7019 = vmatpush.bf16.msra.mxu0 %v1326
  %7020 = vmatpush.bf16.msra.mxu0 %v1324
  %7021 = vmatpush.bf16.msra.mxu0 %v1322
  %7022 = vmatpush.bf16.msra.mxu0 %v1320
  %7023 = vmatpush.bf16.msra.mxu0 %v1318
  %7024 = vmatpush.bf16.msra.mxu0 %v1316
  %7025 = vmatpush.bf16.msra.mxu0 %v1314
  %7026 = vmatpush.bf16.msra.mxu0 %v1312
  %7027 = vmatmul.bf16.gmra.mxu0 %v6646
  %v7028 = vpop.f32.mrf.mxu0
  %v7029 = vadd.f32 %v7011, %v7028
  %v7030 = vpop.f32.mrf.mxu0
  %v7031 = vadd.f32 %v7013, %v7030
  %7032 = vmatmul.bf16.gmra.mxu0 %v6657
  %v7033 = vpop.f32.mrf.mxu0
  %v7034 = vadd.f32 %v7016, %v7033
  %v7035 = vpop.f32.mrf.mxu0
  %7036 = vdwg.mxu0
  %7037 = vmatpush.bf16.msra.mxu0 %v1342
  %7038 = vmatpush.bf16.msra.mxu0 %v1340
  %7039 = vmatpush.bf16.msra.mxu0 %v1338
  %7040 = vmatpush.bf16.msra.mxu0 %v1336
  %7041 = vmatpush.bf16.msra.mxu0 %v1334
  %7042 = vmatpush.bf16.msra.mxu0 %v1332
  %7043 = vmatpush.bf16.msra.mxu0 %v1330
  %7044 = vmatpush.bf16.msra.mxu0 %v1328
  %7045 = vmatmul.bf16.gmra.mxu0 %v6647
  %v7046 = vpop.f32.mrf.mxu0
  %v7047 = vadd.f32 %v7029, %v7046
  %v7048 = vpop.f32.mrf.mxu0
  %v7049 = vadd.f32 %v7031, %v7048
  %7050 = vmatmul.bf16.gmra.mxu0 %v6658
  %v7051 = vpop.f32.mrf.mxu0
  %v7052 = vadd.f32 %v7034, %v7051
  %v7053 = vpop.f32.mrf.mxu0
  %7054 = vdwg.mxu0
  %v7055 = vmul.f32 %v6849, %v203
  %v7056 = vmul.f32 %v7047, %v204
  %v7057 = vmul.f32 %v6851, %v205
  %v7058 = vmul.f32 %v7049, %v206
  %v7059 = vmul.f32 %v6854, %v207
  %v7060 = vmul.f32 %v7052, %v208
  %v7061 = vadd.f32 %v7055, %v7057
  %v7062 = vsel %vm1922, %v7059, 0.0
  %v7063 = vadd.f32 %v7061, %v7062
  %v7064 = vrot.slane %v7063, 4
  %v7065 = vadd.f32 %v7063, %v7064
  %v7066 = vrot.slane %v7065, 2
  %v7067 = vadd.f32 %v7065, %v7066
  %v7068 = vrot.slane %v7067, 1
  %v7069 = vadd.f32 %v7067, %v7068
  %v7070 = vsel %vm1931, %v7056, 0.0
  %v7071 = vsel %vm1931, %v7058, 0.0
  %v7072 = vadd.f32 %v7070, %v7071
  %v7073 = vsel %vm1935, %v7060, 0.0
  %v7074 = vadd.f32 %v7072, %v7073
  %v7075 = vrot.slane %v7074, 4
  %v7076 = vadd.f32 %v7074, %v7075
  %v7077 = vrot.slane %v7076, 2
  %v7078 = vadd.f32 %v7076, %v7077
  %v7079 = vrot.slane %v7078, 1
  %v7080 = vadd.f32 %v7078, %v7079
  %v7082 = vsel %vm1931, %v7080, 0
  %7084 = vmatpush.msra.mxu0 %v224
  %7085 = vmatpush.msra.mxu0 %v223
  %7086 = vmatpush.msra.mxu0 %v222
  %7087 = vmatpush.msra.mxu0 %v221
  %7088 = vmatpush.msra.mxu0 %v220
  %7089 = vmatpush.msra.mxu0 %v219
  %7090 = vmatpush.msra.mxu0 %v218
  %7091 = vmatpush.msra.mxu0 %v217
  %7092 = vmatpush.msra.mxu0 %v216
  %7093 = vmatpush.msra.mxu0 %v215
  %7094 = vmatpush.msra.mxu0 %v214
  %7095 = vmatpush.msra.mxu0 %v213
  %7096 = vmatpush.msra.mxu0 %v212
  %7097 = vmatpush.msra.mxu0 %v211
  %7098 = vmatpush.msra.mxu0 %v210
  %7099 = vmatpush.msra.mxu0 %v209
  %7100 = vmatmul.f32.gmra.mxu0 %v7069
  %v7101 = vpop.f32.mrf.mxu0
  %v7102 = vadd.f32 %v234, %v7101
  %7103 = vdwg.mxu0
  %7104 = vmatpush.msra.mxu0 0.0
  %7105 = vmatpush.msra.mxu0 0.0
  %7106 = vmatpush.msra.mxu0 0.0
  %7107 = vmatpush.msra.mxu0 0.0
  %7108 = vmatpush.msra.mxu0 0.0
  %7109 = vmatpush.msra.mxu0 0.0
  %7110 = vmatpush.msra.mxu0 0.0
  %7111 = vmatpush.msra.mxu0 %v233
  %7112 = vmatpush.msra.mxu0 %v232
  %7113 = vmatpush.msra.mxu0 %v231
  %7114 = vmatpush.msra.mxu0 %v230
  %7115 = vmatpush.msra.mxu0 %v229
  %7116 = vmatpush.msra.mxu0 %v228
  %7117 = vmatpush.msra.mxu0 %v227
  %7118 = vmatpush.msra.mxu0 %v226
  %7119 = vmatpush.msra.mxu0 %v225
  %7120 = vmatmul.f32.gmra.mxu0 %v7082
  %v7121 = vpop.f32.mrf.mxu0
  %v7122 = vadd.f32 %v7102, %v7121
  %7123 = vdwg.mxu0
  %7124 = vst.msk [vmem:[%s6 + $0x6] sm:$0x1] %vm1987, %v7122
  %s7125 = scalar_lea.vmem %s0, 1232
  %v7126 = vld [vmem:[%s7125] sm:$0xff]
  %v7127 = vld [vmem:[%s7125 + $0x8] sm:$0xff]
  %v7128 = vld [vmem:[%s7125 + $0x10] sm:$0xff]
  %v7129 = vld [vmem:[%s7125 + $0x18] sm:$0xff]
  %v7130 = vld [vmem:[%s7125 + $0x20] sm:$0xff]
  %v7131 = vld [vmem:[%s7125 + $0x28] sm:$0xf]
  %v7132 = vld [vmem:[%s7125 + $0x2c] sm:$0xff]
  %v7133 = vld [vmem:[%s7125 + $0x34] sm:$0xff]
  %v7134 = vld [vmem:[%s7125 + $0x3c] sm:$0xff]
  %v7135 = vld [vmem:[%s7125 + $0x44] sm:$0xff]
  %v7136 = vld [vmem:[%s7125 + $0x4c] sm:$0xff]
  %v7137 = vld [vmem:[%s7125 + $0x54] sm:$0xf]
  %v7138 = vld [vmem:[%s7125 + $0x58] sm:$0xff]
  %v7139 = vld [vmem:[%s7125 + $0x60] sm:$0xff]
  %v7140 = vld [vmem:[%s7125 + $0x68] sm:$0xff]
  %v7141 = vld [vmem:[%s7125 + $0x70] sm:$0xff]
  %v7142 = vld [vmem:[%s7125 + $0x78] sm:$0xff]
  %v7143 = vld [vmem:[%s7125 + $0x80] sm:$0xf]
  %v7144 = vld [vmem:[%s7125 + $0x84] sm:$0xff]
  %v7145 = vld [vmem:[%s7125 + $0x8c] sm:$0xff]
  %v7146 = vld [vmem:[%s7125 + $0x94] sm:$0xff]
  %v7147 = vld [vmem:[%s7125 + $0x9c] sm:$0xff]
  %v7148 = vld [vmem:[%s7125 + $0xa4] sm:$0xff]
  %v7149 = vld [vmem:[%s7125 + $0xac] sm:$0xf]
  %v7174 = vunpack.c.l.b16 %v7126
  %v7175 = vunpack.c.h.b16 %v7126
  %v7176 = vunpack.c.l.b16 %v7127
  %v7177 = vunpack.c.h.b16 %v7127
  %v7178 = vunpack.c.l.b16 %v7128
  %v7179 = vunpack.c.h.b16 %v7128
  %v7180 = vunpack.c.l.b16 %v7129
  %v7181 = vunpack.c.h.b16 %v7129
  %v7182 = vunpack.c.l.b16 %v7130
  %v7183 = vunpack.c.h.b16 %v7130
  %v7184 = vunpack.c.l.b16 %v7131
  %v7185 = vunpack.c.l.b16 %v7132
  %v7186 = vunpack.c.h.b16 %v7132
  %v7187 = vunpack.c.l.b16 %v7133
  %v7188 = vunpack.c.h.b16 %v7133
  %v7189 = vunpack.c.l.b16 %v7134
  %v7190 = vunpack.c.h.b16 %v7134
  %v7191 = vunpack.c.l.b16 %v7135
  %v7192 = vunpack.c.h.b16 %v7135
  %v7193 = vunpack.c.l.b16 %v7136
  %v7194 = vunpack.c.h.b16 %v7136
  %v7195 = vunpack.c.l.b16 %v7137
  %v7196 = vunpack.c.l.b16 %v7138
  %v7197 = vunpack.c.h.b16 %v7138
  %v7198 = vunpack.c.l.b16 %v7139
  %v7199 = vunpack.c.h.b16 %v7139
  %v7200 = vunpack.c.l.b16 %v7140
  %v7201 = vunpack.c.h.b16 %v7140
  %v7202 = vunpack.c.l.b16 %v7141
  %v7203 = vunpack.c.h.b16 %v7141
  %v7204 = vunpack.c.l.b16 %v7142
  %v7205 = vunpack.c.h.b16 %v7142
  %v7206 = vunpack.c.l.b16 %v7143
  %v7207 = vunpack.c.l.b16 %v7144
  %v7208 = vunpack.c.h.b16 %v7144
  %v7209 = vunpack.c.l.b16 %v7145
  %v7210 = vunpack.c.h.b16 %v7145
  %v7211 = vunpack.c.l.b16 %v7146
  %v7212 = vunpack.c.h.b16 %v7146
  %v7213 = vunpack.c.l.b16 %v7147
  %v7214 = vunpack.c.h.b16 %v7147
  %v7215 = vunpack.c.l.b16 %v7148
  %v7216 = vunpack.c.h.b16 %v7148
  %v7217 = vunpack.c.l.b16 %v7149
  %v7218 = vpack.c.b16 %v7185, %v7174
  %v7219 = vpack.c.b16 %v7186, %v7175
  %v7220 = vpack.c.b16 %v7187, %v7176
  %v7221 = vpack.c.b16 %v7188, %v7177
  %v7222 = vpack.c.b16 %v7189, %v7178
  %v7223 = vpack.c.b16 %v7190, %v7179
  %v7224 = vpack.c.b16 %v7191, %v7180
  %v7225 = vpack.c.b16 %v7192, %v7181
  %v7226 = vpack.c.b16 %v7193, %v7182
  %v7227 = vpack.c.b16 %v7194, %v7183
  %v7228 = vpack.c.b16 %v7195, %v7184
  %v7229 = vpack.c.b16 %v7207, %v7196
  %v7230 = vpack.c.b16 %v7208, %v7197
  %v7231 = vpack.c.b16 %v7209, %v7198
  %v7232 = vpack.c.b16 %v7210, %v7199
  %v7233 = vpack.c.b16 %v7211, %v7200
  %v7234 = vpack.c.b16 %v7212, %v7201
  %v7235 = vpack.c.b16 %v7213, %v7202
  %v7236 = vpack.c.b16 %v7214, %v7203
  %v7237 = vpack.c.b16 %v7215, %v7204
  %v7238 = vpack.c.b16 %v7216, %v7205
  %v7239 = vpack.c.b16 %v7217, %v7206
  %7262 = vmatpush.bf16.msra.mxu0 0
  %7263 = vmatpush.bf16.msra.mxu0 0
  %7264 = vmatpush.bf16.msra.mxu0 0
  %7265 = vmatpush.bf16.msra.mxu0 0
  %7266 = vmatpush.bf16.msra.mxu0 0
  %7267 = vmatpush.bf16.msra.mxu0 0
  %7268 = vmatpush.bf16.msra.mxu0 %v7229
  %7269 = vmatpush.bf16.msra.mxu0 %v7218
  %7270 = vmatmul.bf16.gmra.mxu0 %v381
  %v7271 = vpop.f32.mrf.mxu0
  %v7272 = vadd.f32 0.0, %v7271
  %v7273 = vpop.f32.mrf.mxu0
  %v7274 = vadd.f32 0.0, %v7273
  %7275 = vmatmul.bf16.gmra.mxu0 %v384
  %v7276 = vpop.f32.mrf.mxu0
  %v7277 = vadd.f32 0.0, %v7276
  %v7278 = vpop.f32.mrf.mxu0
  %7279 = vdwg.mxu0
  %7280 = vmatpush.bf16.msra.mxu0 0
  %7281 = vmatpush.bf16.msra.mxu0 0
  %7282 = vmatpush.bf16.msra.mxu0 0
  %7283 = vmatpush.bf16.msra.mxu0 0
  %7284 = vmatpush.bf16.msra.mxu0 0
  %7285 = vmatpush.bf16.msra.mxu0 0
  %7286 = vmatpush.bf16.msra.mxu0 %v7230
  %7287 = vmatpush.bf16.msra.mxu0 %v7219
  %7288 = vmatmul.bf16.gmra.mxu0 %v381
  %v7289 = vpop.f32.mrf.mxu0
  %v7290 = vadd.f32 0.0, %v7289
  %v7291 = vpop.f32.mrf.mxu0
  %v7292 = vadd.f32 0.0, %v7291
  %7293 = vmatmul.bf16.gmra.mxu0 %v384
  %v7294 = vpop.f32.mrf.mxu0
  %v7295 = vadd.f32 0.0, %v7294
  %v7296 = vpop.f32.mrf.mxu0
  %7297 = vdwg.mxu0
  %7298 = vmatpush.bf16.msra.mxu0 0
  %7299 = vmatpush.bf16.msra.mxu0 0
  %7300 = vmatpush.bf16.msra.mxu0 0
  %7301 = vmatpush.bf16.msra.mxu0 0
  %7302 = vmatpush.bf16.msra.mxu0 0
  %7303 = vmatpush.bf16.msra.mxu0 0
  %7304 = vmatpush.bf16.msra.mxu0 %v7231
  %7305 = vmatpush.bf16.msra.mxu0 %v7220
  %7306 = vmatmul.bf16.gmra.mxu0 %v381
  %v7307 = vpop.f32.mrf.mxu0
  %v7308 = vadd.f32 0.0, %v7307
  %v7309 = vpop.f32.mrf.mxu0
  %v7310 = vadd.f32 0.0, %v7309
  %7311 = vmatmul.bf16.gmra.mxu0 %v384
  %v7312 = vpop.f32.mrf.mxu0
  %v7313 = vadd.f32 0.0, %v7312
  %v7314 = vpop.f32.mrf.mxu0
  %7315 = vdwg.mxu0
  %7316 = vmatpush.bf16.msra.mxu0 0
  %7317 = vmatpush.bf16.msra.mxu0 0
  %7318 = vmatpush.bf16.msra.mxu0 0
  %7319 = vmatpush.bf16.msra.mxu0 0
  %7320 = vmatpush.bf16.msra.mxu0 0
  %7321 = vmatpush.bf16.msra.mxu0 0
  %7322 = vmatpush.bf16.msra.mxu0 %v7232
  %7323 = vmatpush.bf16.msra.mxu0 %v7221
  %7324 = vmatmul.bf16.gmra.mxu0 %v381
  %v7325 = vpop.f32.mrf.mxu0
  %v7326 = vadd.f32 0.0, %v7325
  %v7327 = vpop.f32.mrf.mxu0
  %v7328 = vadd.f32 0.0, %v7327
  %7329 = vmatmul.bf16.gmra.mxu0 %v384
  %v7330 = vpop.f32.mrf.mxu0
  %v7331 = vadd.f32 0.0, %v7330
  %v7332 = vpop.f32.mrf.mxu0
  %7333 = vdwg.mxu0
  %7334 = vmatpush.bf16.msra.mxu0 0
  %7335 = vmatpush.bf16.msra.mxu0 0
  %7336 = vmatpush.bf16.msra.mxu0 0
  %7337 = vmatpush.bf16.msra.mxu0 0
  %7338 = vmatpush.bf16.msra.mxu0 0
  %7339 = vmatpush.bf16.msra.mxu0 0
  %7340 = vmatpush.bf16.msra.mxu0 %v7233
  %7341 = vmatpush.bf16.msra.mxu0 %v7222
  %7342 = vmatmul.bf16.gmra.mxu0 %v381
  %v7343 = vpop.f32.mrf.mxu0
  %v7344 = vadd.f32 0.0, %v7343
  %v7345 = vpop.f32.mrf.mxu0
  %v7346 = vadd.f32 0.0, %v7345
  %7347 = vmatmul.bf16.gmra.mxu0 %v384
  %v7348 = vpop.f32.mrf.mxu0
  %v7349 = vadd.f32 0.0, %v7348
  %v7350 = vpop.f32.mrf.mxu0
  %7351 = vdwg.mxu0
  %7352 = vmatpush.bf16.msra.mxu0 0
  %7353 = vmatpush.bf16.msra.mxu0 0
  %7354 = vmatpush.bf16.msra.mxu0 0
  %7355 = vmatpush.bf16.msra.mxu0 0
  %7356 = vmatpush.bf16.msra.mxu0 0
  %7357 = vmatpush.bf16.msra.mxu0 0
  %7358 = vmatpush.bf16.msra.mxu0 %v7234
  %7359 = vmatpush.bf16.msra.mxu0 %v7223
  %7360 = vmatmul.bf16.gmra.mxu0 %v381
  %v7361 = vpop.f32.mrf.mxu0
  %v7362 = vadd.f32 0.0, %v7361
  %v7363 = vpop.f32.mrf.mxu0
  %v7364 = vadd.f32 0.0, %v7363
  %7365 = vmatmul.bf16.gmra.mxu0 %v384
  %v7366 = vpop.f32.mrf.mxu0
  %v7367 = vadd.f32 0.0, %v7366
  %v7368 = vpop.f32.mrf.mxu0
  %7369 = vdwg.mxu0
  %7370 = vmatpush.bf16.msra.mxu0 0
  %7371 = vmatpush.bf16.msra.mxu0 0
  %7372 = vmatpush.bf16.msra.mxu0 0
  %7373 = vmatpush.bf16.msra.mxu0 0
  %7374 = vmatpush.bf16.msra.mxu0 0
  %7375 = vmatpush.bf16.msra.mxu0 0
  %7376 = vmatpush.bf16.msra.mxu0 %v7235
  %7377 = vmatpush.bf16.msra.mxu0 %v7224
  %7378 = vmatmul.bf16.gmra.mxu0 %v381
  %v7379 = vpop.f32.mrf.mxu0
  %v7380 = vadd.f32 0.0, %v7379
  %v7381 = vpop.f32.mrf.mxu0
  %v7382 = vadd.f32 0.0, %v7381
  %7383 = vmatmul.bf16.gmra.mxu0 %v384
  %v7384 = vpop.f32.mrf.mxu0
  %v7385 = vadd.f32 0.0, %v7384
  %v7386 = vpop.f32.mrf.mxu0
  %7387 = vdwg.mxu0
  %7388 = vmatpush.bf16.msra.mxu0 0
  %7389 = vmatpush.bf16.msra.mxu0 0
  %7390 = vmatpush.bf16.msra.mxu0 0
  %7391 = vmatpush.bf16.msra.mxu0 0
  %7392 = vmatpush.bf16.msra.mxu0 0
  %7393 = vmatpush.bf16.msra.mxu0 0
  %7394 = vmatpush.bf16.msra.mxu0 %v7236
  %7395 = vmatpush.bf16.msra.mxu0 %v7225
  %7396 = vmatmul.bf16.gmra.mxu0 %v381
  %v7397 = vpop.f32.mrf.mxu0
  %v7398 = vadd.f32 0.0, %v7397
  %v7399 = vpop.f32.mrf.mxu0
  %v7400 = vadd.f32 0.0, %v7399
  %7401 = vmatmul.bf16.gmra.mxu0 %v384
  %v7402 = vpop.f32.mrf.mxu0
  %v7403 = vadd.f32 0.0, %v7402
  %v7404 = vpop.f32.mrf.mxu0
  %7405 = vdwg.mxu0
  %7406 = vmatpush.bf16.msra.mxu0 0
  %7407 = vmatpush.bf16.msra.mxu0 0
  %7408 = vmatpush.bf16.msra.mxu0 0
  %7409 = vmatpush.bf16.msra.mxu0 0
  %7410 = vmatpush.bf16.msra.mxu0 0
  %7411 = vmatpush.bf16.msra.mxu0 0
  %7412 = vmatpush.bf16.msra.mxu0 %v7237
  %7413 = vmatpush.bf16.msra.mxu0 %v7226
  %7414 = vmatmul.bf16.gmra.mxu0 %v381
  %v7415 = vpop.f32.mrf.mxu0
  %v7416 = vadd.f32 0.0, %v7415
  %v7417 = vpop.f32.mrf.mxu0
  %v7418 = vadd.f32 0.0, %v7417
  %7419 = vmatmul.bf16.gmra.mxu0 %v384
  %v7420 = vpop.f32.mrf.mxu0
  %v7421 = vadd.f32 0.0, %v7420
  %v7422 = vpop.f32.mrf.mxu0
  %7423 = vdwg.mxu0
  %7424 = vmatpush.bf16.msra.mxu0 0
  %7425 = vmatpush.bf16.msra.mxu0 0
  %7426 = vmatpush.bf16.msra.mxu0 0
  %7427 = vmatpush.bf16.msra.mxu0 0
  %7428 = vmatpush.bf16.msra.mxu0 0
  %7429 = vmatpush.bf16.msra.mxu0 0
  %7430 = vmatpush.bf16.msra.mxu0 %v7238
  %7431 = vmatpush.bf16.msra.mxu0 %v7227
  %7432 = vmatmul.bf16.gmra.mxu0 %v381
  %v7433 = vpop.f32.mrf.mxu0
  %v7434 = vadd.f32 0.0, %v7433
  %v7435 = vpop.f32.mrf.mxu0
  %v7436 = vadd.f32 0.0, %v7435
  %7437 = vmatmul.bf16.gmra.mxu0 %v384
  %v7438 = vpop.f32.mrf.mxu0
  %v7439 = vadd.f32 0.0, %v7438
  %v7440 = vpop.f32.mrf.mxu0
  %7441 = vdwg.mxu0
  %7442 = vmatpush.bf16.msra.mxu0 0
  %7443 = vmatpush.bf16.msra.mxu0 0
  %7444 = vmatpush.bf16.msra.mxu0 0
  %7445 = vmatpush.bf16.msra.mxu0 0
  %7446 = vmatpush.bf16.msra.mxu0 0
  %7447 = vmatpush.bf16.msra.mxu0 0
  %7448 = vmatpush.bf16.msra.mxu0 %v7239
  %7449 = vmatpush.bf16.msra.mxu0 %v7228
  %7450 = vmatmul.bf16.gmra.mxu0 %v381
  %v7451 = vpop.f32.mrf.mxu0
  %v7452 = vadd.f32 0.0, %v7451
  %v7453 = vpop.f32.mrf.mxu0
  %v7454 = vadd.f32 0.0, %v7453
  %7455 = vmatmul.bf16.gmra.mxu0 %v384
  %v7456 = vpop.f32.mrf.mxu0
  %v7457 = vadd.f32 0.0, %v7456
  %v7458 = vpop.f32.mrf.mxu0
  %7459 = vdwg.mxu0
  %v7460 = vmax.f32 %v7272, 0.0
  %v7461 = vmax.f32 %v7290, 0.0
  %v7462 = vmax.f32 %v7308, 0.0
  %v7463 = vmax.f32 %v7326, 0.0
  %v7464 = vmax.f32 %v7344, 0.0
  %v7465 = vmax.f32 %v7362, 0.0
  %v7466 = vmax.f32 %v7380, 0.0
  %v7467 = vmax.f32 %v7398, 0.0
  %v7468 = vmax.f32 %v7416, 0.0
  %v7469 = vmax.f32 %v7434, 0.0
  %v7470 = vmax.f32 %v7452, 0.0
  %v7471 = vmax.f32 %v7274, 0.0
  %v7472 = vmax.f32 %v7292, 0.0
  %v7473 = vmax.f32 %v7310, 0.0
  %v7474 = vmax.f32 %v7328, 0.0
  %v7475 = vmax.f32 %v7346, 0.0
  %v7476 = vmax.f32 %v7364, 0.0
  %v7477 = vmax.f32 %v7382, 0.0
  %v7478 = vmax.f32 %v7400, 0.0
  %v7479 = vmax.f32 %v7418, 0.0
  %v7480 = vmax.f32 %v7436, 0.0
  %v7481 = vmax.f32 %v7454, 0.0
  %v7482 = vmax.f32 %v7277, 0.0
  %v7483 = vmax.f32 %v7295, 0.0
  %v7484 = vmax.f32 %v7313, 0.0
  %v7485 = vmax.f32 %v7331, 0.0
  %v7486 = vmax.f32 %v7349, 0.0
  %v7487 = vmax.f32 %v7367, 0.0
  %v7488 = vmax.f32 %v7385, 0.0
  %v7489 = vmax.f32 %v7403, 0.0
  %v7490 = vmax.f32 %v7421, 0.0
  %v7491 = vmax.f32 %v7439, 0.0
  %v7492 = vmax.f32 %v7457, 0.0
  %v7493 = vpack.c.bf16 %v7471, %v7460
  %v7494 = vpack.c.bf16 %v7472, %v7461
  %v7495 = vpack.c.bf16 %v7473, %v7462
  %v7496 = vpack.c.bf16 %v7474, %v7463
  %v7497 = vpack.c.bf16 %v7475, %v7464
  %v7498 = vpack.c.bf16 %v7476, %v7465
  %v7499 = vpack.c.bf16 %v7477, %v7466
  %v7500 = vpack.c.bf16 %v7478, %v7467
  %v7501 = vpack.c.bf16 %v7479, %v7468
  %v7502 = vpack.c.bf16 %v7480, %v7469
  %v7503 = vpack.c.bf16 %v7481, %v7470
  %v7504 = vpack.c.bf16 %v7482, %v7482
  %v7505 = vpack.c.bf16 %v7483, %v7483
  %v7506 = vpack.c.bf16 %v7484, %v7484
  %v7507 = vpack.c.bf16 %v7485, %v7485
  %v7508 = vpack.c.bf16 %v7486, %v7486
  %v7509 = vpack.c.bf16 %v7487, %v7487
  %v7510 = vpack.c.bf16 %v7488, %v7488
  %v7511 = vpack.c.bf16 %v7489, %v7489
  %v7512 = vpack.c.bf16 %v7490, %v7490
  %v7513 = vpack.c.bf16 %v7491, %v7491
  %v7514 = vpack.c.bf16 %v7492, %v7492
  %7515 = vmatpush.bf16.msra.mxu0 %v1181
  %7516 = vmatpush.bf16.msra.mxu0 %v1179
  %7517 = vmatpush.bf16.msra.mxu0 %v1177
  %7518 = vmatpush.bf16.msra.mxu0 %v1175
  %7519 = vmatpush.bf16.msra.mxu0 %v1173
  %7520 = vmatpush.bf16.msra.mxu0 %v1171
  %7521 = vmatpush.bf16.msra.mxu0 %v1169
  %7522 = vmatpush.bf16.msra.mxu0 %v1167
  %7523 = vmatmul.bf16.gmra.mxu0 %v7493
  %v7524 = vpop.f32.mrf.mxu0
  %v7525 = vadd.f32 0.0, %v7524
  %v7526 = vpop.f32.mrf.mxu0
  %v7527 = vadd.f32 0.0, %v7526
  %7528 = vmatmul.bf16.gmra.mxu0 %v7504
  %v7529 = vpop.f32.mrf.mxu0
  %v7530 = vadd.f32 0.0, %v7529
  %v7531 = vpop.f32.mrf.mxu0
  %7532 = vdwg.mxu0
  %7533 = vmatpush.bf16.msra.mxu0 %v1197
  %7534 = vmatpush.bf16.msra.mxu0 %v1195
  %7535 = vmatpush.bf16.msra.mxu0 %v1193
  %7536 = vmatpush.bf16.msra.mxu0 %v1191
  %7537 = vmatpush.bf16.msra.mxu0 %v1189
  %7538 = vmatpush.bf16.msra.mxu0 %v1187
  %7539 = vmatpush.bf16.msra.mxu0 %v1185
  %7540 = vmatpush.bf16.msra.mxu0 %v1183
  %7541 = vmatmul.bf16.gmra.mxu0 %v7494
  %v7542 = vpop.f32.mrf.mxu0
  %v7543 = vadd.f32 %v7525, %v7542
  %v7544 = vpop.f32.mrf.mxu0
  %v7545 = vadd.f32 %v7527, %v7544
  %7546 = vmatmul.bf16.gmra.mxu0 %v7505
  %v7547 = vpop.f32.mrf.mxu0
  %v7548 = vadd.f32 %v7530, %v7547
  %v7549 = vpop.f32.mrf.mxu0
  %7550 = vdwg.mxu0
  %7551 = vmatpush.bf16.msra.mxu0 %v1213
  %7552 = vmatpush.bf16.msra.mxu0 %v1211
  %7553 = vmatpush.bf16.msra.mxu0 %v1209
  %7554 = vmatpush.bf16.msra.mxu0 %v1207
  %7555 = vmatpush.bf16.msra.mxu0 %v1205
  %7556 = vmatpush.bf16.msra.mxu0 %v1203
  %7557 = vmatpush.bf16.msra.mxu0 %v1201
  %7558 = vmatpush.bf16.msra.mxu0 %v1199
  %7559 = vmatmul.bf16.gmra.mxu0 %v7495
  %v7560 = vpop.f32.mrf.mxu0
  %v7561 = vadd.f32 %v7543, %v7560
  %v7562 = vpop.f32.mrf.mxu0
  %v7563 = vadd.f32 %v7545, %v7562
  %7564 = vmatmul.bf16.gmra.mxu0 %v7506
  %v7565 = vpop.f32.mrf.mxu0
  %v7566 = vadd.f32 %v7548, %v7565
  %v7567 = vpop.f32.mrf.mxu0
  %7568 = vdwg.mxu0
  %7569 = vmatpush.bf16.msra.mxu0 %v1229
  %7570 = vmatpush.bf16.msra.mxu0 %v1227
  %7571 = vmatpush.bf16.msra.mxu0 %v1225
  %7572 = vmatpush.bf16.msra.mxu0 %v1223
  %7573 = vmatpush.bf16.msra.mxu0 %v1221
  %7574 = vmatpush.bf16.msra.mxu0 %v1219
  %7575 = vmatpush.bf16.msra.mxu0 %v1217
  %7576 = vmatpush.bf16.msra.mxu0 %v1215
  %7577 = vmatmul.bf16.gmra.mxu0 %v7496
  %v7578 = vpop.f32.mrf.mxu0
  %v7579 = vadd.f32 %v7561, %v7578
  %v7580 = vpop.f32.mrf.mxu0
  %v7581 = vadd.f32 %v7563, %v7580
  %7582 = vmatmul.bf16.gmra.mxu0 %v7507
  %v7583 = vpop.f32.mrf.mxu0
  %v7584 = vadd.f32 %v7566, %v7583
  %v7585 = vpop.f32.mrf.mxu0
  %7586 = vdwg.mxu0
  %7587 = vmatpush.bf16.msra.mxu0 %v1245
  %7588 = vmatpush.bf16.msra.mxu0 %v1243
  %7589 = vmatpush.bf16.msra.mxu0 %v1241
  %7590 = vmatpush.bf16.msra.mxu0 %v1239
  %7591 = vmatpush.bf16.msra.mxu0 %v1237
  %7592 = vmatpush.bf16.msra.mxu0 %v1235
  %7593 = vmatpush.bf16.msra.mxu0 %v1233
  %7594 = vmatpush.bf16.msra.mxu0 %v1231
  %7595 = vmatmul.bf16.gmra.mxu0 %v7497
  %v7596 = vpop.f32.mrf.mxu0
  %v7597 = vadd.f32 %v7579, %v7596
  %v7598 = vpop.f32.mrf.mxu0
  %v7599 = vadd.f32 %v7581, %v7598
  %7600 = vmatmul.bf16.gmra.mxu0 %v7508
  %v7601 = vpop.f32.mrf.mxu0
  %v7602 = vadd.f32 %v7584, %v7601
  %v7603 = vpop.f32.mrf.mxu0
  %7604 = vdwg.mxu0
  %7605 = vmatpush.bf16.msra.mxu0 %v1261
  %7606 = vmatpush.bf16.msra.mxu0 %v1259
  %7607 = vmatpush.bf16.msra.mxu0 %v1257
  %7608 = vmatpush.bf16.msra.mxu0 %v1255
  %7609 = vmatpush.bf16.msra.mxu0 %v1253
  %7610 = vmatpush.bf16.msra.mxu0 %v1251
  %7611 = vmatpush.bf16.msra.mxu0 %v1249
  %7612 = vmatpush.bf16.msra.mxu0 %v1247
  %7613 = vmatmul.bf16.gmra.mxu0 %v7498
  %v7614 = vpop.f32.mrf.mxu0
  %v7615 = vadd.f32 %v7597, %v7614
  %v7616 = vpop.f32.mrf.mxu0
  %v7617 = vadd.f32 %v7599, %v7616
  %7618 = vmatmul.bf16.gmra.mxu0 %v7509
  %v7619 = vpop.f32.mrf.mxu0
  %v7620 = vadd.f32 %v7602, %v7619
  %v7621 = vpop.f32.mrf.mxu0
  %7622 = vdwg.mxu0
  %7623 = vmatpush.bf16.msra.mxu0 %v1277
  %7624 = vmatpush.bf16.msra.mxu0 %v1275
  %7625 = vmatpush.bf16.msra.mxu0 %v1273
  %7626 = vmatpush.bf16.msra.mxu0 %v1271
  %7627 = vmatpush.bf16.msra.mxu0 %v1269
  %7628 = vmatpush.bf16.msra.mxu0 %v1267
  %7629 = vmatpush.bf16.msra.mxu0 %v1265
  %7630 = vmatpush.bf16.msra.mxu0 %v1263
  %7631 = vmatmul.bf16.gmra.mxu0 %v7499
  %v7632 = vpop.f32.mrf.mxu0
  %v7633 = vadd.f32 %v7615, %v7632
  %v7634 = vpop.f32.mrf.mxu0
  %v7635 = vadd.f32 %v7617, %v7634
  %7636 = vmatmul.bf16.gmra.mxu0 %v7510
  %v7637 = vpop.f32.mrf.mxu0
  %v7638 = vadd.f32 %v7620, %v7637
  %v7639 = vpop.f32.mrf.mxu0
  %7640 = vdwg.mxu0
  %7641 = vmatpush.bf16.msra.mxu0 %v1293
  %7642 = vmatpush.bf16.msra.mxu0 %v1291
  %7643 = vmatpush.bf16.msra.mxu0 %v1289
  %7644 = vmatpush.bf16.msra.mxu0 %v1287
  %7645 = vmatpush.bf16.msra.mxu0 %v1285
  %7646 = vmatpush.bf16.msra.mxu0 %v1283
  %7647 = vmatpush.bf16.msra.mxu0 %v1281
  %7648 = vmatpush.bf16.msra.mxu0 %v1279
  %7649 = vmatmul.bf16.gmra.mxu0 %v7500
  %v7650 = vpop.f32.mrf.mxu0
  %v7651 = vadd.f32 %v7633, %v7650
  %v7652 = vpop.f32.mrf.mxu0
  %v7653 = vadd.f32 %v7635, %v7652
  %7654 = vmatmul.bf16.gmra.mxu0 %v7511
  %v7655 = vpop.f32.mrf.mxu0
  %v7656 = vadd.f32 %v7638, %v7655
  %v7657 = vpop.f32.mrf.mxu0
  %7658 = vdwg.mxu0
  %7659 = vmatpush.bf16.msra.mxu0 %v1309
  %7660 = vmatpush.bf16.msra.mxu0 %v1307
  %7661 = vmatpush.bf16.msra.mxu0 %v1305
  %7662 = vmatpush.bf16.msra.mxu0 %v1303
  %7663 = vmatpush.bf16.msra.mxu0 %v1301
  %7664 = vmatpush.bf16.msra.mxu0 %v1299
  %7665 = vmatpush.bf16.msra.mxu0 %v1297
  %7666 = vmatpush.bf16.msra.mxu0 %v1295
  %7667 = vmatmul.bf16.gmra.mxu0 %v7501
  %v7668 = vpop.f32.mrf.mxu0
  %v7669 = vadd.f32 %v7651, %v7668
  %v7670 = vpop.f32.mrf.mxu0
  %v7671 = vadd.f32 %v7653, %v7670
  %7672 = vmatmul.bf16.gmra.mxu0 %v7512
  %v7673 = vpop.f32.mrf.mxu0
  %v7674 = vadd.f32 %v7656, %v7673
  %v7675 = vpop.f32.mrf.mxu0
  %7676 = vdwg.mxu0
  %7677 = vmatpush.bf16.msra.mxu0 %v1325
  %7678 = vmatpush.bf16.msra.mxu0 %v1323
  %7679 = vmatpush.bf16.msra.mxu0 %v1321
  %7680 = vmatpush.bf16.msra.mxu0 %v1319
  %7681 = vmatpush.bf16.msra.mxu0 %v1317
  %7682 = vmatpush.bf16.msra.mxu0 %v1315
  %7683 = vmatpush.bf16.msra.mxu0 %v1313
  %7684 = vmatpush.bf16.msra.mxu0 %v1311
  %7685 = vmatmul.bf16.gmra.mxu0 %v7502
  %v7686 = vpop.f32.mrf.mxu0
  %v7687 = vadd.f32 %v7669, %v7686
  %v7688 = vpop.f32.mrf.mxu0
  %v7689 = vadd.f32 %v7671, %v7688
  %7690 = vmatmul.bf16.gmra.mxu0 %v7513
  %v7691 = vpop.f32.mrf.mxu0
  %v7692 = vadd.f32 %v7674, %v7691
  %v7693 = vpop.f32.mrf.mxu0
  %7694 = vdwg.mxu0
  %7695 = vmatpush.bf16.msra.mxu0 %v1341
  %7696 = vmatpush.bf16.msra.mxu0 %v1339
  %7697 = vmatpush.bf16.msra.mxu0 %v1337
  %7698 = vmatpush.bf16.msra.mxu0 %v1335
  %7699 = vmatpush.bf16.msra.mxu0 %v1333
  %7700 = vmatpush.bf16.msra.mxu0 %v1331
  %7701 = vmatpush.bf16.msra.mxu0 %v1329
  %7702 = vmatpush.bf16.msra.mxu0 %v1327
  %7703 = vmatmul.bf16.gmra.mxu0 %v7503
  %v7704 = vpop.f32.mrf.mxu0
  %v7705 = vadd.f32 %v7687, %v7704
  %v7706 = vpop.f32.mrf.mxu0
  %v7707 = vadd.f32 %v7689, %v7706
  %7708 = vmatmul.bf16.gmra.mxu0 %v7514
  %v7709 = vpop.f32.mrf.mxu0
  %v7710 = vadd.f32 %v7692, %v7709
  %v7711 = vpop.f32.mrf.mxu0
  %7712 = vdwg.mxu0
  %7713 = vmatpush.bf16.msra.mxu0 %v1182
  %7714 = vmatpush.bf16.msra.mxu0 %v1180
  %7715 = vmatpush.bf16.msra.mxu0 %v1178
  %7716 = vmatpush.bf16.msra.mxu0 %v1176
  %7717 = vmatpush.bf16.msra.mxu0 %v1174
  %7718 = vmatpush.bf16.msra.mxu0 %v1172
  %7719 = vmatpush.bf16.msra.mxu0 %v1170
  %7720 = vmatpush.bf16.msra.mxu0 %v1168
  %7721 = vmatmul.bf16.gmra.mxu0 %v7493
  %v7722 = vpop.f32.mrf.mxu0
  %v7723 = vadd.f32 0.0, %v7722
  %v7724 = vpop.f32.mrf.mxu0
  %v7725 = vadd.f32 0.0, %v7724
  %7726 = vmatmul.bf16.gmra.mxu0 %v7504
  %v7727 = vpop.f32.mrf.mxu0
  %v7728 = vadd.f32 0.0, %v7727
  %v7729 = vpop.f32.mrf.mxu0
  %7730 = vdwg.mxu0
  %7731 = vmatpush.bf16.msra.mxu0 %v1198
  %7732 = vmatpush.bf16.msra.mxu0 %v1196
  %7733 = vmatpush.bf16.msra.mxu0 %v1194
  %7734 = vmatpush.bf16.msra.mxu0 %v1192
  %7735 = vmatpush.bf16.msra.mxu0 %v1190
  %7736 = vmatpush.bf16.msra.mxu0 %v1188
  %7737 = vmatpush.bf16.msra.mxu0 %v1186
  %7738 = vmatpush.bf16.msra.mxu0 %v1184
  %7739 = vmatmul.bf16.gmra.mxu0 %v7494
  %v7740 = vpop.f32.mrf.mxu0
  %v7741 = vadd.f32 %v7723, %v7740
  %v7742 = vpop.f32.mrf.mxu0
  %v7743 = vadd.f32 %v7725, %v7742
  %7744 = vmatmul.bf16.gmra.mxu0 %v7505
  %v7745 = vpop.f32.mrf.mxu0
  %v7746 = vadd.f32 %v7728, %v7745
  %v7747 = vpop.f32.mrf.mxu0
  %7748 = vdwg.mxu0
  %7749 = vmatpush.bf16.msra.mxu0 %v1214
  %7750 = vmatpush.bf16.msra.mxu0 %v1212
  %7751 = vmatpush.bf16.msra.mxu0 %v1210
  %7752 = vmatpush.bf16.msra.mxu0 %v1208
  %7753 = vmatpush.bf16.msra.mxu0 %v1206
  %7754 = vmatpush.bf16.msra.mxu0 %v1204
  %7755 = vmatpush.bf16.msra.mxu0 %v1202
  %7756 = vmatpush.bf16.msra.mxu0 %v1200
  %7757 = vmatmul.bf16.gmra.mxu0 %v7495
  %v7758 = vpop.f32.mrf.mxu0
  %v7759 = vadd.f32 %v7741, %v7758
  %v7760 = vpop.f32.mrf.mxu0
  %v7761 = vadd.f32 %v7743, %v7760
  %7762 = vmatmul.bf16.gmra.mxu0 %v7506
  %v7763 = vpop.f32.mrf.mxu0
  %v7764 = vadd.f32 %v7746, %v7763
  %v7765 = vpop.f32.mrf.mxu0
  %7766 = vdwg.mxu0
  %7767 = vmatpush.bf16.msra.mxu0 %v1230
  %7768 = vmatpush.bf16.msra.mxu0 %v1228
  %7769 = vmatpush.bf16.msra.mxu0 %v1226
  %7770 = vmatpush.bf16.msra.mxu0 %v1224
  %7771 = vmatpush.bf16.msra.mxu0 %v1222
  %7772 = vmatpush.bf16.msra.mxu0 %v1220
  %7773 = vmatpush.bf16.msra.mxu0 %v1218
  %7774 = vmatpush.bf16.msra.mxu0 %v1216
  %7775 = vmatmul.bf16.gmra.mxu0 %v7496
  %v7776 = vpop.f32.mrf.mxu0
  %v7777 = vadd.f32 %v7759, %v7776
  %v7778 = vpop.f32.mrf.mxu0
  %v7779 = vadd.f32 %v7761, %v7778
  %7780 = vmatmul.bf16.gmra.mxu0 %v7507
  %v7781 = vpop.f32.mrf.mxu0
  %v7782 = vadd.f32 %v7764, %v7781
  %v7783 = vpop.f32.mrf.mxu0
  %7784 = vdwg.mxu0
  %7785 = vmatpush.bf16.msra.mxu0 %v1246
  %7786 = vmatpush.bf16.msra.mxu0 %v1244
  %7787 = vmatpush.bf16.msra.mxu0 %v1242
  %7788 = vmatpush.bf16.msra.mxu0 %v1240
  %7789 = vmatpush.bf16.msra.mxu0 %v1238
  %7790 = vmatpush.bf16.msra.mxu0 %v1236
  %7791 = vmatpush.bf16.msra.mxu0 %v1234
  %7792 = vmatpush.bf16.msra.mxu0 %v1232
  %7793 = vmatmul.bf16.gmra.mxu0 %v7497
  %v7794 = vpop.f32.mrf.mxu0
  %v7795 = vadd.f32 %v7777, %v7794
  %v7796 = vpop.f32.mrf.mxu0
  %v7797 = vadd.f32 %v7779, %v7796
  %7798 = vmatmul.bf16.gmra.mxu0 %v7508
  %v7799 = vpop.f32.mrf.mxu0
  %v7800 = vadd.f32 %v7782, %v7799
  %v7801 = vpop.f32.mrf.mxu0
  %7802 = vdwg.mxu0
  %7803 = vmatpush.bf16.msra.mxu0 %v1262
  %7804 = vmatpush.bf16.msra.mxu0 %v1260
  %7805 = vmatpush.bf16.msra.mxu0 %v1258
  %7806 = vmatpush.bf16.msra.mxu0 %v1256
  %7807 = vmatpush.bf16.msra.mxu0 %v1254
  %7808 = vmatpush.bf16.msra.mxu0 %v1252
  %7809 = vmatpush.bf16.msra.mxu0 %v1250
  %7810 = vmatpush.bf16.msra.mxu0 %v1248
  %7811 = vmatmul.bf16.gmra.mxu0 %v7498
  %v7812 = vpop.f32.mrf.mxu0
  %v7813 = vadd.f32 %v7795, %v7812
  %v7814 = vpop.f32.mrf.mxu0
  %v7815 = vadd.f32 %v7797, %v7814
  %7816 = vmatmul.bf16.gmra.mxu0 %v7509
  %v7817 = vpop.f32.mrf.mxu0
  %v7818 = vadd.f32 %v7800, %v7817
  %v7819 = vpop.f32.mrf.mxu0
  %7820 = vdwg.mxu0
  %7821 = vmatpush.bf16.msra.mxu0 %v1278
  %7822 = vmatpush.bf16.msra.mxu0 %v1276
  %7823 = vmatpush.bf16.msra.mxu0 %v1274
  %7824 = vmatpush.bf16.msra.mxu0 %v1272
  %7825 = vmatpush.bf16.msra.mxu0 %v1270
  %7826 = vmatpush.bf16.msra.mxu0 %v1268
  %7827 = vmatpush.bf16.msra.mxu0 %v1266
  %7828 = vmatpush.bf16.msra.mxu0 %v1264
  %7829 = vmatmul.bf16.gmra.mxu0 %v7499
  %v7830 = vpop.f32.mrf.mxu0
  %v7831 = vadd.f32 %v7813, %v7830
  %v7832 = vpop.f32.mrf.mxu0
  %v7833 = vadd.f32 %v7815, %v7832
  %7834 = vmatmul.bf16.gmra.mxu0 %v7510
  %v7835 = vpop.f32.mrf.mxu0
  %v7836 = vadd.f32 %v7818, %v7835
  %v7837 = vpop.f32.mrf.mxu0
  %7838 = vdwg.mxu0
  %7839 = vmatpush.bf16.msra.mxu0 %v1294
  %7840 = vmatpush.bf16.msra.mxu0 %v1292
  %7841 = vmatpush.bf16.msra.mxu0 %v1290
  %7842 = vmatpush.bf16.msra.mxu0 %v1288
  %7843 = vmatpush.bf16.msra.mxu0 %v1286
  %7844 = vmatpush.bf16.msra.mxu0 %v1284
  %7845 = vmatpush.bf16.msra.mxu0 %v1282
  %7846 = vmatpush.bf16.msra.mxu0 %v1280
  %7847 = vmatmul.bf16.gmra.mxu0 %v7500
  %v7848 = vpop.f32.mrf.mxu0
  %v7849 = vadd.f32 %v7831, %v7848
  %v7850 = vpop.f32.mrf.mxu0
  %v7851 = vadd.f32 %v7833, %v7850
  %7852 = vmatmul.bf16.gmra.mxu0 %v7511
  %v7853 = vpop.f32.mrf.mxu0
  %v7854 = vadd.f32 %v7836, %v7853
  %v7855 = vpop.f32.mrf.mxu0
  %7856 = vdwg.mxu0
  %7857 = vmatpush.bf16.msra.mxu0 %v1310
  %7858 = vmatpush.bf16.msra.mxu0 %v1308
  %7859 = vmatpush.bf16.msra.mxu0 %v1306
  %7860 = vmatpush.bf16.msra.mxu0 %v1304
  %7861 = vmatpush.bf16.msra.mxu0 %v1302
  %7862 = vmatpush.bf16.msra.mxu0 %v1300
  %7863 = vmatpush.bf16.msra.mxu0 %v1298
  %7864 = vmatpush.bf16.msra.mxu0 %v1296
  %7865 = vmatmul.bf16.gmra.mxu0 %v7501
  %v7866 = vpop.f32.mrf.mxu0
  %v7867 = vadd.f32 %v7849, %v7866
  %v7868 = vpop.f32.mrf.mxu0
  %v7869 = vadd.f32 %v7851, %v7868
  %7870 = vmatmul.bf16.gmra.mxu0 %v7512
  %v7871 = vpop.f32.mrf.mxu0
  %v7872 = vadd.f32 %v7854, %v7871
  %v7873 = vpop.f32.mrf.mxu0
  %7874 = vdwg.mxu0
  %7875 = vmatpush.bf16.msra.mxu0 %v1326
  %7876 = vmatpush.bf16.msra.mxu0 %v1324
  %7877 = vmatpush.bf16.msra.mxu0 %v1322
  %7878 = vmatpush.bf16.msra.mxu0 %v1320
  %7879 = vmatpush.bf16.msra.mxu0 %v1318
  %7880 = vmatpush.bf16.msra.mxu0 %v1316
  %7881 = vmatpush.bf16.msra.mxu0 %v1314
  %7882 = vmatpush.bf16.msra.mxu0 %v1312
  %7883 = vmatmul.bf16.gmra.mxu0 %v7502
  %v7884 = vpop.f32.mrf.mxu0
  %v7885 = vadd.f32 %v7867, %v7884
  %v7886 = vpop.f32.mrf.mxu0
  %v7887 = vadd.f32 %v7869, %v7886
  %7888 = vmatmul.bf16.gmra.mxu0 %v7513
  %v7889 = vpop.f32.mrf.mxu0
  %v7890 = vadd.f32 %v7872, %v7889
  %v7891 = vpop.f32.mrf.mxu0
  %7892 = vdwg.mxu0
  %7893 = vmatpush.bf16.msra.mxu0 %v1342
  %7894 = vmatpush.bf16.msra.mxu0 %v1340
  %7895 = vmatpush.bf16.msra.mxu0 %v1338
  %7896 = vmatpush.bf16.msra.mxu0 %v1336
  %7897 = vmatpush.bf16.msra.mxu0 %v1334
  %7898 = vmatpush.bf16.msra.mxu0 %v1332
  %7899 = vmatpush.bf16.msra.mxu0 %v1330
  %7900 = vmatpush.bf16.msra.mxu0 %v1328
  %7901 = vmatmul.bf16.gmra.mxu0 %v7503
  %v7902 = vpop.f32.mrf.mxu0
  %v7903 = vadd.f32 %v7885, %v7902
  %v7904 = vpop.f32.mrf.mxu0
  %v7905 = vadd.f32 %v7887, %v7904
  %7906 = vmatmul.bf16.gmra.mxu0 %v7514
  %v7907 = vpop.f32.mrf.mxu0
  %v7908 = vadd.f32 %v7890, %v7907
  %v7909 = vpop.f32.mrf.mxu0
  %7910 = vdwg.mxu0
  %v7911 = vmul.f32 %v7705, %v203
  %v7912 = vmul.f32 %v7903, %v204
  %v7913 = vmul.f32 %v7707, %v205
  %v7914 = vmul.f32 %v7905, %v206
  %v7915 = vmul.f32 %v7710, %v207
  %v7916 = vmul.f32 %v7908, %v208
  %v7917 = vadd.f32 %v7911, %v7913
  %v7918 = vsel %vm1922, %v7915, 0.0
  %v7919 = vadd.f32 %v7917, %v7918
  %v7920 = vrot.slane %v7919, 4
  %v7921 = vadd.f32 %v7919, %v7920
  %v7922 = vrot.slane %v7921, 2
  %v7923 = vadd.f32 %v7921, %v7922
  %v7924 = vrot.slane %v7923, 1
  %v7925 = vadd.f32 %v7923, %v7924
  %v7926 = vsel %vm1931, %v7912, 0.0
  %v7927 = vsel %vm1931, %v7914, 0.0
  %v7928 = vadd.f32 %v7926, %v7927
  %v7929 = vsel %vm1935, %v7916, 0.0
  %v7930 = vadd.f32 %v7928, %v7929
  %v7931 = vrot.slane %v7930, 4
  %v7932 = vadd.f32 %v7930, %v7931
  %v7933 = vrot.slane %v7932, 2
  %v7934 = vadd.f32 %v7932, %v7933
  %v7935 = vrot.slane %v7934, 1
  %v7936 = vadd.f32 %v7934, %v7935
  %v7938 = vsel %vm1931, %v7936, 0
  %7940 = vmatpush.msra.mxu0 %v224
  %7941 = vmatpush.msra.mxu0 %v223
  %7942 = vmatpush.msra.mxu0 %v222
  %7943 = vmatpush.msra.mxu0 %v221
  %7944 = vmatpush.msra.mxu0 %v220
  %7945 = vmatpush.msra.mxu0 %v219
  %7946 = vmatpush.msra.mxu0 %v218
  %7947 = vmatpush.msra.mxu0 %v217
  %7948 = vmatpush.msra.mxu0 %v216
  %7949 = vmatpush.msra.mxu0 %v215
  %7950 = vmatpush.msra.mxu0 %v214
  %7951 = vmatpush.msra.mxu0 %v213
  %7952 = vmatpush.msra.mxu0 %v212
  %7953 = vmatpush.msra.mxu0 %v211
  %7954 = vmatpush.msra.mxu0 %v210
  %7955 = vmatpush.msra.mxu0 %v209
  %7956 = vmatmul.f32.gmra.mxu0 %v7925
  %v7957 = vpop.f32.mrf.mxu0
  %v7958 = vadd.f32 %v234, %v7957
  %7959 = vdwg.mxu0
  %7960 = vmatpush.msra.mxu0 0.0
  %7961 = vmatpush.msra.mxu0 0.0
  %7962 = vmatpush.msra.mxu0 0.0
  %7963 = vmatpush.msra.mxu0 0.0
  %7964 = vmatpush.msra.mxu0 0.0
  %7965 = vmatpush.msra.mxu0 0.0
  %7966 = vmatpush.msra.mxu0 0.0
  %7967 = vmatpush.msra.mxu0 %v233
  %7968 = vmatpush.msra.mxu0 %v232
  %7969 = vmatpush.msra.mxu0 %v231
  %7970 = vmatpush.msra.mxu0 %v230
  %7971 = vmatpush.msra.mxu0 %v229
  %7972 = vmatpush.msra.mxu0 %v228
  %7973 = vmatpush.msra.mxu0 %v227
  %7974 = vmatpush.msra.mxu0 %v226
  %7975 = vmatpush.msra.mxu0 %v225
  %7976 = vmatmul.f32.gmra.mxu0 %v7938
  %v7977 = vpop.f32.mrf.mxu0
  %v7978 = vadd.f32 %v7958, %v7977
  %7979 = vdwg.mxu0
  %7980 = vst.msk [vmem:[%s6 + $0x7] sm:$0x1] %vm1987, %v7978
  // Predicated region
  $region26: #{cifar_cnn_forward.1} parent=0 // pred_check
    _
  $region27: #{cifar_cnn_forward.1} parent=0 // pred_check_branch
    %7982 = sbr.rel (0) target = $region29
  $region28: #{cifar_cnn_forward.1} parent=0 // pred_region
    _
  $region29: #{cifar_cnn_forward.1} parent=0 // pred_fallthru
    _
  // Predicated region
  $region30: #{cifar_cnn_forward.1} parent=0 // pred_check
    _
  $region31: #{cifar_cnn_forward.1} parent=0 // pred_check_branch
    %7984 = sbr.rel (0) target = $region33
  $region32: #{cifar_cnn_forward.1} parent=0 // pred_region
    _
  $region33: #{cifar_cnn_forward.1} parent=0 // pred_fallthru
    _

</llo_original>
